<compile_context>
chip_gen: v5e
topology: v5e:2x2
jax: 0.10.0
libtpu: 0.0.40
codegen_flags: <defaults>
</compile_context>

<pallas_src>
import math

import jax
import jax.numpy as jnp
from jax.experimental import pallas as pl
from jax.experimental.pallas import tpu as pltpu


# ---------------------------------------------------------------------------
# Kernel
# ---------------------------------------------------------------------------
def model1_head_kernel(embs_ref, mask_ref,
                       w1_ref, b1_ref, w2_ref, b2_ref,
                       w3_ref, b3_ref, w4_ref, b4_ref,
                       out_ref, sum_acc, den_acc):
    s = pl.program_id(1)

    @pl.when(s == 0)
    def _():
        sum_acc[...] = jnp.zeros_like(sum_acc)
        den_acc[...] = jnp.zeros_like(den_acc)

    # embs streamed bf16 -> upcast, accumulate pooling in f32 (VPU/XLU path,
    # no degenerate MXU contraction).
    embs = embs_ref[...].astype(jnp.float32)                    # (tb, tS, H)
    mask = mask_ref[...]                                        # (tb, tS) f32

    sum_acc[...] += jnp.sum(embs * mask[:, :, None], axis=1)    # (tb, H)
    den_acc[...] += jnp.sum(mask, axis=1, keepdims=True)        # (tb, 1)

    @pl.when(s == pl.num_programs(1) - 1)
    def _():
        # out = embs.sum(dim=1) / a.sum(dim=1, keepdims=True)
        denom = jnp.maximum(den_acc[...], 1e-9)                 # guard all-zero rows
        pooled = sum_acc[...] / denom                           # exact division (f32)

        h = jnp.tanh(pooled)

        # dff: Linear(768,2048)->ReLU->(Dropout=id)->Linear(2048,512)->ReLU
        #      ->Linear(512,64)->ReLU->Linear(64,classes)->LogSoftmax(dim=1)
        # Weights are bf16 (halved HBM stream); MXU accumulates in f32.
        h = jnp.maximum(
            jnp.dot(h.astype(jnp.bfloat16), w1_ref[...],
                    preferred_element_type=jnp.float32) + b1_ref[...], 0.0)
        h = jnp.maximum(
            jnp.dot(h.astype(jnp.bfloat16), w2_ref[...],
                    preferred_element_type=jnp.float32) + b2_ref[...], 0.0)
        h = jnp.maximum(
            jnp.dot(h.astype(jnp.bfloat16), w3_ref[...],
                    preferred_element_type=jnp.float32) + b3_ref[...], 0.0)
        logits = jnp.dot(h.astype(jnp.bfloat16), w4_ref[...],
                         preferred_element_type=jnp.float32) + b4_ref[...]

        # Numerically safe LogSoftmax over dim=1 (classes), f32.
        m = jnp.max(logits, axis=1, keepdims=True)
        lse = m + jnp.log(jnp.sum(jnp.exp(logits - m), axis=1, keepdims=True))
        out_ref[...] = logits - lse


# ---------------------------------------------------------------------------
# Tiling / VMEM budget helpers
# ---------------------------------------------------------------------------
def _vmem_limit_bytes():
    """Generation-aware scoped VMEM limit (~3/4 of physical, capped at 100 MiB)."""
    cap = 64 << 20  # conservative fallback = v7x physical
    try:
        info = pltpu.get_tpu_info()
        cap = int(getattr(info, "vmem_capacity_bytes", cap) or cap)
    except Exception:
        pass
    return int(min(100 << 20, max(32 << 20, cap * 3 // 4)))


def _choose_tiles(B, S, H, act_budget):
    """Pick (tb, tS) so the double-buffered embs/mask stream fits act_budget."""
    def act_bytes(tb, ts):
        embs_tile = tb * ts * H * 2                 # bf16 per buffer
        mask_tile = tb * max(ts, 128) * 4           # f32 (lane-padded estimate)
        out_tile = tb * 128 * 4                     # lane-padded output block
        scratch = tb * H * 4 + tb * 128 * 4         # pooled sum + denom accumulators
        return 2 * (embs_tile + mask_tile) + 2 * out_tile + scratch

    # tS must be a multiple of 128 (mask lane dim) or equal S; must divide S
    # so no garbage from a partial S block leaks into real rows' accumulators.
    s_cands = [S] + [t for t in (2048, 1024, 512, 256, 128) if t < S and S % t == 0]
    # tb must be a multiple of 8 (sublane) or equal B; prefer 128-multiples (MXU M).
    if B <= 512:
        b_cands = [B]
    else:
        b_cands = [t for t in (1024, 512, 256, 128) if t <= B]

    for tb in b_cands:          # prefer large batch tile (MXU M utilization)
        for ts in s_cands:      # prefer full-S (no reduction axis) if it fits
            if act_bytes(tb, ts) <= act_budget:
                return tb, ts
    return b_cands[-1], s_cands[-1]


# ---------------------------------------------------------------------------
# Wrapper
# ---------------------------------------------------------------------------
def model1_forward(embs, mask, params):
    B, S, H = embs.shape
    classes = params["w4"].shape[1]

    vmem_limit = _vmem_limit_bytes()

    # Stationary weights/biases are single-buffered -> count once.
    w_bytes = 0
    for i in range(1, 5):
        for name in (f"w{i}", f"b{i}"):
            arr = params[name]
            w_bytes += math.prod(arr.shape) * arr.dtype.itemsize
    act_budget = max(1 << 20, vmem_limit - w_bytes - (6 << 20))  # margin for compiler scratch

    tb, ts = _choose_tiles(B, S, H, act_budget)
    n_b = pl.cdiv(B, tb)
    n_s = pl.cdiv(S, ts)

    # Only megacore-shard the batch axis when there are enough tiles; otherwise
    # sharding just duplicates the stationary weight DMA on each core.
    batch_sem = "parallel" if n_b > 2 else "arbitrary"

    stationary = lambda i, s: (0, 0)
    single_buf = pl.Buffered(1)   # constant index_map -> DMA'd once, stays resident

    in_specs = [
        pl.BlockSpec((tb, ts, H), lambda i, s: (i, s, 0)),   # embs  (bf16 stream)
        pl.BlockSpec((tb, ts), lambda i, s: (i, s)),         # mask  (f32 stream)
        pl.BlockSpec(params["w1"].shape, stationary, pipeline_mode=single_buf),
        pl.BlockSpec(params["b1"].shape, stationary, pipeline_mode=single_buf),
        pl.BlockSpec(params["w2"].shape, stationary, pipeline_mode=single_buf),
        pl.BlockSpec(params["b2"].shape, stationary, pipeline_mode=single_buf),
        pl.BlockSpec(params["w3"].shape, stationary, pipeline_mode=single_buf),
        pl.BlockSpec(params["b3"].shape, stationary, pipeline_mode=single_buf),
        pl.BlockSpec(params["w4"].shape, stationary, pipeline_mode=single_buf),
        pl.BlockSpec(params["b4"].shape, stationary, pipeline_mode=single_buf),
    ]
    out_specs = pl.BlockSpec((tb, classes), lambda i, s: (i, 0))

    grid_spec = pltpu.PrefetchScalarGridSpec(
        num_scalar_prefetch=0,
        grid=(n_b, n_s),
        in_specs=in_specs,
        out_specs=out_specs,
        scratch_shapes=[
            pltpu.VMEM((tb, H), jnp.float32),   # pooled masked-sum accumulator
            pltpu.VMEM((tb, 1), jnp.float32),   # mask-count accumulator
        ],
    )

    fn = pl.pallas_call(
        model1_head_kernel,
        out_shape=jax.ShapeDtypeStruct((B, classes), jnp.float32),
        grid_spec=grid_spec,
        compiler_params=pltpu.CompilerParams(
            dimension_semantics=(batch_sem, "arbitrary"),
            vmem_limit_bytes=vmem_limit,
        ),
    )
    return fn(embs.astype(jnp.bfloat16), mask.astype(jnp.float32),
              params["w1"], params["b1"],
              params["w2"], params["b2"],
              params["w3"], params["b3"],
              params["w4"], params["b4"])


# ---------------------------------------------------------------------------
# Params / reference / driver
# ---------------------------------------------------------------------------
def init_params(key, classes):
    dims = [(768, 2048), (2048, 512), (512, 64), (64, classes)]
    params = {}
    for i, (din, dout) in enumerate(dims, start=1):
        key, kw, kb = jax.random.split(key, 3)
        scale = 1.0 / jnp.sqrt(din)
        # weights streamed as bf16 (DMA-bound kernel), biases kept f32
        params[f"w{i}"] = jax.random.uniform(
            kw, (din, dout), jnp.float32, -scale, scale).astype(jnp.bfloat16)
        params[f"b{i}"] = jax.random.uniform(
            kb, (1, dout), jnp.float32, -scale, scale)
    return params


def model1_reference(embs, mask, params):
    """Pure-JAX f32 reference of the post-encoder head."""
    pooled = (embs * mask[:, :, None]).sum(axis=1) / jnp.maximum(
        mask.sum(axis=1, keepdims=True), 1e-9)
    h = jnp.tanh(pooled)
    h = jnp.maximum(h @ params["w1"].astype(jnp.float32) + params["b1"], 0.0)
    h = jnp.maximum(h @ params["w2"].astype(jnp.float32) + params["b2"], 0.0)
    h = jnp.maximum(h @ params["w3"].astype(jnp.float32) + params["b3"], 0.0)
    logits = h @ params["w4"].astype(jnp.float32) + params["b4"]
    return jax.nn.log_softmax(logits, axis=1)


if __name__ == "__main__":
    B, S, H, VOCAB, CLASSES = 2, 8, 768, 128, 8
    key = jax.random.PRNGKey(0)
    k_ids, k_emb, k_params = jax.random.split(key, 3)

    # deterministic inputs
    x = jax.random.randint(k_ids, (B, S), 0, VOCAB, dtype=jnp.int32)   # input_ids
    a = jnp.array([[1, 1, 1, 1, 1, 0, 0, 0],
                   [1, 1, 1, 1, 1, 1, 1, 0]], dtype=jnp.float32)       # attention_mask

    # simulated BERT last_hidden_state via deterministic embedding lookup (glue)
    emb_table = jax.random.normal(k_emb, (VOCAB, H), jnp.float32) * 0.02
    embs = emb_table[x]                                                # (B, S, H)

    params = init_params(k_params, CLASSES)

    out = model1_forward(embs, a, params)
    out = jax.block_until_ready(out)

    assert out.shape == (B, CLASSES)
    # sanity: log-softmax rows sum to ~1 in prob space, finite everywhere
    assert jnp.allclose(jnp.sum(jnp.exp(out), axis=1), 1.0, atol=1e-4)
    assert bool(jnp.all(jnp.isfinite(out)))
    # compare against pure-JAX f32 reference (bf16 streaming drift tolerated)
    ref = model1_reference(embs, a, params)
    assert jnp.allclose(out, ref, atol=5e-2, rtol=5e-2)
    print("KERNEL_OK")
</pallas_src>

<mosaic_0001>
module attributes {stable_mosaic.version = 11 : i64} {
  func.func @model1_head_kernel(%arg0: i32, %arg1: i32, %arg2: memref<2x8x768xbf16, #tpu.memory_space<vmem>>, %arg3: memref<2x8xf32, #tpu.memory_space<vmem>>, %arg4: memref<768x2048xbf16, #tpu.memory_space<vmem>>, %arg5: memref<1x2048xf32, #tpu.memory_space<vmem>>, %arg6: memref<2048x512xbf16, #tpu.memory_space<vmem>>, %arg7: memref<1x512xf32, #tpu.memory_space<vmem>>, %arg8: memref<512x64xbf16, #tpu.memory_space<vmem>>, %arg9: memref<1x64xf32, #tpu.memory_space<vmem>>, %arg10: memref<64x8xbf16, #tpu.memory_space<vmem>>, %arg11: memref<1x8xf32, #tpu.memory_space<vmem>>, %arg12: memref<2x8xf32, #tpu.memory_space<vmem>>, %arg13: memref<2x768xf32, #tpu.memory_space<vmem>>, %arg14: memref<2x1xf32, #tpu.memory_space<vmem>>) attributes {dimension_semantics = [#tpu.dimension_semantics<arbitrary>, #tpu.dimension_semantics<arbitrary>], iteration_bounds = array<i64: 1, 1>, scalar_prefetch = 0 : i64, scratch_operands = 2 : i64, tpu.core_type = #tpu.core_type<tc>, window_params = [{transform_indices = @transform_0, window_bounds = array<i64: 2, 8, 768>}, {transform_indices = @transform_1, window_bounds = array<i64: 2, 8>}, {pipeline_mode = #tpu.pipeline_mode<synchronous>, transform_indices = @transform_2, window_bounds = array<i64: 768, 2048>}, {pipeline_mode = #tpu.pipeline_mode<synchronous>, transform_indices = @transform_3, window_bounds = array<i64: 1, 2048>}, {pipeline_mode = #tpu.pipeline_mode<synchronous>, transform_indices = @transform_4, window_bounds = array<i64: 2048, 512>}, {pipeline_mode = #tpu.pipeline_mode<synchronous>, transform_indices = @transform_5, window_bounds = array<i64: 1, 512>}, {pipeline_mode = #tpu.pipeline_mode<synchronous>, transform_indices = @transform_6, window_bounds = array<i64: 512, 64>}, {pipeline_mode = #tpu.pipeline_mode<synchronous>, transform_indices = @transform_7, window_bounds = array<i64: 1, 64>}, {pipeline_mode = #tpu.pipeline_mode<synchronous>, transform_indices = @transform_8, window_bounds = array<i64: 64, 8>}, {pipeline_mode = #tpu.pipeline_mode<synchronous>, transform_indices = @transform_9, window_bounds = array<i64: 1, 8>}, {transform_indices = @transform_10, window_bounds = array<i64: 2, 8>}]} {
    %c0_i32 = arith.constant 0 : i32
    %0 = arith.cmpi eq, %arg1, %c0_i32 : i32
    %1 = arith.extui %0 : i1 to i32
    %c0_i32_0 = arith.constant 0 : i32
    %2 = arith.cmpi ne, %1, %c0_i32_0 : i32
    scf.if %2 {
      %cst_16 = arith.constant 0.000000e+00 : f32
      %21 = vector.broadcast %cst_16 : f32 to vector<2x768xf32>
      %c0_17 = arith.constant 0 : index
      %c0_18 = arith.constant 0 : index
      %22 = vector.load %arg13[%c0_17, %c0_18] : memref<2x768xf32, #tpu.memory_space<vmem>>, vector<2x768xf32>
      tpu.vector_store %arg13[%c0_17, %c0_18], %21 {strides = array<i32>} : memref<2x768xf32, #tpu.memory_space<vmem>>, vector<2x768xf32>,
      %cst_19 = arith.constant 0.000000e+00 : f32
      %23 = vector.broadcast %cst_19 : f32 to vector<2x1xf32>
      %c0_20 = arith.constant 0 : index
      %c0_21 = arith.constant 0 : index
      %24 = vector.load %arg14[%c0_20, %c0_21] : memref<2x1xf32, #tpu.memory_space<vmem>>, vector<2x1xf32>
      tpu.vector_store %arg14[%c0_20, %c0_21], %23 {strides = array<i32>} : memref<2x1xf32, #tpu.memory_space<vmem>>, vector<2x1xf32>,
    } else {
    }
    %c0 = arith.constant 0 : index
    %c0_1 = arith.constant 0 : index
    %c0_2 = arith.constant 0 : index
    %3 = vector.load %arg2[%c0, %c0_1, %c0_2] : memref<2x8x768xbf16, #tpu.memory_space<vmem>>, vector<2x8x768xbf16>
    %4 = arith.extf %3 : vector<2x8x768xbf16> to vector<2x8x768xf32>
    %c0_3 = arith.constant 0 : index
    %c0_4 = arith.constant 0 : index
    %5 = vector.load %arg3[%c0_3, %c0_4] : memref<2x8xf32, #tpu.memory_space<vmem>>, vector<2x8xf32>
    %c0_5 = arith.constant 0 : index
    %c0_6 = arith.constant 0 : index
    %6 = vector.load %arg13[%c0_5, %c0_6] : memref<2x768xf32, #tpu.memory_space<vmem>>, vector<2x768xf32>
    %7 = vector.shape_cast %5 : vector<2x8xf32> to vector<2x8x1xf32>
    %8 = vector.broadcast %7 : vector<2x8x1xf32> to vector<2x8x768xf32>
    %9 = arith.mulf %4, %8 : vector<2x8x768xf32>
    %cst = arith.constant dense<0.000000e+00> : vector<2x768xf32>
    %10 = vector.multi_reduction <add>, %9, %cst [1] : vector<2x8x768xf32> to vector<2x768xf32>
    %11 = arith.addf %6, %10 : vector<2x768xf32>
    %c0_7 = arith.constant 0 : index
    %c0_8 = arith.constant 0 : index
    %12 = vector.load %arg13[%c0_7, %c0_8] : memref<2x768xf32, #tpu.memory_space<vmem>>, vector<2x768xf32>
    tpu.vector_store %arg13[%c0_7, %c0_8], %11 {strides = array<i32>} : memref<2x768xf32, #tpu.memory_space<vmem>>, vector<2x768xf32>,
    %c0_9 = arith.constant 0 : index
    %c0_10 = arith.constant 0 : index
    %13 = vector.load %arg14[%c0_9, %c0_10] : memref<2x1xf32, #tpu.memory_space<vmem>>, vector<2x1xf32>
    %cst_11 = arith.constant dense<0.000000e+00> : vector<2xf32>
    %14 = vector.multi_reduction <add>, %5, %cst_11 [1] : vector<2x8xf32> to vector<2xf32>
    %15 = vector.shape_cast %14 : vector<2xf32> to vector<2x1xf32>
    %16 = arith.addf %13, %15 : vector<2x1xf32>
    %c0_12 = arith.constant 0 : index
    %c0_13 = arith.constant 0 : index
    %17 = vector.load %arg14[%c0_12, %c0_13] : memref<2x1xf32, #tpu.memory_space<vmem>>, vector<2x1xf32>
    tpu.vector_store %arg14[%c0_12, %c0_13], %16 {strides = array<i32>} : memref<2x1xf32, #tpu.memory_space<vmem>>, vector<2x1xf32>,
    %c0_i32_14 = arith.constant 0 : i32
    %18 = arith.cmpi eq, %arg1, %c0_i32_14 : i32
    %19 = arith.extui %18 : i1 to i32
    %c0_i32_15 = arith.constant 0 : i32
    %20 = arith.cmpi ne, %19, %c0_i32_15 : i32
    scf.if %20 {
      %c0_16 = arith.constant 0 : index
      %c0_17 = arith.constant 0 : index
      %21 = vector.load %arg14[%c0_16, %c0_17] : memref<2x1xf32, #tpu.memory_space<vmem>>, vector<2x1xf32>
      %cst_18 = arith.constant 9.99999971E-10 : f32
      %22 = vector.broadcast %cst_18 : f32 to vector<2x1xf32>
      %23 = arith.maximumf %21, %22 : vector<2x1xf32>
      %c0_19 = arith.constant 0 : index
      %c0_20 = arith.constant 0 : index
      %24 = vector.load %arg13[%c0_19, %c0_20] : memref<2x768xf32, #tpu.memory_space<vmem>>, vector<2x768xf32>
      %25 = vector.broadcast %23 : vector<2x1xf32> to vector<2x768xf32>
      %26 = arith.divf %24, %25 : vector<2x768xf32>
      %27 = math.tanh %26 : vector<2x768xf32>
      %28 = arith.truncf %27 : vector<2x768xf32> to vector<2x768xbf16>
      %c0_21 = arith.constant 0 : index
      %c0_22 = arith.constant 0 : index
      %29 = vector.load %arg4[%c0_21, %c0_22] : memref<768x2048xbf16, #tpu.memory_space<vmem>>, vector<768x2048xbf16>
      %cst_23 = arith.constant dense<0.000000e+00> : vector<2x2048xf32>
      %30 = tpu.matmul %28, %29, %cst_23 {dimension_numbers = #tpu.dot_dimension_numbers<[1], [0], [0], [1], [0, 0, 1, 1], [], []>} : vector<2x768xbf16>, vector<768x2048xbf16>, vector<2x2048xf32> -> vector<2x2048xf32>
      %c0_24 = arith.constant 0 : index
      %c0_25 = arith.constant 0 : index
      %31 = vector.load %arg5[%c0_24, %c0_25] : memref<1x2048xf32, #tpu.memory_space<vmem>>, vector<1x2048xf32>
      %32 = vector.broadcast %31 : vector<1x2048xf32> to vector<2x2048xf32>
      %33 = arith.addf %30, %32 : vector<2x2048xf32>
      %cst_26 = arith.constant 0.000000e+00 : f32
      %34 = vector.broadcast %cst_26 : f32 to vector<2x2048xf32>
      %35 = arith.maximumf %33, %34 : vector<2x2048xf32>
      %36 = arith.truncf %35 : vector<2x2048xf32> to vector<2x2048xbf16>
      %c0_27 = arith.constant 0 : index
      %c0_28 = arith.constant 0 : index
      %37 = vector.load %arg6[%c0_27, %c0_28] : memref<2048x512xbf16, #tpu.memory_space<vmem>>, vector<2048x512xbf16>
      %cst_29 = arith.constant dense<0.000000e+00> : vector<2x512xf32>
      %38 = tpu.matmul %36, %37, %cst_29 {dimension_numbers = #tpu.dot_dimension_numbers<[1], [0], [0], [1], [0, 0, 1, 1], [], []>} : vector<2x2048xbf16>, vector<2048x512xbf16>, vector<2x512xf32> -> vector<2x512xf32>
      %c0_30 = arith.constant 0 : index
      %c0_31 = arith.constant 0 : index
      %39 = vector.load %arg7[%c0_30, %c0_31] : memref<1x512xf32, #tpu.memory_space<vmem>>, vector<1x512xf32>
      %40 = vector.broadcast %39 : vector<1x512xf32> to vector<2x512xf32>
      %41 = arith.addf %38, %40 : vector<2x512xf32>
      %cst_32 = arith.constant 0.000000e+00 : f32
      %42 = vector.broadcast %cst_32 : f32 to vector<2x512xf32>
      %43 = arith.maximumf %41, %42 : vector<2x512xf32>
      %44 = arith.truncf %43 : vector<2x512xf32> to vector<2x512xbf16>
      %c0_33 = arith.constant 0 : index
      %c0_34 = arith.constant 0 : index
      %45 = vector.load %arg8[%c0_33, %c0_34] : memref<512x64xbf16, #tpu.memory_space<vmem>>, vector<512x64xbf16>
      %cst_35 = arith.constant dense<0.000000e+00> : vector<2x64xf32>
      %46 = tpu.matmul %44, %45, %cst_35 {dimension_numbers = #tpu.dot_dimension_numbers<[1], [0], [0], [1], [0, 0, 1, 1], [], []>} : vector<2x512xbf16>, vector<512x64xbf16>, vector<2x64xf32> -> vector<2x64xf32>
      %c0_36 = arith.constant 0 : index
      %c0_37 = arith.constant 0 : index
      %47 = vector.load %arg9[%c0_36, %c0_37] : memref<1x64xf32, #tpu.memory_space<vmem>>, vector<1x64xf32>
      %48 = vector.broadcast %47 : vector<1x64xf32> to vector<2x64xf32>
      %49 = arith.addf %46, %48 : vector<2x64xf32>
      %cst_38 = arith.constant 0.000000e+00 : f32
      %50 = vector.broadcast %cst_38 : f32 to vector<2x64xf32>
      %51 = arith.maximumf %49, %50 : vector<2x64xf32>
      %52 = arith.truncf %51 : vector<2x64xf32> to vector<2x64xbf16>
      %c0_39 = arith.constant 0 : index
      %c0_40 = arith.constant 0 : index
      %53 = vector.load %arg10[%c0_39, %c0_40] : memref<64x8xbf16, #tpu.memory_space<vmem>>, vector<64x8xbf16>
      %cst_41 = arith.constant dense<0.000000e+00> : vector<2x8xf32>
      %54 = tpu.matmul %52, %53, %cst_41 {dimension_numbers = #tpu.dot_dimension_numbers<[1], [0], [0], [1], [0, 0, 1, 1], [], []>} : vector<2x64xbf16>, vector<64x8xbf16>, vector<2x8xf32> -> vector<2x8xf32>
      %c0_42 = arith.constant 0 : index
      %c0_43 = arith.constant 0 : index
      %55 = vector.load %arg11[%c0_42, %c0_43] : memref<1x8xf32, #tpu.memory_space<vmem>>, vector<1x8xf32>
      %56 = vector.broadcast %55 : vector<1x8xf32> to vector<2x8xf32>
      %57 = arith.addf %54, %56 : vector<2x8xf32>
      %cst_44 = arith.constant dense<0xFF800000> : vector<2xf32>
      %58 = vector.multi_reduction <maximumf>, %57, %cst_44 [1] : vector<2x8xf32> to vector<2xf32>
      %59 = vector.shape_cast %58 : vector<2xf32> to vector<2x1xf32>
      %60 = vector.broadcast %59 : vector<2x1xf32> to vector<2x8xf32>
      %61 = arith.subf %57, %60 : vector<2x8xf32>
      %62 = math.exp %61 : vector<2x8xf32>
      %cst_45 = arith.constant dense<0.000000e+00> : vector<2xf32>
      %63 = vector.multi_reduction <add>, %62, %cst_45 [1] : vector<2x8xf32> to vector<2xf32>
      %64 = vector.shape_cast %63 : vector<2xf32> to vector<2x1xf32>
      %65 = math.log %64 : vector<2x1xf32>
      %66 = arith.addf %59, %65 : vector<2x1xf32>
      %67 = vector.broadcast %66 : vector<2x1xf32> to vector<2x8xf32>
      %68 = arith.subf %57, %67 : vector<2x8xf32>
      %c0_46 = arith.constant 0 : index
      %c0_47 = arith.constant 0 : index
      %69 = vector.load %arg12[%c0_46, %c0_47] : memref<2x8xf32, #tpu.memory_space<vmem>>, vector<2x8xf32>
      tpu.vector_store %arg12[%c0_46, %c0_47], %68 {strides = array<i32>} : memref<2x8xf32, #tpu.memory_space<vmem>>, vector<2x8xf32>,
    } else {
    }
    return
  }
  func.func @transform_0(%arg0: i32, %arg1: i32) -> (i32, i32, i32) {
    %c0_i32 = arith.constant 0 : i32
    %c0_i32_0 = arith.constant 0 : i32
    return %arg0, %arg1, %c0_i32 : i32, i32, i32
  }
  func.func @transform_1(%arg0: i32, %arg1: i32) -> (i32, i32) {
    %c0_i32 = arith.constant 0 : i32
    return %arg0, %arg1 : i32, i32
  }
  func.func @transform_2(%arg0: i32, %arg1: i32) -> (i32, i32) {
    %c0_i32 = arith.constant 0 : i32
    %c0_i32_0 = arith.constant 0 : i32
    %c0_i32_1 = arith.constant 0 : i32
    return %c0_i32, %c0_i32_0 : i32, i32
  }
  func.func @transform_3(%arg0: i32, %arg1: i32) -> (i32, i32) {
    %c0_i32 = arith.constant 0 : i32
    %c0_i32_0 = arith.constant 0 : i32
    %c0_i32_1 = arith.constant 0 : i32
    return %c0_i32, %c0_i32_0 : i32, i32
  }
  func.func @transform_4(%arg0: i32, %arg1: i32) -> (i32, i32) {
    %c0_i32 = arith.constant 0 : i32
    %c0_i32_0 = arith.constant 0 : i32
    %c0_i32_1 = arith.constant 0 : i32
    return %c0_i32, %c0_i32_0 : i32, i32
  }
  func.func @transform_5(%arg0: i32, %arg1: i32) -> (i32, i32) {
    %c0_i32 = arith.constant 0 : i32
    %c0_i32_0 = arith.constant 0 : i32
    %c0_i32_1 = arith.constant 0 : i32
    return %c0_i32, %c0_i32_0 : i32, i32
  }
  func.func @transform_6(%arg0: i32, %arg1: i32) -> (i32, i32) {
    %c0_i32 = arith.constant 0 : i32
    %c0_i32_0 = arith.constant 0 : i32
    %c0_i32_1 = arith.constant 0 : i32
    return %c0_i32, %c0_i32_0 : i32, i32
  }
  func.func @transform_7(%arg0: i32, %arg1: i32) -> (i32, i32) {
    %c0_i32 = arith.constant 0 : i32
    %c0_i32_0 = arith.constant 0 : i32
    %c0_i32_1 = arith.constant 0 : i32
    return %c0_i32, %c0_i32_0 : i32, i32
  }
  func.func @transform_8(%arg0: i32, %arg1: i32) -> (i32, i32) {
    %c0_i32 = arith.constant 0 : i32
    %c0_i32_0 = arith.constant 0 : i32
    %c0_i32_1 = arith.constant 0 : i32
    return %c0_i32, %c0_i32_0 : i32, i32
  }
  func.func @transform_9(%arg0: i32, %arg1: i32) -> (i32, i32) {
    %c0_i32 = arith.constant 0 : i32
    %c0_i32_0 = arith.constant 0 : i32
    %c0_i32_1 = arith.constant 0 : i32
    return %c0_i32, %c0_i32_0 : i32, i32
  }
  func.func @transform_10(%arg0: i32, %arg1: i32) -> (i32, i32) {
    %c0_i32 = arith.constant 0 : i32
    %c0_i32_0 = arith.constant 0 : i32
    return %arg0, %c0_i32 : i32, i32
  }
}

</mosaic_0001>

<llo_original>
// kernel: tpu_custom_call.1
$region0: #{tpu_custom_call.1}
  #allocation0 [shape = 'u32[]', space=smem, size = 0x4, offset = 0x4, fixed_abs, tag = 'smem constant byte address 0x4 - core index']
  #allocation1 [shape = 'u32[72,128]{1,0:T(1,128)}', space=vmem, size = 0x9000, scoped, tag = 'internal scratch']
  #allocation2 [shape = 'f32[2,768]{1,0:T(2,128)}', space=vmem, size = 0x1800, scoped, tag = 'scratch operand']
  #allocation3 [shape = 'f32[2,1]{1,0:T(2,128)}', space=vmem, size = 0x400, scoped, tag = 'scratch operand']
  %s0 = inlined_call_operand.hbm [shape: bf16[2,8,768], index: 0, kind: input, shape index: {}]
  %s1 = inlined_call_operand.hbm [shape: f32[2,8], index: 1, kind: input, shape index: {}]
  %s2 = inlined_call_operand.hbm [shape: bf16[768,2048], index: 2, kind: input, shape index: {}]
  %s3 = inlined_call_operand.hbm [shape: f32[1,2048], index: 3, kind: input, shape index: {}]
  %s4 = inlined_call_operand.hbm [shape: bf16[2048,512], index: 4, kind: input, shape index: {}]
  %s5 = inlined_call_operand.hbm [shape: f32[1,512], index: 5, kind: input, shape index: {}]
  %s6 = inlined_call_operand.vmem [shape: bf16[512,64], index: 6, kind: input, shape index: {}]
  %s7 = inlined_call_operand.hbm [shape: f32[1,64], index: 7, kind: input, shape index: {}]
  %s8 = inlined_call_operand.vmem [shape: bf16[64,8], index: 8, kind: input, shape index: {}]
  %s9 = inlined_call_operand.hbm [shape: f32[1,8], index: 9, kind: input, shape index: {}]
  %s10 = inlined_call_operand.hbm [shape: f32[2,8], index: 10, kind: output, shape index: {}]
  %s11 = sld [smem:[#allocation0]]
  $region90: #{tpu_custom_call.1} parent=0
    _
  %s13 = ssub.s32 1, %s11
  %s14 = scalar_select 0, %s13, %s11
  $region1: #{tpu_custom_call.1} parent=0
    #allocation4 [shape = 'u8[24576]{0}', space=vmem, size = 0x6000, scoped, tag = 'input window, operand 0, single buffered']
    #allocation5 [shape = 's32[1]{0}', space=sflag, size = 0x4, scoped, tag = 'scoped memory for tpu_custom_call.1']
    #allocation6 [shape = 's32[1]{0}', space=sflag, size = 0x4, scoped, tag = 'scoped memory for tpu_custom_call.1']
    #allocation7 [shape = 'u8[1024]{0}', space=vmem, size = 0x400, scoped, tag = 'input window, operand 1, single buffered']
    #allocation8 [shape = 's32[1]{0}', space=sflag, size = 0x4, scoped, tag = 'scoped memory for tpu_custom_call.1']
    #allocation9 [shape = 'u8[3145728]{0}', space=vmem, size = 0x300000, scoped, tag = 'input window, operand 2, single buffered']
    #allocation10 [shape = 'u8[8192]{0}', space=vmem, size = 0x2000, scoped, tag = 'input window, operand 3, single buffered']
    #allocation11 [shape = 's32[1]{0}', space=sflag, size = 0x4, scoped, tag = 'scoped memory for tpu_custom_call.1']
    #allocation12 [shape = 'u8[2097152]{0}', space=vmem, size = 0x200000, scoped, tag = 'input window, operand 4, single buffered']
    #allocation13 [shape = 'u8[2048]{0}', space=vmem, size = 0x800, scoped, tag = 'input window, operand 5, single buffered']
    #allocation14 [shape = 's32[1]{0}', space=sflag, size = 0x4, scoped, tag = 'scoped memory for tpu_custom_call.1']
    #allocation15 [shape = 'u8[512]{0}', space=vmem, size = 0x400, scoped, tag = 'input window, operand 7, single buffered']
    #allocation16 [shape = 'u8[512]{0}', space=vmem, size = 0x400, scoped, tag = 'input window, operand 9, single buffered']
    #allocation17 [shape = 's32[1]{0}', space=sflag, size = 0x4, scoped, tag = 'scoped memory for tpu_custom_call.1']
    #allocation18 [shape = 'u8[1024]{0}', space=vmem, size = 0x400, scoped, tag = 'output window, operand 0, single buffered']
    %15 = vsyncpa [#allocation5], 0
    %16 = vsyncpa [#allocation8], 0
    %17 = vsyncpa [#allocation11], 0
    %18 = vsyncpa [#allocation14], 0
    %19 = vsyncpa [#allocation17], 0
    %20 = vsyncpa [#allocation6], 0
    // Predicated region
    $region2: #{tpu_custom_call.1} parent=1 // pred_check
      _
    $region3: #{tpu_custom_call.1} parent=1 // pred_check_branch
      %22 = sbr.rel (0) target = $region5
    $region4: #{tpu_custom_call.1} parent=1 // pred_region
      %24 = vsyncadd [#allocation5], 0
      %s25 = sshll.u32 %s0, 4
      %s26 = int_to_ptr.hbm [resolvable:$true] %s25
      %s27 = sshll.u32 [#allocation4], 4
      %s28 = int_to_ptr.vmem [resolvable:$true] %s27
      %33 = dma.hbm_to_vmem [thread:$0]  %s26, 768, %s28, [#allocation5], 384, 384, 24
    $region5: #{tpu_custom_call.1} parent=1 // pred_fallthru
      _
    // Predicated region
    $region6: #{tpu_custom_call.1} parent=1 // pred_check
      _
    $region7: #{tpu_custom_call.1} parent=1 // pred_check_branch
      %35 = sbr.rel (0) target = $region9
    $region8: #{tpu_custom_call.1} parent=1 // pred_region
      %37 = vsyncadd [#allocation8], 0
      %s39 = sshll.u32 %s1, 4
      %s40 = int_to_ptr.hbm [resolvable:$true] %s39
      %s41 = sshll.u32 [#allocation7], 4
      %s42 = int_to_ptr.vmem [resolvable:$true] %s41
      %44 = dma.hbm_to_vmem [thread:$0]  %s40, 32, %s42, [#allocation8]
    $region9: #{tpu_custom_call.1} parent=1 // pred_fallthru
      _
    // Predicated region
    $region10: #{tpu_custom_call.1} parent=1 // pred_check
      _
    $region11: #{tpu_custom_call.1} parent=1 // pred_check_branch
      %46 = sbr.rel (0) target = $region13
    $region12: #{tpu_custom_call.1} parent=1 // pred_region
      %48 = vsyncadd [#allocation8], 0
      %s49 = sshll.u32 %s2, 4
      %s50 = int_to_ptr.hbm [resolvable:$true] %s49
      %s51 = sshll.u32 [#allocation9], 4
      %s52 = int_to_ptr.vmem [resolvable:$true] %s51
      %57 = dma.hbm_to_vmem [thread:$0]  %s50, 98304, %s52, [#allocation8], 1024, 1024, 64
    $region13: #{tpu_custom_call.1} parent=1 // pred_fallthru
      _
    // Predicated region
    $region14: #{tpu_custom_call.1} parent=1 // pred_check
      _
    $region15: #{tpu_custom_call.1} parent=1 // pred_check_branch
      %59 = sbr.rel (0) target = $region17
    $region16: #{tpu_custom_call.1} parent=1 // pred_region
      %61 = vsyncadd [#allocation11], 0
      %s63 = sshll.u32 %s3, 4
      %s64 = int_to_ptr.hbm [resolvable:$true] %s63
      %s65 = sshll.u32 [#allocation10], 4
      %s66 = int_to_ptr.vmem [resolvable:$true] %s65
      %68 = dma.hbm_to_vmem [thread:$0]  %s64, 256, %s66, [#allocation11]
    $region17: #{tpu_custom_call.1} parent=1 // pred_fallthru
      _
    // Predicated region
    $region18: #{tpu_custom_call.1} parent=1 // pred_check
      _
    $region19: #{tpu_custom_call.1} parent=1 // pred_check_branch
      %70 = sbr.rel (0) target = $region21
    $region20: #{tpu_custom_call.1} parent=1 // pred_region
      %72 = vsyncadd [#allocation11], 0
      %s73 = sshll.u32 %s4, 4
      %s74 = int_to_ptr.hbm [resolvable:$true] %s73
      %s75 = sshll.u32 [#allocation12], 4
      %s76 = int_to_ptr.vmem [resolvable:$true] %s75
      %81 = dma.hbm_to_vmem [thread:$0]  %s74, 65536, %s76, [#allocation11], 256, 256, 16
    $region21: #{tpu_custom_call.1} parent=1 // pred_fallthru
      _
    // Predicated region
    $region22: #{tpu_custom_call.1} parent=1 // pred_check
      _
    $region23: #{tpu_custom_call.1} parent=1 // pred_check_branch
      %83 = sbr.rel (0) target = $region25
    $region24: #{tpu_custom_call.1} parent=1 // pred_region
      %85 = vsyncadd [#allocation14], 0
      %s87 = sshll.u32 %s5, 4
      %s88 = int_to_ptr.hbm [resolvable:$true] %s87
      %s89 = sshll.u32 [#allocation13], 4
      %s90 = int_to_ptr.vmem [resolvable:$true] %s89
      %92 = dma.hbm_to_vmem [thread:$0]  %s88, 64, %s90, [#allocation14]
    $region25: #{tpu_custom_call.1} parent=1 // pred_fallthru
      _
    // Predicated region
    $region26: #{tpu_custom_call.1} parent=1 // pred_check
      _
    $region27: #{tpu_custom_call.1} parent=1 // pred_check_branch
      %94 = sbr.rel (0) target = $region29
    $region28: #{tpu_custom_call.1} parent=1 // pred_region
      _
    $region29: #{tpu_custom_call.1} parent=1 // pred_fallthru
      _
    // Predicated region
    $region30: #{tpu_custom_call.1} parent=1 // pred_check
      _
    $region31: #{tpu_custom_call.1} parent=1 // pred_check_branch
      %96 = sbr.rel (0) target = $region33
    $region32: #{tpu_custom_call.1} parent=1 // pred_region
      %98 = vsyncadd [#allocation14], 0
      %s100 = sshll.u32 %s7, 4
      %s101 = int_to_ptr.hbm [resolvable:$true] %s100
      %s102 = sshll.u32 [#allocation15], 4
      %s103 = int_to_ptr.vmem [resolvable:$true] %s102
      %105 = dma.hbm_to_vmem [thread:$0]  %s101, 16, %s103, [#allocation14]
    $region33: #{tpu_custom_call.1} parent=1 // pred_fallthru
      _
    // Predicated region
    $region34: #{tpu_custom_call.1} parent=1 // pred_check
      _
    $region35: #{tpu_custom_call.1} parent=1 // pred_check_branch
      %107 = sbr.rel (0) target = $region37
    $region36: #{tpu_custom_call.1} parent=1 // pred_region
      _
    $region37: #{tpu_custom_call.1} parent=1 // pred_fallthru
      _
    // Predicated region
    $region38: #{tpu_custom_call.1} parent=1 // pred_check
      _
    $region39: #{tpu_custom_call.1} parent=1 // pred_check_branch
      %109 = sbr.rel (0) target = $region41
    $region40: #{tpu_custom_call.1} parent=1 // pred_region
      %111 = vsyncadd [#allocation17], 0
      %s113 = sshll.u32 %s9, 4
      %s114 = int_to_ptr.hbm [resolvable:$true] %s113
      %s115 = sshll.u32 [#allocation16], 4
      %s116 = int_to_ptr.vmem [resolvable:$true] %s115
      %118 = dma.hbm_to_vmem [thread:$0]  %s114, 16, %s116, [#allocation17]
    $region41: #{tpu_custom_call.1} parent=1 // pred_fallthru
      _
    // Predicated region
    $region42: #{tpu_custom_call.1} parent=1 // pred_check
      _
    $region43: #{tpu_custom_call.1} parent=1 // pred_check_branch
      %120 = sbr.rel (0) target = $region45
    $region44: #{tpu_custom_call.1} parent=1 // pred_region
      %122 = dma.done [#allocation5], 768
    $region45: #{tpu_custom_call.1} parent=1 // pred_fallthru
      _
    // Predicated region
    $region46: #{tpu_custom_call.1} parent=1 // pred_check
      _
    $region47: #{tpu_custom_call.1} parent=1 // pred_check_branch
      %124 = sbr.rel (0) target = $region49
    $region48: #{tpu_custom_call.1} parent=1 // pred_region
      %126 = dma.done [#allocation8], 32
    $region49: #{tpu_custom_call.1} parent=1 // pred_fallthru
      _
    // Predicated region
    $region50: #{tpu_custom_call.1} parent=1 // pred_check
      _
    $region51: #{tpu_custom_call.1} parent=1 // pred_check_branch
      %128 = sbr.rel (0) target = $region53
    $region52: #{tpu_custom_call.1} parent=1 // pred_region
      %130 = dma.done [#allocation8], 98304
    $region53: #{tpu_custom_call.1} parent=1 // pred_fallthru
      _
    // Predicated region
    $region54: #{tpu_custom_call.1} parent=1 // pred_check
      _
    $region55: #{tpu_custom_call.1} parent=1 // pred_check_branch
      %132 = sbr.rel (0) target = $region57
    $region56: #{tpu_custom_call.1} parent=1 // pred_region
      %134 = dma.done [#allocation11], 256
    $region57: #{tpu_custom_call.1} parent=1 // pred_fallthru
      _
    // Predicated region
    $region58: #{tpu_custom_call.1} parent=1 // pred_check
      _
    $region59: #{tpu_custom_call.1} parent=1 // pred_check_branch
      %136 = sbr.rel (0) target = $region61
    $region60: #{tpu_custom_call.1} parent=1 // pred_region
      %138 = dma.done [#allocation11], 65536
    $region61: #{tpu_custom_call.1} parent=1 // pred_fallthru
      _
    // Predicated region
    $region62: #{tpu_custom_call.1} parent=1 // pred_check
      _
    $region63: #{tpu_custom_call.1} parent=1 // pred_check_branch
      %140 = sbr.rel (0) target = $region65
    $region64: #{tpu_custom_call.1} parent=1 // pred_region
      %142 = dma.done [#allocation14], 64
    $region65: #{tpu_custom_call.1} parent=1 // pred_fallthru
      _
    // Predicated region
    $region66: #{tpu_custom_call.1} parent=1 // pred_check
      _
    $region67: #{tpu_custom_call.1} parent=1 // pred_check_branch
      %144 = sbr.rel (0) target = $region69
    $region68: #{tpu_custom_call.1} parent=1 // pred_region
      %146 = dma.done [#allocation14], 16
    $region69: #{tpu_custom_call.1} parent=1 // pred_fallthru
      _
    // Predicated region
    $region70: #{tpu_custom_call.1} parent=1 // pred_check
      _
    $region71: #{tpu_custom_call.1} parent=1 // pred_check_branch
      %148 = sbr.rel (0) target = $region73
    $region72: #{tpu_custom_call.1} parent=1 // pred_region
      %150 = dma.done [#allocation17], 16
    $region73: #{tpu_custom_call.1} parent=1 // pred_fallthru
      _
    %p152 = scmp.eq.s32.totalorder 0, 0
    // Predicated region
    $region74: #{tpu_custom_call.1} parent=1 // pred_check
      %p153 = pneg %p152
    $region75: #{tpu_custom_call.1} parent=1 // pred_check_branch
      %155 = sbr.rel (%p153) target = $region77
    $region76: #{tpu_custom_call.1} parent=1 // pred_region
      %156 = vst [vmem:[#allocation2] sm:$0xff] 0.0
      %157 = vst [vmem:[#allocation2 + $0x8] sm:$0xf] 0.0
      %vm158 = vcmask 1024
      %159 = vst.msk [vmem:[#allocation3] sm:$0x3] %vm158, 0.0
    $region77: #{tpu_custom_call.1} parent=1 // pred_fallthru
      _
    %v160 = vld [vmem:[#allocation4] sm:$0xff]
    %v161 = vld [vmem:[#allocation4 + $0x8] sm:$0xff]
    %v162 = vld [vmem:[#allocation4 + $0x10] sm:$0xff]
    %v163 = vld [vmem:[#allocation4 + $0x18] sm:$0xff]
    %v164 = vld [vmem:[#allocation4 + $0x20] sm:$0xff]
    %v165 = vld [vmem:[#allocation4 + $0x28] sm:$0xff]
    %v166 = vunpack.c.l.bf16 %v160
    %v167 = vunpack.c.h.bf16 %v160
    %v168 = vunpack.c.l.bf16 %v161
    %v169 = vunpack.c.h.bf16 %v161
    %v170 = vunpack.c.l.bf16 %v162
    %v171 = vunpack.c.h.bf16 %v162
    %v172 = vunpack.c.l.bf16 %v163
    %v173 = vunpack.c.h.bf16 %v163
    %v174 = vunpack.c.l.bf16 %v164
    %v175 = vunpack.c.h.bf16 %v164
    %v176 = vunpack.c.l.bf16 %v165
    %v177 = vunpack.c.h.bf16 %v165
    %v178 = vld [vmem:[#allocation7] sm:$0x3]
    %v179 = vld [vmem:[#allocation2] sm:$0xff]
    %v180 = vld [vmem:[#allocation2 + $0x8] sm:$0xf]
    %v181 = vperm.slane %v178, 0
    %v182 = vlaneseq
    %v183 = vshrl.u32 %v182, 7
    %185 = vset.pattern.permute.xlu0 %v183
    %186 = vperm.xlu0 %185, %v181
    %v187 = vpop.permute.xlu0 %186
    %v188 = vperm.slane %v178, 1
    %v189 = vlaneseq
    %v190 = vshrl.u32 %v189, 7
    %192 = vset.pattern.permute.xlu0 %v190
    %193 = vperm.xlu0 %192, %v188
    %v194 = vpop.permute.xlu0 %193
    %v195 = vmul.f32 %v166, %v187
    %v196 = vmul.f32 %v167, %v187
    %v197 = vmul.f32 %v168, %v187
    %v198 = vmul.f32 %v169, %v187
    %v199 = vmul.f32 %v170, %v187
    %v200 = vmul.f32 %v171, %v187
    %v201 = vmul.f32 %v172, %v194
    %v202 = vmul.f32 %v173, %v194
    %v203 = vmul.f32 %v174, %v194
    %v204 = vmul.f32 %v175, %v194
    %v205 = vmul.f32 %v176, %v194
    %v206 = vmul.f32 %v177, %v194
    %v207 = vrot.slane %v195, 4
    %v208 = vadd.f32 %v195, %v207
    %v209 = vrot.slane %v208, 2
    %v210 = vadd.f32 %v208, %v209
    %v211 = vrot.slane %v210, 1
    %v212 = vadd.f32 %v210, %v211
    %v213 = vrot.slane %v196, 4
    %v214 = vadd.f32 %v196, %v213
    %v215 = vrot.slane %v214, 2
    %v216 = vadd.f32 %v214, %v215
    %v217 = vrot.slane %v216, 1
    %v218 = vadd.f32 %v216, %v217
    %v219 = vrot.slane %v197, 4
    %v220 = vadd.f32 %v197, %v219
    %v221 = vrot.slane %v220, 2
    %v222 = vadd.f32 %v220, %v221
    %v223 = vrot.slane %v222, 1
    %v224 = vadd.f32 %v222, %v223
    %v225 = vrot.slane %v198, 4
    %v226 = vadd.f32 %v198, %v225
    %v227 = vrot.slane %v226, 2
    %v228 = vadd.f32 %v226, %v227
    %v229 = vrot.slane %v228, 1
    %v230 = vadd.f32 %v228, %v229
    %v231 = vrot.slane %v199, 4
    %v232 = vadd.f32 %v199, %v231
    %v233 = vrot.slane %v232, 2
    %v234 = vadd.f32 %v232, %v233
    %v235 = vrot.slane %v234, 1
    %v236 = vadd.f32 %v234, %v235
    %v237 = vrot.slane %v200, 4
    %v238 = vadd.f32 %v200, %v237
    %v239 = vrot.slane %v238, 2
    %v240 = vadd.f32 %v238, %v239
    %v241 = vrot.slane %v240, 1
    %v242 = vadd.f32 %v240, %v241
    %v243 = vrot.slane %v201, 4
    %v244 = vadd.f32 %v201, %v243
    %v245 = vrot.slane %v244, 2
    %v246 = vadd.f32 %v244, %v245
    %v247 = vrot.slane %v246, 1
    %v248 = vadd.f32 %v246, %v247
    %v249 = vrot.slane %v202, 4
    %v250 = vadd.f32 %v202, %v249
    %v251 = vrot.slane %v250, 2
    %v252 = vadd.f32 %v250, %v251
    %v253 = vrot.slane %v252, 1
    %v254 = vadd.f32 %v252, %v253
    %v255 = vrot.slane %v203, 4
    %v256 = vadd.f32 %v203, %v255
    %v257 = vrot.slane %v256, 2
    %v258 = vadd.f32 %v256, %v257
    %v259 = vrot.slane %v258, 1
    %v260 = vadd.f32 %v258, %v259
    %v261 = vrot.slane %v204, 4
    %v262 = vadd.f32 %v204, %v261
    %v263 = vrot.slane %v262, 2
    %v264 = vadd.f32 %v262, %v263
    %v265 = vrot.slane %v264, 1
    %v266 = vadd.f32 %v264, %v265
    %v267 = vrot.slane %v205, 4
    %v268 = vadd.f32 %v205, %v267
    %v269 = vrot.slane %v268, 2
    %v270 = vadd.f32 %v268, %v269
    %v271 = vrot.slane %v270, 1
    %v272 = vadd.f32 %v270, %v271
    %v273 = vrot.slane %v206, 4
    %v274 = vadd.f32 %v206, %v273
    %v275 = vrot.slane %v274, 2
    %v276 = vadd.f32 %v274, %v275
    %v277 = vrot.slane %v276, 1
    %v278 = vadd.f32 %v276, %v277
    %v291 = vrot.slane %v218, 6
    %v292 = vrot.slane %v224, 4
    %v293 = vrot.slane %v230, 2
    %v294 = vrot.slane %v242, 6
    %v295 = vrot.slane %v254, 6
    %v296 = vrot.slane %v260, 4
    %v297 = vrot.slane %v266, 2
    %v298 = vrot.slane %v278, 6
    %vm299 = vcmask 1041408
    %v300 = vsel %vm299, %v212, %v291
    %vm301 = vcmask 1045508
    %v302 = vsel %vm301, %v292, %v293
    %vm303 = vcmask 1043456
    %v304 = vsel %vm303, %v300, %v302
    %v305 = vsel %vm299, %v236, %v294
    %v306 = vsel %vm299, %v248, %v295
    %v307 = vsel %vm301, %v296, %v297
    %v308 = vsel %vm303, %v306, %v307
    %v309 = vsel %vm299, %v272, %v298
    %vm310 = vcmask 1044484
    %v311 = vsel %vm310, %v304, %v304
    %vm312 = vcmask 1046534
    %v313 = vsel %vm312, %v304, %v311
    %v314 = vrot.slane %v308, 7
    %vm315 = vcmask 1041409
    %v316 = vsel %vm315, %v314, %v313
    %vm317 = vcmask 1043459
    %v318 = vsel %vm317, %v314, %v316
    %vm319 = vcmask 1045509
    %v320 = vsel %vm319, %v314, %v318
    %vm321 = vcmask 1047559
    %v322 = vsel %vm321, %v314, %v320
    %v323 = vsel %vm310, %v305, %v305
    %v324 = vsel %vm312, %v305, %v323
    %v325 = vrot.slane %v309, 7
    %v326 = vsel %vm315, %v325, %v324
    %v327 = vsel %vm317, %v325, %v326
    %v328 = vsel %vm319, %v325, %v327
    %v329 = vsel %vm321, %v325, %v328
    %v332 = vadd.f32 %v179, %v322
    %v333 = vadd.f32 %v180, %v329
    %334 = vst [vmem:[#allocation2] sm:$0xff] %v332
    %335 = vst [vmem:[#allocation2 + $0x8] sm:$0xf] %v333
    %v336 = vld [vmem:[#allocation3] sm:$0x3]
    %vm337 = vcmask 58368
    %v338 = vsel %vm337, %v178, 0.0
    %339 = vadd.xlane.f32.xlu0 %v338
    %v340 = vpop.xlane.xlu0 %339
    %v341 = vadd.f32 %v336, %v340
    %vm342 = vcmask 1024
    %343 = vst.msk [vmem:[#allocation3] sm:$0x3] %vm342, %v341
    // Predicated region
    $region78: #{tpu_custom_call.1} parent=1 // pred_check
      %p344 = pneg %p152
    $region79: #{tpu_custom_call.1} parent=1 // pred_check_branch
      %346 = sbr.rel (%p344) target = $region81
    $region80: #{tpu_custom_call.1} parent=1 // pred_region
      %v347 = vld [vmem:[#allocation3] sm:$0x3]
      %v348 = vmax.f32 %v347, 1e-09
      %v349 = vld [vmem:[#allocation2] sm:$0xff]
      %v350 = vld [vmem:[#allocation2 + $0x8] sm:$0xf]
      %352 = vset.pattern.permute.xlu0 0
      %353 = vperm.xlu0 %352, %v348
      %v354 = vpop.permute.xlu0 %353
      %v356 = vunpack.c.l.s4 269488144
      %v357 = vunpack.c.0.s8 %v356
      %v358 = vperm.slane %v354, %v357
      %v360 = vrcp.pop %v358
      %v361 = vmul.f32 %v358, %v360
      %v362 = vsub.f32 1.0, %v361
      %v363 = vmul.f32 %v360, %v362
      %v364 = vadd.f32 %v360, %v363
      %vm365 = vweird.f32 %v358
      %vm366 = vweird.f32 %v360
      %vm367 = vmor %vm365, %vm366
      %v368 = vsel %vm367, %v360, %v364
      %v369 = vand.u32 2147483647, %v358
      %vm370 = vcmp.eq.f32.partialorder %v369, 8.507059e+37
      %v371 = vand.u32 %v358, 2147483648
      %v372 = vor.u32 1.1754944e-38, %v371
      %v373 = vsel %vm370, %v372, %v368
      %v374 = vmul.f32 %v349, %v373
      %v375 = vmul.f32 %v350, %v373
      %v376 = vtanh.pop %v374
      %v377 = vtanh.pop %v375
      %380 = vst [vmem:[#allocation1] ss:$4 sm:$0xff] %v376
      %s381 = scalar_lea.vmem [#allocation1], 32
      %382 = vst [vmem:[%s381] ss:$4 sm:$0xff] %v377
      %v383 = vld.sshfl [vmem:[#allocation1] sm:$0xff pattern:$0x73625140]
      %v384 = vld.sshfl [vmem:[#allocation1 + $0x8] sm:$0xff pattern:$0x73625140]
      %v385 = vld.sshfl [vmem:[#allocation1 + $0x10] sm:$0xff pattern:$0x73625140]
      %v386 = vld.sshfl [vmem:[#allocation1 + $0x18] sm:$0xff pattern:$0x73625140]
      %v387 = vld.sshfl [vmem:[#allocation1 + $0x20] sm:$0xff pattern:$0x73625140]
      %v388 = vld.sshfl [vmem:[#allocation1 + $0x28] sm:$0xff pattern:$0x73625140]
      %v395 = vpack.c.bf16 %v383, %v383
      %v396 = vpack.c.bf16 %v384, %v384
      %v397 = vpack.c.bf16 %v385, %v385
      %v398 = vpack.c.bf16 %v386, %v386
      %v399 = vpack.c.bf16 %v387, %v387
      %v400 = vpack.c.bf16 %v388, %v388
      %v401 = vld [vmem:[#allocation9] sm:$0xff]
      %v402 = vld [vmem:[#allocation9 + $0x8] sm:$0xff]
      %v403 = vld [vmem:[#allocation9 + $0x10] sm:$0xff]
      %v404 = vld [vmem:[#allocation9 + $0x18] sm:$0xff]
      %v405 = vld [vmem:[#allocation9 + $0x20] sm:$0xff]
      %v406 = vld [vmem:[#allocation9 + $0x28] sm:$0xff]
      %v407 = vld [vmem:[#allocation9 + $0x30] sm:$0xff]
      %v408 = vld [vmem:[#allocation9 + $0x38] sm:$0xff]
      %v409 = vld [vmem:[#allocation9 + $0x40] sm:$0xff]
      %v410 = vld [vmem:[#allocation9 + $0x48] sm:$0xff]
      %v411 = vld [vmem:[#allocation9 + $0x50] sm:$0xff]
      %v412 = vld [vmem:[#allocation9 + $0x58] sm:$0xff]
      %v413 = vld [vmem:[#allocation9 + $0x60] sm:$0xff]
      %v414 = vld [vmem:[#allocation9 + $0x68] sm:$0xff]
      %v415 = vld [vmem:[#allocation9 + $0x70] sm:$0xff]
      %v416 = vld [vmem:[#allocation9 + $0x78] sm:$0xff]
      %v417 = vld [vmem:[#allocation9 + $0x80] sm:$0xff]
      %v418 = vld [vmem:[#allocation9 + $0x88] sm:$0xff]
      %v419 = vld [vmem:[#allocation9 + $0x90] sm:$0xff]
      %v420 = vld [vmem:[#allocation9 + $0x98] sm:$0xff]
      %v421 = vld [vmem:[#allocation9 + $0xa0] sm:$0xff]
      %v422 = vld [vmem:[#allocation9 + $0xa8] sm:$0xff]
      %v423 = vld [vmem:[#allocation9 + $0xb0] sm:$0xff]
      %v424 = vld [vmem:[#allocation9 + $0xb8] sm:$0xff]
      %v425 = vld [vmem:[#allocation9 + $0xc0] sm:$0xff]
      %v426 = vld [vmem:[#allocation9 + $0xc8] sm:$0xff]
      %v427 = vld [vmem:[#allocation9 + $0xd0] sm:$0xff]
      %v428 = vld [vmem:[#allocation9 + $0xd8] sm:$0xff]
      %v429 = vld [vmem:[#allocation9 + $0xe0] sm:$0xff]
      %v430 = vld [vmem:[#allocation9 + $0xe8] sm:$0xff]
      %v431 = vld [vmem:[#allocation9 + $0xf0] sm:$0xff]
      %v432 = vld [vmem:[#allocation9 + $0xf8] sm:$0xff]
      %v433 = vld [vmem:[#allocation9 + $0x100] sm:$0xff]
      %v434 = vld [vmem:[#allocation9 + $0x108] sm:$0xff]
      %v435 = vld [vmem:[#allocation9 + $0x110] sm:$0xff]
      %v436 = vld [vmem:[#allocation9 + $0x118] sm:$0xff]
      %v437 = vld [vmem:[#allocation9 + $0x120] sm:$0xff]
      %v438 = vld [vmem:[#allocation9 + $0x128] sm:$0xff]
      %v439 = vld [vmem:[#allocation9 + $0x130] sm:$0xff]
      %v440 = vld [vmem:[#allocation9 + $0x138] sm:$0xff]
      %v441 = vld [vmem:[#allocation9 + $0x140] sm:$0xff]
      %v442 = vld [vmem:[#allocation9 + $0x148] sm:$0xff]
      %v443 = vld [vmem:[#allocation9 + $0x150] sm:$0xff]
      %v444 = vld [vmem:[#allocation9 + $0x158] sm:$0xff]
      %v445 = vld [vmem:[#allocation9 + $0x160] sm:$0xff]
      %v446 = vld [vmem:[#allocation9 + $0x168] sm:$0xff]
      %v447 = vld [vmem:[#allocation9 + $0x170] sm:$0xff]
      %v448 = vld [vmem:[#allocation9 + $0x178] sm:$0xff]
      %v449 = vld [vmem:[#allocation9 + $0x180] sm:$0xff]
      %v450 = vld [vmem:[#allocation9 + $0x188] sm:$0xff]
      %v451 = vld [vmem:[#allocation9 + $0x190] sm:$0xff]
      %v452 = vld [vmem:[#allocation9 + $0x198] sm:$0xff]
      %v453 = vld [vmem:[#allocation9 + $0x1a0] sm:$0xff]
      %v454 = vld [vmem:[#allocation9 + $0x1a8] sm:$0xff]
      %v455 = vld [vmem:[#allocation9 + $0x1b0] sm:$0xff]
      %v456 = vld [vmem:[#allocation9 + $0x1b8] sm:$0xff]
      %v457 = vld [vmem:[#allocation9 + $0x1c0] sm:$0xff]
      %v458 = vld [vmem:[#allocation9 + $0x1c8] sm:$0xff]
      %v459 = vld [vmem:[#allocation9 + $0x1d0] sm:$0xff]
      %v460 = vld [vmem:[#allocation9 + $0x1d8] sm:$0xff]
      %v461 = vld [vmem:[#allocation9 + $0x1e0] sm:$0xff]
      %v462 = vld [vmem:[#allocation9 + $0x1e8] sm:$0xff]
      %v463 = vld [vmem:[#allocation9 + $0x1f0] sm:$0xff]
      %v464 = vld [vmem:[#allocation9 + $0x1f8] sm:$0xff]
      %v465 = vld [vmem:[#allocation9 + $0x200] sm:$0xff]
      %v466 = vld [vmem:[#allocation9 + $0x208] sm:$0xff]
      %v467 = vld [vmem:[#allocation9 + $0x210] sm:$0xff]
      %v468 = vld [vmem:[#allocation9 + $0x218] sm:$0xff]
      %v469 = vld [vmem:[#allocation9 + $0x220] sm:$0xff]
      %v470 = vld [vmem:[#allocation9 + $0x228] sm:$0xff]
      %v471 = vld [vmem:[#allocation9 + $0x230] sm:$0xff]
      %v472 = vld [vmem:[#allocation9 + $0x238] sm:$0xff]
      %v473 = vld [vmem:[#allocation9 + $0x240] sm:$0xff]
      %v474 = vld [vmem:[#allocation9 + $0x248] sm:$0xff]
      %v475 = vld [vmem:[#allocation9 + $0x250] sm:$0xff]
      %v476 = vld [vmem:[#allocation9 + $0x258] sm:$0xff]
      %v477 = vld [vmem:[#allocation9 + $0x260] sm:$0xff]
      %v478 = vld [vmem:[#allocation9 + $0x268] sm:$0xff]
      %v479 = vld [vmem:[#allocation9 + $0x270] sm:$0xff]
      %v480 = vld [vmem:[#allocation9 + $0x278] sm:$0xff]
      %v481 = vld [vmem:[#allocation9 + $0x280] sm:$0xff]
      %v482 = vld [vmem:[#allocation9 + $0x288] sm:$0xff]
      %v483 = vld [vmem:[#allocation9 + $0x290] sm:$0xff]
      %v484 = vld [vmem:[#allocation9 + $0x298] sm:$0xff]
      %v485 = vld [vmem:[#allocation9 + $0x2a0] sm:$0xff]
      %v486 = vld [vmem:[#allocation9 + $0x2a8] sm:$0xff]
      %v487 = vld [vmem:[#allocation9 + $0x2b0] sm:$0xff]
      %v488 = vld [vmem:[#allocation9 + $0x2b8] sm:$0xff]
      %v489 = vld [vmem:[#allocation9 + $0x2c0] sm:$0xff]
      %v490 = vld [vmem:[#allocation9 + $0x2c8] sm:$0xff]
      %v491 = vld [vmem:[#allocation9 + $0x2d0] sm:$0xff]
      %v492 = vld [vmem:[#allocation9 + $0x2d8] sm:$0xff]
      %v493 = vld [vmem:[#allocation9 + $0x2e0] sm:$0xff]
      %v494 = vld [vmem:[#allocation9 + $0x2e8] sm:$0xff]
      %v495 = vld [vmem:[#allocation9 + $0x2f0] sm:$0xff]
      %v496 = vld [vmem:[#allocation9 + $0x2f8] sm:$0xff]
      %v497 = vld [vmem:[#allocation9 + $0x300] sm:$0xff]
      %v498 = vld [vmem:[#allocation9 + $0x308] sm:$0xff]
      %v499 = vld [vmem:[#allocation9 + $0x310] sm:$0xff]
      %v500 = vld [vmem:[#allocation9 + $0x318] sm:$0xff]
      %v501 = vld [vmem:[#allocation9 + $0x320] sm:$0xff]
      %v502 = vld [vmem:[#allocation9 + $0x328] sm:$0xff]
      %v503 = vld [vmem:[#allocation9 + $0x330] sm:$0xff]
      %v504 = vld [vmem:[#allocation9 + $0x338] sm:$0xff]
      %v505 = vld [vmem:[#allocation9 + $0x340] sm:$0xff]
      %v506 = vld [vmem:[#allocation9 + $0x348] sm:$0xff]
      %v507 = vld [vmem:[#allocation9 + $0x350] sm:$0xff]
      %v508 = vld [vmem:[#allocation9 + $0x358] sm:$0xff]
      %v509 = vld [vmem:[#allocation9 + $0x360] sm:$0xff]
      %v510 = vld [vmem:[#allocation9 + $0x368] sm:$0xff]
      %v511 = vld [vmem:[#allocation9 + $0x370] sm:$0xff]
      %v512 = vld [vmem:[#allocation9 + $0x378] sm:$0xff]
      %v513 = vld [vmem:[#allocation9 + $0x380] sm:$0xff]
      %v514 = vld [vmem:[#allocation9 + $0x388] sm:$0xff]
      %v515 = vld [vmem:[#allocation9 + $0x390] sm:$0xff]
      %v516 = vld [vmem:[#allocation9 + $0x398] sm:$0xff]
      %v517 = vld [vmem:[#allocation9 + $0x3a0] sm:$0xff]
      %v518 = vld [vmem:[#allocation9 + $0x3a8] sm:$0xff]
      %v519 = vld [vmem:[#allocation9 + $0x3b0] sm:$0xff]
      %v520 = vld [vmem:[#allocation9 + $0x3b8] sm:$0xff]
      %v521 = vld [vmem:[#allocation9 + $0x3c0] sm:$0xff]
      %v522 = vld [vmem:[#allocation9 + $0x3c8] sm:$0xff]
      %v523 = vld [vmem:[#allocation9 + $0x3d0] sm:$0xff]
      %v524 = vld [vmem:[#allocation9 + $0x3d8] sm:$0xff]
      %v525 = vld [vmem:[#allocation9 + $0x3e0] sm:$0xff]
      %v526 = vld [vmem:[#allocation9 + $0x3e8] sm:$0xff]
      %v527 = vld [vmem:[#allocation9 + $0x3f0] sm:$0xff]
      %v528 = vld [vmem:[#allocation9 + $0x3f8] sm:$0xff]
      %v529 = vld [vmem:[#allocation9 + $0x400] sm:$0xff]
      %v530 = vld [vmem:[#allocation9 + $0x408] sm:$0xff]
      %v531 = vld [vmem:[#allocation9 + $0x410] sm:$0xff]
      %v532 = vld [vmem:[#allocation9 + $0x418] sm:$0xff]
      %v533 = vld [vmem:[#allocation9 + $0x420] sm:$0xff]
      %v534 = vld [vmem:[#allocation9 + $0x428] sm:$0xff]
      %v535 = vld [vmem:[#allocation9 + $0x430] sm:$0xff]
      %v536 = vld [vmem:[#allocation9 + $0x438] sm:$0xff]
      %v537 = vld [vmem:[#allocation9 + $0x440] sm:$0xff]
      %v538 = vld [vmem:[#allocation9 + $0x448] sm:$0xff]
      %v539 = vld [vmem:[#allocation9 + $0x450] sm:$0xff]
      %v540 = vld [vmem:[#allocation9 + $0x458] sm:$0xff]
      %v541 = vld [vmem:[#allocation9 + $0x460] sm:$0xff]
      %v542 = vld [vmem:[#allocation9 + $0x468] sm:$0xff]
      %v543 = vld [vmem:[#allocation9 + $0x470] sm:$0xff]
      %v544 = vld [vmem:[#allocation9 + $0x478] sm:$0xff]
      %v545 = vld [vmem:[#allocation9 + $0x480] sm:$0xff]
      %v546 = vld [vmem:[#allocation9 + $0x488] sm:$0xff]
      %v547 = vld [vmem:[#allocation9 + $0x490] sm:$0xff]
      %v548 = vld [vmem:[#allocation9 + $0x498] sm:$0xff]
      %v549 = vld [vmem:[#allocation9 + $0x4a0] sm:$0xff]
      %v550 = vld [vmem:[#allocation9 + $0x4a8] sm:$0xff]
      %v551 = vld [vmem:[#allocation9 + $0x4b0] sm:$0xff]
      %v552 = vld [vmem:[#allocation9 + $0x4b8] sm:$0xff]
      %v553 = vld [vmem:[#allocation9 + $0x4c0] sm:$0xff]
      %v554 = vld [vmem:[#allocation9 + $0x4c8] sm:$0xff]
      %v555 = vld [vmem:[#allocation9 + $0x4d0] sm:$0xff]
      %v556 = vld [vmem:[#allocation9 + $0x4d8] sm:$0xff]
      %v557 = vld [vmem:[#allocation9 + $0x4e0] sm:$0xff]
      %v558 = vld [vmem:[#allocation9 + $0x4e8] sm:$0xff]
      %v559 = vld [vmem:[#allocation9 + $0x4f0] sm:$0xff]
      %v560 = vld [vmem:[#allocation9 + $0x4f8] sm:$0xff]
      %v561 = vld [vmem:[#allocation9 + $0x500] sm:$0xff]
      %v562 = vld [vmem:[#allocation9 + $0x508] sm:$0xff]
      %v563 = vld [vmem:[#allocation9 + $0x510] sm:$0xff]
      %v564 = vld [vmem:[#allocation9 + $0x518] sm:$0xff]
      %v565 = vld [vmem:[#allocation9 + $0x520] sm:$0xff]
      %v566 = vld [vmem:[#allocation9 + $0x528] sm:$0xff]
      %v567 = vld [vmem:[#allocation9 + $0x530] sm:$0xff]
      %v568 = vld [vmem:[#allocation9 + $0x538] sm:$0xff]
      %v569 = vld [vmem:[#allocation9 + $0x540] sm:$0xff]
      %v570 = vld [vmem:[#allocation9 + $0x548] sm:$0xff]
      %v571 = vld [vmem:[#allocation9 + $0x550] sm:$0xff]
      %v572 = vld [vmem:[#allocation9 + $0x558] sm:$0xff]
      %v573 = vld [vmem:[#allocation9 + $0x560] sm:$0xff]
      %v574 = vld [vmem:[#allocation9 + $0x568] sm:$0xff]
      %v575 = vld [vmem:[#allocation9 + $0x570] sm:$0xff]
      %v576 = vld [vmem:[#allocation9 + $0x578] sm:$0xff]
      %v577 = vld [vmem:[#allocation9 + $0x580] sm:$0xff]
      %v578 = vld [vmem:[#allocation9 + $0x588] sm:$0xff]
      %v579 = vld [vmem:[#allocation9 + $0x590] sm:$0xff]
      %v580 = vld [vmem:[#allocation9 + $0x598] sm:$0xff]
      %v581 = vld [vmem:[#allocation9 + $0x5a0] sm:$0xff]
      %v582 = vld [vmem:[#allocation9 + $0x5a8] sm:$0xff]
      %v583 = vld [vmem:[#allocation9 + $0x5b0] sm:$0xff]
      %v584 = vld [vmem:[#allocation9 + $0x5b8] sm:$0xff]
      %v585 = vld [vmem:[#allocation9 + $0x5c0] sm:$0xff]
      %v586 = vld [vmem:[#allocation9 + $0x5c8] sm:$0xff]
      %v587 = vld [vmem:[#allocation9 + $0x5d0] sm:$0xff]
      %v588 = vld [vmem:[#allocation9 + $0x5d8] sm:$0xff]
      %v589 = vld [vmem:[#allocation9 + $0x5e0] sm:$0xff]
      %v590 = vld [vmem:[#allocation9 + $0x5e8] sm:$0xff]
      %v591 = vld [vmem:[#allocation9 + $0x5f0] sm:$0xff]
      %v592 = vld [vmem:[#allocation9 + $0x5f8] sm:$0xff]
      %v593 = vld [vmem:[#allocation9 + $0x600] sm:$0xff]
      %v594 = vld [vmem:[#allocation9 + $0x608] sm:$0xff]
      %v595 = vld [vmem:[#allocation9 + $0x610] sm:$0xff]
      %v596 = vld [vmem:[#allocation9 + $0x618] sm:$0xff]
      %v597 = vld [vmem:[#allocation9 + $0x620] sm:$0xff]
      %v598 = vld [vmem:[#allocation9 + $0x628] sm:$0xff]
      %v599 = vld [vmem:[#allocation9 + $0x630] sm:$0xff]
      %v600 = vld [vmem:[#allocation9 + $0x638] sm:$0xff]
      %v601 = vld [vmem:[#allocation9 + $0x640] sm:$0xff]
      %v602 = vld [vmem:[#allocation9 + $0x648] sm:$0xff]
      %v603 = vld [vmem:[#allocation9 + $0x650] sm:$0xff]
      %v604 = vld [vmem:[#allocation9 + $0x658] sm:$0xff]
      %v605 = vld [vmem:[#allocation9 + $0x660] sm:$0xff]
      %v606 = vld [vmem:[#allocation9 + $0x668] sm:$0xff]
      %v607 = vld [vmem:[#allocation9 + $0x670] sm:$0xff]
      %v608 = vld [vmem:[#allocation9 + $0x678] sm:$0xff]
      %v609 = vld [vmem:[#allocation9 + $0x680] sm:$0xff]
      %v610 = vld [vmem:[#allocation9 + $0x688] sm:$0xff]
      %v611 = vld [vmem:[#allocation9 + $0x690] sm:$0xff]
      %v612 = vld [vmem:[#allocation9 + $0x698] sm:$0xff]
      %v613 = vld [vmem:[#allocation9 + $0x6a0] sm:$0xff]
      %v614 = vld [vmem:[#allocation9 + $0x6a8] sm:$0xff]
      %v615 = vld [vmem:[#allocation9 + $0x6b0] sm:$0xff]
      %v616 = vld [vmem:[#allocation9 + $0x6b8] sm:$0xff]
      %v617 = vld [vmem:[#allocation9 + $0x6c0] sm:$0xff]
      %v618 = vld [vmem:[#allocation9 + $0x6c8] sm:$0xff]
      %v619 = vld [vmem:[#allocation9 + $0x6d0] sm:$0xff]
      %v620 = vld [vmem:[#allocation9 + $0x6d8] sm:$0xff]
      %v621 = vld [vmem:[#allocation9 + $0x6e0] sm:$0xff]
      %v622 = vld [vmem:[#allocation9 + $0x6e8] sm:$0xff]
      %v623 = vld [vmem:[#allocation9 + $0x6f0] sm:$0xff]
      %v624 = vld [vmem:[#allocation9 + $0x6f8] sm:$0xff]
      %v625 = vld [vmem:[#allocation9 + $0x700] sm:$0xff]
      %v626 = vld [vmem:[#allocation9 + $0x708] sm:$0xff]
      %v627 = vld [vmem:[#allocation9 + $0x710] sm:$0xff]
      %v628 = vld [vmem:[#allocation9 + $0x718] sm:$0xff]
      %v629 = vld [vmem:[#allocation9 + $0x720] sm:$0xff]
      %v630 = vld [vmem:[#allocation9 + $0x728] sm:$0xff]
      %v631 = vld [vmem:[#allocation9 + $0x730] sm:$0xff]
      %v632 = vld [vmem:[#allocation9 + $0x738] sm:$0xff]
      %v633 = vld [vmem:[#allocation9 + $0x740] sm:$0xff]
      %v634 = vld [vmem:[#allocation9 + $0x748] sm:$0xff]
      %v635 = vld [vmem:[#allocation9 + $0x750] sm:$0xff]
      %v636 = vld [vmem:[#allocation9 + $0x758] sm:$0xff]
      %v637 = vld [vmem:[#allocation9 + $0x760] sm:$0xff]
      %v638 = vld [vmem:[#allocation9 + $0x768] sm:$0xff]
      %v639 = vld [vmem:[#allocation9 + $0x770] sm:$0xff]
      %v640 = vld [vmem:[#allocation9 + $0x778] sm:$0xff]
      %v641 = vld [vmem:[#allocation9 + $0x780] sm:$0xff]
      %v642 = vld [vmem:[#allocation9 + $0x788] sm:$0xff]
      %v643 = vld [vmem:[#allocation9 + $0x790] sm:$0xff]
      %v644 = vld [vmem:[#allocation9 + $0x798] sm:$0xff]
      %v645 = vld [vmem:[#allocation9 + $0x7a0] sm:$0xff]
      %v646 = vld [vmem:[#allocation9 + $0x7a8] sm:$0xff]
      %v647 = vld [vmem:[#allocation9 + $0x7b0] sm:$0xff]
      %v648 = vld [vmem:[#allocation9 + $0x7b8] sm:$0xff]
      %v649 = vld [vmem:[#allocation9 + $0x7c0] sm:$0xff]
      %v650 = vld [vmem:[#allocation9 + $0x7c8] sm:$0xff]
      %v651 = vld [vmem:[#allocation9 + $0x7d0] sm:$0xff]
      %v652 = vld [vmem:[#allocation9 + $0x7d8] sm:$0xff]
      %v653 = vld [vmem:[#allocation9 + $0x7e0] sm:$0xff]
      %v654 = vld [vmem:[#allocation9 + $0x7e8] sm:$0xff]
      %v655 = vld [vmem:[#allocation9 + $0x7f0] sm:$0xff]
      %v656 = vld [vmem:[#allocation9 + $0x7f8] sm:$0xff]
      %v657 = vld [vmem:[#allocation9 + $0x800] sm:$0xff]
      %v658 = vld [vmem:[#allocation9 + $0x808] sm:$0xff]
      %v659 = vld [vmem:[#allocation9 + $0x810] sm:$0xff]
      %v660 = vld [vmem:[#allocation9 + $0x818] sm:$0xff]
      %v661 = vld [vmem:[#allocation9 + $0x820] sm:$0xff]
      %v662 = vld [vmem:[#allocation9 + $0x828] sm:$0xff]
      %v663 = vld [vmem:[#allocation9 + $0x830] sm:$0xff]
      %v664 = vld [vmem:[#allocation9 + $0x838] sm:$0xff]
      %v665 = vld [vmem:[#allocation9 + $0x840] sm:$0xff]
      %v666 = vld [vmem:[#allocation9 + $0x848] sm:$0xff]
      %v667 = vld [vmem:[#allocation9 + $0x850] sm:$0xff]
      %v668 = vld [vmem:[#allocation9 + $0x858] sm:$0xff]
      %v669 = vld [vmem:[#allocation9 + $0x860] sm:$0xff]
      %v670 = vld [vmem:[#allocation9 + $0x868] sm:$0xff]
      %v671 = vld [vmem:[#allocation9 + $0x870] sm:$0xff]
      %v672 = vld [vmem:[#allocation9 + $0x878] sm:$0xff]
      %v673 = vld [vmem:[#allocation9 + $0x880] sm:$0xff]
      %v674 = vld [vmem:[#allocation9 + $0x888] sm:$0xff]
      %v675 = vld [vmem:[#allocation9 + $0x890] sm:$0xff]
      %v676 = vld [vmem:[#allocation9 + $0x898] sm:$0xff]
      %v677 = vld [vmem:[#allocation9 + $0x8a0] sm:$0xff]
      %v678 = vld [vmem:[#allocation9 + $0x8a8] sm:$0xff]
      %v679 = vld [vmem:[#allocation9 + $0x8b0] sm:$0xff]
      %v680 = vld [vmem:[#allocation9 + $0x8b8] sm:$0xff]
      %v681 = vld [vmem:[#allocation9 + $0x8c0] sm:$0xff]
      %v682 = vld [vmem:[#allocation9 + $0x8c8] sm:$0xff]
      %v683 = vld [vmem:[#allocation9 + $0x8d0] sm:$0xff]
      %v684 = vld [vmem:[#allocation9 + $0x8d8] sm:$0xff]
      %v685 = vld [vmem:[#allocation9 + $0x8e0] sm:$0xff]
      %v686 = vld [vmem:[#allocation9 + $0x8e8] sm:$0xff]
      %v687 = vld [vmem:[#allocation9 + $0x8f0] sm:$0xff]
      %v688 = vld [vmem:[#allocation9 + $0x8f8] sm:$0xff]
      %v689 = vld [vmem:[#allocation9 + $0x900] sm:$0xff]
      %v690 = vld [vmem:[#allocation9 + $0x908] sm:$0xff]
      %v691 = vld [vmem:[#allocation9 + $0x910] sm:$0xff]
      %v692 = vld [vmem:[#allocation9 + $0x918] sm:$0xff]
      %v693 = vld [vmem:[#allocation9 + $0x920] sm:$0xff]
      %v694 = vld [vmem:[#allocation9 + $0x928] sm:$0xff]
      %v695 = vld [vmem:[#allocation9 + $0x930] sm:$0xff]
      %v696 = vld [vmem:[#allocation9 + $0x938] sm:$0xff]
      %v697 = vld [vmem:[#allocation9 + $0x940] sm:$0xff]
      %v698 = vld [vmem:[#allocation9 + $0x948] sm:$0xff]
      %v699 = vld [vmem:[#allocation9 + $0x950] sm:$0xff]
      %v700 = vld [vmem:[#allocation9 + $0x958] sm:$0xff]
      %v701 = vld [vmem:[#allocation9 + $0x960] sm:$0xff]
      %v702 = vld [vmem:[#allocation9 + $0x968] sm:$0xff]
      %v703 = vld [vmem:[#allocation9 + $0x970] sm:$0xff]
      %v704 = vld [vmem:[#allocation9 + $0x978] sm:$0xff]
      %v705 = vld [vmem:[#allocation9 + $0x980] sm:$0xff]
      %v706 = vld [vmem:[#allocation9 + $0x988] sm:$0xff]
      %v707 = vld [vmem:[#allocation9 + $0x990] sm:$0xff]
      %v708 = vld [vmem:[#allocation9 + $0x998] sm:$0xff]
      %v709 = vld [vmem:[#allocation9 + $0x9a0] sm:$0xff]
      %v710 = vld [vmem:[#allocation9 + $0x9a8] sm:$0xff]
      %v711 = vld [vmem:[#allocation9 + $0x9b0] sm:$0xff]
      %v712 = vld [vmem:[#allocation9 + $0x9b8] sm:$0xff]
      %v713 = vld [vmem:[#allocation9 + $0x9c0] sm:$0xff]
      %v714 = vld [vmem:[#allocation9 + $0x9c8] sm:$0xff]
      %v715 = vld [vmem:[#allocation9 + $0x9d0] sm:$0xff]
      %v716 = vld [vmem:[#allocation9 + $0x9d8] sm:$0xff]
      %v717 = vld [vmem:[#allocation9 + $0x9e0] sm:$0xff]
      %v718 = vld [vmem:[#allocation9 + $0x9e8] sm:$0xff]
      %v719 = vld [vmem:[#allocation9 + $0x9f0] sm:$0xff]
      %v720 = vld [vmem:[#allocation9 + $0x9f8] sm:$0xff]
      %v721 = vld [vmem:[#allocation9 + $0xa00] sm:$0xff]
      %v722 = vld [vmem:[#allocation9 + $0xa08] sm:$0xff]
      %v723 = vld [vmem:[#allocation9 + $0xa10] sm:$0xff]
      %v724 = vld [vmem:[#allocation9 + $0xa18] sm:$0xff]
      %v725 = vld [vmem:[#allocation9 + $0xa20] sm:$0xff]
      %v726 = vld [vmem:[#allocation9 + $0xa28] sm:$0xff]
      %v727 = vld [vmem:[#allocation9 + $0xa30] sm:$0xff]
      %v728 = vld [vmem:[#allocation9 + $0xa38] sm:$0xff]
      %v729 = vld [vmem:[#allocation9 + $0xa40] sm:$0xff]
      %v730 = vld [vmem:[#allocation9 + $0xa48] sm:$0xff]
      %v731 = vld [vmem:[#allocation9 + $0xa50] sm:$0xff]
      %v732 = vld [vmem:[#allocation9 + $0xa58] sm:$0xff]
      %v733 = vld [vmem:[#allocation9 + $0xa60] sm:$0xff]
      %v734 = vld [vmem:[#allocation9 + $0xa68] sm:$0xff]
      %v735 = vld [vmem:[#allocation9 + $0xa70] sm:$0xff]
      %v736 = vld [vmem:[#allocation9 + $0xa78] sm:$0xff]
      %v737 = vld [vmem:[#allocation9 + $0xa80] sm:$0xff]
      %v738 = vld [vmem:[#allocation9 + $0xa88] sm:$0xff]
      %v739 = vld [vmem:[#allocation9 + $0xa90] sm:$0xff]
      %v740 = vld [vmem:[#allocation9 + $0xa98] sm:$0xff]
      %v741 = vld [vmem:[#allocation9 + $0xaa0] sm:$0xff]
      %v742 = vld [vmem:[#allocation9 + $0xaa8] sm:$0xff]
      %v743 = vld [vmem:[#allocation9 + $0xab0] sm:$0xff]
      %v744 = vld [vmem:[#allocation9 + $0xab8] sm:$0xff]
      %v745 = vld [vmem:[#allocation9 + $0xac0] sm:$0xff]
      %v746 = vld [vmem:[#allocation9 + $0xac8] sm:$0xff]
      %v747 = vld [vmem:[#allocation9 + $0xad0] sm:$0xff]
      %v748 = vld [vmem:[#allocation9 + $0xad8] sm:$0xff]
      %v749 = vld [vmem:[#allocation9 + $0xae0] sm:$0xff]
      %v750 = vld [vmem:[#allocation9 + $0xae8] sm:$0xff]
      %v751 = vld [vmem:[#allocation9 + $0xaf0] sm:$0xff]
      %v752 = vld [vmem:[#allocation9 + $0xaf8] sm:$0xff]
      %v753 = vld [vmem:[#allocation9 + $0xb00] sm:$0xff]
      %v754 = vld [vmem:[#allocation9 + $0xb08] sm:$0xff]
      %v755 = vld [vmem:[#allocation9 + $0xb10] sm:$0xff]
      %v756 = vld [vmem:[#allocation9 + $0xb18] sm:$0xff]
      %v757 = vld [vmem:[#allocation9 + $0xb20] sm:$0xff]
      %v758 = vld [vmem:[#allocation9 + $0xb28] sm:$0xff]
      %v759 = vld [vmem:[#allocation9 + $0xb30] sm:$0xff]
      %v760 = vld [vmem:[#allocation9 + $0xb38] sm:$0xff]
      %v761 = vld [vmem:[#allocation9 + $0xb40] sm:$0xff]
      %v762 = vld [vmem:[#allocation9 + $0xb48] sm:$0xff]
      %v763 = vld [vmem:[#allocation9 + $0xb50] sm:$0xff]
      %v764 = vld [vmem:[#allocation9 + $0xb58] sm:$0xff]
      %v765 = vld [vmem:[#allocation9 + $0xb60] sm:$0xff]
      %v766 = vld [vmem:[#allocation9 + $0xb68] sm:$0xff]
      %v767 = vld [vmem:[#allocation9 + $0xb70] sm:$0xff]
      %v768 = vld [vmem:[#allocation9 + $0xb78] sm:$0xff]
      %v769 = vld [vmem:[#allocation9 + $0xb80] sm:$0xff]
      %v770 = vld [vmem:[#allocation9 + $0xb88] sm:$0xff]
      %v771 = vld [vmem:[#allocation9 + $0xb90] sm:$0xff]
      %v772 = vld [vmem:[#allocation9 + $0xb98] sm:$0xff]
      %v773 = vld [vmem:[#allocation9 + $0xba0] sm:$0xff]
      %v774 = vld [vmem:[#allocation9 + $0xba8] sm:$0xff]
      %v775 = vld [vmem:[#allocation9 + $0xbb0] sm:$0xff]
      %v776 = vld [vmem:[#allocation9 + $0xbb8] sm:$0xff]
      %v777 = vld [vmem:[#allocation9 + $0xbc0] sm:$0xff]
      %v778 = vld [vmem:[#allocation9 + $0xbc8] sm:$0xff]
      %v779 = vld [vmem:[#allocation9 + $0xbd0] sm:$0xff]
      %v780 = vld [vmem:[#allocation9 + $0xbd8] sm:$0xff]
      %v781 = vld [vmem:[#allocation9 + $0xbe0] sm:$0xff]
      %v782 = vld [vmem:[#allocation9 + $0xbe8] sm:$0xff]
      %v783 = vld [vmem:[#allocation9 + $0xbf0] sm:$0xff]
      %v784 = vld [vmem:[#allocation9 + $0xbf8] sm:$0xff]
      %v785 = vld [vmem:[#allocation9 + $0xc00] sm:$0xff]
      %v786 = vld [vmem:[#allocation9 + $0xc08] sm:$0xff]
      %v787 = vld [vmem:[#allocation9 + $0xc10] sm:$0xff]
      %v788 = vld [vmem:[#allocation9 + $0xc18] sm:$0xff]
      %v789 = vld [vmem:[#allocation9 + $0xc20] sm:$0xff]
      %v790 = vld [vmem:[#allocation9 + $0xc28] sm:$0xff]
      %v791 = vld [vmem:[#allocation9 + $0xc30] sm:$0xff]
      %v792 = vld [vmem:[#allocation9 + $0xc38] sm:$0xff]
      %v793 = vld [vmem:[#allocation9 + $0xc40] sm:$0xff]
      %v794 = vld [vmem:[#allocation9 + $0xc48] sm:$0xff]
      %v795 = vld [vmem:[#allocation9 + $0xc50] sm:$0xff]
      %v796 = vld [vmem:[#allocation9 + $0xc58] sm:$0xff]
      %v797 = vld [vmem:[#allocation9 + $0xc60] sm:$0xff]
      %v798 = vld [vmem:[#allocation9 + $0xc68] sm:$0xff]
      %v799 = vld [vmem:[#allocation9 + $0xc70] sm:$0xff]
      %v800 = vld [vmem:[#allocation9 + $0xc78] sm:$0xff]
      %v801 = vld [vmem:[#allocation9 + $0xc80] sm:$0xff]
      %v802 = vld [vmem:[#allocation9 + $0xc88] sm:$0xff]
      %v803 = vld [vmem:[#allocation9 + $0xc90] sm:$0xff]
      %v804 = vld [vmem:[#allocation9 + $0xc98] sm:$0xff]
      %v805 = vld [vmem:[#allocation9 + $0xca0] sm:$0xff]
      %v806 = vld [vmem:[#allocation9 + $0xca8] sm:$0xff]
      %v807 = vld [vmem:[#allocation9 + $0xcb0] sm:$0xff]
      %v808 = vld [vmem:[#allocation9 + $0xcb8] sm:$0xff]
      %v809 = vld [vmem:[#allocation9 + $0xcc0] sm:$0xff]
      %v810 = vld [vmem:[#allocation9 + $0xcc8] sm:$0xff]
      %v811 = vld [vmem:[#allocation9 + $0xcd0] sm:$0xff]
      %v812 = vld [vmem:[#allocation9 + $0xcd8] sm:$0xff]
      %v813 = vld [vmem:[#allocation9 + $0xce0] sm:$0xff]
      %v814 = vld [vmem:[#allocation9 + $0xce8] sm:$0xff]
      %v815 = vld [vmem:[#allocation9 + $0xcf0] sm:$0xff]
      %v816 = vld [vmem:[#allocation9 + $0xcf8] sm:$0xff]
      %v817 = vld [vmem:[#allocation9 + $0xd00] sm:$0xff]
      %v818 = vld [vmem:[#allocation9 + $0xd08] sm:$0xff]
      %v819 = vld [vmem:[#allocation9 + $0xd10] sm:$0xff]
      %v820 = vld [vmem:[#allocation9 + $0xd18] sm:$0xff]
      %v821 = vld [vmem:[#allocation9 + $0xd20] sm:$0xff]
      %v822 = vld [vmem:[#allocation9 + $0xd28] sm:$0xff]
      %v823 = vld [vmem:[#allocation9 + $0xd30] sm:$0xff]
      %v824 = vld [vmem:[#allocation9 + $0xd38] sm:$0xff]
      %v825 = vld [vmem:[#allocation9 + $0xd40] sm:$0xff]
      %v826 = vld [vmem:[#allocation9 + $0xd48] sm:$0xff]
      %v827 = vld [vmem:[#allocation9 + $0xd50] sm:$0xff]
      %v828 = vld [vmem:[#allocation9 + $0xd58] sm:$0xff]
      %v829 = vld [vmem:[#allocation9 + $0xd60] sm:$0xff]
      %v830 = vld [vmem:[#allocation9 + $0xd68] sm:$0xff]
      %v831 = vld [vmem:[#allocation9 + $0xd70] sm:$0xff]
      %v832 = vld [vmem:[#allocation9 + $0xd78] sm:$0xff]
      %v833 = vld [vmem:[#allocation9 + $0xd80] sm:$0xff]
      %v834 = vld [vmem:[#allocation9 + $0xd88] sm:$0xff]
      %v835 = vld [vmem:[#allocation9 + $0xd90] sm:$0xff]
      %v836 = vld [vmem:[#allocation9 + $0xd98] sm:$0xff]
      %v837 = vld [vmem:[#allocation9 + $0xda0] sm:$0xff]
      %v838 = vld [vmem:[#allocation9 + $0xda8] sm:$0xff]
      %v839 = vld [vmem:[#allocation9 + $0xdb0] sm:$0xff]
      %v840 = vld [vmem:[#allocation9 + $0xdb8] sm:$0xff]
      %v841 = vld [vmem:[#allocation9 + $0xdc0] sm:$0xff]
      %v842 = vld [vmem:[#allocation9 + $0xdc8] sm:$0xff]
      %v843 = vld [vmem:[#allocation9 + $0xdd0] sm:$0xff]
      %v844 = vld [vmem:[#allocation9 + $0xdd8] sm:$0xff]
      %v845 = vld [vmem:[#allocation9 + $0xde0] sm:$0xff]
      %v846 = vld [vmem:[#allocation9 + $0xde8] sm:$0xff]
      %v847 = vld [vmem:[#allocation9 + $0xdf0] sm:$0xff]
      %v848 = vld [vmem:[#allocation9 + $0xdf8] sm:$0xff]
      %v849 = vld [vmem:[#allocation9 + $0xe00] sm:$0xff]
      %v850 = vld [vmem:[#allocation9 + $0xe08] sm:$0xff]
      %v851 = vld [vmem:[#allocation9 + $0xe10] sm:$0xff]
      %v852 = vld [vmem:[#allocation9 + $0xe18] sm:$0xff]
      %v853 = vld [vmem:[#allocation9 + $0xe20] sm:$0xff]
      %v854 = vld [vmem:[#allocation9 + $0xe28] sm:$0xff]
      %v855 = vld [vmem:[#allocation9 + $0xe30] sm:$0xff]
      %v856 = vld [vmem:[#allocation9 + $0xe38] sm:$0xff]
      %v857 = vld [vmem:[#allocation9 + $0xe40] sm:$0xff]
      %v858 = vld [vmem:[#allocation9 + $0xe48] sm:$0xff]
      %v859 = vld [vmem:[#allocation9 + $0xe50] sm:$0xff]
      %v860 = vld [vmem:[#allocation9 + $0xe58] sm:$0xff]
      %v861 = vld [vmem:[#allocation9 + $0xe60] sm:$0xff]
      %v862 = vld [vmem:[#allocation9 + $0xe68] sm:$0xff]
      %v863 = vld [vmem:[#allocation9 + $0xe70] sm:$0xff]
      %v864 = vld [vmem:[#allocation9 + $0xe78] sm:$0xff]
      %v865 = vld [vmem:[#allocation9 + $0xe80] sm:$0xff]
      %v866 = vld [vmem:[#allocation9 + $0xe88] sm:$0xff]
      %v867 = vld [vmem:[#allocation9 + $0xe90] sm:$0xff]
      %v868 = vld [vmem:[#allocation9 + $0xe98] sm:$0xff]
      %v869 = vld [vmem:[#allocation9 + $0xea0] sm:$0xff]
      %v870 = vld [vmem:[#allocation9 + $0xea8] sm:$0xff]
      %v871 = vld [vmem:[#allocation9 + $0xeb0] sm:$0xff]
      %v872 = vld [vmem:[#allocation9 + $0xeb8] sm:$0xff]
      %v873 = vld [vmem:[#allocation9 + $0xec0] sm:$0xff]
      %v874 = vld [vmem:[#allocation9 + $0xec8] sm:$0xff]
      %v875 = vld [vmem:[#allocation9 + $0xed0] sm:$0xff]
      %v876 = vld [vmem:[#allocation9 + $0xed8] sm:$0xff]
      %v877 = vld [vmem:[#allocation9 + $0xee0] sm:$0xff]
      %v878 = vld [vmem:[#allocation9 + $0xee8] sm:$0xff]
      %v879 = vld [vmem:[#allocation9 + $0xef0] sm:$0xff]
      %v880 = vld [vmem:[#allocation9 + $0xef8] sm:$0xff]
      %v881 = vld [vmem:[#allocation9 + $0xf00] sm:$0xff]
      %v882 = vld [vmem:[#allocation9 + $0xf08] sm:$0xff]
      %v883 = vld [vmem:[#allocation9 + $0xf10] sm:$0xff]
      %v884 = vld [vmem:[#allocation9 + $0xf18] sm:$0xff]
      %v885 = vld [vmem:[#allocation9 + $0xf20] sm:$0xff]
      %v886 = vld [vmem:[#allocation9 + $0xf28] sm:$0xff]
      %v887 = vld [vmem:[#allocation9 + $0xf30] sm:$0xff]
      %v888 = vld [vmem:[#allocation9 + $0xf38] sm:$0xff]
      %v889 = vld [vmem:[#allocation9 + $0xf40] sm:$0xff]
      %v890 = vld [vmem:[#allocation9 + $0xf48] sm:$0xff]
      %v891 = vld [vmem:[#allocation9 + $0xf50] sm:$0xff]
      %v892 = vld [vmem:[#allocation9 + $0xf58] sm:$0xff]
      %v893 = vld [vmem:[#allocation9 + $0xf60] sm:$0xff]
      %v894 = vld [vmem:[#allocation9 + $0xf68] sm:$0xff]
      %v895 = vld [vmem:[#allocation9 + $0xf70] sm:$0xff]
      %v896 = vld [vmem:[#allocation9 + $0xf78] sm:$0xff]
      %v897 = vld [vmem:[#allocation9 + $0xf80] sm:$0xff]
      %v898 = vld [vmem:[#allocation9 + $0xf88] sm:$0xff]
      %v899 = vld [vmem:[#allocation9 + $0xf90] sm:$0xff]
      %v900 = vld [vmem:[#allocation9 + $0xf98] sm:$0xff]
      %v901 = vld [vmem:[#allocation9 + $0xfa0] sm:$0xff]
      %v902 = vld [vmem:[#allocation9 + $0xfa8] sm:$0xff]
      %v903 = vld [vmem:[#allocation9 + $0xfb0] sm:$0xff]
      %v904 = vld [vmem:[#allocation9 + $0xfb8] sm:$0xff]
      %v905 = vld [vmem:[#allocation9 + $0xfc0] sm:$0xff]
      %v906 = vld [vmem:[#allocation9 + $0xfc8] sm:$0xff]
      %v907 = vld [vmem:[#allocation9 + $0xfd0] sm:$0xff]
      %v908 = vld [vmem:[#allocation9 + $0xfd8] sm:$0xff]
      %v909 = vld [vmem:[#allocation9 + $0xfe0] sm:$0xff]
      %v910 = vld [vmem:[#allocation9 + $0xfe8] sm:$0xff]
      %v911 = vld [vmem:[#allocation9 + $0xff0] sm:$0xff]
      %v912 = vld [vmem:[#allocation9 + $0xff8] sm:$0xff]
      %v913 = vld [vmem:[#allocation9 + $0x1000] sm:$0xff]
      %v914 = vld [vmem:[#allocation9 + $0x1008] sm:$0xff]
      %v915 = vld [vmem:[#allocation9 + $0x1010] sm:$0xff]
      %v916 = vld [vmem:[#allocation9 + $0x1018] sm:$0xff]
      %v917 = vld [vmem:[#allocation9 + $0x1020] sm:$0xff]
      %v918 = vld [vmem:[#allocation9 + $0x1028] sm:$0xff]
      %v919 = vld [vmem:[#allocation9 + $0x1030] sm:$0xff]
      %v920 = vld [vmem:[#allocation9 + $0x1038] sm:$0xff]
      %v921 = vld [vmem:[#allocation9 + $0x1040] sm:$0xff]
      %v922 = vld [vmem:[#allocation9 + $0x1048] sm:$0xff]
      %v923 = vld [vmem:[#allocation9 + $0x1050] sm:$0xff]
      %v924 = vld [vmem:[#allocation9 + $0x1058] sm:$0xff]
      %v925 = vld [vmem:[#allocation9 + $0x1060] sm:$0xff]
      %v926 = vld [vmem:[#allocation9 + $0x1068] sm:$0xff]
      %v927 = vld [vmem:[#allocation9 + $0x1070] sm:$0xff]
      %v928 = vld [vmem:[#allocation9 + $0x1078] sm:$0xff]
      %v929 = vld [vmem:[#allocation9 + $0x1080] sm:$0xff]
      %v930 = vld [vmem:[#allocation9 + $0x1088] sm:$0xff]
      %v931 = vld [vmem:[#allocation9 + $0x1090] sm:$0xff]
      %v932 = vld [vmem:[#allocation9 + $0x1098] sm:$0xff]
      %v933 = vld [vmem:[#allocation9 + $0x10a0] sm:$0xff]
      %v934 = vld [vmem:[#allocation9 + $0x10a8] sm:$0xff]
      %v935 = vld [vmem:[#allocation9 + $0x10b0] sm:$0xff]
      %v936 = vld [vmem:[#allocation9 + $0x10b8] sm:$0xff]
      %v937 = vld [vmem:[#allocation9 + $0x10c0] sm:$0xff]
      %v938 = vld [vmem:[#allocation9 + $0x10c8] sm:$0xff]
      %v939 = vld [vmem:[#allocation9 + $0x10d0] sm:$0xff]
      %v940 = vld [vmem:[#allocation9 + $0x10d8] sm:$0xff]
      %v941 = vld [vmem:[#allocation9 + $0x10e0] sm:$0xff]
      %v942 = vld [vmem:[#allocation9 + $0x10e8] sm:$0xff]
      %v943 = vld [vmem:[#allocation9 + $0x10f0] sm:$0xff]
      %v944 = vld [vmem:[#allocation9 + $0x10f8] sm:$0xff]
      %v945 = vld [vmem:[#allocation9 + $0x1100] sm:$0xff]
      %v946 = vld [vmem:[#allocation9 + $0x1108] sm:$0xff]
      %v947 = vld [vmem:[#allocation9 + $0x1110] sm:$0xff]
      %v948 = vld [vmem:[#allocation9 + $0x1118] sm:$0xff]
      %v949 = vld [vmem:[#allocation9 + $0x1120] sm:$0xff]
      %v950 = vld [vmem:[#allocation9 + $0x1128] sm:$0xff]
      %v951 = vld [vmem:[#allocation9 + $0x1130] sm:$0xff]
      %v952 = vld [vmem:[#allocation9 + $0x1138] sm:$0xff]
      %v953 = vld [vmem:[#allocation9 + $0x1140] sm:$0xff]
      %v954 = vld [vmem:[#allocation9 + $0x1148] sm:$0xff]
      %v955 = vld [vmem:[#allocation9 + $0x1150] sm:$0xff]
      %v956 = vld [vmem:[#allocation9 + $0x1158] sm:$0xff]
      %v957 = vld [vmem:[#allocation9 + $0x1160] sm:$0xff]
      %v958 = vld [vmem:[#allocation9 + $0x1168] sm:$0xff]
      %v959 = vld [vmem:[#allocation9 + $0x1170] sm:$0xff]
      %v960 = vld [vmem:[#allocation9 + $0x1178] sm:$0xff]
      %v961 = vld [vmem:[#allocation9 + $0x1180] sm:$0xff]
      %v962 = vld [vmem:[#allocation9 + $0x1188] sm:$0xff]
      %v963 = vld [vmem:[#allocation9 + $0x1190] sm:$0xff]
      %v964 = vld [vmem:[#allocation9 + $0x1198] sm:$0xff]
      %v965 = vld [vmem:[#allocation9 + $0x11a0] sm:$0xff]
      %v966 = vld [vmem:[#allocation9 + $0x11a8] sm:$0xff]
      %v967 = vld [vmem:[#allocation9 + $0x11b0] sm:$0xff]
      %v968 = vld [vmem:[#allocation9 + $0x11b8] sm:$0xff]
      %v969 = vld [vmem:[#allocation9 + $0x11c0] sm:$0xff]
      %v970 = vld [vmem:[#allocation9 + $0x11c8] sm:$0xff]
      %v971 = vld [vmem:[#allocation9 + $0x11d0] sm:$0xff]
      %v972 = vld [vmem:[#allocation9 + $0x11d8] sm:$0xff]
      %v973 = vld [vmem:[#allocation9 + $0x11e0] sm:$0xff]
      %v974 = vld [vmem:[#allocation9 + $0x11e8] sm:$0xff]
      %v975 = vld [vmem:[#allocation9 + $0x11f0] sm:$0xff]
      %v976 = vld [vmem:[#allocation9 + $0x11f8] sm:$0xff]
      %v977 = vld [vmem:[#allocation9 + $0x1200] sm:$0xff]
      %v978 = vld [vmem:[#allocation9 + $0x1208] sm:$0xff]
      %v979 = vld [vmem:[#allocation9 + $0x1210] sm:$0xff]
      %v980 = vld [vmem:[#allocation9 + $0x1218] sm:$0xff]
      %v981 = vld [vmem:[#allocation9 + $0x1220] sm:$0xff]
      %v982 = vld [vmem:[#allocation9 + $0x1228] sm:$0xff]
      %v983 = vld [vmem:[#allocation9 + $0x1230] sm:$0xff]
      %v984 = vld [vmem:[#allocation9 + $0x1238] sm:$0xff]
      %v985 = vld [vmem:[#allocation9 + $0x1240] sm:$0xff]
      %v986 = vld [vmem:[#allocation9 + $0x1248] sm:$0xff]
      %v987 = vld [vmem:[#allocation9 + $0x1250] sm:$0xff]
      %v988 = vld [vmem:[#allocation9 + $0x1258] sm:$0xff]
      %v989 = vld [vmem:[#allocation9 + $0x1260] sm:$0xff]
      %v990 = vld [vmem:[#allocation9 + $0x1268] sm:$0xff]
      %v991 = vld [vmem:[#allocation9 + $0x1270] sm:$0xff]
      %v992 = vld [vmem:[#allocation9 + $0x1278] sm:$0xff]
      %v993 = vld [vmem:[#allocation9 + $0x1280] sm:$0xff]
      %v994 = vld [vmem:[#allocation9 + $0x1288] sm:$0xff]
      %v995 = vld [vmem:[#allocation9 + $0x1290] sm:$0xff]
      %v996 = vld [vmem:[#allocation9 + $0x1298] sm:$0xff]
      %v997 = vld [vmem:[#allocation9 + $0x12a0] sm:$0xff]
      %v998 = vld [vmem:[#allocation9 + $0x12a8] sm:$0xff]
      %v999 = vld [vmem:[#allocation9 + $0x12b0] sm:$0xff]
      %v1000 = vld [vmem:[#allocation9 + $0x12b8] sm:$0xff]
      %v1001 = vld [vmem:[#allocation9 + $0x12c0] sm:$0xff]
      %v1002 = vld [vmem:[#allocation9 + $0x12c8] sm:$0xff]
      %v1003 = vld [vmem:[#allocation9 + $0x12d0] sm:$0xff]
      %v1004 = vld [vmem:[#allocation9 + $0x12d8] sm:$0xff]
      %v1005 = vld [vmem:[#allocation9 + $0x12e0] sm:$0xff]
      %v1006 = vld [vmem:[#allocation9 + $0x12e8] sm:$0xff]
      %v1007 = vld [vmem:[#allocation9 + $0x12f0] sm:$0xff]
      %v1008 = vld [vmem:[#allocation9 + $0x12f8] sm:$0xff]
      %v1009 = vld [vmem:[#allocation9 + $0x1300] sm:$0xff]
      %v1010 = vld [vmem:[#allocation9 + $0x1308] sm:$0xff]
      %v1011 = vld [vmem:[#allocation9 + $0x1310] sm:$0xff]
      %v1012 = vld [vmem:[#allocation9 + $0x1318] sm:$0xff]
      %v1013 = vld [vmem:[#allocation9 + $0x1320] sm:$0xff]
      %v1014 = vld [vmem:[#allocation9 + $0x1328] sm:$0xff]
      %v1015 = vld [vmem:[#allocation9 + $0x1330] sm:$0xff]
      %v1016 = vld [vmem:[#allocation9 + $0x1338] sm:$0xff]
      %v1017 = vld [vmem:[#allocation9 + $0x1340] sm:$0xff]
      %v1018 = vld [vmem:[#allocation9 + $0x1348] sm:$0xff]
      %v1019 = vld [vmem:[#allocation9 + $0x1350] sm:$0xff]
      %v1020 = vld [vmem:[#allocation9 + $0x1358] sm:$0xff]
      %v1021 = vld [vmem:[#allocation9 + $0x1360] sm:$0xff]
      %v1022 = vld [vmem:[#allocation9 + $0x1368] sm:$0xff]
      %v1023 = vld [vmem:[#allocation9 + $0x1370] sm:$0xff]
      %v1024 = vld [vmem:[#allocation9 + $0x1378] sm:$0xff]
      %v1025 = vld [vmem:[#allocation9 + $0x1380] sm:$0xff]
      %v1026 = vld [vmem:[#allocation9 + $0x1388] sm:$0xff]
      %v1027 = vld [vmem:[#allocation9 + $0x1390] sm:$0xff]
      %v1028 = vld [vmem:[#allocation9 + $0x1398] sm:$0xff]
      %v1029 = vld [vmem:[#allocation9 + $0x13a0] sm:$0xff]
      %v1030 = vld [vmem:[#allocation9 + $0x13a8] sm:$0xff]
      %v1031 = vld [vmem:[#allocation9 + $0x13b0] sm:$0xff]
      %v1032 = vld [vmem:[#allocation9 + $0x13b8] sm:$0xff]
      %v1033 = vld [vmem:[#allocation9 + $0x13c0] sm:$0xff]
      %v1034 = vld [vmem:[#allocation9 + $0x13c8] sm:$0xff]
      %v1035 = vld [vmem:[#allocation9 + $0x13d0] sm:$0xff]
      %v1036 = vld [vmem:[#allocation9 + $0x13d8] sm:$0xff]
      %v1037 = vld [vmem:[#allocation9 + $0x13e0] sm:$0xff]
      %v1038 = vld [vmem:[#allocation9 + $0x13e8] sm:$0xff]
      %v1039 = vld [vmem:[#allocation9 + $0x13f0] sm:$0xff]
      %v1040 = vld [vmem:[#allocation9 + $0x13f8] sm:$0xff]
      %v1041 = vld [vmem:[#allocation9 + $0x1400] sm:$0xff]
      %v1042 = vld [vmem:[#allocation9 + $0x1408] sm:$0xff]
      %v1043 = vld [vmem:[#allocation9 + $0x1410] sm:$0xff]
      %v1044 = vld [vmem:[#allocation9 + $0x1418] sm:$0xff]
      %v1045 = vld [vmem:[#allocation9 + $0x1420] sm:$0xff]
      %v1046 = vld [vmem:[#allocation9 + $0x1428] sm:$0xff]
      %v1047 = vld [vmem:[#allocation9 + $0x1430] sm:$0xff]
      %v1048 = vld [vmem:[#allocation9 + $0x1438] sm:$0xff]
      %v1049 = vld [vmem:[#allocation9 + $0x1440] sm:$0xff]
      %v1050 = vld [vmem:[#allocation9 + $0x1448] sm:$0xff]
      %v1051 = vld [vmem:[#allocation9 + $0x1450] sm:$0xff]
      %v1052 = vld [vmem:[#allocation9 + $0x1458] sm:$0xff]
      %v1053 = vld [vmem:[#allocation9 + $0x1460] sm:$0xff]
      %v1054 = vld [vmem:[#allocation9 + $0x1468] sm:$0xff]
      %v1055 = vld [vmem:[#allocation9 + $0x1470] sm:$0xff]
      %v1056 = vld [vmem:[#allocation9 + $0x1478] sm:$0xff]
      %v1057 = vld [vmem:[#allocation9 + $0x1480] sm:$0xff]
      %v1058 = vld [vmem:[#allocation9 + $0x1488] sm:$0xff]
      %v1059 = vld [vmem:[#allocation9 + $0x1490] sm:$0xff]
      %v1060 = vld [vmem:[#allocation9 + $0x1498] sm:$0xff]
      %v1061 = vld [vmem:[#allocation9 + $0x14a0] sm:$0xff]
      %v1062 = vld [vmem:[#allocation9 + $0x14a8] sm:$0xff]
      %v1063 = vld [vmem:[#allocation9 + $0x14b0] sm:$0xff]
      %v1064 = vld [vmem:[#allocation9 + $0x14b8] sm:$0xff]
      %v1065 = vld [vmem:[#allocation9 + $0x14c0] sm:$0xff]
      %v1066 = vld [vmem:[#allocation9 + $0x14c8] sm:$0xff]
      %v1067 = vld [vmem:[#allocation9 + $0x14d0] sm:$0xff]
      %v1068 = vld [vmem:[#allocation9 + $0x14d8] sm:$0xff]
      %v1069 = vld [vmem:[#allocation9 + $0x14e0] sm:$0xff]
      %v1070 = vld [vmem:[#allocation9 + $0x14e8] sm:$0xff]
      %v1071 = vld [vmem:[#allocation9 + $0x14f0] sm:$0xff]
      %v1072 = vld [vmem:[#allocation9 + $0x14f8] sm:$0xff]
      %v1073 = vld [vmem:[#allocation9 + $0x1500] sm:$0xff]
      %v1074 = vld [vmem:[#allocation9 + $0x1508] sm:$0xff]
      %v1075 = vld [vmem:[#allocation9 + $0x1510] sm:$0xff]
      %v1076 = vld [vmem:[#allocation9 + $0x1518] sm:$0xff]
      %v1077 = vld [vmem:[#allocation9 + $0x1520] sm:$0xff]
      %v1078 = vld [vmem:[#allocation9 + $0x1528] sm:$0xff]
      %v1079 = vld [vmem:[#allocation9 + $0x1530] sm:$0xff]
      %v1080 = vld [vmem:[#allocation9 + $0x1538] sm:$0xff]
      %v1081 = vld [vmem:[#allocation9 + $0x1540] sm:$0xff]
      %v1082 = vld [vmem:[#allocation9 + $0x1548] sm:$0xff]
      %v1083 = vld [vmem:[#allocation9 + $0x1550] sm:$0xff]
      %v1084 = vld [vmem:[#allocation9 + $0x1558] sm:$0xff]
      %v1085 = vld [vmem:[#allocation9 + $0x1560] sm:$0xff]
      %v1086 = vld [vmem:[#allocation9 + $0x1568] sm:$0xff]
      %v1087 = vld [vmem:[#allocation9 + $0x1570] sm:$0xff]
      %v1088 = vld [vmem:[#allocation9 + $0x1578] sm:$0xff]
      %v1089 = vld [vmem:[#allocation9 + $0x1580] sm:$0xff]
      %v1090 = vld [vmem:[#allocation9 + $0x1588] sm:$0xff]
      %v1091 = vld [vmem:[#allocation9 + $0x1590] sm:$0xff]
      %v1092 = vld [vmem:[#allocation9 + $0x1598] sm:$0xff]
      %v1093 = vld [vmem:[#allocation9 + $0x15a0] sm:$0xff]
      %v1094 = vld [vmem:[#allocation9 + $0x15a8] sm:$0xff]
      %v1095 = vld [vmem:[#allocation9 + $0x15b0] sm:$0xff]
      %v1096 = vld [vmem:[#allocation9 + $0x15b8] sm:$0xff]
      %v1097 = vld [vmem:[#allocation9 + $0x15c0] sm:$0xff]
      %v1098 = vld [vmem:[#allocation9 + $0x15c8] sm:$0xff]
      %v1099 = vld [vmem:[#allocation9 + $0x15d0] sm:$0xff]
      %v1100 = vld [vmem:[#allocation9 + $0x15d8] sm:$0xff]
      %v1101 = vld [vmem:[#allocation9 + $0x15e0] sm:$0xff]
      %v1102 = vld [vmem:[#allocation9 + $0x15e8] sm:$0xff]
      %v1103 = vld [vmem:[#allocation9 + $0x15f0] sm:$0xff]
      %v1104 = vld [vmem:[#allocation9 + $0x15f8] sm:$0xff]
      %v1105 = vld [vmem:[#allocation9 + $0x1600] sm:$0xff]
      %v1106 = vld [vmem:[#allocation9 + $0x1608] sm:$0xff]
      %v1107 = vld [vmem:[#allocation9 + $0x1610] sm:$0xff]
      %v1108 = vld [vmem:[#allocation9 + $0x1618] sm:$0xff]
      %v1109 = vld [vmem:[#allocation9 + $0x1620] sm:$0xff]
      %v1110 = vld [vmem:[#allocation9 + $0x1628] sm:$0xff]
      %v1111 = vld [vmem:[#allocation9 + $0x1630] sm:$0xff]
      %v1112 = vld [vmem:[#allocation9 + $0x1638] sm:$0xff]
      %v1113 = vld [vmem:[#allocation9 + $0x1640] sm:$0xff]
      %v1114 = vld [vmem:[#allocation9 + $0x1648] sm:$0xff]
      %v1115 = vld [vmem:[#allocation9 + $0x1650] sm:$0xff]
      %v1116 = vld [vmem:[#allocation9 + $0x1658] sm:$0xff]
      %v1117 = vld [vmem:[#allocation9 + $0x1660] sm:$0xff]
      %v1118 = vld [vmem:[#allocation9 + $0x1668] sm:$0xff]
      %v1119 = vld [vmem:[#allocation9 + $0x1670] sm:$0xff]
      %v1120 = vld [vmem:[#allocation9 + $0x1678] sm:$0xff]
      %v1121 = vld [vmem:[#allocation9 + $0x1680] sm:$0xff]
      %v1122 = vld [vmem:[#allocation9 + $0x1688] sm:$0xff]
      %v1123 = vld [vmem:[#allocation9 + $0x1690] sm:$0xff]
      %v1124 = vld [vmem:[#allocation9 + $0x1698] sm:$0xff]
      %v1125 = vld [vmem:[#allocation9 + $0x16a0] sm:$0xff]
      %v1126 = vld [vmem:[#allocation9 + $0x16a8] sm:$0xff]
      %v1127 = vld [vmem:[#allocation9 + $0x16b0] sm:$0xff]
      %v1128 = vld [vmem:[#allocation9 + $0x16b8] sm:$0xff]
      %v1129 = vld [vmem:[#allocation9 + $0x16c0] sm:$0xff]
      %v1130 = vld [vmem:[#allocation9 + $0x16c8] sm:$0xff]
      %v1131 = vld [vmem:[#allocation9 + $0x16d0] sm:$0xff]
      %v1132 = vld [vmem:[#allocation9 + $0x16d8] sm:$0xff]
      %v1133 = vld [vmem:[#allocation9 + $0x16e0] sm:$0xff]
      %v1134 = vld [vmem:[#allocation9 + $0x16e8] sm:$0xff]
      %v1135 = vld [vmem:[#allocation9 + $0x16f0] sm:$0xff]
      %v1136 = vld [vmem:[#allocation9 + $0x16f8] sm:$0xff]
      %v1137 = vld [vmem:[#allocation9 + $0x1700] sm:$0xff]
      %v1138 = vld [vmem:[#allocation9 + $0x1708] sm:$0xff]
      %v1139 = vld [vmem:[#allocation9 + $0x1710] sm:$0xff]
      %v1140 = vld [vmem:[#allocation9 + $0x1718] sm:$0xff]
      %v1141 = vld [vmem:[#allocation9 + $0x1720] sm:$0xff]
      %v1142 = vld [vmem:[#allocation9 + $0x1728] sm:$0xff]
      %v1143 = vld [vmem:[#allocation9 + $0x1730] sm:$0xff]
      %v1144 = vld [vmem:[#allocation9 + $0x1738] sm:$0xff]
      %v1145 = vld [vmem:[#allocation9 + $0x1740] sm:$0xff]
      %v1146 = vld [vmem:[#allocation9 + $0x1748] sm:$0xff]
      %v1147 = vld [vmem:[#allocation9 + $0x1750] sm:$0xff]
      %v1148 = vld [vmem:[#allocation9 + $0x1758] sm:$0xff]
      %v1149 = vld [vmem:[#allocation9 + $0x1760] sm:$0xff]
      %v1150 = vld [vmem:[#allocation9 + $0x1768] sm:$0xff]
      %v1151 = vld [vmem:[#allocation9 + $0x1770] sm:$0xff]
      %v1152 = vld [vmem:[#allocation9 + $0x1778] sm:$0xff]
      %v1153 = vld [vmem:[#allocation9 + $0x1780] sm:$0xff]
      %v1154 = vld [vmem:[#allocation9 + $0x1788] sm:$0xff]
      %v1155 = vld [vmem:[#allocation9 + $0x1790] sm:$0xff]
      %v1156 = vld [vmem:[#allocation9 + $0x1798] sm:$0xff]
      %v1157 = vld [vmem:[#allocation9 + $0x17a0] sm:$0xff]
      %v1158 = vld [vmem:[#allocation9 + $0x17a8] sm:$0xff]
      %v1159 = vld [vmem:[#allocation9 + $0x17b0] sm:$0xff]
      %v1160 = vld [vmem:[#allocation9 + $0x17b8] sm:$0xff]
      %v1161 = vld [vmem:[#allocation9 + $0x17c0] sm:$0xff]
      %v1162 = vld [vmem:[#allocation9 + $0x17c8] sm:$0xff]
      %v1163 = vld [vmem:[#allocation9 + $0x17d0] sm:$0xff]
      %v1164 = vld [vmem:[#allocation9 + $0x17d8] sm:$0xff]
      %v1165 = vld [vmem:[#allocation9 + $0x17e0] sm:$0xff]
      %v1166 = vld [vmem:[#allocation9 + $0x17e8] sm:$0xff]
      %v1167 = vld [vmem:[#allocation9 + $0x17f0] sm:$0xff]
      %v1168 = vld [vmem:[#allocation9 + $0x17f8] sm:$0xff]
      %v1169 = vld [vmem:[#allocation10] sm:$0xff]
      %v1170 = vld [vmem:[#allocation10 + $0x8] sm:$0xff]
      %v1173 = vperm.slane %v1169, 0
      %v1174 = vperm.slane %v1169, 1
      %v1175 = vperm.slane %v1169, 2
      %v1176 = vperm.slane %v1169, 3
      %v1177 = vperm.slane %v1169, 4
      %v1178 = vperm.slane %v1169, 5
      %v1179 = vperm.slane %v1169, 6
      %v1180 = vperm.slane %v1169, 7
      %v1181 = vperm.slane %v1170, 0
      %v1182 = vperm.slane %v1170, 1
      %v1183 = vperm.slane %v1170, 2
      %v1184 = vperm.slane %v1170, 3
      %v1185 = vperm.slane %v1170, 4
      %v1186 = vperm.slane %v1170, 5
      %v1187 = vperm.slane %v1170, 6
      %v1188 = vperm.slane %v1170, 7
      %v1973 = vunpack.c.l.b16 %v401
      %v1974 = vunpack.c.h.b16 %v401
      %v1975 = vunpack.c.l.b16 %v402
      %v1976 = vunpack.c.h.b16 %v402
      %v1977 = vunpack.c.l.b16 %v403
      %v1978 = vunpack.c.h.b16 %v403
      %v1979 = vunpack.c.l.b16 %v404
      %v1980 = vunpack.c.h.b16 %v404
      %v1981 = vunpack.c.l.b16 %v405
      %v1982 = vunpack.c.h.b16 %v405
      %v1983 = vunpack.c.l.b16 %v406
      %v1984 = vunpack.c.h.b16 %v406
      %v1985 = vunpack.c.l.b16 %v407
      %v1986 = vunpack.c.h.b16 %v407
      %v1987 = vunpack.c.l.b16 %v408
      %v1988 = vunpack.c.h.b16 %v408
      %v1989 = vunpack.c.l.b16 %v409
      %v1990 = vunpack.c.h.b16 %v409
      %v1991 = vunpack.c.l.b16 %v410
      %v1992 = vunpack.c.h.b16 %v410
      %v1993 = vunpack.c.l.b16 %v411
      %v1994 = vunpack.c.h.b16 %v411
      %v1995 = vunpack.c.l.b16 %v412
      %v1996 = vunpack.c.h.b16 %v412
      %v1997 = vunpack.c.l.b16 %v413
      %v1998 = vunpack.c.h.b16 %v413
      %v1999 = vunpack.c.l.b16 %v414
      %v2000 = vunpack.c.h.b16 %v414
      %v2001 = vunpack.c.l.b16 %v415
      %v2002 = vunpack.c.h.b16 %v415
      %v2003 = vunpack.c.l.b16 %v416
      %v2004 = vunpack.c.h.b16 %v416
      %v2005 = vunpack.c.l.b16 %v417
      %v2006 = vunpack.c.h.b16 %v417
      %v2007 = vunpack.c.l.b16 %v418
      %v2008 = vunpack.c.h.b16 %v418
      %v2009 = vunpack.c.l.b16 %v419
      %v2010 = vunpack.c.h.b16 %v419
      %v2011 = vunpack.c.l.b16 %v420
      %v2012 = vunpack.c.h.b16 %v420
      %v2013 = vunpack.c.l.b16 %v421
      %v2014 = vunpack.c.h.b16 %v421
      %v2015 = vunpack.c.l.b16 %v422
      %v2016 = vunpack.c.h.b16 %v422
      %v2017 = vunpack.c.l.b16 %v423
      %v2018 = vunpack.c.h.b16 %v423
      %v2019 = vunpack.c.l.b16 %v424
      %v2020 = vunpack.c.h.b16 %v424
      %v2021 = vunpack.c.l.b16 %v425
      %v2022 = vunpack.c.h.b16 %v425
      %v2023 = vunpack.c.l.b16 %v426
      %v2024 = vunpack.c.h.b16 %v426
      %v2025 = vunpack.c.l.b16 %v427
      %v2026 = vunpack.c.h.b16 %v427
      %v2027 = vunpack.c.l.b16 %v428
      %v2028 = vunpack.c.h.b16 %v428
      %v2029 = vunpack.c.l.b16 %v429
      %v2030 = vunpack.c.h.b16 %v429
      %v2031 = vunpack.c.l.b16 %v430
      %v2032 = vunpack.c.h.b16 %v430
      %v2033 = vunpack.c.l.b16 %v431
      %v2034 = vunpack.c.h.b16 %v431
      %v2035 = vunpack.c.l.b16 %v432
      %v2036 = vunpack.c.h.b16 %v432
      %v2037 = vunpack.c.l.b16 %v433
      %v2038 = vunpack.c.h.b16 %v433
      %v2039 = vunpack.c.l.b16 %v434
      %v2040 = vunpack.c.h.b16 %v434
      %v2041 = vunpack.c.l.b16 %v435
      %v2042 = vunpack.c.h.b16 %v435
      %v2043 = vunpack.c.l.b16 %v436
      %v2044 = vunpack.c.h.b16 %v436
      %v2045 = vunpack.c.l.b16 %v437
      %v2046 = vunpack.c.h.b16 %v437
      %v2047 = vunpack.c.l.b16 %v438
      %v2048 = vunpack.c.h.b16 %v438
      %v2049 = vunpack.c.l.b16 %v439
      %v2050 = vunpack.c.h.b16 %v439
      %v2051 = vunpack.c.l.b16 %v440
      %v2052 = vunpack.c.h.b16 %v440
      %v2053 = vunpack.c.l.b16 %v441
      %v2054 = vunpack.c.h.b16 %v441
      %v2055 = vunpack.c.l.b16 %v442
      %v2056 = vunpack.c.h.b16 %v442
      %v2057 = vunpack.c.l.b16 %v443
      %v2058 = vunpack.c.h.b16 %v443
      %v2059 = vunpack.c.l.b16 %v444
      %v2060 = vunpack.c.h.b16 %v444
      %v2061 = vunpack.c.l.b16 %v445
      %v2062 = vunpack.c.h.b16 %v445
      %v2063 = vunpack.c.l.b16 %v446
      %v2064 = vunpack.c.h.b16 %v446
      %v2065 = vunpack.c.l.b16 %v447
      %v2066 = vunpack.c.h.b16 %v447
      %v2067 = vunpack.c.l.b16 %v448
      %v2068 = vunpack.c.h.b16 %v448
      %v2069 = vunpack.c.l.b16 %v449
      %v2070 = vunpack.c.h.b16 %v449
      %v2071 = vunpack.c.l.b16 %v450
      %v2072 = vunpack.c.h.b16 %v450
      %v2073 = vunpack.c.l.b16 %v451
      %v2074 = vunpack.c.h.b16 %v451
      %v2075 = vunpack.c.l.b16 %v452
      %v2076 = vunpack.c.h.b16 %v452
      %v2077 = vunpack.c.l.b16 %v453
      %v2078 = vunpack.c.h.b16 %v453
      %v2079 = vunpack.c.l.b16 %v454
      %v2080 = vunpack.c.h.b16 %v454
      %v2081 = vunpack.c.l.b16 %v455
      %v2082 = vunpack.c.h.b16 %v455
      %v2083 = vunpack.c.l.b16 %v456
      %v2084 = vunpack.c.h.b16 %v456
      %v2085 = vunpack.c.l.b16 %v457
      %v2086 = vunpack.c.h.b16 %v457
      %v2087 = vunpack.c.l.b16 %v458
      %v2088 = vunpack.c.h.b16 %v458
      %v2089 = vunpack.c.l.b16 %v459
      %v2090 = vunpack.c.h.b16 %v459
      %v2091 = vunpack.c.l.b16 %v460
      %v2092 = vunpack.c.h.b16 %v460
      %v2093 = vunpack.c.l.b16 %v461
      %v2094 = vunpack.c.h.b16 %v461
      %v2095 = vunpack.c.l.b16 %v462
      %v2096 = vunpack.c.h.b16 %v462
      %v2097 = vunpack.c.l.b16 %v463
      %v2098 = vunpack.c.h.b16 %v463
      %v2099 = vunpack.c.l.b16 %v464
      %v2100 = vunpack.c.h.b16 %v464
      %v2101 = vunpack.c.l.b16 %v465
      %v2102 = vunpack.c.h.b16 %v465
      %v2103 = vunpack.c.l.b16 %v466
      %v2104 = vunpack.c.h.b16 %v466
      %v2105 = vunpack.c.l.b16 %v467
      %v2106 = vunpack.c.h.b16 %v467
      %v2107 = vunpack.c.l.b16 %v468
      %v2108 = vunpack.c.h.b16 %v468
      %v2109 = vunpack.c.l.b16 %v469
      %v2110 = vunpack.c.h.b16 %v469
      %v2111 = vunpack.c.l.b16 %v470
      %v2112 = vunpack.c.h.b16 %v470
      %v2113 = vunpack.c.l.b16 %v471
      %v2114 = vunpack.c.h.b16 %v471
      %v2115 = vunpack.c.l.b16 %v472
      %v2116 = vunpack.c.h.b16 %v472
      %v2117 = vunpack.c.l.b16 %v473
      %v2118 = vunpack.c.h.b16 %v473
      %v2119 = vunpack.c.l.b16 %v474
      %v2120 = vunpack.c.h.b16 %v474
      %v2121 = vunpack.c.l.b16 %v475
      %v2122 = vunpack.c.h.b16 %v475
      %v2123 = vunpack.c.l.b16 %v476
      %v2124 = vunpack.c.h.b16 %v476
      %v2125 = vunpack.c.l.b16 %v477
      %v2126 = vunpack.c.h.b16 %v477
      %v2127 = vunpack.c.l.b16 %v478
      %v2128 = vunpack.c.h.b16 %v478
      %v2129 = vunpack.c.l.b16 %v479
      %v2130 = vunpack.c.h.b16 %v479
      %v2131 = vunpack.c.l.b16 %v480
      %v2132 = vunpack.c.h.b16 %v480
      %v2133 = vunpack.c.l.b16 %v481
      %v2134 = vunpack.c.h.b16 %v481
      %v2135 = vunpack.c.l.b16 %v482
      %v2136 = vunpack.c.h.b16 %v482
      %v2137 = vunpack.c.l.b16 %v483
      %v2138 = vunpack.c.h.b16 %v483
      %v2139 = vunpack.c.l.b16 %v484
      %v2140 = vunpack.c.h.b16 %v484
      %v2141 = vunpack.c.l.b16 %v485
      %v2142 = vunpack.c.h.b16 %v485
      %v2143 = vunpack.c.l.b16 %v486
      %v2144 = vunpack.c.h.b16 %v486
      %v2145 = vunpack.c.l.b16 %v487
      %v2146 = vunpack.c.h.b16 %v487
      %v2147 = vunpack.c.l.b16 %v488
      %v2148 = vunpack.c.h.b16 %v488
      %v2149 = vunpack.c.l.b16 %v489
      %v2150 = vunpack.c.h.b16 %v489
      %v2151 = vunpack.c.l.b16 %v490
      %v2152 = vunpack.c.h.b16 %v490
      %v2153 = vunpack.c.l.b16 %v491
      %v2154 = vunpack.c.h.b16 %v491
      %v2155 = vunpack.c.l.b16 %v492
      %v2156 = vunpack.c.h.b16 %v492
      %v2157 = vunpack.c.l.b16 %v493
      %v2158 = vunpack.c.h.b16 %v493
      %v2159 = vunpack.c.l.b16 %v494
      %v2160 = vunpack.c.h.b16 %v494
      %v2161 = vunpack.c.l.b16 %v495
      %v2162 = vunpack.c.h.b16 %v495
      %v2163 = vunpack.c.l.b16 %v496
      %v2164 = vunpack.c.h.b16 %v496
      %v2165 = vunpack.c.l.b16 %v497
      %v2166 = vunpack.c.h.b16 %v497
      %v2167 = vunpack.c.l.b16 %v498
      %v2168 = vunpack.c.h.b16 %v498
      %v2169 = vunpack.c.l.b16 %v499
      %v2170 = vunpack.c.h.b16 %v499
      %v2171 = vunpack.c.l.b16 %v500
      %v2172 = vunpack.c.h.b16 %v500
      %v2173 = vunpack.c.l.b16 %v501
      %v2174 = vunpack.c.h.b16 %v501
      %v2175 = vunpack.c.l.b16 %v502
      %v2176 = vunpack.c.h.b16 %v502
      %v2177 = vunpack.c.l.b16 %v503
      %v2178 = vunpack.c.h.b16 %v503
      %v2179 = vunpack.c.l.b16 %v504
      %v2180 = vunpack.c.h.b16 %v504
      %v2181 = vunpack.c.l.b16 %v505
      %v2182 = vunpack.c.h.b16 %v505
      %v2183 = vunpack.c.l.b16 %v506
      %v2184 = vunpack.c.h.b16 %v506
      %v2185 = vunpack.c.l.b16 %v507
      %v2186 = vunpack.c.h.b16 %v507
      %v2187 = vunpack.c.l.b16 %v508
      %v2188 = vunpack.c.h.b16 %v508
      %v2189 = vunpack.c.l.b16 %v509
      %v2190 = vunpack.c.h.b16 %v509
      %v2191 = vunpack.c.l.b16 %v510
      %v2192 = vunpack.c.h.b16 %v510
      %v2193 = vunpack.c.l.b16 %v511
      %v2194 = vunpack.c.h.b16 %v511
      %v2195 = vunpack.c.l.b16 %v512
      %v2196 = vunpack.c.h.b16 %v512
      %v2197 = vunpack.c.l.b16 %v513
      %v2198 = vunpack.c.h.b16 %v513
      %v2199 = vunpack.c.l.b16 %v514
      %v2200 = vunpack.c.h.b16 %v514
      %v2201 = vunpack.c.l.b16 %v515
      %v2202 = vunpack.c.h.b16 %v515
      %v2203 = vunpack.c.l.b16 %v516
      %v2204 = vunpack.c.h.b16 %v516
      %v2205 = vunpack.c.l.b16 %v517
      %v2206 = vunpack.c.h.b16 %v517
      %v2207 = vunpack.c.l.b16 %v518
      %v2208 = vunpack.c.h.b16 %v518
      %v2209 = vunpack.c.l.b16 %v519
      %v2210 = vunpack.c.h.b16 %v519
      %v2211 = vunpack.c.l.b16 %v520
      %v2212 = vunpack.c.h.b16 %v520
      %v2213 = vunpack.c.l.b16 %v521
      %v2214 = vunpack.c.h.b16 %v521
      %v2215 = vunpack.c.l.b16 %v522
      %v2216 = vunpack.c.h.b16 %v522
      %v2217 = vunpack.c.l.b16 %v523
      %v2218 = vunpack.c.h.b16 %v523
      %v2219 = vunpack.c.l.b16 %v524
      %v2220 = vunpack.c.h.b16 %v524
      %v2221 = vunpack.c.l.b16 %v525
      %v2222 = vunpack.c.h.b16 %v525
      %v2223 = vunpack.c.l.b16 %v526
      %v2224 = vunpack.c.h.b16 %v526
      %v2225 = vunpack.c.l.b16 %v527
      %v2226 = vunpack.c.h.b16 %v527
      %v2227 = vunpack.c.l.b16 %v528
      %v2228 = vunpack.c.h.b16 %v528
      %v2229 = vunpack.c.l.b16 %v529
      %v2230 = vunpack.c.h.b16 %v529
      %v2231 = vunpack.c.l.b16 %v530
      %v2232 = vunpack.c.h.b16 %v530
      %v2233 = vunpack.c.l.b16 %v531
      %v2234 = vunpack.c.h.b16 %v531
      %v2235 = vunpack.c.l.b16 %v532
      %v2236 = vunpack.c.h.b16 %v532
      %v2237 = vunpack.c.l.b16 %v533
      %v2238 = vunpack.c.h.b16 %v533
      %v2239 = vunpack.c.l.b16 %v534
      %v2240 = vunpack.c.h.b16 %v534
      %v2241 = vunpack.c.l.b16 %v535
      %v2242 = vunpack.c.h.b16 %v535
      %v2243 = vunpack.c.l.b16 %v536
      %v2244 = vunpack.c.h.b16 %v536
      %v2245 = vunpack.c.l.b16 %v537
      %v2246 = vunpack.c.h.b16 %v537
      %v2247 = vunpack.c.l.b16 %v538
      %v2248 = vunpack.c.h.b16 %v538
      %v2249 = vunpack.c.l.b16 %v539
      %v2250 = vunpack.c.h.b16 %v539
      %v2251 = vunpack.c.l.b16 %v540
      %v2252 = vunpack.c.h.b16 %v540
      %v2253 = vunpack.c.l.b16 %v541
      %v2254 = vunpack.c.h.b16 %v541
      %v2255 = vunpack.c.l.b16 %v542
      %v2256 = vunpack.c.h.b16 %v542
      %v2257 = vunpack.c.l.b16 %v543
      %v2258 = vunpack.c.h.b16 %v543
      %v2259 = vunpack.c.l.b16 %v544
      %v2260 = vunpack.c.h.b16 %v544
      %v2261 = vunpack.c.l.b16 %v545
      %v2262 = vunpack.c.h.b16 %v545
      %v2263 = vunpack.c.l.b16 %v546
      %v2264 = vunpack.c.h.b16 %v546
      %v2265 = vunpack.c.l.b16 %v547
      %v2266 = vunpack.c.h.b16 %v547
      %v2267 = vunpack.c.l.b16 %v548
      %v2268 = vunpack.c.h.b16 %v548
      %v2269 = vunpack.c.l.b16 %v549
      %v2270 = vunpack.c.h.b16 %v549
      %v2271 = vunpack.c.l.b16 %v550
      %v2272 = vunpack.c.h.b16 %v550
      %v2273 = vunpack.c.l.b16 %v551
      %v2274 = vunpack.c.h.b16 %v551
      %v2275 = vunpack.c.l.b16 %v552
      %v2276 = vunpack.c.h.b16 %v552
      %v2277 = vunpack.c.l.b16 %v553
      %v2278 = vunpack.c.h.b16 %v553
      %v2279 = vunpack.c.l.b16 %v554
      %v2280 = vunpack.c.h.b16 %v554
      %v2281 = vunpack.c.l.b16 %v555
      %v2282 = vunpack.c.h.b16 %v555
      %v2283 = vunpack.c.l.b16 %v556
      %v2284 = vunpack.c.h.b16 %v556
      %v2285 = vunpack.c.l.b16 %v557
      %v2286 = vunpack.c.h.b16 %v557
      %v2287 = vunpack.c.l.b16 %v558
      %v2288 = vunpack.c.h.b16 %v558
      %v2289 = vunpack.c.l.b16 %v559
      %v2290 = vunpack.c.h.b16 %v559
      %v2291 = vunpack.c.l.b16 %v560
      %v2292 = vunpack.c.h.b16 %v560
      %v2293 = vunpack.c.l.b16 %v561
      %v2294 = vunpack.c.h.b16 %v561
      %v2295 = vunpack.c.l.b16 %v562
      %v2296 = vunpack.c.h.b16 %v562
      %v2297 = vunpack.c.l.b16 %v563
      %v2298 = vunpack.c.h.b16 %v563
      %v2299 = vunpack.c.l.b16 %v564
      %v2300 = vunpack.c.h.b16 %v564
      %v2301 = vunpack.c.l.b16 %v565
      %v2302 = vunpack.c.h.b16 %v565
      %v2303 = vunpack.c.l.b16 %v566
      %v2304 = vunpack.c.h.b16 %v566
      %v2305 = vunpack.c.l.b16 %v567
      %v2306 = vunpack.c.h.b16 %v567
      %v2307 = vunpack.c.l.b16 %v568
      %v2308 = vunpack.c.h.b16 %v568
      %v2309 = vunpack.c.l.b16 %v569
      %v2310 = vunpack.c.h.b16 %v569
      %v2311 = vunpack.c.l.b16 %v570
      %v2312 = vunpack.c.h.b16 %v570
      %v2313 = vunpack.c.l.b16 %v571
      %v2314 = vunpack.c.h.b16 %v571
      %v2315 = vunpack.c.l.b16 %v572
      %v2316 = vunpack.c.h.b16 %v572
      %v2317 = vunpack.c.l.b16 %v573
      %v2318 = vunpack.c.h.b16 %v573
      %v2319 = vunpack.c.l.b16 %v574
      %v2320 = vunpack.c.h.b16 %v574
      %v2321 = vunpack.c.l.b16 %v575
      %v2322 = vunpack.c.h.b16 %v575
      %v2323 = vunpack.c.l.b16 %v576
      %v2324 = vunpack.c.h.b16 %v576
      %v2325 = vunpack.c.l.b16 %v577
      %v2326 = vunpack.c.h.b16 %v577
      %v2327 = vunpack.c.l.b16 %v578
      %v2328 = vunpack.c.h.b16 %v578
      %v2329 = vunpack.c.l.b16 %v579
      %v2330 = vunpack.c.h.b16 %v579
      %v2331 = vunpack.c.l.b16 %v580
      %v2332 = vunpack.c.h.b16 %v580
      %v2333 = vunpack.c.l.b16 %v581
      %v2334 = vunpack.c.h.b16 %v581
      %v2335 = vunpack.c.l.b16 %v582
      %v2336 = vunpack.c.h.b16 %v582
      %v2337 = vunpack.c.l.b16 %v583
      %v2338 = vunpack.c.h.b16 %v583
      %v2339 = vunpack.c.l.b16 %v584
      %v2340 = vunpack.c.h.b16 %v584
      %v2341 = vunpack.c.l.b16 %v585
      %v2342 = vunpack.c.h.b16 %v585
      %v2343 = vunpack.c.l.b16 %v586
      %v2344 = vunpack.c.h.b16 %v586
      %v2345 = vunpack.c.l.b16 %v587
      %v2346 = vunpack.c.h.b16 %v587
      %v2347 = vunpack.c.l.b16 %v588
      %v2348 = vunpack.c.h.b16 %v588
      %v2349 = vunpack.c.l.b16 %v589
      %v2350 = vunpack.c.h.b16 %v589
      %v2351 = vunpack.c.l.b16 %v590
      %v2352 = vunpack.c.h.b16 %v590
      %v2353 = vunpack.c.l.b16 %v591
      %v2354 = vunpack.c.h.b16 %v591
      %v2355 = vunpack.c.l.b16 %v592
      %v2356 = vunpack.c.h.b16 %v592
      %v2357 = vunpack.c.l.b16 %v593
      %v2358 = vunpack.c.h.b16 %v593
      %v2359 = vunpack.c.l.b16 %v594
      %v2360 = vunpack.c.h.b16 %v594
      %v2361 = vunpack.c.l.b16 %v595
      %v2362 = vunpack.c.h.b16 %v595
      %v2363 = vunpack.c.l.b16 %v596
      %v2364 = vunpack.c.h.b16 %v596
      %v2365 = vunpack.c.l.b16 %v597
      %v2366 = vunpack.c.h.b16 %v597
      %v2367 = vunpack.c.l.b16 %v598
      %v2368 = vunpack.c.h.b16 %v598
      %v2369 = vunpack.c.l.b16 %v599
      %v2370 = vunpack.c.h.b16 %v599
      %v2371 = vunpack.c.l.b16 %v600
      %v2372 = vunpack.c.h.b16 %v600
      %v2373 = vunpack.c.l.b16 %v601
      %v2374 = vunpack.c.h.b16 %v601
      %v2375 = vunpack.c.l.b16 %v602
      %v2376 = vunpack.c.h.b16 %v602
      %v2377 = vunpack.c.l.b16 %v603
      %v2378 = vunpack.c.h.b16 %v603
      %v2379 = vunpack.c.l.b16 %v604
      %v2380 = vunpack.c.h.b16 %v604
      %v2381 = vunpack.c.l.b16 %v605
      %v2382 = vunpack.c.h.b16 %v605
      %v2383 = vunpack.c.l.b16 %v606
      %v2384 = vunpack.c.h.b16 %v606
      %v2385 = vunpack.c.l.b16 %v607
      %v2386 = vunpack.c.h.b16 %v607
      %v2387 = vunpack.c.l.b16 %v608
      %v2388 = vunpack.c.h.b16 %v608
      %v2389 = vunpack.c.l.b16 %v609
      %v2390 = vunpack.c.h.b16 %v609
      %v2391 = vunpack.c.l.b16 %v610
      %v2392 = vunpack.c.h.b16 %v610
      %v2393 = vunpack.c.l.b16 %v611
      %v2394 = vunpack.c.h.b16 %v611
      %v2395 = vunpack.c.l.b16 %v612
      %v2396 = vunpack.c.h.b16 %v612
      %v2397 = vunpack.c.l.b16 %v613
      %v2398 = vunpack.c.h.b16 %v613
      %v2399 = vunpack.c.l.b16 %v614
      %v2400 = vunpack.c.h.b16 %v614
      %v2401 = vunpack.c.l.b16 %v615
      %v2402 = vunpack.c.h.b16 %v615
      %v2403 = vunpack.c.l.b16 %v616
      %v2404 = vunpack.c.h.b16 %v616
      %v2405 = vunpack.c.l.b16 %v617
      %v2406 = vunpack.c.h.b16 %v617
      %v2407 = vunpack.c.l.b16 %v618
      %v2408 = vunpack.c.h.b16 %v618
      %v2409 = vunpack.c.l.b16 %v619
      %v2410 = vunpack.c.h.b16 %v619
      %v2411 = vunpack.c.l.b16 %v620
      %v2412 = vunpack.c.h.b16 %v620
      %v2413 = vunpack.c.l.b16 %v621
      %v2414 = vunpack.c.h.b16 %v621
      %v2415 = vunpack.c.l.b16 %v622
      %v2416 = vunpack.c.h.b16 %v622
      %v2417 = vunpack.c.l.b16 %v623
      %v2418 = vunpack.c.h.b16 %v623
      %v2419 = vunpack.c.l.b16 %v624
      %v2420 = vunpack.c.h.b16 %v624
      %v2421 = vunpack.c.l.b16 %v625
      %v2422 = vunpack.c.h.b16 %v625
      %v2423 = vunpack.c.l.b16 %v626
      %v2424 = vunpack.c.h.b16 %v626
      %v2425 = vunpack.c.l.b16 %v627
      %v2426 = vunpack.c.h.b16 %v627
      %v2427 = vunpack.c.l.b16 %v628
      %v2428 = vunpack.c.h.b16 %v628
      %v2429 = vunpack.c.l.b16 %v629
      %v2430 = vunpack.c.h.b16 %v629
      %v2431 = vunpack.c.l.b16 %v630
      %v2432 = vunpack.c.h.b16 %v630
      %v2433 = vunpack.c.l.b16 %v631
      %v2434 = vunpack.c.h.b16 %v631
      %v2435 = vunpack.c.l.b16 %v632
      %v2436 = vunpack.c.h.b16 %v632
      %v2437 = vunpack.c.l.b16 %v633
      %v2438 = vunpack.c.h.b16 %v633
      %v2439 = vunpack.c.l.b16 %v634
      %v2440 = vunpack.c.h.b16 %v634
      %v2441 = vunpack.c.l.b16 %v635
      %v2442 = vunpack.c.h.b16 %v635
      %v2443 = vunpack.c.l.b16 %v636
      %v2444 = vunpack.c.h.b16 %v636
      %v2445 = vunpack.c.l.b16 %v637
      %v2446 = vunpack.c.h.b16 %v637
      %v2447 = vunpack.c.l.b16 %v638
      %v2448 = vunpack.c.h.b16 %v638
      %v2449 = vunpack.c.l.b16 %v639
      %v2450 = vunpack.c.h.b16 %v639
      %v2451 = vunpack.c.l.b16 %v640
      %v2452 = vunpack.c.h.b16 %v640
      %v2453 = vunpack.c.l.b16 %v641
      %v2454 = vunpack.c.h.b16 %v641
      %v2455 = vunpack.c.l.b16 %v642
      %v2456 = vunpack.c.h.b16 %v642
      %v2457 = vunpack.c.l.b16 %v643
      %v2458 = vunpack.c.h.b16 %v643
      %v2459 = vunpack.c.l.b16 %v644
      %v2460 = vunpack.c.h.b16 %v644
      %v2461 = vunpack.c.l.b16 %v645
      %v2462 = vunpack.c.h.b16 %v645
      %v2463 = vunpack.c.l.b16 %v646
      %v2464 = vunpack.c.h.b16 %v646
      %v2465 = vunpack.c.l.b16 %v647
      %v2466 = vunpack.c.h.b16 %v647
      %v2467 = vunpack.c.l.b16 %v648
      %v2468 = vunpack.c.h.b16 %v648
      %v2469 = vunpack.c.l.b16 %v649
      %v2470 = vunpack.c.h.b16 %v649
      %v2471 = vunpack.c.l.b16 %v650
      %v2472 = vunpack.c.h.b16 %v650
      %v2473 = vunpack.c.l.b16 %v651
      %v2474 = vunpack.c.h.b16 %v651
      %v2475 = vunpack.c.l.b16 %v652
      %v2476 = vunpack.c.h.b16 %v652
      %v2477 = vunpack.c.l.b16 %v653
      %v2478 = vunpack.c.h.b16 %v653
      %v2479 = vunpack.c.l.b16 %v654
      %v2480 = vunpack.c.h.b16 %v654
      %v2481 = vunpack.c.l.b16 %v655
      %v2482 = vunpack.c.h.b16 %v655
      %v2483 = vunpack.c.l.b16 %v656
      %v2484 = vunpack.c.h.b16 %v656
      %v2485 = vunpack.c.l.b16 %v657
      %v2486 = vunpack.c.h.b16 %v657
      %v2487 = vunpack.c.l.b16 %v658
      %v2488 = vunpack.c.h.b16 %v658
      %v2489 = vunpack.c.l.b16 %v659
      %v2490 = vunpack.c.h.b16 %v659
      %v2491 = vunpack.c.l.b16 %v660
      %v2492 = vunpack.c.h.b16 %v660
      %v2493 = vunpack.c.l.b16 %v661
      %v2494 = vunpack.c.h.b16 %v661
      %v2495 = vunpack.c.l.b16 %v662
      %v2496 = vunpack.c.h.b16 %v662
      %v2497 = vunpack.c.l.b16 %v663
      %v2498 = vunpack.c.h.b16 %v663
      %v2499 = vunpack.c.l.b16 %v664
      %v2500 = vunpack.c.h.b16 %v664
      %v2501 = vunpack.c.l.b16 %v665
      %v2502 = vunpack.c.h.b16 %v665
      %v2503 = vunpack.c.l.b16 %v666
      %v2504 = vunpack.c.h.b16 %v666
      %v2505 = vunpack.c.l.b16 %v667
      %v2506 = vunpack.c.h.b16 %v667
      %v2507 = vunpack.c.l.b16 %v668
      %v2508 = vunpack.c.h.b16 %v668
      %v2509 = vunpack.c.l.b16 %v669
      %v2510 = vunpack.c.h.b16 %v669
      %v2511 = vunpack.c.l.b16 %v670
      %v2512 = vunpack.c.h.b16 %v670
      %v2513 = vunpack.c.l.b16 %v671
      %v2514 = vunpack.c.h.b16 %v671
      %v2515 = vunpack.c.l.b16 %v672
      %v2516 = vunpack.c.h.b16 %v672
      %v2517 = vunpack.c.l.b16 %v673
      %v2518 = vunpack.c.h.b16 %v673
      %v2519 = vunpack.c.l.b16 %v674
      %v2520 = vunpack.c.h.b16 %v674
      %v2521 = vunpack.c.l.b16 %v675
      %v2522 = vunpack.c.h.b16 %v675
      %v2523 = vunpack.c.l.b16 %v676
      %v2524 = vunpack.c.h.b16 %v676
      %v2525 = vunpack.c.l.b16 %v677
      %v2526 = vunpack.c.h.b16 %v677
      %v2527 = vunpack.c.l.b16 %v678
      %v2528 = vunpack.c.h.b16 %v678
      %v2529 = vunpack.c.l.b16 %v679
      %v2530 = vunpack.c.h.b16 %v679
      %v2531 = vunpack.c.l.b16 %v680
      %v2532 = vunpack.c.h.b16 %v680
      %v2533 = vunpack.c.l.b16 %v681
      %v2534 = vunpack.c.h.b16 %v681
      %v2535 = vunpack.c.l.b16 %v682
      %v2536 = vunpack.c.h.b16 %v682
      %v2537 = vunpack.c.l.b16 %v683
      %v2538 = vunpack.c.h.b16 %v683
      %v2539 = vunpack.c.l.b16 %v684
      %v2540 = vunpack.c.h.b16 %v684
      %v2541 = vunpack.c.l.b16 %v685
      %v2542 = vunpack.c.h.b16 %v685
      %v2543 = vunpack.c.l.b16 %v686
      %v2544 = vunpack.c.h.b16 %v686
      %v2545 = vunpack.c.l.b16 %v687
      %v2546 = vunpack.c.h.b16 %v687
      %v2547 = vunpack.c.l.b16 %v688
      %v2548 = vunpack.c.h.b16 %v688
      %v2549 = vunpack.c.l.b16 %v689
      %v2550 = vunpack.c.h.b16 %v689
      %v2551 = vunpack.c.l.b16 %v690
      %v2552 = vunpack.c.h.b16 %v690
      %v2553 = vunpack.c.l.b16 %v691
      %v2554 = vunpack.c.h.b16 %v691
      %v2555 = vunpack.c.l.b16 %v692
      %v2556 = vunpack.c.h.b16 %v692
      %v2557 = vunpack.c.l.b16 %v693
      %v2558 = vunpack.c.h.b16 %v693
      %v2559 = vunpack.c.l.b16 %v694
      %v2560 = vunpack.c.h.b16 %v694
      %v2561 = vunpack.c.l.b16 %v695
      %v2562 = vunpack.c.h.b16 %v695
      %v2563 = vunpack.c.l.b16 %v696
      %v2564 = vunpack.c.h.b16 %v696
      %v2565 = vunpack.c.l.b16 %v697
      %v2566 = vunpack.c.h.b16 %v697
      %v2567 = vunpack.c.l.b16 %v698
      %v2568 = vunpack.c.h.b16 %v698
      %v2569 = vunpack.c.l.b16 %v699
      %v2570 = vunpack.c.h.b16 %v699
      %v2571 = vunpack.c.l.b16 %v700
      %v2572 = vunpack.c.h.b16 %v700
      %v2573 = vunpack.c.l.b16 %v701
      %v2574 = vunpack.c.h.b16 %v701
      %v2575 = vunpack.c.l.b16 %v702
      %v2576 = vunpack.c.h.b16 %v702
      %v2577 = vunpack.c.l.b16 %v703
      %v2578 = vunpack.c.h.b16 %v703
      %v2579 = vunpack.c.l.b16 %v704
      %v2580 = vunpack.c.h.b16 %v704
      %v2581 = vunpack.c.l.b16 %v705
      %v2582 = vunpack.c.h.b16 %v705
      %v2583 = vunpack.c.l.b16 %v706
      %v2584 = vunpack.c.h.b16 %v706
      %v2585 = vunpack.c.l.b16 %v707
      %v2586 = vunpack.c.h.b16 %v707
      %v2587 = vunpack.c.l.b16 %v708
      %v2588 = vunpack.c.h.b16 %v708
      %v2589 = vunpack.c.l.b16 %v709
      %v2590 = vunpack.c.h.b16 %v709
      %v2591 = vunpack.c.l.b16 %v710
      %v2592 = vunpack.c.h.b16 %v710
      %v2593 = vunpack.c.l.b16 %v711
      %v2594 = vunpack.c.h.b16 %v711
      %v2595 = vunpack.c.l.b16 %v712
      %v2596 = vunpack.c.h.b16 %v712
      %v2597 = vunpack.c.l.b16 %v713
      %v2598 = vunpack.c.h.b16 %v713
      %v2599 = vunpack.c.l.b16 %v714
      %v2600 = vunpack.c.h.b16 %v714
      %v2601 = vunpack.c.l.b16 %v715
      %v2602 = vunpack.c.h.b16 %v715
      %v2603 = vunpack.c.l.b16 %v716
      %v2604 = vunpack.c.h.b16 %v716
      %v2605 = vunpack.c.l.b16 %v717
      %v2606 = vunpack.c.h.b16 %v717
      %v2607 = vunpack.c.l.b16 %v718
      %v2608 = vunpack.c.h.b16 %v718
      %v2609 = vunpack.c.l.b16 %v719
      %v2610 = vunpack.c.h.b16 %v719
      %v2611 = vunpack.c.l.b16 %v720
      %v2612 = vunpack.c.h.b16 %v720
      %v2613 = vunpack.c.l.b16 %v721
      %v2614 = vunpack.c.h.b16 %v721
      %v2615 = vunpack.c.l.b16 %v722
      %v2616 = vunpack.c.h.b16 %v722
      %v2617 = vunpack.c.l.b16 %v723
      %v2618 = vunpack.c.h.b16 %v723
      %v2619 = vunpack.c.l.b16 %v724
      %v2620 = vunpack.c.h.b16 %v724
      %v2621 = vunpack.c.l.b16 %v725
      %v2622 = vunpack.c.h.b16 %v725
      %v2623 = vunpack.c.l.b16 %v726
      %v2624 = vunpack.c.h.b16 %v726
      %v2625 = vunpack.c.l.b16 %v727
      %v2626 = vunpack.c.h.b16 %v727
      %v2627 = vunpack.c.l.b16 %v728
      %v2628 = vunpack.c.h.b16 %v728
      %v2629 = vunpack.c.l.b16 %v729
      %v2630 = vunpack.c.h.b16 %v729
      %v2631 = vunpack.c.l.b16 %v730
      %v2632 = vunpack.c.h.b16 %v730
      %v2633 = vunpack.c.l.b16 %v731
      %v2634 = vunpack.c.h.b16 %v731
      %v2635 = vunpack.c.l.b16 %v732
      %v2636 = vunpack.c.h.b16 %v732
      %v2637 = vunpack.c.l.b16 %v733
      %v2638 = vunpack.c.h.b16 %v733
      %v2639 = vunpack.c.l.b16 %v734
      %v2640 = vunpack.c.h.b16 %v734
      %v2641 = vunpack.c.l.b16 %v735
      %v2642 = vunpack.c.h.b16 %v735
      %v2643 = vunpack.c.l.b16 %v736
      %v2644 = vunpack.c.h.b16 %v736
      %v2645 = vunpack.c.l.b16 %v737
      %v2646 = vunpack.c.h.b16 %v737
      %v2647 = vunpack.c.l.b16 %v738
      %v2648 = vunpack.c.h.b16 %v738
      %v2649 = vunpack.c.l.b16 %v739
      %v2650 = vunpack.c.h.b16 %v739
      %v2651 = vunpack.c.l.b16 %v740
      %v2652 = vunpack.c.h.b16 %v740
      %v2653 = vunpack.c.l.b16 %v741
      %v2654 = vunpack.c.h.b16 %v741
      %v2655 = vunpack.c.l.b16 %v742
      %v2656 = vunpack.c.h.b16 %v742
      %v2657 = vunpack.c.l.b16 %v743
      %v2658 = vunpack.c.h.b16 %v743
      %v2659 = vunpack.c.l.b16 %v744
      %v2660 = vunpack.c.h.b16 %v744
      %v2661 = vunpack.c.l.b16 %v745
      %v2662 = vunpack.c.h.b16 %v745
      %v2663 = vunpack.c.l.b16 %v746
      %v2664 = vunpack.c.h.b16 %v746
      %v2665 = vunpack.c.l.b16 %v747
      %v2666 = vunpack.c.h.b16 %v747
      %v2667 = vunpack.c.l.b16 %v748
      %v2668 = vunpack.c.h.b16 %v748
      %v2669 = vunpack.c.l.b16 %v749
      %v2670 = vunpack.c.h.b16 %v749
      %v2671 = vunpack.c.l.b16 %v750
      %v2672 = vunpack.c.h.b16 %v750
      %v2673 = vunpack.c.l.b16 %v751
      %v2674 = vunpack.c.h.b16 %v751
      %v2675 = vunpack.c.l.b16 %v752
      %v2676 = vunpack.c.h.b16 %v752
      %v2677 = vunpack.c.l.b16 %v753
      %v2678 = vunpack.c.h.b16 %v753
      %v2679 = vunpack.c.l.b16 %v754
      %v2680 = vunpack.c.h.b16 %v754
      %v2681 = vunpack.c.l.b16 %v755
      %v2682 = vunpack.c.h.b16 %v755
      %v2683 = vunpack.c.l.b16 %v756
      %v2684 = vunpack.c.h.b16 %v756
      %v2685 = vunpack.c.l.b16 %v757
      %v2686 = vunpack.c.h.b16 %v757
      %v2687 = vunpack.c.l.b16 %v758
      %v2688 = vunpack.c.h.b16 %v758
      %v2689 = vunpack.c.l.b16 %v759
      %v2690 = vunpack.c.h.b16 %v759
      %v2691 = vunpack.c.l.b16 %v760
      %v2692 = vunpack.c.h.b16 %v760
      %v2693 = vunpack.c.l.b16 %v761
      %v2694 = vunpack.c.h.b16 %v761
      %v2695 = vunpack.c.l.b16 %v762
      %v2696 = vunpack.c.h.b16 %v762
      %v2697 = vunpack.c.l.b16 %v763
      %v2698 = vunpack.c.h.b16 %v763
      %v2699 = vunpack.c.l.b16 %v764
      %v2700 = vunpack.c.h.b16 %v764
      %v2701 = vunpack.c.l.b16 %v765
      %v2702 = vunpack.c.h.b16 %v765
      %v2703 = vunpack.c.l.b16 %v766
      %v2704 = vunpack.c.h.b16 %v766
      %v2705 = vunpack.c.l.b16 %v767
      %v2706 = vunpack.c.h.b16 %v767
      %v2707 = vunpack.c.l.b16 %v768
      %v2708 = vunpack.c.h.b16 %v768
      %v2709 = vunpack.c.l.b16 %v769
      %v2710 = vunpack.c.h.b16 %v769
      %v2711 = vunpack.c.l.b16 %v770
      %v2712 = vunpack.c.h.b16 %v770
      %v2713 = vunpack.c.l.b16 %v771
      %v2714 = vunpack.c.h.b16 %v771
      %v2715 = vunpack.c.l.b16 %v772
      %v2716 = vunpack.c.h.b16 %v772
      %v2717 = vunpack.c.l.b16 %v773
      %v2718 = vunpack.c.h.b16 %v773
      %v2719 = vunpack.c.l.b16 %v774
      %v2720 = vunpack.c.h.b16 %v774
      %v2721 = vunpack.c.l.b16 %v775
      %v2722 = vunpack.c.h.b16 %v775
      %v2723 = vunpack.c.l.b16 %v776
      %v2724 = vunpack.c.h.b16 %v776
      %v2725 = vunpack.c.l.b16 %v777
      %v2726 = vunpack.c.h.b16 %v777
      %v2727 = vunpack.c.l.b16 %v778
      %v2728 = vunpack.c.h.b16 %v778
      %v2729 = vunpack.c.l.b16 %v779
      %v2730 = vunpack.c.h.b16 %v779
      %v2731 = vunpack.c.l.b16 %v780
      %v2732 = vunpack.c.h.b16 %v780
      %v2733 = vunpack.c.l.b16 %v781
      %v2734 = vunpack.c.h.b16 %v781
      %v2735 = vunpack.c.l.b16 %v782
      %v2736 = vunpack.c.h.b16 %v782
      %v2737 = vunpack.c.l.b16 %v783
      %v2738 = vunpack.c.h.b16 %v783
      %v2739 = vunpack.c.l.b16 %v784
      %v2740 = vunpack.c.h.b16 %v784
      %v2741 = vunpack.c.l.b16 %v785
      %v2742 = vunpack.c.h.b16 %v785
      %v2743 = vunpack.c.l.b16 %v786
      %v2744 = vunpack.c.h.b16 %v786
      %v2745 = vunpack.c.l.b16 %v787
      %v2746 = vunpack.c.h.b16 %v787
      %v2747 = vunpack.c.l.b16 %v788
      %v2748 = vunpack.c.h.b16 %v788
      %v2749 = vunpack.c.l.b16 %v789
      %v2750 = vunpack.c.h.b16 %v789
      %v2751 = vunpack.c.l.b16 %v790
      %v2752 = vunpack.c.h.b16 %v790
      %v2753 = vunpack.c.l.b16 %v791
      %v2754 = vunpack.c.h.b16 %v791
      %v2755 = vunpack.c.l.b16 %v792
      %v2756 = vunpack.c.h.b16 %v792
      %v2757 = vunpack.c.l.b16 %v793
      %v2758 = vunpack.c.h.b16 %v793
      %v2759 = vunpack.c.l.b16 %v794
      %v2760 = vunpack.c.h.b16 %v794
      %v2761 = vunpack.c.l.b16 %v795
      %v2762 = vunpack.c.h.b16 %v795
      %v2763 = vunpack.c.l.b16 %v796
      %v2764 = vunpack.c.h.b16 %v796
      %v2765 = vunpack.c.l.b16 %v797
      %v2766 = vunpack.c.h.b16 %v797
      %v2767 = vunpack.c.l.b16 %v798
      %v2768 = vunpack.c.h.b16 %v798
      %v2769 = vunpack.c.l.b16 %v799
      %v2770 = vunpack.c.h.b16 %v799
      %v2771 = vunpack.c.l.b16 %v800
      %v2772 = vunpack.c.h.b16 %v800
      %v2773 = vunpack.c.l.b16 %v801
      %v2774 = vunpack.c.h.b16 %v801
      %v2775 = vunpack.c.l.b16 %v802
      %v2776 = vunpack.c.h.b16 %v802
      %v2777 = vunpack.c.l.b16 %v803
      %v2778 = vunpack.c.h.b16 %v803
      %v2779 = vunpack.c.l.b16 %v804
      %v2780 = vunpack.c.h.b16 %v804
      %v2781 = vunpack.c.l.b16 %v805
      %v2782 = vunpack.c.h.b16 %v805
      %v2783 = vunpack.c.l.b16 %v806
      %v2784 = vunpack.c.h.b16 %v806
      %v2785 = vunpack.c.l.b16 %v807
      %v2786 = vunpack.c.h.b16 %v807
      %v2787 = vunpack.c.l.b16 %v808
      %v2788 = vunpack.c.h.b16 %v808
      %v2789 = vunpack.c.l.b16 %v809
      %v2790 = vunpack.c.h.b16 %v809
      %v2791 = vunpack.c.l.b16 %v810
      %v2792 = vunpack.c.h.b16 %v810
      %v2793 = vunpack.c.l.b16 %v811
      %v2794 = vunpack.c.h.b16 %v811
      %v2795 = vunpack.c.l.b16 %v812
      %v2796 = vunpack.c.h.b16 %v812
      %v2797 = vunpack.c.l.b16 %v813
      %v2798 = vunpack.c.h.b16 %v813
      %v2799 = vunpack.c.l.b16 %v814
      %v2800 = vunpack.c.h.b16 %v814
      %v2801 = vunpack.c.l.b16 %v815
      %v2802 = vunpack.c.h.b16 %v815
      %v2803 = vunpack.c.l.b16 %v816
      %v2804 = vunpack.c.h.b16 %v816
      %v2805 = vunpack.c.l.b16 %v817
      %v2806 = vunpack.c.h.b16 %v817
      %v2807 = vunpack.c.l.b16 %v818
      %v2808 = vunpack.c.h.b16 %v818
      %v2809 = vunpack.c.l.b16 %v819
      %v2810 = vunpack.c.h.b16 %v819
      %v2811 = vunpack.c.l.b16 %v820
      %v2812 = vunpack.c.h.b16 %v820
      %v2813 = vunpack.c.l.b16 %v821
      %v2814 = vunpack.c.h.b16 %v821
      %v2815 = vunpack.c.l.b16 %v822
      %v2816 = vunpack.c.h.b16 %v822
      %v2817 = vunpack.c.l.b16 %v823
      %v2818 = vunpack.c.h.b16 %v823
      %v2819 = vunpack.c.l.b16 %v824
      %v2820 = vunpack.c.h.b16 %v824
      %v2821 = vunpack.c.l.b16 %v825
      %v2822 = vunpack.c.h.b16 %v825
      %v2823 = vunpack.c.l.b16 %v826
      %v2824 = vunpack.c.h.b16 %v826
      %v2825 = vunpack.c.l.b16 %v827
      %v2826 = vunpack.c.h.b16 %v827
      %v2827 = vunpack.c.l.b16 %v828
      %v2828 = vunpack.c.h.b16 %v828
      %v2829 = vunpack.c.l.b16 %v829
      %v2830 = vunpack.c.h.b16 %v829
      %v2831 = vunpack.c.l.b16 %v830
      %v2832 = vunpack.c.h.b16 %v830
      %v2833 = vunpack.c.l.b16 %v831
      %v2834 = vunpack.c.h.b16 %v831
      %v2835 = vunpack.c.l.b16 %v832
      %v2836 = vunpack.c.h.b16 %v832
      %v2837 = vunpack.c.l.b16 %v833
      %v2838 = vunpack.c.h.b16 %v833
      %v2839 = vunpack.c.l.b16 %v834
      %v2840 = vunpack.c.h.b16 %v834
      %v2841 = vunpack.c.l.b16 %v835
      %v2842 = vunpack.c.h.b16 %v835
      %v2843 = vunpack.c.l.b16 %v836
      %v2844 = vunpack.c.h.b16 %v836
      %v2845 = vunpack.c.l.b16 %v837
      %v2846 = vunpack.c.h.b16 %v837
      %v2847 = vunpack.c.l.b16 %v838
      %v2848 = vunpack.c.h.b16 %v838
      %v2849 = vunpack.c.l.b16 %v839
      %v2850 = vunpack.c.h.b16 %v839
      %v2851 = vunpack.c.l.b16 %v840
      %v2852 = vunpack.c.h.b16 %v840
      %v2853 = vunpack.c.l.b16 %v841
      %v2854 = vunpack.c.h.b16 %v841
      %v2855 = vunpack.c.l.b16 %v842
      %v2856 = vunpack.c.h.b16 %v842
      %v2857 = vunpack.c.l.b16 %v843
      %v2858 = vunpack.c.h.b16 %v843
      %v2859 = vunpack.c.l.b16 %v844
      %v2860 = vunpack.c.h.b16 %v844
      %v2861 = vunpack.c.l.b16 %v845
      %v2862 = vunpack.c.h.b16 %v845
      %v2863 = vunpack.c.l.b16 %v846
      %v2864 = vunpack.c.h.b16 %v846
      %v2865 = vunpack.c.l.b16 %v847
      %v2866 = vunpack.c.h.b16 %v847
      %v2867 = vunpack.c.l.b16 %v848
      %v2868 = vunpack.c.h.b16 %v848
      %v2869 = vunpack.c.l.b16 %v849
      %v2870 = vunpack.c.h.b16 %v849
      %v2871 = vunpack.c.l.b16 %v850
      %v2872 = vunpack.c.h.b16 %v850
      %v2873 = vunpack.c.l.b16 %v851
      %v2874 = vunpack.c.h.b16 %v851
      %v2875 = vunpack.c.l.b16 %v852
      %v2876 = vunpack.c.h.b16 %v852
      %v2877 = vunpack.c.l.b16 %v853
      %v2878 = vunpack.c.h.b16 %v853
      %v2879 = vunpack.c.l.b16 %v854
      %v2880 = vunpack.c.h.b16 %v854
      %v2881 = vunpack.c.l.b16 %v855
      %v2882 = vunpack.c.h.b16 %v855
      %v2883 = vunpack.c.l.b16 %v856
      %v2884 = vunpack.c.h.b16 %v856
      %v2885 = vunpack.c.l.b16 %v857
      %v2886 = vunpack.c.h.b16 %v857
      %v2887 = vunpack.c.l.b16 %v858
      %v2888 = vunpack.c.h.b16 %v858
      %v2889 = vunpack.c.l.b16 %v859
      %v2890 = vunpack.c.h.b16 %v859
      %v2891 = vunpack.c.l.b16 %v860
      %v2892 = vunpack.c.h.b16 %v860
      %v2893 = vunpack.c.l.b16 %v861
      %v2894 = vunpack.c.h.b16 %v861
      %v2895 = vunpack.c.l.b16 %v862
      %v2896 = vunpack.c.h.b16 %v862
      %v2897 = vunpack.c.l.b16 %v863
      %v2898 = vunpack.c.h.b16 %v863
      %v2899 = vunpack.c.l.b16 %v864
      %v2900 = vunpack.c.h.b16 %v864
      %v2901 = vunpack.c.l.b16 %v865
      %v2902 = vunpack.c.h.b16 %v865
      %v2903 = vunpack.c.l.b16 %v866
      %v2904 = vunpack.c.h.b16 %v866
      %v2905 = vunpack.c.l.b16 %v867
      %v2906 = vunpack.c.h.b16 %v867
      %v2907 = vunpack.c.l.b16 %v868
      %v2908 = vunpack.c.h.b16 %v868
      %v2909 = vunpack.c.l.b16 %v869
      %v2910 = vunpack.c.h.b16 %v869
      %v2911 = vunpack.c.l.b16 %v870
      %v2912 = vunpack.c.h.b16 %v870
      %v2913 = vunpack.c.l.b16 %v871
      %v2914 = vunpack.c.h.b16 %v871
      %v2915 = vunpack.c.l.b16 %v872
      %v2916 = vunpack.c.h.b16 %v872
      %v2917 = vunpack.c.l.b16 %v873
      %v2918 = vunpack.c.h.b16 %v873
      %v2919 = vunpack.c.l.b16 %v874
      %v2920 = vunpack.c.h.b16 %v874
      %v2921 = vunpack.c.l.b16 %v875
      %v2922 = vunpack.c.h.b16 %v875
      %v2923 = vunpack.c.l.b16 %v876
      %v2924 = vunpack.c.h.b16 %v876
      %v2925 = vunpack.c.l.b16 %v877
      %v2926 = vunpack.c.h.b16 %v877
      %v2927 = vunpack.c.l.b16 %v878
      %v2928 = vunpack.c.h.b16 %v878
      %v2929 = vunpack.c.l.b16 %v879
      %v2930 = vunpack.c.h.b16 %v879
      %v2931 = vunpack.c.l.b16 %v880
      %v2932 = vunpack.c.h.b16 %v880
      %v2933 = vunpack.c.l.b16 %v881
      %v2934 = vunpack.c.h.b16 %v881
      %v2935 = vunpack.c.l.b16 %v882
      %v2936 = vunpack.c.h.b16 %v882
      %v2937 = vunpack.c.l.b16 %v883
      %v2938 = vunpack.c.h.b16 %v883
      %v2939 = vunpack.c.l.b16 %v884
      %v2940 = vunpack.c.h.b16 %v884
      %v2941 = vunpack.c.l.b16 %v885
      %v2942 = vunpack.c.h.b16 %v885
      %v2943 = vunpack.c.l.b16 %v886
      %v2944 = vunpack.c.h.b16 %v886
      %v2945 = vunpack.c.l.b16 %v887
      %v2946 = vunpack.c.h.b16 %v887
      %v2947 = vunpack.c.l.b16 %v888
      %v2948 = vunpack.c.h.b16 %v888
      %v2949 = vunpack.c.l.b16 %v889
      %v2950 = vunpack.c.h.b16 %v889
      %v2951 = vunpack.c.l.b16 %v890
      %v2952 = vunpack.c.h.b16 %v890
      %v2953 = vunpack.c.l.b16 %v891
      %v2954 = vunpack.c.h.b16 %v891
      %v2955 = vunpack.c.l.b16 %v892
      %v2956 = vunpack.c.h.b16 %v892
      %v2957 = vunpack.c.l.b16 %v893
      %v2958 = vunpack.c.h.b16 %v893
      %v2959 = vunpack.c.l.b16 %v894
      %v2960 = vunpack.c.h.b16 %v894
      %v2961 = vunpack.c.l.b16 %v895
      %v2962 = vunpack.c.h.b16 %v895
      %v2963 = vunpack.c.l.b16 %v896
      %v2964 = vunpack.c.h.b16 %v896
      %v2965 = vunpack.c.l.b16 %v897
      %v2966 = vunpack.c.h.b16 %v897
      %v2967 = vunpack.c.l.b16 %v898
      %v2968 = vunpack.c.h.b16 %v898
      %v2969 = vunpack.c.l.b16 %v899
      %v2970 = vunpack.c.h.b16 %v899
      %v2971 = vunpack.c.l.b16 %v900
      %v2972 = vunpack.c.h.b16 %v900
      %v2973 = vunpack.c.l.b16 %v901
      %v2974 = vunpack.c.h.b16 %v901
      %v2975 = vunpack.c.l.b16 %v902
      %v2976 = vunpack.c.h.b16 %v902
      %v2977 = vunpack.c.l.b16 %v903
      %v2978 = vunpack.c.h.b16 %v903
      %v2979 = vunpack.c.l.b16 %v904
      %v2980 = vunpack.c.h.b16 %v904
      %v2981 = vunpack.c.l.b16 %v905
      %v2982 = vunpack.c.h.b16 %v905
      %v2983 = vunpack.c.l.b16 %v906
      %v2984 = vunpack.c.h.b16 %v906
      %v2985 = vunpack.c.l.b16 %v907
      %v2986 = vunpack.c.h.b16 %v907
      %v2987 = vunpack.c.l.b16 %v908
      %v2988 = vunpack.c.h.b16 %v908
      %v2989 = vunpack.c.l.b16 %v909
      %v2990 = vunpack.c.h.b16 %v909
      %v2991 = vunpack.c.l.b16 %v910
      %v2992 = vunpack.c.h.b16 %v910
      %v2993 = vunpack.c.l.b16 %v911
      %v2994 = vunpack.c.h.b16 %v911
      %v2995 = vunpack.c.l.b16 %v912
      %v2996 = vunpack.c.h.b16 %v912
      %v2997 = vunpack.c.l.b16 %v913
      %v2998 = vunpack.c.h.b16 %v913
      %v2999 = vunpack.c.l.b16 %v914
      %v3000 = vunpack.c.h.b16 %v914
      %v3001 = vunpack.c.l.b16 %v915
      %v3002 = vunpack.c.h.b16 %v915
      %v3003 = vunpack.c.l.b16 %v916
      %v3004 = vunpack.c.h.b16 %v916
      %v3005 = vunpack.c.l.b16 %v917
      %v3006 = vunpack.c.h.b16 %v917
      %v3007 = vunpack.c.l.b16 %v918
      %v3008 = vunpack.c.h.b16 %v918
      %v3009 = vunpack.c.l.b16 %v919
      %v3010 = vunpack.c.h.b16 %v919
      %v3011 = vunpack.c.l.b16 %v920
      %v3012 = vunpack.c.h.b16 %v920
      %v3013 = vunpack.c.l.b16 %v921
      %v3014 = vunpack.c.h.b16 %v921
      %v3015 = vunpack.c.l.b16 %v922
      %v3016 = vunpack.c.h.b16 %v922
      %v3017 = vunpack.c.l.b16 %v923
      %v3018 = vunpack.c.h.b16 %v923
      %v3019 = vunpack.c.l.b16 %v924
      %v3020 = vunpack.c.h.b16 %v924
      %v3021 = vunpack.c.l.b16 %v925
      %v3022 = vunpack.c.h.b16 %v925
      %v3023 = vunpack.c.l.b16 %v926
      %v3024 = vunpack.c.h.b16 %v926
      %v3025 = vunpack.c.l.b16 %v927
      %v3026 = vunpack.c.h.b16 %v927
      %v3027 = vunpack.c.l.b16 %v928
      %v3028 = vunpack.c.h.b16 %v928
      %v3029 = vunpack.c.l.b16 %v929
      %v3030 = vunpack.c.h.b16 %v929
      %v3031 = vunpack.c.l.b16 %v930
      %v3032 = vunpack.c.h.b16 %v930
      %v3033 = vunpack.c.l.b16 %v931
      %v3034 = vunpack.c.h.b16 %v931
      %v3035 = vunpack.c.l.b16 %v932
      %v3036 = vunpack.c.h.b16 %v932
      %v3037 = vunpack.c.l.b16 %v933
      %v3038 = vunpack.c.h.b16 %v933
      %v3039 = vunpack.c.l.b16 %v934
      %v3040 = vunpack.c.h.b16 %v934
      %v3041 = vunpack.c.l.b16 %v935
      %v3042 = vunpack.c.h.b16 %v935
      %v3043 = vunpack.c.l.b16 %v936
      %v3044 = vunpack.c.h.b16 %v936
      %v3045 = vunpack.c.l.b16 %v937
      %v3046 = vunpack.c.h.b16 %v937
      %v3047 = vunpack.c.l.b16 %v938
      %v3048 = vunpack.c.h.b16 %v938
      %v3049 = vunpack.c.l.b16 %v939
      %v3050 = vunpack.c.h.b16 %v939
      %v3051 = vunpack.c.l.b16 %v940
      %v3052 = vunpack.c.h.b16 %v940
      %v3053 = vunpack.c.l.b16 %v941
      %v3054 = vunpack.c.h.b16 %v941
      %v3055 = vunpack.c.l.b16 %v942
      %v3056 = vunpack.c.h.b16 %v942
      %v3057 = vunpack.c.l.b16 %v943
      %v3058 = vunpack.c.h.b16 %v943
      %v3059 = vunpack.c.l.b16 %v944
      %v3060 = vunpack.c.h.b16 %v944
      %v3061 = vunpack.c.l.b16 %v945
      %v3062 = vunpack.c.h.b16 %v945
      %v3063 = vunpack.c.l.b16 %v946
      %v3064 = vunpack.c.h.b16 %v946
      %v3065 = vunpack.c.l.b16 %v947
      %v3066 = vunpack.c.h.b16 %v947
      %v3067 = vunpack.c.l.b16 %v948
      %v3068 = vunpack.c.h.b16 %v948
      %v3069 = vunpack.c.l.b16 %v949
      %v3070 = vunpack.c.h.b16 %v949
      %v3071 = vunpack.c.l.b16 %v950
      %v3072 = vunpack.c.h.b16 %v950
      %v3073 = vunpack.c.l.b16 %v951
      %v3074 = vunpack.c.h.b16 %v951
      %v3075 = vunpack.c.l.b16 %v952
      %v3076 = vunpack.c.h.b16 %v952
      %v3077 = vunpack.c.l.b16 %v953
      %v3078 = vunpack.c.h.b16 %v953
      %v3079 = vunpack.c.l.b16 %v954
      %v3080 = vunpack.c.h.b16 %v954
      %v3081 = vunpack.c.l.b16 %v955
      %v3082 = vunpack.c.h.b16 %v955
      %v3083 = vunpack.c.l.b16 %v956
      %v3084 = vunpack.c.h.b16 %v956
      %v3085 = vunpack.c.l.b16 %v957
      %v3086 = vunpack.c.h.b16 %v957
      %v3087 = vunpack.c.l.b16 %v958
      %v3088 = vunpack.c.h.b16 %v958
      %v3089 = vunpack.c.l.b16 %v959
      %v3090 = vunpack.c.h.b16 %v959
      %v3091 = vunpack.c.l.b16 %v960
      %v3092 = vunpack.c.h.b16 %v960
      %v3093 = vunpack.c.l.b16 %v961
      %v3094 = vunpack.c.h.b16 %v961
      %v3095 = vunpack.c.l.b16 %v962
      %v3096 = vunpack.c.h.b16 %v962
      %v3097 = vunpack.c.l.b16 %v963
      %v3098 = vunpack.c.h.b16 %v963
      %v3099 = vunpack.c.l.b16 %v964
      %v3100 = vunpack.c.h.b16 %v964
      %v3101 = vunpack.c.l.b16 %v965
      %v3102 = vunpack.c.h.b16 %v965
      %v3103 = vunpack.c.l.b16 %v966
      %v3104 = vunpack.c.h.b16 %v966
      %v3105 = vunpack.c.l.b16 %v967
      %v3106 = vunpack.c.h.b16 %v967
      %v3107 = vunpack.c.l.b16 %v968
      %v3108 = vunpack.c.h.b16 %v968
      %v3109 = vunpack.c.l.b16 %v969
      %v3110 = vunpack.c.h.b16 %v969
      %v3111 = vunpack.c.l.b16 %v970
      %v3112 = vunpack.c.h.b16 %v970
      %v3113 = vunpack.c.l.b16 %v971
      %v3114 = vunpack.c.h.b16 %v971
      %v3115 = vunpack.c.l.b16 %v972
      %v3116 = vunpack.c.h.b16 %v972
      %v3117 = vunpack.c.l.b16 %v973
      %v3118 = vunpack.c.h.b16 %v973
      %v3119 = vunpack.c.l.b16 %v974
      %v3120 = vunpack.c.h.b16 %v974
      %v3121 = vunpack.c.l.b16 %v975
      %v3122 = vunpack.c.h.b16 %v975
      %v3123 = vunpack.c.l.b16 %v976
      %v3124 = vunpack.c.h.b16 %v976
      %v3125 = vunpack.c.l.b16 %v977
      %v3126 = vunpack.c.h.b16 %v977
      %v3127 = vunpack.c.l.b16 %v978
      %v3128 = vunpack.c.h.b16 %v978
      %v3129 = vunpack.c.l.b16 %v979
      %v3130 = vunpack.c.h.b16 %v979
      %v3131 = vunpack.c.l.b16 %v980
      %v3132 = vunpack.c.h.b16 %v980
      %v3133 = vunpack.c.l.b16 %v981
      %v3134 = vunpack.c.h.b16 %v981
      %v3135 = vunpack.c.l.b16 %v982
      %v3136 = vunpack.c.h.b16 %v982
      %v3137 = vunpack.c.l.b16 %v983
      %v3138 = vunpack.c.h.b16 %v983
      %v3139 = vunpack.c.l.b16 %v984
      %v3140 = vunpack.c.h.b16 %v984
      %v3141 = vunpack.c.l.b16 %v985
      %v3142 = vunpack.c.h.b16 %v985
      %v3143 = vunpack.c.l.b16 %v986
      %v3144 = vunpack.c.h.b16 %v986
      %v3145 = vunpack.c.l.b16 %v987
      %v3146 = vunpack.c.h.b16 %v987
      %v3147 = vunpack.c.l.b16 %v988
      %v3148 = vunpack.c.h.b16 %v988
      %v3149 = vunpack.c.l.b16 %v989
      %v3150 = vunpack.c.h.b16 %v989
      %v3151 = vunpack.c.l.b16 %v990
      %v3152 = vunpack.c.h.b16 %v990
      %v3153 = vunpack.c.l.b16 %v991
      %v3154 = vunpack.c.h.b16 %v991
      %v3155 = vunpack.c.l.b16 %v992
      %v3156 = vunpack.c.h.b16 %v992
      %v3157 = vunpack.c.l.b16 %v993
      %v3158 = vunpack.c.h.b16 %v993
      %v3159 = vunpack.c.l.b16 %v994
      %v3160 = vunpack.c.h.b16 %v994
      %v3161 = vunpack.c.l.b16 %v995
      %v3162 = vunpack.c.h.b16 %v995
      %v3163 = vunpack.c.l.b16 %v996
      %v3164 = vunpack.c.h.b16 %v996
      %v3165 = vunpack.c.l.b16 %v997
      %v3166 = vunpack.c.h.b16 %v997
      %v3167 = vunpack.c.l.b16 %v998
      %v3168 = vunpack.c.h.b16 %v998
      %v3169 = vunpack.c.l.b16 %v999
      %v3170 = vunpack.c.h.b16 %v999
      %v3171 = vunpack.c.l.b16 %v1000
      %v3172 = vunpack.c.h.b16 %v1000
      %v3173 = vunpack.c.l.b16 %v1001
      %v3174 = vunpack.c.h.b16 %v1001
      %v3175 = vunpack.c.l.b16 %v1002
      %v3176 = vunpack.c.h.b16 %v1002
      %v3177 = vunpack.c.l.b16 %v1003
      %v3178 = vunpack.c.h.b16 %v1003
      %v3179 = vunpack.c.l.b16 %v1004
      %v3180 = vunpack.c.h.b16 %v1004
      %v3181 = vunpack.c.l.b16 %v1005
      %v3182 = vunpack.c.h.b16 %v1005
      %v3183 = vunpack.c.l.b16 %v1006
      %v3184 = vunpack.c.h.b16 %v1006
      %v3185 = vunpack.c.l.b16 %v1007
      %v3186 = vunpack.c.h.b16 %v1007
      %v3187 = vunpack.c.l.b16 %v1008
      %v3188 = vunpack.c.h.b16 %v1008
      %v3189 = vunpack.c.l.b16 %v1009
      %v3190 = vunpack.c.h.b16 %v1009
      %v3191 = vunpack.c.l.b16 %v1010
      %v3192 = vunpack.c.h.b16 %v1010
      %v3193 = vunpack.c.l.b16 %v1011
      %v3194 = vunpack.c.h.b16 %v1011
      %v3195 = vunpack.c.l.b16 %v1012
      %v3196 = vunpack.c.h.b16 %v1012
      %v3197 = vunpack.c.l.b16 %v1013
      %v3198 = vunpack.c.h.b16 %v1013
      %v3199 = vunpack.c.l.b16 %v1014
      %v3200 = vunpack.c.h.b16 %v1014
      %v3201 = vunpack.c.l.b16 %v1015
      %v3202 = vunpack.c.h.b16 %v1015
      %v3203 = vunpack.c.l.b16 %v1016
      %v3204 = vunpack.c.h.b16 %v1016
      %v3205 = vunpack.c.l.b16 %v1017
      %v3206 = vunpack.c.h.b16 %v1017
      %v3207 = vunpack.c.l.b16 %v1018
      %v3208 = vunpack.c.h.b16 %v1018
      %v3209 = vunpack.c.l.b16 %v1019
      %v3210 = vunpack.c.h.b16 %v1019
      %v3211 = vunpack.c.l.b16 %v1020
      %v3212 = vunpack.c.h.b16 %v1020
      %v3213 = vunpack.c.l.b16 %v1021
      %v3214 = vunpack.c.h.b16 %v1021
      %v3215 = vunpack.c.l.b16 %v1022
      %v3216 = vunpack.c.h.b16 %v1022
      %v3217 = vunpack.c.l.b16 %v1023
      %v3218 = vunpack.c.h.b16 %v1023
      %v3219 = vunpack.c.l.b16 %v1024
      %v3220 = vunpack.c.h.b16 %v1024
      %v3221 = vunpack.c.l.b16 %v1025
      %v3222 = vunpack.c.h.b16 %v1025
      %v3223 = vunpack.c.l.b16 %v1026
      %v3224 = vunpack.c.h.b16 %v1026
      %v3225 = vunpack.c.l.b16 %v1027
      %v3226 = vunpack.c.h.b16 %v1027
      %v3227 = vunpack.c.l.b16 %v1028
      %v3228 = vunpack.c.h.b16 %v1028
      %v3229 = vunpack.c.l.b16 %v1029
      %v3230 = vunpack.c.h.b16 %v1029
      %v3231 = vunpack.c.l.b16 %v1030
      %v3232 = vunpack.c.h.b16 %v1030
      %v3233 = vunpack.c.l.b16 %v1031
      %v3234 = vunpack.c.h.b16 %v1031
      %v3235 = vunpack.c.l.b16 %v1032
      %v3236 = vunpack.c.h.b16 %v1032
      %v3237 = vunpack.c.l.b16 %v1033
      %v3238 = vunpack.c.h.b16 %v1033
      %v3239 = vunpack.c.l.b16 %v1034
      %v3240 = vunpack.c.h.b16 %v1034
      %v3241 = vunpack.c.l.b16 %v1035
      %v3242 = vunpack.c.h.b16 %v1035
      %v3243 = vunpack.c.l.b16 %v1036
      %v3244 = vunpack.c.h.b16 %v1036
      %v3245 = vunpack.c.l.b16 %v1037
      %v3246 = vunpack.c.h.b16 %v1037
      %v3247 = vunpack.c.l.b16 %v1038
      %v3248 = vunpack.c.h.b16 %v1038
      %v3249 = vunpack.c.l.b16 %v1039
      %v3250 = vunpack.c.h.b16 %v1039
      %v3251 = vunpack.c.l.b16 %v1040
      %v3252 = vunpack.c.h.b16 %v1040
      %v3253 = vunpack.c.l.b16 %v1041
      %v3254 = vunpack.c.h.b16 %v1041
      %v3255 = vunpack.c.l.b16 %v1042
      %v3256 = vunpack.c.h.b16 %v1042
      %v3257 = vunpack.c.l.b16 %v1043
      %v3258 = vunpack.c.h.b16 %v1043
      %v3259 = vunpack.c.l.b16 %v1044
      %v3260 = vunpack.c.h.b16 %v1044
      %v3261 = vunpack.c.l.b16 %v1045
      %v3262 = vunpack.c.h.b16 %v1045
      %v3263 = vunpack.c.l.b16 %v1046
      %v3264 = vunpack.c.h.b16 %v1046
      %v3265 = vunpack.c.l.b16 %v1047
      %v3266 = vunpack.c.h.b16 %v1047
      %v3267 = vunpack.c.l.b16 %v1048
      %v3268 = vunpack.c.h.b16 %v1048
      %v3269 = vunpack.c.l.b16 %v1049
      %v3270 = vunpack.c.h.b16 %v1049
      %v3271 = vunpack.c.l.b16 %v1050
      %v3272 = vunpack.c.h.b16 %v1050
      %v3273 = vunpack.c.l.b16 %v1051
      %v3274 = vunpack.c.h.b16 %v1051
      %v3275 = vunpack.c.l.b16 %v1052
      %v3276 = vunpack.c.h.b16 %v1052
      %v3277 = vunpack.c.l.b16 %v1053
      %v3278 = vunpack.c.h.b16 %v1053
      %v3279 = vunpack.c.l.b16 %v1054
      %v3280 = vunpack.c.h.b16 %v1054
      %v3281 = vunpack.c.l.b16 %v1055
      %v3282 = vunpack.c.h.b16 %v1055
      %v3283 = vunpack.c.l.b16 %v1056
      %v3284 = vunpack.c.h.b16 %v1056
      %v3285 = vunpack.c.l.b16 %v1057
      %v3286 = vunpack.c.h.b16 %v1057
      %v3287 = vunpack.c.l.b16 %v1058
      %v3288 = vunpack.c.h.b16 %v1058
      %v3289 = vunpack.c.l.b16 %v1059
      %v3290 = vunpack.c.h.b16 %v1059
      %v3291 = vunpack.c.l.b16 %v1060
      %v3292 = vunpack.c.h.b16 %v1060
      %v3293 = vunpack.c.l.b16 %v1061
      %v3294 = vunpack.c.h.b16 %v1061
      %v3295 = vunpack.c.l.b16 %v1062
      %v3296 = vunpack.c.h.b16 %v1062
      %v3297 = vunpack.c.l.b16 %v1063
      %v3298 = vunpack.c.h.b16 %v1063
      %v3299 = vunpack.c.l.b16 %v1064
      %v3300 = vunpack.c.h.b16 %v1064
      %v3301 = vunpack.c.l.b16 %v1065
      %v3302 = vunpack.c.h.b16 %v1065
      %v3303 = vunpack.c.l.b16 %v1066
      %v3304 = vunpack.c.h.b16 %v1066
      %v3305 = vunpack.c.l.b16 %v1067
      %v3306 = vunpack.c.h.b16 %v1067
      %v3307 = vunpack.c.l.b16 %v1068
      %v3308 = vunpack.c.h.b16 %v1068
      %v3309 = vunpack.c.l.b16 %v1069
      %v3310 = vunpack.c.h.b16 %v1069
      %v3311 = vunpack.c.l.b16 %v1070
      %v3312 = vunpack.c.h.b16 %v1070
      %v3313 = vunpack.c.l.b16 %v1071
      %v3314 = vunpack.c.h.b16 %v1071
      %v3315 = vunpack.c.l.b16 %v1072
      %v3316 = vunpack.c.h.b16 %v1072
      %v3317 = vunpack.c.l.b16 %v1073
      %v3318 = vunpack.c.h.b16 %v1073
      %v3319 = vunpack.c.l.b16 %v1074
      %v3320 = vunpack.c.h.b16 %v1074
      %v3321 = vunpack.c.l.b16 %v1075
      %v3322 = vunpack.c.h.b16 %v1075
      %v3323 = vunpack.c.l.b16 %v1076
      %v3324 = vunpack.c.h.b16 %v1076
      %v3325 = vunpack.c.l.b16 %v1077
      %v3326 = vunpack.c.h.b16 %v1077
      %v3327 = vunpack.c.l.b16 %v1078
      %v3328 = vunpack.c.h.b16 %v1078
      %v3329 = vunpack.c.l.b16 %v1079
      %v3330 = vunpack.c.h.b16 %v1079
      %v3331 = vunpack.c.l.b16 %v1080
      %v3332 = vunpack.c.h.b16 %v1080
      %v3333 = vunpack.c.l.b16 %v1081
      %v3334 = vunpack.c.h.b16 %v1081
      %v3335 = vunpack.c.l.b16 %v1082
      %v3336 = vunpack.c.h.b16 %v1082
      %v3337 = vunpack.c.l.b16 %v1083
      %v3338 = vunpack.c.h.b16 %v1083
      %v3339 = vunpack.c.l.b16 %v1084
      %v3340 = vunpack.c.h.b16 %v1084
      %v3341 = vunpack.c.l.b16 %v1085
      %v3342 = vunpack.c.h.b16 %v1085
      %v3343 = vunpack.c.l.b16 %v1086
      %v3344 = vunpack.c.h.b16 %v1086
      %v3345 = vunpack.c.l.b16 %v1087
      %v3346 = vunpack.c.h.b16 %v1087
      %v3347 = vunpack.c.l.b16 %v1088
      %v3348 = vunpack.c.h.b16 %v1088
      %v3349 = vunpack.c.l.b16 %v1089
      %v3350 = vunpack.c.h.b16 %v1089
      %v3351 = vunpack.c.l.b16 %v1090
      %v3352 = vunpack.c.h.b16 %v1090
      %v3353 = vunpack.c.l.b16 %v1091
      %v3354 = vunpack.c.h.b16 %v1091
      %v3355 = vunpack.c.l.b16 %v1092
      %v3356 = vunpack.c.h.b16 %v1092
      %v3357 = vunpack.c.l.b16 %v1093
      %v3358 = vunpack.c.h.b16 %v1093
      %v3359 = vunpack.c.l.b16 %v1094
      %v3360 = vunpack.c.h.b16 %v1094
      %v3361 = vunpack.c.l.b16 %v1095
      %v3362 = vunpack.c.h.b16 %v1095
      %v3363 = vunpack.c.l.b16 %v1096
      %v3364 = vunpack.c.h.b16 %v1096
      %v3365 = vunpack.c.l.b16 %v1097
      %v3366 = vunpack.c.h.b16 %v1097
      %v3367 = vunpack.c.l.b16 %v1098
      %v3368 = vunpack.c.h.b16 %v1098
      %v3369 = vunpack.c.l.b16 %v1099
      %v3370 = vunpack.c.h.b16 %v1099
      %v3371 = vunpack.c.l.b16 %v1100
      %v3372 = vunpack.c.h.b16 %v1100
      %v3373 = vunpack.c.l.b16 %v1101
      %v3374 = vunpack.c.h.b16 %v1101
      %v3375 = vunpack.c.l.b16 %v1102
      %v3376 = vunpack.c.h.b16 %v1102
      %v3377 = vunpack.c.l.b16 %v1103
      %v3378 = vunpack.c.h.b16 %v1103
      %v3379 = vunpack.c.l.b16 %v1104
      %v3380 = vunpack.c.h.b16 %v1104
      %v3381 = vunpack.c.l.b16 %v1105
      %v3382 = vunpack.c.h.b16 %v1105
      %v3383 = vunpack.c.l.b16 %v1106
      %v3384 = vunpack.c.h.b16 %v1106
      %v3385 = vunpack.c.l.b16 %v1107
      %v3386 = vunpack.c.h.b16 %v1107
      %v3387 = vunpack.c.l.b16 %v1108
      %v3388 = vunpack.c.h.b16 %v1108
      %v3389 = vunpack.c.l.b16 %v1109
      %v3390 = vunpack.c.h.b16 %v1109
      %v3391 = vunpack.c.l.b16 %v1110
      %v3392 = vunpack.c.h.b16 %v1110
      %v3393 = vunpack.c.l.b16 %v1111
      %v3394 = vunpack.c.h.b16 %v1111
      %v3395 = vunpack.c.l.b16 %v1112
      %v3396 = vunpack.c.h.b16 %v1112
      %v3397 = vunpack.c.l.b16 %v1113
      %v3398 = vunpack.c.h.b16 %v1113
      %v3399 = vunpack.c.l.b16 %v1114
      %v3400 = vunpack.c.h.b16 %v1114
      %v3401 = vunpack.c.l.b16 %v1115
      %v3402 = vunpack.c.h.b16 %v1115
      %v3403 = vunpack.c.l.b16 %v1116
      %v3404 = vunpack.c.h.b16 %v1116
      %v3405 = vunpack.c.l.b16 %v1117
      %v3406 = vunpack.c.h.b16 %v1117
      %v3407 = vunpack.c.l.b16 %v1118
      %v3408 = vunpack.c.h.b16 %v1118
      %v3409 = vunpack.c.l.b16 %v1119
      %v3410 = vunpack.c.h.b16 %v1119
      %v3411 = vunpack.c.l.b16 %v1120
      %v3412 = vunpack.c.h.b16 %v1120
      %v3413 = vunpack.c.l.b16 %v1121
      %v3414 = vunpack.c.h.b16 %v1121
      %v3415 = vunpack.c.l.b16 %v1122
      %v3416 = vunpack.c.h.b16 %v1122
      %v3417 = vunpack.c.l.b16 %v1123
      %v3418 = vunpack.c.h.b16 %v1123
      %v3419 = vunpack.c.l.b16 %v1124
      %v3420 = vunpack.c.h.b16 %v1124
      %v3421 = vunpack.c.l.b16 %v1125
      %v3422 = vunpack.c.h.b16 %v1125
      %v3423 = vunpack.c.l.b16 %v1126
      %v3424 = vunpack.c.h.b16 %v1126
      %v3425 = vunpack.c.l.b16 %v1127
      %v3426 = vunpack.c.h.b16 %v1127
      %v3427 = vunpack.c.l.b16 %v1128
      %v3428 = vunpack.c.h.b16 %v1128
      %v3429 = vunpack.c.l.b16 %v1129
      %v3430 = vunpack.c.h.b16 %v1129
      %v3431 = vunpack.c.l.b16 %v1130
      %v3432 = vunpack.c.h.b16 %v1130
      %v3433 = vunpack.c.l.b16 %v1131
      %v3434 = vunpack.c.h.b16 %v1131
      %v3435 = vunpack.c.l.b16 %v1132
      %v3436 = vunpack.c.h.b16 %v1132
      %v3437 = vunpack.c.l.b16 %v1133
      %v3438 = vunpack.c.h.b16 %v1133
      %v3439 = vunpack.c.l.b16 %v1134
      %v3440 = vunpack.c.h.b16 %v1134
      %v3441 = vunpack.c.l.b16 %v1135
      %v3442 = vunpack.c.h.b16 %v1135
      %v3443 = vunpack.c.l.b16 %v1136
      %v3444 = vunpack.c.h.b16 %v1136
      %v3445 = vunpack.c.l.b16 %v1137
      %v3446 = vunpack.c.h.b16 %v1137
      %v3447 = vunpack.c.l.b16 %v1138
      %v3448 = vunpack.c.h.b16 %v1138
      %v3449 = vunpack.c.l.b16 %v1139
      %v3450 = vunpack.c.h.b16 %v1139
      %v3451 = vunpack.c.l.b16 %v1140
      %v3452 = vunpack.c.h.b16 %v1140
      %v3453 = vunpack.c.l.b16 %v1141
      %v3454 = vunpack.c.h.b16 %v1141
      %v3455 = vunpack.c.l.b16 %v1142
      %v3456 = vunpack.c.h.b16 %v1142
      %v3457 = vunpack.c.l.b16 %v1143
      %v3458 = vunpack.c.h.b16 %v1143
      %v3459 = vunpack.c.l.b16 %v1144
      %v3460 = vunpack.c.h.b16 %v1144
      %v3461 = vunpack.c.l.b16 %v1145
      %v3462 = vunpack.c.h.b16 %v1145
      %v3463 = vunpack.c.l.b16 %v1146
      %v3464 = vunpack.c.h.b16 %v1146
      %v3465 = vunpack.c.l.b16 %v1147
      %v3466 = vunpack.c.h.b16 %v1147
      %v3467 = vunpack.c.l.b16 %v1148
      %v3468 = vunpack.c.h.b16 %v1148
      %v3469 = vunpack.c.l.b16 %v1149
      %v3470 = vunpack.c.h.b16 %v1149
      %v3471 = vunpack.c.l.b16 %v1150
      %v3472 = vunpack.c.h.b16 %v1150
      %v3473 = vunpack.c.l.b16 %v1151
      %v3474 = vunpack.c.h.b16 %v1151
      %v3475 = vunpack.c.l.b16 %v1152
      %v3476 = vunpack.c.h.b16 %v1152
      %v3477 = vunpack.c.l.b16 %v1153
      %v3478 = vunpack.c.h.b16 %v1153
      %v3479 = vunpack.c.l.b16 %v1154
      %v3480 = vunpack.c.h.b16 %v1154
      %v3481 = vunpack.c.l.b16 %v1155
      %v3482 = vunpack.c.h.b16 %v1155
      %v3483 = vunpack.c.l.b16 %v1156
      %v3484 = vunpack.c.h.b16 %v1156
      %v3485 = vunpack.c.l.b16 %v1157
      %v3486 = vunpack.c.h.b16 %v1157
      %v3487 = vunpack.c.l.b16 %v1158
      %v3488 = vunpack.c.h.b16 %v1158
      %v3489 = vunpack.c.l.b16 %v1159
      %v3490 = vunpack.c.h.b16 %v1159
      %v3491 = vunpack.c.l.b16 %v1160
      %v3492 = vunpack.c.h.b16 %v1160
      %v3493 = vunpack.c.l.b16 %v1161
      %v3494 = vunpack.c.h.b16 %v1161
      %v3495 = vunpack.c.l.b16 %v1162
      %v3496 = vunpack.c.h.b16 %v1162
      %v3497 = vunpack.c.l.b16 %v1163
      %v3498 = vunpack.c.h.b16 %v1163
      %v3499 = vunpack.c.l.b16 %v1164
      %v3500 = vunpack.c.h.b16 %v1164
      %v3501 = vunpack.c.l.b16 %v1165
      %v3502 = vunpack.c.h.b16 %v1165
      %v3503 = vunpack.c.l.b16 %v1166
      %v3504 = vunpack.c.h.b16 %v1166
      %v3505 = vunpack.c.l.b16 %v1167
      %v3506 = vunpack.c.h.b16 %v1167
      %v3507 = vunpack.c.l.b16 %v1168
      %v3508 = vunpack.c.h.b16 %v1168
      %v3509 = vpack.c.b16 %v1989, %v1973
      %v3510 = vpack.c.b16 %v1990, %v1974
      %v3511 = vpack.c.b16 %v1991, %v1975
      %v3512 = vpack.c.b16 %v1992, %v1976
      %v3513 = vpack.c.b16 %v1993, %v1977
      %v3514 = vpack.c.b16 %v1994, %v1978
      %v3515 = vpack.c.b16 %v1995, %v1979
      %v3516 = vpack.c.b16 %v1996, %v1980
      %v3517 = vpack.c.b16 %v1997, %v1981
      %v3518 = vpack.c.b16 %v1998, %v1982
      %v3519 = vpack.c.b16 %v1999, %v1983
      %v3520 = vpack.c.b16 %v2000, %v1984
      %v3521 = vpack.c.b16 %v2001, %v1985
      %v3522 = vpack.c.b16 %v2002, %v1986
      %v3523 = vpack.c.b16 %v2003, %v1987
      %v3524 = vpack.c.b16 %v2004, %v1988
      %v3525 = vpack.c.b16 %v2021, %v2005
      %v3526 = vpack.c.b16 %v2022, %v2006
      %v3527 = vpack.c.b16 %v2023, %v2007
      %v3528 = vpack.c.b16 %v2024, %v2008
      %v3529 = vpack.c.b16 %v2025, %v2009
      %v3530 = vpack.c.b16 %v2026, %v2010
      %v3531 = vpack.c.b16 %v2027, %v2011
      %v3532 = vpack.c.b16 %v2028, %v2012
      %v3533 = vpack.c.b16 %v2029, %v2013
      %v3534 = vpack.c.b16 %v2030, %v2014
      %v3535 = vpack.c.b16 %v2031, %v2015
      %v3536 = vpack.c.b16 %v2032, %v2016
      %v3537 = vpack.c.b16 %v2033, %v2017
      %v3538 = vpack.c.b16 %v2034, %v2018
      %v3539 = vpack.c.b16 %v2035, %v2019
      %v3540 = vpack.c.b16 %v2036, %v2020
      %v3541 = vpack.c.b16 %v2053, %v2037
      %v3542 = vpack.c.b16 %v2054, %v2038
      %v3543 = vpack.c.b16 %v2055, %v2039
      %v3544 = vpack.c.b16 %v2056, %v2040
      %v3545 = vpack.c.b16 %v2057, %v2041
      %v3546 = vpack.c.b16 %v2058, %v2042
      %v3547 = vpack.c.b16 %v2059, %v2043
      %v3548 = vpack.c.b16 %v2060, %v2044
      %v3549 = vpack.c.b16 %v2061, %v2045
      %v3550 = vpack.c.b16 %v2062, %v2046
      %v3551 = vpack.c.b16 %v2063, %v2047
      %v3552 = vpack.c.b16 %v2064, %v2048
      %v3553 = vpack.c.b16 %v2065, %v2049
      %v3554 = vpack.c.b16 %v2066, %v2050
      %v3555 = vpack.c.b16 %v2067, %v2051
      %v3556 = vpack.c.b16 %v2068, %v2052
      %v3557 = vpack.c.b16 %v2085, %v2069
      %v3558 = vpack.c.b16 %v2086, %v2070
      %v3559 = vpack.c.b16 %v2087, %v2071
      %v3560 = vpack.c.b16 %v2088, %v2072
      %v3561 = vpack.c.b16 %v2089, %v2073
      %v3562 = vpack.c.b16 %v2090, %v2074
      %v3563 = vpack.c.b16 %v2091, %v2075
      %v3564 = vpack.c.b16 %v2092, %v2076
      %v3565 = vpack.c.b16 %v2093, %v2077
      %v3566 = vpack.c.b16 %v2094, %v2078
      %v3567 = vpack.c.b16 %v2095, %v2079
      %v3568 = vpack.c.b16 %v2096, %v2080
      %v3569 = vpack.c.b16 %v2097, %v2081
      %v3570 = vpack.c.b16 %v2098, %v2082
      %v3571 = vpack.c.b16 %v2099, %v2083
      %v3572 = vpack.c.b16 %v2100, %v2084
      %v3573 = vpack.c.b16 %v2117, %v2101
      %v3574 = vpack.c.b16 %v2118, %v2102
      %v3575 = vpack.c.b16 %v2119, %v2103
      %v3576 = vpack.c.b16 %v2120, %v2104
      %v3577 = vpack.c.b16 %v2121, %v2105
      %v3578 = vpack.c.b16 %v2122, %v2106
      %v3579 = vpack.c.b16 %v2123, %v2107
      %v3580 = vpack.c.b16 %v2124, %v2108
      %v3581 = vpack.c.b16 %v2125, %v2109
      %v3582 = vpack.c.b16 %v2126, %v2110
      %v3583 = vpack.c.b16 %v2127, %v2111
      %v3584 = vpack.c.b16 %v2128, %v2112
      %v3585 = vpack.c.b16 %v2129, %v2113
      %v3586 = vpack.c.b16 %v2130, %v2114
      %v3587 = vpack.c.b16 %v2131, %v2115
      %v3588 = vpack.c.b16 %v2132, %v2116
      %v3589 = vpack.c.b16 %v2149, %v2133
      %v3590 = vpack.c.b16 %v2150, %v2134
      %v3591 = vpack.c.b16 %v2151, %v2135
      %v3592 = vpack.c.b16 %v2152, %v2136
      %v3593 = vpack.c.b16 %v2153, %v2137
      %v3594 = vpack.c.b16 %v2154, %v2138
      %v3595 = vpack.c.b16 %v2155, %v2139
      %v3596 = vpack.c.b16 %v2156, %v2140
      %v3597 = vpack.c.b16 %v2157, %v2141
      %v3598 = vpack.c.b16 %v2158, %v2142
      %v3599 = vpack.c.b16 %v2159, %v2143
      %v3600 = vpack.c.b16 %v2160, %v2144
      %v3601 = vpack.c.b16 %v2161, %v2145
      %v3602 = vpack.c.b16 %v2162, %v2146
      %v3603 = vpack.c.b16 %v2163, %v2147
      %v3604 = vpack.c.b16 %v2164, %v2148
      %v3605 = vpack.c.b16 %v2181, %v2165
      %v3606 = vpack.c.b16 %v2182, %v2166
      %v3607 = vpack.c.b16 %v2183, %v2167
      %v3608 = vpack.c.b16 %v2184, %v2168
      %v3609 = vpack.c.b16 %v2185, %v2169
      %v3610 = vpack.c.b16 %v2186, %v2170
      %v3611 = vpack.c.b16 %v2187, %v2171
      %v3612 = vpack.c.b16 %v2188, %v2172
      %v3613 = vpack.c.b16 %v2189, %v2173
      %v3614 = vpack.c.b16 %v2190, %v2174
      %v3615 = vpack.c.b16 %v2191, %v2175
      %v3616 = vpack.c.b16 %v2192, %v2176
      %v3617 = vpack.c.b16 %v2193, %v2177
      %v3618 = vpack.c.b16 %v2194, %v2178
      %v3619 = vpack.c.b16 %v2195, %v2179
      %v3620 = vpack.c.b16 %v2196, %v2180
      %v3621 = vpack.c.b16 %v2213, %v2197
      %v3622 = vpack.c.b16 %v2214, %v2198
      %v3623 = vpack.c.b16 %v2215, %v2199
      %v3624 = vpack.c.b16 %v2216, %v2200
      %v3625 = vpack.c.b16 %v2217, %v2201
      %v3626 = vpack.c.b16 %v2218, %v2202
      %v3627 = vpack.c.b16 %v2219, %v2203
      %v3628 = vpack.c.b16 %v2220, %v2204
      %v3629 = vpack.c.b16 %v2221, %v2205
      %v3630 = vpack.c.b16 %v2222, %v2206
      %v3631 = vpack.c.b16 %v2223, %v2207
      %v3632 = vpack.c.b16 %v2224, %v2208
      %v3633 = vpack.c.b16 %v2225, %v2209
      %v3634 = vpack.c.b16 %v2226, %v2210
      %v3635 = vpack.c.b16 %v2227, %v2211
      %v3636 = vpack.c.b16 %v2228, %v2212
      %v3637 = vpack.c.b16 %v2245, %v2229
      %v3638 = vpack.c.b16 %v2246, %v2230
      %v3639 = vpack.c.b16 %v2247, %v2231
      %v3640 = vpack.c.b16 %v2248, %v2232
      %v3641 = vpack.c.b16 %v2249, %v2233
      %v3642 = vpack.c.b16 %v2250, %v2234
      %v3643 = vpack.c.b16 %v2251, %v2235
      %v3644 = vpack.c.b16 %v2252, %v2236
      %v3645 = vpack.c.b16 %v2253, %v2237
      %v3646 = vpack.c.b16 %v2254, %v2238
      %v3647 = vpack.c.b16 %v2255, %v2239
      %v3648 = vpack.c.b16 %v2256, %v2240
      %v3649 = vpack.c.b16 %v2257, %v2241
      %v3650 = vpack.c.b16 %v2258, %v2242
      %v3651 = vpack.c.b16 %v2259, %v2243
      %v3652 = vpack.c.b16 %v2260, %v2244
      %v3653 = vpack.c.b16 %v2277, %v2261
      %v3654 = vpack.c.b16 %v2278, %v2262
      %v3655 = vpack.c.b16 %v2279, %v2263
      %v3656 = vpack.c.b16 %v2280, %v2264
      %v3657 = vpack.c.b16 %v2281, %v2265
      %v3658 = vpack.c.b16 %v2282, %v2266
      %v3659 = vpack.c.b16 %v2283, %v2267
      %v3660 = vpack.c.b16 %v2284, %v2268
      %v3661 = vpack.c.b16 %v2285, %v2269
      %v3662 = vpack.c.b16 %v2286, %v2270
      %v3663 = vpack.c.b16 %v2287, %v2271
      %v3664 = vpack.c.b16 %v2288, %v2272
      %v3665 = vpack.c.b16 %v2289, %v2273
      %v3666 = vpack.c.b16 %v2290, %v2274
      %v3667 = vpack.c.b16 %v2291, %v2275
      %v3668 = vpack.c.b16 %v2292, %v2276
      %v3669 = vpack.c.b16 %v2309, %v2293
      %v3670 = vpack.c.b16 %v2310, %v2294
      %v3671 = vpack.c.b16 %v2311, %v2295
      %v3672 = vpack.c.b16 %v2312, %v2296
      %v3673 = vpack.c.b16 %v2313, %v2297
      %v3674 = vpack.c.b16 %v2314, %v2298
      %v3675 = vpack.c.b16 %v2315, %v2299
      %v3676 = vpack.c.b16 %v2316, %v2300
      %v3677 = vpack.c.b16 %v2317, %v2301
      %v3678 = vpack.c.b16 %v2318, %v2302
      %v3679 = vpack.c.b16 %v2319, %v2303
      %v3680 = vpack.c.b16 %v2320, %v2304
      %v3681 = vpack.c.b16 %v2321, %v2305
      %v3682 = vpack.c.b16 %v2322, %v2306
      %v3683 = vpack.c.b16 %v2323, %v2307
      %v3684 = vpack.c.b16 %v2324, %v2308
      %v3685 = vpack.c.b16 %v2341, %v2325
      %v3686 = vpack.c.b16 %v2342, %v2326
      %v3687 = vpack.c.b16 %v2343, %v2327
      %v3688 = vpack.c.b16 %v2344, %v2328
      %v3689 = vpack.c.b16 %v2345, %v2329
      %v3690 = vpack.c.b16 %v2346, %v2330
      %v3691 = vpack.c.b16 %v2347, %v2331
      %v3692 = vpack.c.b16 %v2348, %v2332
      %v3693 = vpack.c.b16 %v2349, %v2333
      %v3694 = vpack.c.b16 %v2350, %v2334
      %v3695 = vpack.c.b16 %v2351, %v2335
      %v3696 = vpack.c.b16 %v2352, %v2336
      %v3697 = vpack.c.b16 %v2353, %v2337
      %v3698 = vpack.c.b16 %v2354, %v2338
      %v3699 = vpack.c.b16 %v2355, %v2339
      %v3700 = vpack.c.b16 %v2356, %v2340
      %v3701 = vpack.c.b16 %v2373, %v2357
      %v3702 = vpack.c.b16 %v2374, %v2358
      %v3703 = vpack.c.b16 %v2375, %v2359
      %v3704 = vpack.c.b16 %v2376, %v2360
      %v3705 = vpack.c.b16 %v2377, %v2361
      %v3706 = vpack.c.b16 %v2378, %v2362
      %v3707 = vpack.c.b16 %v2379, %v2363
      %v3708 = vpack.c.b16 %v2380, %v2364
      %v3709 = vpack.c.b16 %v2381, %v2365
      %v3710 = vpack.c.b16 %v2382, %v2366
      %v3711 = vpack.c.b16 %v2383, %v2367
      %v3712 = vpack.c.b16 %v2384, %v2368
      %v3713 = vpack.c.b16 %v2385, %v2369
      %v3714 = vpack.c.b16 %v2386, %v2370
      %v3715 = vpack.c.b16 %v2387, %v2371
      %v3716 = vpack.c.b16 %v2388, %v2372
      %v3717 = vpack.c.b16 %v2405, %v2389
      %v3718 = vpack.c.b16 %v2406, %v2390
      %v3719 = vpack.c.b16 %v2407, %v2391
      %v3720 = vpack.c.b16 %v2408, %v2392
      %v3721 = vpack.c.b16 %v2409, %v2393
      %v3722 = vpack.c.b16 %v2410, %v2394
      %v3723 = vpack.c.b16 %v2411, %v2395
      %v3724 = vpack.c.b16 %v2412, %v2396
      %v3725 = vpack.c.b16 %v2413, %v2397
      %v3726 = vpack.c.b16 %v2414, %v2398
      %v3727 = vpack.c.b16 %v2415, %v2399
      %v3728 = vpack.c.b16 %v2416, %v2400
      %v3729 = vpack.c.b16 %v2417, %v2401
      %v3730 = vpack.c.b16 %v2418, %v2402
      %v3731 = vpack.c.b16 %v2419, %v2403
      %v3732 = vpack.c.b16 %v2420, %v2404
      %v3733 = vpack.c.b16 %v2437, %v2421
      %v3734 = vpack.c.b16 %v2438, %v2422
      %v3735 = vpack.c.b16 %v2439, %v2423
      %v3736 = vpack.c.b16 %v2440, %v2424
      %v3737 = vpack.c.b16 %v2441, %v2425
      %v3738 = vpack.c.b16 %v2442, %v2426
      %v3739 = vpack.c.b16 %v2443, %v2427
      %v3740 = vpack.c.b16 %v2444, %v2428
      %v3741 = vpack.c.b16 %v2445, %v2429
      %v3742 = vpack.c.b16 %v2446, %v2430
      %v3743 = vpack.c.b16 %v2447, %v2431
      %v3744 = vpack.c.b16 %v2448, %v2432
      %v3745 = vpack.c.b16 %v2449, %v2433
      %v3746 = vpack.c.b16 %v2450, %v2434
      %v3747 = vpack.c.b16 %v2451, %v2435
      %v3748 = vpack.c.b16 %v2452, %v2436
      %v3749 = vpack.c.b16 %v2469, %v2453
      %v3750 = vpack.c.b16 %v2470, %v2454
      %v3751 = vpack.c.b16 %v2471, %v2455
      %v3752 = vpack.c.b16 %v2472, %v2456
      %v3753 = vpack.c.b16 %v2473, %v2457
      %v3754 = vpack.c.b16 %v2474, %v2458
      %v3755 = vpack.c.b16 %v2475, %v2459
      %v3756 = vpack.c.b16 %v2476, %v2460
      %v3757 = vpack.c.b16 %v2477, %v2461
      %v3758 = vpack.c.b16 %v2478, %v2462
      %v3759 = vpack.c.b16 %v2479, %v2463
      %v3760 = vpack.c.b16 %v2480, %v2464
      %v3761 = vpack.c.b16 %v2481, %v2465
      %v3762 = vpack.c.b16 %v2482, %v2466
      %v3763 = vpack.c.b16 %v2483, %v2467
      %v3764 = vpack.c.b16 %v2484, %v2468
      %v3765 = vpack.c.b16 %v2501, %v2485
      %v3766 = vpack.c.b16 %v2502, %v2486
      %v3767 = vpack.c.b16 %v2503, %v2487
      %v3768 = vpack.c.b16 %v2504, %v2488
      %v3769 = vpack.c.b16 %v2505, %v2489
      %v3770 = vpack.c.b16 %v2506, %v2490
      %v3771 = vpack.c.b16 %v2507, %v2491
      %v3772 = vpack.c.b16 %v2508, %v2492
      %v3773 = vpack.c.b16 %v2509, %v2493
      %v3774 = vpack.c.b16 %v2510, %v2494
      %v3775 = vpack.c.b16 %v2511, %v2495
      %v3776 = vpack.c.b16 %v2512, %v2496
      %v3777 = vpack.c.b16 %v2513, %v2497
      %v3778 = vpack.c.b16 %v2514, %v2498
      %v3779 = vpack.c.b16 %v2515, %v2499
      %v3780 = vpack.c.b16 %v2516, %v2500
      %v3781 = vpack.c.b16 %v2533, %v2517
      %v3782 = vpack.c.b16 %v2534, %v2518
      %v3783 = vpack.c.b16 %v2535, %v2519
      %v3784 = vpack.c.b16 %v2536, %v2520
      %v3785 = vpack.c.b16 %v2537, %v2521
      %v3786 = vpack.c.b16 %v2538, %v2522
      %v3787 = vpack.c.b16 %v2539, %v2523
      %v3788 = vpack.c.b16 %v2540, %v2524
      %v3789 = vpack.c.b16 %v2541, %v2525
      %v3790 = vpack.c.b16 %v2542, %v2526
      %v3791 = vpack.c.b16 %v2543, %v2527
      %v3792 = vpack.c.b16 %v2544, %v2528
      %v3793 = vpack.c.b16 %v2545, %v2529
      %v3794 = vpack.c.b16 %v2546, %v2530
      %v3795 = vpack.c.b16 %v2547, %v2531
      %v3796 = vpack.c.b16 %v2548, %v2532
      %v3797 = vpack.c.b16 %v2565, %v2549
      %v3798 = vpack.c.b16 %v2566, %v2550
      %v3799 = vpack.c.b16 %v2567, %v2551
      %v3800 = vpack.c.b16 %v2568, %v2552
      %v3801 = vpack.c.b16 %v2569, %v2553
      %v3802 = vpack.c.b16 %v2570, %v2554
      %v3803 = vpack.c.b16 %v2571, %v2555
      %v3804 = vpack.c.b16 %v2572, %v2556
      %v3805 = vpack.c.b16 %v2573, %v2557
      %v3806 = vpack.c.b16 %v2574, %v2558
      %v3807 = vpack.c.b16 %v2575, %v2559
      %v3808 = vpack.c.b16 %v2576, %v2560
      %v3809 = vpack.c.b16 %v2577, %v2561
      %v3810 = vpack.c.b16 %v2578, %v2562
      %v3811 = vpack.c.b16 %v2579, %v2563
      %v3812 = vpack.c.b16 %v2580, %v2564
      %v3813 = vpack.c.b16 %v2597, %v2581
      %v3814 = vpack.c.b16 %v2598, %v2582
      %v3815 = vpack.c.b16 %v2599, %v2583
      %v3816 = vpack.c.b16 %v2600, %v2584
      %v3817 = vpack.c.b16 %v2601, %v2585
      %v3818 = vpack.c.b16 %v2602, %v2586
      %v3819 = vpack.c.b16 %v2603, %v2587
      %v3820 = vpack.c.b16 %v2604, %v2588
      %v3821 = vpack.c.b16 %v2605, %v2589
      %v3822 = vpack.c.b16 %v2606, %v2590
      %v3823 = vpack.c.b16 %v2607, %v2591
      %v3824 = vpack.c.b16 %v2608, %v2592
      %v3825 = vpack.c.b16 %v2609, %v2593
      %v3826 = vpack.c.b16 %v2610, %v2594
      %v3827 = vpack.c.b16 %v2611, %v2595
      %v3828 = vpack.c.b16 %v2612, %v2596
      %v3829 = vpack.c.b16 %v2629, %v2613
      %v3830 = vpack.c.b16 %v2630, %v2614
      %v3831 = vpack.c.b16 %v2631, %v2615
      %v3832 = vpack.c.b16 %v2632, %v2616
      %v3833 = vpack.c.b16 %v2633, %v2617
      %v3834 = vpack.c.b16 %v2634, %v2618
      %v3835 = vpack.c.b16 %v2635, %v2619
      %v3836 = vpack.c.b16 %v2636, %v2620
      %v3837 = vpack.c.b16 %v2637, %v2621
      %v3838 = vpack.c.b16 %v2638, %v2622
      %v3839 = vpack.c.b16 %v2639, %v2623
      %v3840 = vpack.c.b16 %v2640, %v2624
      %v3841 = vpack.c.b16 %v2641, %v2625
      %v3842 = vpack.c.b16 %v2642, %v2626
      %v3843 = vpack.c.b16 %v2643, %v2627
      %v3844 = vpack.c.b16 %v2644, %v2628
      %v3845 = vpack.c.b16 %v2661, %v2645
      %v3846 = vpack.c.b16 %v2662, %v2646
      %v3847 = vpack.c.b16 %v2663, %v2647
      %v3848 = vpack.c.b16 %v2664, %v2648
      %v3849 = vpack.c.b16 %v2665, %v2649
      %v3850 = vpack.c.b16 %v2666, %v2650
      %v3851 = vpack.c.b16 %v2667, %v2651
      %v3852 = vpack.c.b16 %v2668, %v2652
      %v3853 = vpack.c.b16 %v2669, %v2653
      %v3854 = vpack.c.b16 %v2670, %v2654
      %v3855 = vpack.c.b16 %v2671, %v2655
      %v3856 = vpack.c.b16 %v2672, %v2656
      %v3857 = vpack.c.b16 %v2673, %v2657
      %v3858 = vpack.c.b16 %v2674, %v2658
      %v3859 = vpack.c.b16 %v2675, %v2659
      %v3860 = vpack.c.b16 %v2676, %v2660
      %v3861 = vpack.c.b16 %v2693, %v2677
      %v3862 = vpack.c.b16 %v2694, %v2678
      %v3863 = vpack.c.b16 %v2695, %v2679
      %v3864 = vpack.c.b16 %v2696, %v2680
      %v3865 = vpack.c.b16 %v2697, %v2681
      %v3866 = vpack.c.b16 %v2698, %v2682
      %v3867 = vpack.c.b16 %v2699, %v2683
      %v3868 = vpack.c.b16 %v2700, %v2684
      %v3869 = vpack.c.b16 %v2701, %v2685
      %v3870 = vpack.c.b16 %v2702, %v2686
      %v3871 = vpack.c.b16 %v2703, %v2687
      %v3872 = vpack.c.b16 %v2704, %v2688
      %v3873 = vpack.c.b16 %v2705, %v2689
      %v3874 = vpack.c.b16 %v2706, %v2690
      %v3875 = vpack.c.b16 %v2707, %v2691
      %v3876 = vpack.c.b16 %v2708, %v2692
      %v3877 = vpack.c.b16 %v2725, %v2709
      %v3878 = vpack.c.b16 %v2726, %v2710
      %v3879 = vpack.c.b16 %v2727, %v2711
      %v3880 = vpack.c.b16 %v2728, %v2712
      %v3881 = vpack.c.b16 %v2729, %v2713
      %v3882 = vpack.c.b16 %v2730, %v2714
      %v3883 = vpack.c.b16 %v2731, %v2715
      %v3884 = vpack.c.b16 %v2732, %v2716
      %v3885 = vpack.c.b16 %v2733, %v2717
      %v3886 = vpack.c.b16 %v2734, %v2718
      %v3887 = vpack.c.b16 %v2735, %v2719
      %v3888 = vpack.c.b16 %v2736, %v2720
      %v3889 = vpack.c.b16 %v2737, %v2721
      %v3890 = vpack.c.b16 %v2738, %v2722
      %v3891 = vpack.c.b16 %v2739, %v2723
      %v3892 = vpack.c.b16 %v2740, %v2724
      %v3893 = vpack.c.b16 %v2757, %v2741
      %v3894 = vpack.c.b16 %v2758, %v2742
      %v3895 = vpack.c.b16 %v2759, %v2743
      %v3896 = vpack.c.b16 %v2760, %v2744
      %v3897 = vpack.c.b16 %v2761, %v2745
      %v3898 = vpack.c.b16 %v2762, %v2746
      %v3899 = vpack.c.b16 %v2763, %v2747
      %v3900 = vpack.c.b16 %v2764, %v2748
      %v3901 = vpack.c.b16 %v2765, %v2749
      %v3902 = vpack.c.b16 %v2766, %v2750
      %v3903 = vpack.c.b16 %v2767, %v2751
      %v3904 = vpack.c.b16 %v2768, %v2752
      %v3905 = vpack.c.b16 %v2769, %v2753
      %v3906 = vpack.c.b16 %v2770, %v2754
      %v3907 = vpack.c.b16 %v2771, %v2755
      %v3908 = vpack.c.b16 %v2772, %v2756
      %v3909 = vpack.c.b16 %v2789, %v2773
      %v3910 = vpack.c.b16 %v2790, %v2774
      %v3911 = vpack.c.b16 %v2791, %v2775
      %v3912 = vpack.c.b16 %v2792, %v2776
      %v3913 = vpack.c.b16 %v2793, %v2777
      %v3914 = vpack.c.b16 %v2794, %v2778
      %v3915 = vpack.c.b16 %v2795, %v2779
      %v3916 = vpack.c.b16 %v2796, %v2780
      %v3917 = vpack.c.b16 %v2797, %v2781
      %v3918 = vpack.c.b16 %v2798, %v2782
      %v3919 = vpack.c.b16 %v2799, %v2783
      %v3920 = vpack.c.b16 %v2800, %v2784
      %v3921 = vpack.c.b16 %v2801, %v2785
      %v3922 = vpack.c.b16 %v2802, %v2786
      %v3923 = vpack.c.b16 %v2803, %v2787
      %v3924 = vpack.c.b16 %v2804, %v2788
      %v3925 = vpack.c.b16 %v2821, %v2805
      %v3926 = vpack.c.b16 %v2822, %v2806
      %v3927 = vpack.c.b16 %v2823, %v2807
      %v3928 = vpack.c.b16 %v2824, %v2808
      %v3929 = vpack.c.b16 %v2825, %v2809
      %v3930 = vpack.c.b16 %v2826, %v2810
      %v3931 = vpack.c.b16 %v2827, %v2811
      %v3932 = vpack.c.b16 %v2828, %v2812
      %v3933 = vpack.c.b16 %v2829, %v2813
      %v3934 = vpack.c.b16 %v2830, %v2814
      %v3935 = vpack.c.b16 %v2831, %v2815
      %v3936 = vpack.c.b16 %v2832, %v2816
      %v3937 = vpack.c.b16 %v2833, %v2817
      %v3938 = vpack.c.b16 %v2834, %v2818
      %v3939 = vpack.c.b16 %v2835, %v2819
      %v3940 = vpack.c.b16 %v2836, %v2820
      %v3941 = vpack.c.b16 %v2853, %v2837
      %v3942 = vpack.c.b16 %v2854, %v2838
      %v3943 = vpack.c.b16 %v2855, %v2839
      %v3944 = vpack.c.b16 %v2856, %v2840
      %v3945 = vpack.c.b16 %v2857, %v2841
      %v3946 = vpack.c.b16 %v2858, %v2842
      %v3947 = vpack.c.b16 %v2859, %v2843
      %v3948 = vpack.c.b16 %v2860, %v2844
      %v3949 = vpack.c.b16 %v2861, %v2845
      %v3950 = vpack.c.b16 %v2862, %v2846
      %v3951 = vpack.c.b16 %v2863, %v2847
      %v3952 = vpack.c.b16 %v2864, %v2848
      %v3953 = vpack.c.b16 %v2865, %v2849
      %v3954 = vpack.c.b16 %v2866, %v2850
      %v3955 = vpack.c.b16 %v2867, %v2851
      %v3956 = vpack.c.b16 %v2868, %v2852
      %v3957 = vpack.c.b16 %v2885, %v2869
      %v3958 = vpack.c.b16 %v2886, %v2870
      %v3959 = vpack.c.b16 %v2887, %v2871
      %v3960 = vpack.c.b16 %v2888, %v2872
      %v3961 = vpack.c.b16 %v2889, %v2873
      %v3962 = vpack.c.b16 %v2890, %v2874
      %v3963 = vpack.c.b16 %v2891, %v2875
      %v3964 = vpack.c.b16 %v2892, %v2876
      %v3965 = vpack.c.b16 %v2893, %v2877
      %v3966 = vpack.c.b16 %v2894, %v2878
      %v3967 = vpack.c.b16 %v2895, %v2879
      %v3968 = vpack.c.b16 %v2896, %v2880
      %v3969 = vpack.c.b16 %v2897, %v2881
      %v3970 = vpack.c.b16 %v2898, %v2882
      %v3971 = vpack.c.b16 %v2899, %v2883
      %v3972 = vpack.c.b16 %v2900, %v2884
      %v3973 = vpack.c.b16 %v2917, %v2901
      %v3974 = vpack.c.b16 %v2918, %v2902
      %v3975 = vpack.c.b16 %v2919, %v2903
      %v3976 = vpack.c.b16 %v2920, %v2904
      %v3977 = vpack.c.b16 %v2921, %v2905
      %v3978 = vpack.c.b16 %v2922, %v2906
      %v3979 = vpack.c.b16 %v2923, %v2907
      %v3980 = vpack.c.b16 %v2924, %v2908
      %v3981 = vpack.c.b16 %v2925, %v2909
      %v3982 = vpack.c.b16 %v2926, %v2910
      %v3983 = vpack.c.b16 %v2927, %v2911
      %v3984 = vpack.c.b16 %v2928, %v2912
      %v3985 = vpack.c.b16 %v2929, %v2913
      %v3986 = vpack.c.b16 %v2930, %v2914
      %v3987 = vpack.c.b16 %v2931, %v2915
      %v3988 = vpack.c.b16 %v2932, %v2916
      %v3989 = vpack.c.b16 %v2949, %v2933
      %v3990 = vpack.c.b16 %v2950, %v2934
      %v3991 = vpack.c.b16 %v2951, %v2935
      %v3992 = vpack.c.b16 %v2952, %v2936
      %v3993 = vpack.c.b16 %v2953, %v2937
      %v3994 = vpack.c.b16 %v2954, %v2938
      %v3995 = vpack.c.b16 %v2955, %v2939
      %v3996 = vpack.c.b16 %v2956, %v2940
      %v3997 = vpack.c.b16 %v2957, %v2941
      %v3998 = vpack.c.b16 %v2958, %v2942
      %v3999 = vpack.c.b16 %v2959, %v2943
      %v4000 = vpack.c.b16 %v2960, %v2944
      %v4001 = vpack.c.b16 %v2961, %v2945
      %v4002 = vpack.c.b16 %v2962, %v2946
      %v4003 = vpack.c.b16 %v2963, %v2947
      %v4004 = vpack.c.b16 %v2964, %v2948
      %v4005 = vpack.c.b16 %v2981, %v2965
      %v4006 = vpack.c.b16 %v2982, %v2966
      %v4007 = vpack.c.b16 %v2983, %v2967
      %v4008 = vpack.c.b16 %v2984, %v2968
      %v4009 = vpack.c.b16 %v2985, %v2969
      %v4010 = vpack.c.b16 %v2986, %v2970
      %v4011 = vpack.c.b16 %v2987, %v2971
      %v4012 = vpack.c.b16 %v2988, %v2972
      %v4013 = vpack.c.b16 %v2989, %v2973
      %v4014 = vpack.c.b16 %v2990, %v2974
      %v4015 = vpack.c.b16 %v2991, %v2975
      %v4016 = vpack.c.b16 %v2992, %v2976
      %v4017 = vpack.c.b16 %v2993, %v2977
      %v4018 = vpack.c.b16 %v2994, %v2978
      %v4019 = vpack.c.b16 %v2995, %v2979
      %v4020 = vpack.c.b16 %v2996, %v2980
      %v4021 = vpack.c.b16 %v3013, %v2997
      %v4022 = vpack.c.b16 %v3014, %v2998
      %v4023 = vpack.c.b16 %v3015, %v2999
      %v4024 = vpack.c.b16 %v3016, %v3000
      %v4025 = vpack.c.b16 %v3017, %v3001
      %v4026 = vpack.c.b16 %v3018, %v3002
      %v4027 = vpack.c.b16 %v3019, %v3003
      %v4028 = vpack.c.b16 %v3020, %v3004
      %v4029 = vpack.c.b16 %v3021, %v3005
      %v4030 = vpack.c.b16 %v3022, %v3006
      %v4031 = vpack.c.b16 %v3023, %v3007
      %v4032 = vpack.c.b16 %v3024, %v3008
      %v4033 = vpack.c.b16 %v3025, %v3009
      %v4034 = vpack.c.b16 %v3026, %v3010
      %v4035 = vpack.c.b16 %v3027, %v3011
      %v4036 = vpack.c.b16 %v3028, %v3012
      %v4037 = vpack.c.b16 %v3045, %v3029
      %v4038 = vpack.c.b16 %v3046, %v3030
      %v4039 = vpack.c.b16 %v3047, %v3031
      %v4040 = vpack.c.b16 %v3048, %v3032
      %v4041 = vpack.c.b16 %v3049, %v3033
      %v4042 = vpack.c.b16 %v3050, %v3034
      %v4043 = vpack.c.b16 %v3051, %v3035
      %v4044 = vpack.c.b16 %v3052, %v3036
      %v4045 = vpack.c.b16 %v3053, %v3037
      %v4046 = vpack.c.b16 %v3054, %v3038
      %v4047 = vpack.c.b16 %v3055, %v3039
      %v4048 = vpack.c.b16 %v3056, %v3040
      %v4049 = vpack.c.b16 %v3057, %v3041
      %v4050 = vpack.c.b16 %v3058, %v3042
      %v4051 = vpack.c.b16 %v3059, %v3043
      %v4052 = vpack.c.b16 %v3060, %v3044
      %v4053 = vpack.c.b16 %v3077, %v3061
      %v4054 = vpack.c.b16 %v3078, %v3062
      %v4055 = vpack.c.b16 %v3079, %v3063
      %v4056 = vpack.c.b16 %v3080, %v3064
      %v4057 = vpack.c.b16 %v3081, %v3065
      %v4058 = vpack.c.b16 %v3082, %v3066
      %v4059 = vpack.c.b16 %v3083, %v3067
      %v4060 = vpack.c.b16 %v3084, %v3068
      %v4061 = vpack.c.b16 %v3085, %v3069
      %v4062 = vpack.c.b16 %v3086, %v3070
      %v4063 = vpack.c.b16 %v3087, %v3071
      %v4064 = vpack.c.b16 %v3088, %v3072
      %v4065 = vpack.c.b16 %v3089, %v3073
      %v4066 = vpack.c.b16 %v3090, %v3074
      %v4067 = vpack.c.b16 %v3091, %v3075
      %v4068 = vpack.c.b16 %v3092, %v3076
      %v4069 = vpack.c.b16 %v3109, %v3093
      %v4070 = vpack.c.b16 %v3110, %v3094
      %v4071 = vpack.c.b16 %v3111, %v3095
      %v4072 = vpack.c.b16 %v3112, %v3096
      %v4073 = vpack.c.b16 %v3113, %v3097
      %v4074 = vpack.c.b16 %v3114, %v3098
      %v4075 = vpack.c.b16 %v3115, %v3099
      %v4076 = vpack.c.b16 %v3116, %v3100
      %v4077 = vpack.c.b16 %v3117, %v3101
      %v4078 = vpack.c.b16 %v3118, %v3102
      %v4079 = vpack.c.b16 %v3119, %v3103
      %v4080 = vpack.c.b16 %v3120, %v3104
      %v4081 = vpack.c.b16 %v3121, %v3105
      %v4082 = vpack.c.b16 %v3122, %v3106
      %v4083 = vpack.c.b16 %v3123, %v3107
      %v4084 = vpack.c.b16 %v3124, %v3108
      %v4085 = vpack.c.b16 %v3141, %v3125
      %v4086 = vpack.c.b16 %v3142, %v3126
      %v4087 = vpack.c.b16 %v3143, %v3127
      %v4088 = vpack.c.b16 %v3144, %v3128
      %v4089 = vpack.c.b16 %v3145, %v3129
      %v4090 = vpack.c.b16 %v3146, %v3130
      %v4091 = vpack.c.b16 %v3147, %v3131
      %v4092 = vpack.c.b16 %v3148, %v3132
      %v4093 = vpack.c.b16 %v3149, %v3133
      %v4094 = vpack.c.b16 %v3150, %v3134
      %v4095 = vpack.c.b16 %v3151, %v3135
      %v4096 = vpack.c.b16 %v3152, %v3136
      %v4097 = vpack.c.b16 %v3153, %v3137
      %v4098 = vpack.c.b16 %v3154, %v3138
      %v4099 = vpack.c.b16 %v3155, %v3139
      %v4100 = vpack.c.b16 %v3156, %v3140
      %v4101 = vpack.c.b16 %v3173, %v3157
      %v4102 = vpack.c.b16 %v3174, %v3158
      %v4103 = vpack.c.b16 %v3175, %v3159
      %v4104 = vpack.c.b16 %v3176, %v3160
      %v4105 = vpack.c.b16 %v3177, %v3161
      %v4106 = vpack.c.b16 %v3178, %v3162
      %v4107 = vpack.c.b16 %v3179, %v3163
      %v4108 = vpack.c.b16 %v3180, %v3164
      %v4109 = vpack.c.b16 %v3181, %v3165
      %v4110 = vpack.c.b16 %v3182, %v3166
      %v4111 = vpack.c.b16 %v3183, %v3167
      %v4112 = vpack.c.b16 %v3184, %v3168
      %v4113 = vpack.c.b16 %v3185, %v3169
      %v4114 = vpack.c.b16 %v3186, %v3170
      %v4115 = vpack.c.b16 %v3187, %v3171
      %v4116 = vpack.c.b16 %v3188, %v3172
      %v4117 = vpack.c.b16 %v3205, %v3189
      %v4118 = vpack.c.b16 %v3206, %v3190
      %v4119 = vpack.c.b16 %v3207, %v3191
      %v4120 = vpack.c.b16 %v3208, %v3192
      %v4121 = vpack.c.b16 %v3209, %v3193
      %v4122 = vpack.c.b16 %v3210, %v3194
      %v4123 = vpack.c.b16 %v3211, %v3195
      %v4124 = vpack.c.b16 %v3212, %v3196
      %v4125 = vpack.c.b16 %v3213, %v3197
      %v4126 = vpack.c.b16 %v3214, %v3198
      %v4127 = vpack.c.b16 %v3215, %v3199
      %v4128 = vpack.c.b16 %v3216, %v3200
      %v4129 = vpack.c.b16 %v3217, %v3201
      %v4130 = vpack.c.b16 %v3218, %v3202
      %v4131 = vpack.c.b16 %v3219, %v3203
      %v4132 = vpack.c.b16 %v3220, %v3204
      %v4133 = vpack.c.b16 %v3237, %v3221
      %v4134 = vpack.c.b16 %v3238, %v3222
      %v4135 = vpack.c.b16 %v3239, %v3223
      %v4136 = vpack.c.b16 %v3240, %v3224
      %v4137 = vpack.c.b16 %v3241, %v3225
      %v4138 = vpack.c.b16 %v3242, %v3226
      %v4139 = vpack.c.b16 %v3243, %v3227
      %v4140 = vpack.c.b16 %v3244, %v3228
      %v4141 = vpack.c.b16 %v3245, %v3229
      %v4142 = vpack.c.b16 %v3246, %v3230
      %v4143 = vpack.c.b16 %v3247, %v3231
      %v4144 = vpack.c.b16 %v3248, %v3232
      %v4145 = vpack.c.b16 %v3249, %v3233
      %v4146 = vpack.c.b16 %v3250, %v3234
      %v4147 = vpack.c.b16 %v3251, %v3235
      %v4148 = vpack.c.b16 %v3252, %v3236
      %v4149 = vpack.c.b16 %v3269, %v3253
      %v4150 = vpack.c.b16 %v3270, %v3254
      %v4151 = vpack.c.b16 %v3271, %v3255
      %v4152 = vpack.c.b16 %v3272, %v3256
      %v4153 = vpack.c.b16 %v3273, %v3257
      %v4154 = vpack.c.b16 %v3274, %v3258
      %v4155 = vpack.c.b16 %v3275, %v3259
      %v4156 = vpack.c.b16 %v3276, %v3260
      %v4157 = vpack.c.b16 %v3277, %v3261
      %v4158 = vpack.c.b16 %v3278, %v3262
      %v4159 = vpack.c.b16 %v3279, %v3263
      %v4160 = vpack.c.b16 %v3280, %v3264
      %v4161 = vpack.c.b16 %v3281, %v3265
      %v4162 = vpack.c.b16 %v3282, %v3266
      %v4163 = vpack.c.b16 %v3283, %v3267
      %v4164 = vpack.c.b16 %v3284, %v3268
      %v4165 = vpack.c.b16 %v3301, %v3285
      %v4166 = vpack.c.b16 %v3302, %v3286
      %v4167 = vpack.c.b16 %v3303, %v3287
      %v4168 = vpack.c.b16 %v3304, %v3288
      %v4169 = vpack.c.b16 %v3305, %v3289
      %v4170 = vpack.c.b16 %v3306, %v3290
      %v4171 = vpack.c.b16 %v3307, %v3291
      %v4172 = vpack.c.b16 %v3308, %v3292
      %v4173 = vpack.c.b16 %v3309, %v3293
      %v4174 = vpack.c.b16 %v3310, %v3294
      %v4175 = vpack.c.b16 %v3311, %v3295
      %v4176 = vpack.c.b16 %v3312, %v3296
      %v4177 = vpack.c.b16 %v3313, %v3297
      %v4178 = vpack.c.b16 %v3314, %v3298
      %v4179 = vpack.c.b16 %v3315, %v3299
      %v4180 = vpack.c.b16 %v3316, %v3300
      %v4181 = vpack.c.b16 %v3333, %v3317
      %v4182 = vpack.c.b16 %v3334, %v3318
      %v4183 = vpack.c.b16 %v3335, %v3319
      %v4184 = vpack.c.b16 %v3336, %v3320
      %v4185 = vpack.c.b16 %v3337, %v3321
      %v4186 = vpack.c.b16 %v3338, %v3322
      %v4187 = vpack.c.b16 %v3339, %v3323
      %v4188 = vpack.c.b16 %v3340, %v3324
      %v4189 = vpack.c.b16 %v3341, %v3325
      %v4190 = vpack.c.b16 %v3342, %v3326
      %v4191 = vpack.c.b16 %v3343, %v3327
      %v4192 = vpack.c.b16 %v3344, %v3328
      %v4193 = vpack.c.b16 %v3345, %v3329
      %v4194 = vpack.c.b16 %v3346, %v3330
      %v4195 = vpack.c.b16 %v3347, %v3331
      %v4196 = vpack.c.b16 %v3348, %v3332
      %v4197 = vpack.c.b16 %v3365, %v3349
      %v4198 = vpack.c.b16 %v3366, %v3350
      %v4199 = vpack.c.b16 %v3367, %v3351
      %v4200 = vpack.c.b16 %v3368, %v3352
      %v4201 = vpack.c.b16 %v3369, %v3353
      %v4202 = vpack.c.b16 %v3370, %v3354
      %v4203 = vpack.c.b16 %v3371, %v3355
      %v4204 = vpack.c.b16 %v3372, %v3356
      %v4205 = vpack.c.b16 %v3373, %v3357
      %v4206 = vpack.c.b16 %v3374, %v3358
      %v4207 = vpack.c.b16 %v3375, %v3359
      %v4208 = vpack.c.b16 %v3376, %v3360
      %v4209 = vpack.c.b16 %v3377, %v3361
      %v4210 = vpack.c.b16 %v3378, %v3362
      %v4211 = vpack.c.b16 %v3379, %v3363
      %v4212 = vpack.c.b16 %v3380, %v3364
      %v4213 = vpack.c.b16 %v3397, %v3381
      %v4214 = vpack.c.b16 %v3398, %v3382
      %v4215 = vpack.c.b16 %v3399, %v3383
      %v4216 = vpack.c.b16 %v3400, %v3384
      %v4217 = vpack.c.b16 %v3401, %v3385
      %v4218 = vpack.c.b16 %v3402, %v3386
      %v4219 = vpack.c.b16 %v3403, %v3387
      %v4220 = vpack.c.b16 %v3404, %v3388
      %v4221 = vpack.c.b16 %v3405, %v3389
      %v4222 = vpack.c.b16 %v3406, %v3390
      %v4223 = vpack.c.b16 %v3407, %v3391
      %v4224 = vpack.c.b16 %v3408, %v3392
      %v4225 = vpack.c.b16 %v3409, %v3393
      %v4226 = vpack.c.b16 %v3410, %v3394
      %v4227 = vpack.c.b16 %v3411, %v3395
      %v4228 = vpack.c.b16 %v3412, %v3396
      %v4229 = vpack.c.b16 %v3429, %v3413
      %v4230 = vpack.c.b16 %v3430, %v3414
      %v4231 = vpack.c.b16 %v3431, %v3415
      %v4232 = vpack.c.b16 %v3432, %v3416
      %v4233 = vpack.c.b16 %v3433, %v3417
      %v4234 = vpack.c.b16 %v3434, %v3418
      %v4235 = vpack.c.b16 %v3435, %v3419
      %v4236 = vpack.c.b16 %v3436, %v3420
      %v4237 = vpack.c.b16 %v3437, %v3421
      %v4238 = vpack.c.b16 %v3438, %v3422
      %v4239 = vpack.c.b16 %v3439, %v3423
      %v4240 = vpack.c.b16 %v3440, %v3424
      %v4241 = vpack.c.b16 %v3441, %v3425
      %v4242 = vpack.c.b16 %v3442, %v3426
      %v4243 = vpack.c.b16 %v3443, %v3427
      %v4244 = vpack.c.b16 %v3444, %v3428
      %v4245 = vpack.c.b16 %v3461, %v3445
      %v4246 = vpack.c.b16 %v3462, %v3446
      %v4247 = vpack.c.b16 %v3463, %v3447
      %v4248 = vpack.c.b16 %v3464, %v3448
      %v4249 = vpack.c.b16 %v3465, %v3449
      %v4250 = vpack.c.b16 %v3466, %v3450
      %v4251 = vpack.c.b16 %v3467, %v3451
      %v4252 = vpack.c.b16 %v3468, %v3452
      %v4253 = vpack.c.b16 %v3469, %v3453
      %v4254 = vpack.c.b16 %v3470, %v3454
      %v4255 = vpack.c.b16 %v3471, %v3455
      %v4256 = vpack.c.b16 %v3472, %v3456
      %v4257 = vpack.c.b16 %v3473, %v3457
      %v4258 = vpack.c.b16 %v3474, %v3458
      %v4259 = vpack.c.b16 %v3475, %v3459
      %v4260 = vpack.c.b16 %v3476, %v3460
      %v4261 = vpack.c.b16 %v3493, %v3477
      %v4262 = vpack.c.b16 %v3494, %v3478
      %v4263 = vpack.c.b16 %v3495, %v3479
      %v4264 = vpack.c.b16 %v3496, %v3480
      %v4265 = vpack.c.b16 %v3497, %v3481
      %v4266 = vpack.c.b16 %v3498, %v3482
      %v4267 = vpack.c.b16 %v3499, %v3483
      %v4268 = vpack.c.b16 %v3500, %v3484
      %v4269 = vpack.c.b16 %v3501, %v3485
      %v4270 = vpack.c.b16 %v3502, %v3486
      %v4271 = vpack.c.b16 %v3503, %v3487
      %v4272 = vpack.c.b16 %v3504, %v3488
      %v4273 = vpack.c.b16 %v3505, %v3489
      %v4274 = vpack.c.b16 %v3506, %v3490
      %v4275 = vpack.c.b16 %v3507, %v3491
      %v4276 = vpack.c.b16 %v3508, %v3492
      %5045 = vmatpush.bf16.msra.mxu0 %v3621
      %5046 = vmatpush.bf16.msra.mxu0 %v3605
      %5047 = vmatpush.bf16.msra.mxu0 %v3589
      %5048 = vmatpush.bf16.msra.mxu0 %v3573
      %5049 = vmatpush.bf16.msra.mxu0 %v3557
      %5050 = vmatpush.bf16.msra.mxu0 %v3541
      %5051 = vmatpush.bf16.msra.mxu0 %v3525
      %5052 = vmatpush.bf16.msra.mxu0 %v3509
      %5053 = vmatmul.bf16.gmra.mxu0 %v395
      %v5054 = vpop.f32.mrf.mxu0
      %v5055 = vadd.f32 %v1173, %v5054
      %v5056 = vpop.f32.mrf.mxu0
      %5057 = vdwg.mxu0
      %5058 = vmatpush.bf16.msra.mxu0 %v3749
      %5059 = vmatpush.bf16.msra.mxu0 %v3733
      %5060 = vmatpush.bf16.msra.mxu0 %v3717
      %5061 = vmatpush.bf16.msra.mxu0 %v3701
      %5062 = vmatpush.bf16.msra.mxu0 %v3685
      %5063 = vmatpush.bf16.msra.mxu0 %v3669
      %5064 = vmatpush.bf16.msra.mxu0 %v3653
      %5065 = vmatpush.bf16.msra.mxu0 %v3637
      %5066 = vmatmul.bf16.gmra.mxu0 %v396
      %v5067 = vpop.f32.mrf.mxu0
      %v5068 = vadd.f32 %v5055, %v5067
      %v5069 = vpop.f32.mrf.mxu0
      %5070 = vdwg.mxu0
      %5071 = vmatpush.bf16.msra.mxu0 %v3877
      %5072 = vmatpush.bf16.msra.mxu0 %v3861
      %5073 = vmatpush.bf16.msra.mxu0 %v3845
      %5074 = vmatpush.bf16.msra.mxu0 %v3829
      %5075 = vmatpush.bf16.msra.mxu0 %v3813
      %5076 = vmatpush.bf16.msra.mxu0 %v3797
      %5077 = vmatpush.bf16.msra.mxu0 %v3781
      %5078 = vmatpush.bf16.msra.mxu0 %v3765
      %5079 = vmatmul.bf16.gmra.mxu0 %v397
      %v5080 = vpop.f32.mrf.mxu0
      %v5081 = vadd.f32 %v5068, %v5080
      %v5082 = vpop.f32.mrf.mxu0
      %5083 = vdwg.mxu0
      %5084 = vmatpush.bf16.msra.mxu0 %v4005
      %5085 = vmatpush.bf16.msra.mxu0 %v3989
      %5086 = vmatpush.bf16.msra.mxu0 %v3973
      %5087 = vmatpush.bf16.msra.mxu0 %v3957
      %5088 = vmatpush.bf16.msra.mxu0 %v3941
      %5089 = vmatpush.bf16.msra.mxu0 %v3925
      %5090 = vmatpush.bf16.msra.mxu0 %v3909
      %5091 = vmatpush.bf16.msra.mxu0 %v3893
      %5092 = vmatmul.bf16.gmra.mxu0 %v398
      %v5093 = vpop.f32.mrf.mxu0
      %v5094 = vadd.f32 %v5081, %v5093
      %v5095 = vpop.f32.mrf.mxu0
      %5096 = vdwg.mxu0
      %5097 = vmatpush.bf16.msra.mxu0 %v4133
      %5098 = vmatpush.bf16.msra.mxu0 %v4117
      %5099 = vmatpush.bf16.msra.mxu0 %v4101
      %5100 = vmatpush.bf16.msra.mxu0 %v4085
      %5101 = vmatpush.bf16.msra.mxu0 %v4069
      %5102 = vmatpush.bf16.msra.mxu0 %v4053
      %5103 = vmatpush.bf16.msra.mxu0 %v4037
      %5104 = vmatpush.bf16.msra.mxu0 %v4021
      %5105 = vmatmul.bf16.gmra.mxu0 %v399
      %v5106 = vpop.f32.mrf.mxu0
      %v5107 = vadd.f32 %v5094, %v5106
      %v5108 = vpop.f32.mrf.mxu0
      %5109 = vdwg.mxu0
      %5110 = vmatpush.bf16.msra.mxu0 %v4261
      %5111 = vmatpush.bf16.msra.mxu0 %v4245
      %5112 = vmatpush.bf16.msra.mxu0 %v4229
      %5113 = vmatpush.bf16.msra.mxu0 %v4213
      %5114 = vmatpush.bf16.msra.mxu0 %v4197
      %5115 = vmatpush.bf16.msra.mxu0 %v4181
      %5116 = vmatpush.bf16.msra.mxu0 %v4165
      %5117 = vmatpush.bf16.msra.mxu0 %v4149
      %5118 = vmatmul.bf16.gmra.mxu0 %v400
      %v5119 = vpop.f32.mrf.mxu0
      %v5120 = vadd.f32 %v5107, %v5119
      %v5121 = vpop.f32.mrf.mxu0
      %5122 = vdwg.mxu0
      %5123 = vmatpush.bf16.msra.mxu0 %v3622
      %5124 = vmatpush.bf16.msra.mxu0 %v3606
      %5125 = vmatpush.bf16.msra.mxu0 %v3590
      %5126 = vmatpush.bf16.msra.mxu0 %v3574
      %5127 = vmatpush.bf16.msra.mxu0 %v3558
      %5128 = vmatpush.bf16.msra.mxu0 %v3542
      %5129 = vmatpush.bf16.msra.mxu0 %v3526
      %5130 = vmatpush.bf16.msra.mxu0 %v3510
      %5131 = vmatmul.bf16.gmra.mxu0 %v395
      %v5132 = vpop.f32.mrf.mxu0
      %v5133 = vadd.f32 %v1174, %v5132
      %v5134 = vpop.f32.mrf.mxu0
      %5135 = vdwg.mxu0
      %5136 = vmatpush.bf16.msra.mxu0 %v3750
      %5137 = vmatpush.bf16.msra.mxu0 %v3734
      %5138 = vmatpush.bf16.msra.mxu0 %v3718
      %5139 = vmatpush.bf16.msra.mxu0 %v3702
      %5140 = vmatpush.bf16.msra.mxu0 %v3686
      %5141 = vmatpush.bf16.msra.mxu0 %v3670
      %5142 = vmatpush.bf16.msra.mxu0 %v3654
      %5143 = vmatpush.bf16.msra.mxu0 %v3638
      %5144 = vmatmul.bf16.gmra.mxu0 %v396
      %v5145 = vpop.f32.mrf.mxu0
      %v5146 = vadd.f32 %v5133, %v5145
      %v5147 = vpop.f32.mrf.mxu0
      %5148 = vdwg.mxu0
      %5149 = vmatpush.bf16.msra.mxu0 %v3878
      %5150 = vmatpush.bf16.msra.mxu0 %v3862
      %5151 = vmatpush.bf16.msra.mxu0 %v3846
      %5152 = vmatpush.bf16.msra.mxu0 %v3830
      %5153 = vmatpush.bf16.msra.mxu0 %v3814
      %5154 = vmatpush.bf16.msra.mxu0 %v3798
      %5155 = vmatpush.bf16.msra.mxu0 %v3782
      %5156 = vmatpush.bf16.msra.mxu0 %v3766
      %5157 = vmatmul.bf16.gmra.mxu0 %v397
      %v5158 = vpop.f32.mrf.mxu0
      %v5159 = vadd.f32 %v5146, %v5158
      %v5160 = vpop.f32.mrf.mxu0
      %5161 = vdwg.mxu0
      %5162 = vmatpush.bf16.msra.mxu0 %v4006
      %5163 = vmatpush.bf16.msra.mxu0 %v3990
      %5164 = vmatpush.bf16.msra.mxu0 %v3974
      %5165 = vmatpush.bf16.msra.mxu0 %v3958
      %5166 = vmatpush.bf16.msra.mxu0 %v3942
      %5167 = vmatpush.bf16.msra.mxu0 %v3926
      %5168 = vmatpush.bf16.msra.mxu0 %v3910
      %5169 = vmatpush.bf16.msra.mxu0 %v3894
      %5170 = vmatmul.bf16.gmra.mxu0 %v398
      %v5171 = vpop.f32.mrf.mxu0
      %v5172 = vadd.f32 %v5159, %v5171
      %v5173 = vpop.f32.mrf.mxu0
      %5174 = vdwg.mxu0
      %5175 = vmatpush.bf16.msra.mxu0 %v4134
      %5176 = vmatpush.bf16.msra.mxu0 %v4118
      %5177 = vmatpush.bf16.msra.mxu0 %v4102
      %5178 = vmatpush.bf16.msra.mxu0 %v4086
      %5179 = vmatpush.bf16.msra.mxu0 %v4070
      %5180 = vmatpush.bf16.msra.mxu0 %v4054
      %5181 = vmatpush.bf16.msra.mxu0 %v4038
      %5182 = vmatpush.bf16.msra.mxu0 %v4022
      %5183 = vmatmul.bf16.gmra.mxu0 %v399
      %v5184 = vpop.f32.mrf.mxu0
      %v5185 = vadd.f32 %v5172, %v5184
      %v5186 = vpop.f32.mrf.mxu0
      %5187 = vdwg.mxu0
      %5188 = vmatpush.bf16.msra.mxu0 %v4262
      %5189 = vmatpush.bf16.msra.mxu0 %v4246
      %5190 = vmatpush.bf16.msra.mxu0 %v4230
      %5191 = vmatpush.bf16.msra.mxu0 %v4214
      %5192 = vmatpush.bf16.msra.mxu0 %v4198
      %5193 = vmatpush.bf16.msra.mxu0 %v4182
      %5194 = vmatpush.bf16.msra.mxu0 %v4166
      %5195 = vmatpush.bf16.msra.mxu0 %v4150
      %5196 = vmatmul.bf16.gmra.mxu0 %v400
      %v5197 = vpop.f32.mrf.mxu0
      %v5198 = vadd.f32 %v5185, %v5197
      %v5199 = vpop.f32.mrf.mxu0
      %5200 = vdwg.mxu0
      %5201 = vmatpush.bf16.msra.mxu0 %v3623
      %5202 = vmatpush.bf16.msra.mxu0 %v3607
      %5203 = vmatpush.bf16.msra.mxu0 %v3591
      %5204 = vmatpush.bf16.msra.mxu0 %v3575
      %5205 = vmatpush.bf16.msra.mxu0 %v3559
      %5206 = vmatpush.bf16.msra.mxu0 %v3543
      %5207 = vmatpush.bf16.msra.mxu0 %v3527
      %5208 = vmatpush.bf16.msra.mxu0 %v3511
      %5209 = vmatmul.bf16.gmra.mxu0 %v395
      %v5210 = vpop.f32.mrf.mxu0
      %v5211 = vadd.f32 %v1175, %v5210
      %v5212 = vpop.f32.mrf.mxu0
      %5213 = vdwg.mxu0
      %5214 = vmatpush.bf16.msra.mxu0 %v3751
      %5215 = vmatpush.bf16.msra.mxu0 %v3735
      %5216 = vmatpush.bf16.msra.mxu0 %v3719
      %5217 = vmatpush.bf16.msra.mxu0 %v3703
      %5218 = vmatpush.bf16.msra.mxu0 %v3687
      %5219 = vmatpush.bf16.msra.mxu0 %v3671
      %5220 = vmatpush.bf16.msra.mxu0 %v3655
      %5221 = vmatpush.bf16.msra.mxu0 %v3639
      %5222 = vmatmul.bf16.gmra.mxu0 %v396
      %v5223 = vpop.f32.mrf.mxu0
      %v5224 = vadd.f32 %v5211, %v5223
      %v5225 = vpop.f32.mrf.mxu0
      %5226 = vdwg.mxu0
      %5227 = vmatpush.bf16.msra.mxu0 %v3879
      %5228 = vmatpush.bf16.msra.mxu0 %v3863
      %5229 = vmatpush.bf16.msra.mxu0 %v3847
      %5230 = vmatpush.bf16.msra.mxu0 %v3831
      %5231 = vmatpush.bf16.msra.mxu0 %v3815
      %5232 = vmatpush.bf16.msra.mxu0 %v3799
      %5233 = vmatpush.bf16.msra.mxu0 %v3783
      %5234 = vmatpush.bf16.msra.mxu0 %v3767
      %5235 = vmatmul.bf16.gmra.mxu0 %v397
      %v5236 = vpop.f32.mrf.mxu0
      %v5237 = vadd.f32 %v5224, %v5236
      %v5238 = vpop.f32.mrf.mxu0
      %5239 = vdwg.mxu0
      %5240 = vmatpush.bf16.msra.mxu0 %v4007
      %5241 = vmatpush.bf16.msra.mxu0 %v3991
      %5242 = vmatpush.bf16.msra.mxu0 %v3975
      %5243 = vmatpush.bf16.msra.mxu0 %v3959
      %5244 = vmatpush.bf16.msra.mxu0 %v3943
      %5245 = vmatpush.bf16.msra.mxu0 %v3927
      %5246 = vmatpush.bf16.msra.mxu0 %v3911
      %5247 = vmatpush.bf16.msra.mxu0 %v3895
      %5248 = vmatmul.bf16.gmra.mxu0 %v398
      %v5249 = vpop.f32.mrf.mxu0
      %v5250 = vadd.f32 %v5237, %v5249
      %v5251 = vpop.f32.mrf.mxu0
      %5252 = vdwg.mxu0
      %5253 = vmatpush.bf16.msra.mxu0 %v4135
      %5254 = vmatpush.bf16.msra.mxu0 %v4119
      %5255 = vmatpush.bf16.msra.mxu0 %v4103
      %5256 = vmatpush.bf16.msra.mxu0 %v4087
      %5257 = vmatpush.bf16.msra.mxu0 %v4071
      %5258 = vmatpush.bf16.msra.mxu0 %v4055
      %5259 = vmatpush.bf16.msra.mxu0 %v4039
      %5260 = vmatpush.bf16.msra.mxu0 %v4023
      %5261 = vmatmul.bf16.gmra.mxu0 %v399
      %v5262 = vpop.f32.mrf.mxu0
      %v5263 = vadd.f32 %v5250, %v5262
      %v5264 = vpop.f32.mrf.mxu0
      %5265 = vdwg.mxu0
      %5266 = vmatpush.bf16.msra.mxu0 %v4263
      %5267 = vmatpush.bf16.msra.mxu0 %v4247
      %5268 = vmatpush.bf16.msra.mxu0 %v4231
      %5269 = vmatpush.bf16.msra.mxu0 %v4215
      %5270 = vmatpush.bf16.msra.mxu0 %v4199
      %5271 = vmatpush.bf16.msra.mxu0 %v4183
      %5272 = vmatpush.bf16.msra.mxu0 %v4167
      %5273 = vmatpush.bf16.msra.mxu0 %v4151
      %5274 = vmatmul.bf16.gmra.mxu0 %v400
      %v5275 = vpop.f32.mrf.mxu0
      %v5276 = vadd.f32 %v5263, %v5275
      %v5277 = vpop.f32.mrf.mxu0
      %5278 = vdwg.mxu0
      %5279 = vmatpush.bf16.msra.mxu0 %v3624
      %5280 = vmatpush.bf16.msra.mxu0 %v3608
      %5281 = vmatpush.bf16.msra.mxu0 %v3592
      %5282 = vmatpush.bf16.msra.mxu0 %v3576
      %5283 = vmatpush.bf16.msra.mxu0 %v3560
      %5284 = vmatpush.bf16.msra.mxu0 %v3544
      %5285 = vmatpush.bf16.msra.mxu0 %v3528
      %5286 = vmatpush.bf16.msra.mxu0 %v3512
      %5287 = vmatmul.bf16.gmra.mxu0 %v395
      %v5288 = vpop.f32.mrf.mxu0
      %v5289 = vadd.f32 %v1176, %v5288
      %v5290 = vpop.f32.mrf.mxu0
      %5291 = vdwg.mxu0
      %5292 = vmatpush.bf16.msra.mxu0 %v3752
      %5293 = vmatpush.bf16.msra.mxu0 %v3736
      %5294 = vmatpush.bf16.msra.mxu0 %v3720
      %5295 = vmatpush.bf16.msra.mxu0 %v3704
      %5296 = vmatpush.bf16.msra.mxu0 %v3688
      %5297 = vmatpush.bf16.msra.mxu0 %v3672
      %5298 = vmatpush.bf16.msra.mxu0 %v3656
      %5299 = vmatpush.bf16.msra.mxu0 %v3640
      %5300 = vmatmul.bf16.gmra.mxu0 %v396
      %v5301 = vpop.f32.mrf.mxu0
      %v5302 = vadd.f32 %v5289, %v5301
      %v5303 = vpop.f32.mrf.mxu0
      %5304 = vdwg.mxu0
      %5305 = vmatpush.bf16.msra.mxu0 %v3880
      %5306 = vmatpush.bf16.msra.mxu0 %v3864
      %5307 = vmatpush.bf16.msra.mxu0 %v3848
      %5308 = vmatpush.bf16.msra.mxu0 %v3832
      %5309 = vmatpush.bf16.msra.mxu0 %v3816
      %5310 = vmatpush.bf16.msra.mxu0 %v3800
      %5311 = vmatpush.bf16.msra.mxu0 %v3784
      %5312 = vmatpush.bf16.msra.mxu0 %v3768
      %5313 = vmatmul.bf16.gmra.mxu0 %v397
      %v5314 = vpop.f32.mrf.mxu0
      %v5315 = vadd.f32 %v5302, %v5314
      %v5316 = vpop.f32.mrf.mxu0
      %5317 = vdwg.mxu0
      %5318 = vmatpush.bf16.msra.mxu0 %v4008
      %5319 = vmatpush.bf16.msra.mxu0 %v3992
      %5320 = vmatpush.bf16.msra.mxu0 %v3976
      %5321 = vmatpush.bf16.msra.mxu0 %v3960
      %5322 = vmatpush.bf16.msra.mxu0 %v3944
      %5323 = vmatpush.bf16.msra.mxu0 %v3928
      %5324 = vmatpush.bf16.msra.mxu0 %v3912
      %5325 = vmatpush.bf16.msra.mxu0 %v3896
      %5326 = vmatmul.bf16.gmra.mxu0 %v398
      %v5327 = vpop.f32.mrf.mxu0
      %v5328 = vadd.f32 %v5315, %v5327
      %v5329 = vpop.f32.mrf.mxu0
      %5330 = vdwg.mxu0
      %5331 = vmatpush.bf16.msra.mxu0 %v4136
      %5332 = vmatpush.bf16.msra.mxu0 %v4120
      %5333 = vmatpush.bf16.msra.mxu0 %v4104
      %5334 = vmatpush.bf16.msra.mxu0 %v4088
      %5335 = vmatpush.bf16.msra.mxu0 %v4072
      %5336 = vmatpush.bf16.msra.mxu0 %v4056
      %5337 = vmatpush.bf16.msra.mxu0 %v4040
      %5338 = vmatpush.bf16.msra.mxu0 %v4024
      %5339 = vmatmul.bf16.gmra.mxu0 %v399
      %v5340 = vpop.f32.mrf.mxu0
      %v5341 = vadd.f32 %v5328, %v5340
      %v5342 = vpop.f32.mrf.mxu0
      %5343 = vdwg.mxu0
      %5344 = vmatpush.bf16.msra.mxu0 %v4264
      %5345 = vmatpush.bf16.msra.mxu0 %v4248
      %5346 = vmatpush.bf16.msra.mxu0 %v4232
      %5347 = vmatpush.bf16.msra.mxu0 %v4216
      %5348 = vmatpush.bf16.msra.mxu0 %v4200
      %5349 = vmatpush.bf16.msra.mxu0 %v4184
      %5350 = vmatpush.bf16.msra.mxu0 %v4168
      %5351 = vmatpush.bf16.msra.mxu0 %v4152
      %5352 = vmatmul.bf16.gmra.mxu0 %v400
      %v5353 = vpop.f32.mrf.mxu0
      %v5354 = vadd.f32 %v5341, %v5353
      %v5355 = vpop.f32.mrf.mxu0
      %5356 = vdwg.mxu0
      %5357 = vmatpush.bf16.msra.mxu0 %v3625
      %5358 = vmatpush.bf16.msra.mxu0 %v3609
      %5359 = vmatpush.bf16.msra.mxu0 %v3593
      %5360 = vmatpush.bf16.msra.mxu0 %v3577
      %5361 = vmatpush.bf16.msra.mxu0 %v3561
      %5362 = vmatpush.bf16.msra.mxu0 %v3545
      %5363 = vmatpush.bf16.msra.mxu0 %v3529
      %5364 = vmatpush.bf16.msra.mxu0 %v3513
      %5365 = vmatmul.bf16.gmra.mxu0 %v395
      %v5366 = vpop.f32.mrf.mxu0
      %v5367 = vadd.f32 %v1177, %v5366
      %v5368 = vpop.f32.mrf.mxu0
      %5369 = vdwg.mxu0
      %5370 = vmatpush.bf16.msra.mxu0 %v3753
      %5371 = vmatpush.bf16.msra.mxu0 %v3737
      %5372 = vmatpush.bf16.msra.mxu0 %v3721
      %5373 = vmatpush.bf16.msra.mxu0 %v3705
      %5374 = vmatpush.bf16.msra.mxu0 %v3689
      %5375 = vmatpush.bf16.msra.mxu0 %v3673
      %5376 = vmatpush.bf16.msra.mxu0 %v3657
      %5377 = vmatpush.bf16.msra.mxu0 %v3641
      %5378 = vmatmul.bf16.gmra.mxu0 %v396
      %v5379 = vpop.f32.mrf.mxu0
      %v5380 = vadd.f32 %v5367, %v5379
      %v5381 = vpop.f32.mrf.mxu0
      %5382 = vdwg.mxu0
      %5383 = vmatpush.bf16.msra.mxu0 %v3881
      %5384 = vmatpush.bf16.msra.mxu0 %v3865
      %5385 = vmatpush.bf16.msra.mxu0 %v3849
      %5386 = vmatpush.bf16.msra.mxu0 %v3833
      %5387 = vmatpush.bf16.msra.mxu0 %v3817
      %5388 = vmatpush.bf16.msra.mxu0 %v3801
      %5389 = vmatpush.bf16.msra.mxu0 %v3785
      %5390 = vmatpush.bf16.msra.mxu0 %v3769
      %5391 = vmatmul.bf16.gmra.mxu0 %v397
      %v5392 = vpop.f32.mrf.mxu0
      %v5393 = vadd.f32 %v5380, %v5392
      %v5394 = vpop.f32.mrf.mxu0
      %5395 = vdwg.mxu0
      %5396 = vmatpush.bf16.msra.mxu0 %v4009
      %5397 = vmatpush.bf16.msra.mxu0 %v3993
      %5398 = vmatpush.bf16.msra.mxu0 %v3977
      %5399 = vmatpush.bf16.msra.mxu0 %v3961
      %5400 = vmatpush.bf16.msra.mxu0 %v3945
      %5401 = vmatpush.bf16.msra.mxu0 %v3929
      %5402 = vmatpush.bf16.msra.mxu0 %v3913
      %5403 = vmatpush.bf16.msra.mxu0 %v3897
      %5404 = vmatmul.bf16.gmra.mxu0 %v398
      %v5405 = vpop.f32.mrf.mxu0
      %v5406 = vadd.f32 %v5393, %v5405
      %v5407 = vpop.f32.mrf.mxu0
      %5408 = vdwg.mxu0
      %5409 = vmatpush.bf16.msra.mxu0 %v4137
      %5410 = vmatpush.bf16.msra.mxu0 %v4121
      %5411 = vmatpush.bf16.msra.mxu0 %v4105
      %5412 = vmatpush.bf16.msra.mxu0 %v4089
      %5413 = vmatpush.bf16.msra.mxu0 %v4073
      %5414 = vmatpush.bf16.msra.mxu0 %v4057
      %5415 = vmatpush.bf16.msra.mxu0 %v4041
      %5416 = vmatpush.bf16.msra.mxu0 %v4025
      %5417 = vmatmul.bf16.gmra.mxu0 %v399
      %v5418 = vpop.f32.mrf.mxu0
      %v5419 = vadd.f32 %v5406, %v5418
      %v5420 = vpop.f32.mrf.mxu0
      %5421 = vdwg.mxu0
      %5422 = vmatpush.bf16.msra.mxu0 %v4265
      %5423 = vmatpush.bf16.msra.mxu0 %v4249
      %5424 = vmatpush.bf16.msra.mxu0 %v4233
      %5425 = vmatpush.bf16.msra.mxu0 %v4217
      %5426 = vmatpush.bf16.msra.mxu0 %v4201
      %5427 = vmatpush.bf16.msra.mxu0 %v4185
      %5428 = vmatpush.bf16.msra.mxu0 %v4169
      %5429 = vmatpush.bf16.msra.mxu0 %v4153
      %5430 = vmatmul.bf16.gmra.mxu0 %v400
      %v5431 = vpop.f32.mrf.mxu0
      %v5432 = vadd.f32 %v5419, %v5431
      %v5433 = vpop.f32.mrf.mxu0
      %5434 = vdwg.mxu0
      %5435 = vmatpush.bf16.msra.mxu0 %v3626
      %5436 = vmatpush.bf16.msra.mxu0 %v3610
      %5437 = vmatpush.bf16.msra.mxu0 %v3594
      %5438 = vmatpush.bf16.msra.mxu0 %v3578
      %5439 = vmatpush.bf16.msra.mxu0 %v3562
      %5440 = vmatpush.bf16.msra.mxu0 %v3546
      %5441 = vmatpush.bf16.msra.mxu0 %v3530
      %5442 = vmatpush.bf16.msra.mxu0 %v3514
      %5443 = vmatmul.bf16.gmra.mxu0 %v395
      %v5444 = vpop.f32.mrf.mxu0
      %v5445 = vadd.f32 %v1178, %v5444
      %v5446 = vpop.f32.mrf.mxu0
      %5447 = vdwg.mxu0
      %5448 = vmatpush.bf16.msra.mxu0 %v3754
      %5449 = vmatpush.bf16.msra.mxu0 %v3738
      %5450 = vmatpush.bf16.msra.mxu0 %v3722
      %5451 = vmatpush.bf16.msra.mxu0 %v3706
      %5452 = vmatpush.bf16.msra.mxu0 %v3690
      %5453 = vmatpush.bf16.msra.mxu0 %v3674
      %5454 = vmatpush.bf16.msra.mxu0 %v3658
      %5455 = vmatpush.bf16.msra.mxu0 %v3642
      %5456 = vmatmul.bf16.gmra.mxu0 %v396
      %v5457 = vpop.f32.mrf.mxu0
      %v5458 = vadd.f32 %v5445, %v5457
      %v5459 = vpop.f32.mrf.mxu0
      %5460 = vdwg.mxu0
      %5461 = vmatpush.bf16.msra.mxu0 %v3882
      %5462 = vmatpush.bf16.msra.mxu0 %v3866
      %5463 = vmatpush.bf16.msra.mxu0 %v3850
      %5464 = vmatpush.bf16.msra.mxu0 %v3834
      %5465 = vmatpush.bf16.msra.mxu0 %v3818
      %5466 = vmatpush.bf16.msra.mxu0 %v3802
      %5467 = vmatpush.bf16.msra.mxu0 %v3786
      %5468 = vmatpush.bf16.msra.mxu0 %v3770
      %5469 = vmatmul.bf16.gmra.mxu0 %v397
      %v5470 = vpop.f32.mrf.mxu0
      %v5471 = vadd.f32 %v5458, %v5470
      %v5472 = vpop.f32.mrf.mxu0
      %5473 = vdwg.mxu0
      %5474 = vmatpush.bf16.msra.mxu0 %v4010
      %5475 = vmatpush.bf16.msra.mxu0 %v3994
      %5476 = vmatpush.bf16.msra.mxu0 %v3978
      %5477 = vmatpush.bf16.msra.mxu0 %v3962
      %5478 = vmatpush.bf16.msra.mxu0 %v3946
      %5479 = vmatpush.bf16.msra.mxu0 %v3930
      %5480 = vmatpush.bf16.msra.mxu0 %v3914
      %5481 = vmatpush.bf16.msra.mxu0 %v3898
      %5482 = vmatmul.bf16.gmra.mxu0 %v398
      %v5483 = vpop.f32.mrf.mxu0
      %v5484 = vadd.f32 %v5471, %v5483
      %v5485 = vpop.f32.mrf.mxu0
      %5486 = vdwg.mxu0
      %5487 = vmatpush.bf16.msra.mxu0 %v4138
      %5488 = vmatpush.bf16.msra.mxu0 %v4122
      %5489 = vmatpush.bf16.msra.mxu0 %v4106
      %5490 = vmatpush.bf16.msra.mxu0 %v4090
      %5491 = vmatpush.bf16.msra.mxu0 %v4074
      %5492 = vmatpush.bf16.msra.mxu0 %v4058
      %5493 = vmatpush.bf16.msra.mxu0 %v4042
      %5494 = vmatpush.bf16.msra.mxu0 %v4026
      %5495 = vmatmul.bf16.gmra.mxu0 %v399
      %v5496 = vpop.f32.mrf.mxu0
      %v5497 = vadd.f32 %v5484, %v5496
      %v5498 = vpop.f32.mrf.mxu0
      %5499 = vdwg.mxu0
      %5500 = vmatpush.bf16.msra.mxu0 %v4266
      %5501 = vmatpush.bf16.msra.mxu0 %v4250
      %5502 = vmatpush.bf16.msra.mxu0 %v4234
      %5503 = vmatpush.bf16.msra.mxu0 %v4218
      %5504 = vmatpush.bf16.msra.mxu0 %v4202
      %5505 = vmatpush.bf16.msra.mxu0 %v4186
      %5506 = vmatpush.bf16.msra.mxu0 %v4170
      %5507 = vmatpush.bf16.msra.mxu0 %v4154
      %5508 = vmatmul.bf16.gmra.mxu0 %v400
      %v5509 = vpop.f32.mrf.mxu0
      %v5510 = vadd.f32 %v5497, %v5509
      %v5511 = vpop.f32.mrf.mxu0
      %5512 = vdwg.mxu0
      %5513 = vmatpush.bf16.msra.mxu0 %v3627
      %5514 = vmatpush.bf16.msra.mxu0 %v3611
      %5515 = vmatpush.bf16.msra.mxu0 %v3595
      %5516 = vmatpush.bf16.msra.mxu0 %v3579
      %5517 = vmatpush.bf16.msra.mxu0 %v3563
      %5518 = vmatpush.bf16.msra.mxu0 %v3547
      %5519 = vmatpush.bf16.msra.mxu0 %v3531
      %5520 = vmatpush.bf16.msra.mxu0 %v3515
      %5521 = vmatmul.bf16.gmra.mxu0 %v395
      %v5522 = vpop.f32.mrf.mxu0
      %v5523 = vadd.f32 %v1179, %v5522
      %v5524 = vpop.f32.mrf.mxu0
      %5525 = vdwg.mxu0
      %5526 = vmatpush.bf16.msra.mxu0 %v3755
      %5527 = vmatpush.bf16.msra.mxu0 %v3739
      %5528 = vmatpush.bf16.msra.mxu0 %v3723
      %5529 = vmatpush.bf16.msra.mxu0 %v3707
      %5530 = vmatpush.bf16.msra.mxu0 %v3691
      %5531 = vmatpush.bf16.msra.mxu0 %v3675
      %5532 = vmatpush.bf16.msra.mxu0 %v3659
      %5533 = vmatpush.bf16.msra.mxu0 %v3643
      %5534 = vmatmul.bf16.gmra.mxu0 %v396
      %v5535 = vpop.f32.mrf.mxu0
      %v5536 = vadd.f32 %v5523, %v5535
      %v5537 = vpop.f32.mrf.mxu0
      %5538 = vdwg.mxu0
      %5539 = vmatpush.bf16.msra.mxu0 %v3883
      %5540 = vmatpush.bf16.msra.mxu0 %v3867
      %5541 = vmatpush.bf16.msra.mxu0 %v3851
      %5542 = vmatpush.bf16.msra.mxu0 %v3835
      %5543 = vmatpush.bf16.msra.mxu0 %v3819
      %5544 = vmatpush.bf16.msra.mxu0 %v3803
      %5545 = vmatpush.bf16.msra.mxu0 %v3787
      %5546 = vmatpush.bf16.msra.mxu0 %v3771
      %5547 = vmatmul.bf16.gmra.mxu0 %v397
      %v5548 = vpop.f32.mrf.mxu0
      %v5549 = vadd.f32 %v5536, %v5548
      %v5550 = vpop.f32.mrf.mxu0
      %5551 = vdwg.mxu0
      %5552 = vmatpush.bf16.msra.mxu0 %v4011
      %5553 = vmatpush.bf16.msra.mxu0 %v3995
      %5554 = vmatpush.bf16.msra.mxu0 %v3979
      %5555 = vmatpush.bf16.msra.mxu0 %v3963
      %5556 = vmatpush.bf16.msra.mxu0 %v3947
      %5557 = vmatpush.bf16.msra.mxu0 %v3931
      %5558 = vmatpush.bf16.msra.mxu0 %v3915
      %5559 = vmatpush.bf16.msra.mxu0 %v3899
      %5560 = vmatmul.bf16.gmra.mxu0 %v398
      %v5561 = vpop.f32.mrf.mxu0
      %v5562 = vadd.f32 %v5549, %v5561
      %v5563 = vpop.f32.mrf.mxu0
      %5564 = vdwg.mxu0
      %5565 = vmatpush.bf16.msra.mxu0 %v4139
      %5566 = vmatpush.bf16.msra.mxu0 %v4123
      %5567 = vmatpush.bf16.msra.mxu0 %v4107
      %5568 = vmatpush.bf16.msra.mxu0 %v4091
      %5569 = vmatpush.bf16.msra.mxu0 %v4075
      %5570 = vmatpush.bf16.msra.mxu0 %v4059
      %5571 = vmatpush.bf16.msra.mxu0 %v4043
      %5572 = vmatpush.bf16.msra.mxu0 %v4027
      %5573 = vmatmul.bf16.gmra.mxu0 %v399
      %v5574 = vpop.f32.mrf.mxu0
      %v5575 = vadd.f32 %v5562, %v5574
      %v5576 = vpop.f32.mrf.mxu0
      %5577 = vdwg.mxu0
      %5578 = vmatpush.bf16.msra.mxu0 %v4267
      %5579 = vmatpush.bf16.msra.mxu0 %v4251
      %5580 = vmatpush.bf16.msra.mxu0 %v4235
      %5581 = vmatpush.bf16.msra.mxu0 %v4219
      %5582 = vmatpush.bf16.msra.mxu0 %v4203
      %5583 = vmatpush.bf16.msra.mxu0 %v4187
      %5584 = vmatpush.bf16.msra.mxu0 %v4171
      %5585 = vmatpush.bf16.msra.mxu0 %v4155
      %5586 = vmatmul.bf16.gmra.mxu0 %v400
      %v5587 = vpop.f32.mrf.mxu0
      %v5588 = vadd.f32 %v5575, %v5587
      %v5589 = vpop.f32.mrf.mxu0
      %5590 = vdwg.mxu0
      %5591 = vmatpush.bf16.msra.mxu0 %v3628
      %5592 = vmatpush.bf16.msra.mxu0 %v3612
      %5593 = vmatpush.bf16.msra.mxu0 %v3596
      %5594 = vmatpush.bf16.msra.mxu0 %v3580
      %5595 = vmatpush.bf16.msra.mxu0 %v3564
      %5596 = vmatpush.bf16.msra.mxu0 %v3548
      %5597 = vmatpush.bf16.msra.mxu0 %v3532
      %5598 = vmatpush.bf16.msra.mxu0 %v3516
      %5599 = vmatmul.bf16.gmra.mxu0 %v395
      %v5600 = vpop.f32.mrf.mxu0
      %v5601 = vadd.f32 %v1180, %v5600
      %v5602 = vpop.f32.mrf.mxu0
      %5603 = vdwg.mxu0
      %5604 = vmatpush.bf16.msra.mxu0 %v3756
      %5605 = vmatpush.bf16.msra.mxu0 %v3740
      %5606 = vmatpush.bf16.msra.mxu0 %v3724
      %5607 = vmatpush.bf16.msra.mxu0 %v3708
      %5608 = vmatpush.bf16.msra.mxu0 %v3692
      %5609 = vmatpush.bf16.msra.mxu0 %v3676
      %5610 = vmatpush.bf16.msra.mxu0 %v3660
      %5611 = vmatpush.bf16.msra.mxu0 %v3644
      %5612 = vmatmul.bf16.gmra.mxu0 %v396
      %v5613 = vpop.f32.mrf.mxu0
      %v5614 = vadd.f32 %v5601, %v5613
      %v5615 = vpop.f32.mrf.mxu0
      %5616 = vdwg.mxu0
      %5617 = vmatpush.bf16.msra.mxu0 %v3884
      %5618 = vmatpush.bf16.msra.mxu0 %v3868
      %5619 = vmatpush.bf16.msra.mxu0 %v3852
      %5620 = vmatpush.bf16.msra.mxu0 %v3836
      %5621 = vmatpush.bf16.msra.mxu0 %v3820
      %5622 = vmatpush.bf16.msra.mxu0 %v3804
      %5623 = vmatpush.bf16.msra.mxu0 %v3788
      %5624 = vmatpush.bf16.msra.mxu0 %v3772
      %5625 = vmatmul.bf16.gmra.mxu0 %v397
      %v5626 = vpop.f32.mrf.mxu0
      %v5627 = vadd.f32 %v5614, %v5626
      %v5628 = vpop.f32.mrf.mxu0
      %5629 = vdwg.mxu0
      %5630 = vmatpush.bf16.msra.mxu0 %v4012
      %5631 = vmatpush.bf16.msra.mxu0 %v3996
      %5632 = vmatpush.bf16.msra.mxu0 %v3980
      %5633 = vmatpush.bf16.msra.mxu0 %v3964
      %5634 = vmatpush.bf16.msra.mxu0 %v3948
      %5635 = vmatpush.bf16.msra.mxu0 %v3932
      %5636 = vmatpush.bf16.msra.mxu0 %v3916
      %5637 = vmatpush.bf16.msra.mxu0 %v3900
      %5638 = vmatmul.bf16.gmra.mxu0 %v398
      %v5639 = vpop.f32.mrf.mxu0
      %v5640 = vadd.f32 %v5627, %v5639
      %v5641 = vpop.f32.mrf.mxu0
      %5642 = vdwg.mxu0
      %5643 = vmatpush.bf16.msra.mxu0 %v4140
      %5644 = vmatpush.bf16.msra.mxu0 %v4124
      %5645 = vmatpush.bf16.msra.mxu0 %v4108
      %5646 = vmatpush.bf16.msra.mxu0 %v4092
      %5647 = vmatpush.bf16.msra.mxu0 %v4076
      %5648 = vmatpush.bf16.msra.mxu0 %v4060
      %5649 = vmatpush.bf16.msra.mxu0 %v4044
      %5650 = vmatpush.bf16.msra.mxu0 %v4028
      %5651 = vmatmul.bf16.gmra.mxu0 %v399
      %v5652 = vpop.f32.mrf.mxu0
      %v5653 = vadd.f32 %v5640, %v5652
      %v5654 = vpop.f32.mrf.mxu0
      %5655 = vdwg.mxu0
      %5656 = vmatpush.bf16.msra.mxu0 %v4268
      %5657 = vmatpush.bf16.msra.mxu0 %v4252
      %5658 = vmatpush.bf16.msra.mxu0 %v4236
      %5659 = vmatpush.bf16.msra.mxu0 %v4220
      %5660 = vmatpush.bf16.msra.mxu0 %v4204
      %5661 = vmatpush.bf16.msra.mxu0 %v4188
      %5662 = vmatpush.bf16.msra.mxu0 %v4172
      %5663 = vmatpush.bf16.msra.mxu0 %v4156
      %5664 = vmatmul.bf16.gmra.mxu0 %v400
      %v5665 = vpop.f32.mrf.mxu0
      %v5666 = vadd.f32 %v5653, %v5665
      %v5667 = vpop.f32.mrf.mxu0
      %5668 = vdwg.mxu0
      %5669 = vmatpush.bf16.msra.mxu0 %v3629
      %5670 = vmatpush.bf16.msra.mxu0 %v3613
      %5671 = vmatpush.bf16.msra.mxu0 %v3597
      %5672 = vmatpush.bf16.msra.mxu0 %v3581
      %5673 = vmatpush.bf16.msra.mxu0 %v3565
      %5674 = vmatpush.bf16.msra.mxu0 %v3549
      %5675 = vmatpush.bf16.msra.mxu0 %v3533
      %5676 = vmatpush.bf16.msra.mxu0 %v3517
      %5677 = vmatmul.bf16.gmra.mxu0 %v395
      %v5678 = vpop.f32.mrf.mxu0
      %v5679 = vadd.f32 %v1181, %v5678
      %v5680 = vpop.f32.mrf.mxu0
      %5681 = vdwg.mxu0
      %5682 = vmatpush.bf16.msra.mxu0 %v3757
      %5683 = vmatpush.bf16.msra.mxu0 %v3741
      %5684 = vmatpush.bf16.msra.mxu0 %v3725
      %5685 = vmatpush.bf16.msra.mxu0 %v3709
      %5686 = vmatpush.bf16.msra.mxu0 %v3693
      %5687 = vmatpush.bf16.msra.mxu0 %v3677
      %5688 = vmatpush.bf16.msra.mxu0 %v3661
      %5689 = vmatpush.bf16.msra.mxu0 %v3645
      %5690 = vmatmul.bf16.gmra.mxu0 %v396
      %v5691 = vpop.f32.mrf.mxu0
      %v5692 = vadd.f32 %v5679, %v5691
      %v5693 = vpop.f32.mrf.mxu0
      %5694 = vdwg.mxu0
      %5695 = vmatpush.bf16.msra.mxu0 %v3885
      %5696 = vmatpush.bf16.msra.mxu0 %v3869
      %5697 = vmatpush.bf16.msra.mxu0 %v3853
      %5698 = vmatpush.bf16.msra.mxu0 %v3837
      %5699 = vmatpush.bf16.msra.mxu0 %v3821
      %5700 = vmatpush.bf16.msra.mxu0 %v3805
      %5701 = vmatpush.bf16.msra.mxu0 %v3789
      %5702 = vmatpush.bf16.msra.mxu0 %v3773
      %5703 = vmatmul.bf16.gmra.mxu0 %v397
      %v5704 = vpop.f32.mrf.mxu0
      %v5705 = vadd.f32 %v5692, %v5704
      %v5706 = vpop.f32.mrf.mxu0
      %5707 = vdwg.mxu0
      %5708 = vmatpush.bf16.msra.mxu0 %v4013
      %5709 = vmatpush.bf16.msra.mxu0 %v3997
      %5710 = vmatpush.bf16.msra.mxu0 %v3981
      %5711 = vmatpush.bf16.msra.mxu0 %v3965
      %5712 = vmatpush.bf16.msra.mxu0 %v3949
      %5713 = vmatpush.bf16.msra.mxu0 %v3933
      %5714 = vmatpush.bf16.msra.mxu0 %v3917
      %5715 = vmatpush.bf16.msra.mxu0 %v3901
      %5716 = vmatmul.bf16.gmra.mxu0 %v398
      %v5717 = vpop.f32.mrf.mxu0
      %v5718 = vadd.f32 %v5705, %v5717
      %v5719 = vpop.f32.mrf.mxu0
      %5720 = vdwg.mxu0
      %5721 = vmatpush.bf16.msra.mxu0 %v4141
      %5722 = vmatpush.bf16.msra.mxu0 %v4125
      %5723 = vmatpush.bf16.msra.mxu0 %v4109
      %5724 = vmatpush.bf16.msra.mxu0 %v4093
      %5725 = vmatpush.bf16.msra.mxu0 %v4077
      %5726 = vmatpush.bf16.msra.mxu0 %v4061
      %5727 = vmatpush.bf16.msra.mxu0 %v4045
      %5728 = vmatpush.bf16.msra.mxu0 %v4029
      %5729 = vmatmul.bf16.gmra.mxu0 %v399
      %v5730 = vpop.f32.mrf.mxu0
      %v5731 = vadd.f32 %v5718, %v5730
      %v5732 = vpop.f32.mrf.mxu0
      %5733 = vdwg.mxu0
      %5734 = vmatpush.bf16.msra.mxu0 %v4269
      %5735 = vmatpush.bf16.msra.mxu0 %v4253
      %5736 = vmatpush.bf16.msra.mxu0 %v4237
      %5737 = vmatpush.bf16.msra.mxu0 %v4221
      %5738 = vmatpush.bf16.msra.mxu0 %v4205
      %5739 = vmatpush.bf16.msra.mxu0 %v4189
      %5740 = vmatpush.bf16.msra.mxu0 %v4173
      %5741 = vmatpush.bf16.msra.mxu0 %v4157
      %5742 = vmatmul.bf16.gmra.mxu0 %v400
      %v5743 = vpop.f32.mrf.mxu0
      %v5744 = vadd.f32 %v5731, %v5743
      %v5745 = vpop.f32.mrf.mxu0
      %5746 = vdwg.mxu0
      %5747 = vmatpush.bf16.msra.mxu0 %v3630
      %5748 = vmatpush.bf16.msra.mxu0 %v3614
      %5749 = vmatpush.bf16.msra.mxu0 %v3598
      %5750 = vmatpush.bf16.msra.mxu0 %v3582
      %5751 = vmatpush.bf16.msra.mxu0 %v3566
      %5752 = vmatpush.bf16.msra.mxu0 %v3550
      %5753 = vmatpush.bf16.msra.mxu0 %v3534
      %5754 = vmatpush.bf16.msra.mxu0 %v3518
      %5755 = vmatmul.bf16.gmra.mxu0 %v395
      %v5756 = vpop.f32.mrf.mxu0
      %v5757 = vadd.f32 %v1182, %v5756
      %v5758 = vpop.f32.mrf.mxu0
      %5759 = vdwg.mxu0
      %5760 = vmatpush.bf16.msra.mxu0 %v3758
      %5761 = vmatpush.bf16.msra.mxu0 %v3742
      %5762 = vmatpush.bf16.msra.mxu0 %v3726
      %5763 = vmatpush.bf16.msra.mxu0 %v3710
      %5764 = vmatpush.bf16.msra.mxu0 %v3694
      %5765 = vmatpush.bf16.msra.mxu0 %v3678
      %5766 = vmatpush.bf16.msra.mxu0 %v3662
      %5767 = vmatpush.bf16.msra.mxu0 %v3646
      %5768 = vmatmul.bf16.gmra.mxu0 %v396
      %v5769 = vpop.f32.mrf.mxu0
      %v5770 = vadd.f32 %v5757, %v5769
      %v5771 = vpop.f32.mrf.mxu0
      %5772 = vdwg.mxu0
      %5773 = vmatpush.bf16.msra.mxu0 %v3886
      %5774 = vmatpush.bf16.msra.mxu0 %v3870
      %5775 = vmatpush.bf16.msra.mxu0 %v3854
      %5776 = vmatpush.bf16.msra.mxu0 %v3838
      %5777 = vmatpush.bf16.msra.mxu0 %v3822
      %5778 = vmatpush.bf16.msra.mxu0 %v3806
      %5779 = vmatpush.bf16.msra.mxu0 %v3790
      %5780 = vmatpush.bf16.msra.mxu0 %v3774
      %5781 = vmatmul.bf16.gmra.mxu0 %v397
      %v5782 = vpop.f32.mrf.mxu0
      %v5783 = vadd.f32 %v5770, %v5782
      %v5784 = vpop.f32.mrf.mxu0
      %5785 = vdwg.mxu0
      %5786 = vmatpush.bf16.msra.mxu0 %v4014
      %5787 = vmatpush.bf16.msra.mxu0 %v3998
      %5788 = vmatpush.bf16.msra.mxu0 %v3982
      %5789 = vmatpush.bf16.msra.mxu0 %v3966
      %5790 = vmatpush.bf16.msra.mxu0 %v3950
      %5791 = vmatpush.bf16.msra.mxu0 %v3934
      %5792 = vmatpush.bf16.msra.mxu0 %v3918
      %5793 = vmatpush.bf16.msra.mxu0 %v3902
      %5794 = vmatmul.bf16.gmra.mxu0 %v398
      %v5795 = vpop.f32.mrf.mxu0
      %v5796 = vadd.f32 %v5783, %v5795
      %v5797 = vpop.f32.mrf.mxu0
      %5798 = vdwg.mxu0
      %5799 = vmatpush.bf16.msra.mxu0 %v4142
      %5800 = vmatpush.bf16.msra.mxu0 %v4126
      %5801 = vmatpush.bf16.msra.mxu0 %v4110
      %5802 = vmatpush.bf16.msra.mxu0 %v4094
      %5803 = vmatpush.bf16.msra.mxu0 %v4078
      %5804 = vmatpush.bf16.msra.mxu0 %v4062
      %5805 = vmatpush.bf16.msra.mxu0 %v4046
      %5806 = vmatpush.bf16.msra.mxu0 %v4030
      %5807 = vmatmul.bf16.gmra.mxu0 %v399
      %v5808 = vpop.f32.mrf.mxu0
      %v5809 = vadd.f32 %v5796, %v5808
      %v5810 = vpop.f32.mrf.mxu0
      %5811 = vdwg.mxu0
      %5812 = vmatpush.bf16.msra.mxu0 %v4270
      %5813 = vmatpush.bf16.msra.mxu0 %v4254
      %5814 = vmatpush.bf16.msra.mxu0 %v4238
      %5815 = vmatpush.bf16.msra.mxu0 %v4222
      %5816 = vmatpush.bf16.msra.mxu0 %v4206
      %5817 = vmatpush.bf16.msra.mxu0 %v4190
      %5818 = vmatpush.bf16.msra.mxu0 %v4174
      %5819 = vmatpush.bf16.msra.mxu0 %v4158
      %5820 = vmatmul.bf16.gmra.mxu0 %v400
      %v5821 = vpop.f32.mrf.mxu0
      %v5822 = vadd.f32 %v5809, %v5821
      %v5823 = vpop.f32.mrf.mxu0
      %5824 = vdwg.mxu0
      %5825 = vmatpush.bf16.msra.mxu0 %v3631
      %5826 = vmatpush.bf16.msra.mxu0 %v3615
      %5827 = vmatpush.bf16.msra.mxu0 %v3599
      %5828 = vmatpush.bf16.msra.mxu0 %v3583
      %5829 = vmatpush.bf16.msra.mxu0 %v3567
      %5830 = vmatpush.bf16.msra.mxu0 %v3551
      %5831 = vmatpush.bf16.msra.mxu0 %v3535
      %5832 = vmatpush.bf16.msra.mxu0 %v3519
      %5833 = vmatmul.bf16.gmra.mxu0 %v395
      %v5834 = vpop.f32.mrf.mxu0
      %v5835 = vadd.f32 %v1183, %v5834
      %v5836 = vpop.f32.mrf.mxu0
      %5837 = vdwg.mxu0
      %5838 = vmatpush.bf16.msra.mxu0 %v3759
      %5839 = vmatpush.bf16.msra.mxu0 %v3743
      %5840 = vmatpush.bf16.msra.mxu0 %v3727
      %5841 = vmatpush.bf16.msra.mxu0 %v3711
      %5842 = vmatpush.bf16.msra.mxu0 %v3695
      %5843 = vmatpush.bf16.msra.mxu0 %v3679
      %5844 = vmatpush.bf16.msra.mxu0 %v3663
      %5845 = vmatpush.bf16.msra.mxu0 %v3647
      %5846 = vmatmul.bf16.gmra.mxu0 %v396
      %v5847 = vpop.f32.mrf.mxu0
      %v5848 = vadd.f32 %v5835, %v5847
      %v5849 = vpop.f32.mrf.mxu0
      %5850 = vdwg.mxu0
      %5851 = vmatpush.bf16.msra.mxu0 %v3887
      %5852 = vmatpush.bf16.msra.mxu0 %v3871
      %5853 = vmatpush.bf16.msra.mxu0 %v3855
      %5854 = vmatpush.bf16.msra.mxu0 %v3839
      %5855 = vmatpush.bf16.msra.mxu0 %v3823
      %5856 = vmatpush.bf16.msra.mxu0 %v3807
      %5857 = vmatpush.bf16.msra.mxu0 %v3791
      %5858 = vmatpush.bf16.msra.mxu0 %v3775
      %5859 = vmatmul.bf16.gmra.mxu0 %v397
      %v5860 = vpop.f32.mrf.mxu0
      %v5861 = vadd.f32 %v5848, %v5860
      %v5862 = vpop.f32.mrf.mxu0
      %5863 = vdwg.mxu0
      %5864 = vmatpush.bf16.msra.mxu0 %v4015
      %5865 = vmatpush.bf16.msra.mxu0 %v3999
      %5866 = vmatpush.bf16.msra.mxu0 %v3983
      %5867 = vmatpush.bf16.msra.mxu0 %v3967
      %5868 = vmatpush.bf16.msra.mxu0 %v3951
      %5869 = vmatpush.bf16.msra.mxu0 %v3935
      %5870 = vmatpush.bf16.msra.mxu0 %v3919
      %5871 = vmatpush.bf16.msra.mxu0 %v3903
      %5872 = vmatmul.bf16.gmra.mxu0 %v398
      %v5873 = vpop.f32.mrf.mxu0
      %v5874 = vadd.f32 %v5861, %v5873
      %v5875 = vpop.f32.mrf.mxu0
      %5876 = vdwg.mxu0
      %5877 = vmatpush.bf16.msra.mxu0 %v4143
      %5878 = vmatpush.bf16.msra.mxu0 %v4127
      %5879 = vmatpush.bf16.msra.mxu0 %v4111
      %5880 = vmatpush.bf16.msra.mxu0 %v4095
      %5881 = vmatpush.bf16.msra.mxu0 %v4079
      %5882 = vmatpush.bf16.msra.mxu0 %v4063
      %5883 = vmatpush.bf16.msra.mxu0 %v4047
      %5884 = vmatpush.bf16.msra.mxu0 %v4031
      %5885 = vmatmul.bf16.gmra.mxu0 %v399
      %v5886 = vpop.f32.mrf.mxu0
      %v5887 = vadd.f32 %v5874, %v5886
      %v5888 = vpop.f32.mrf.mxu0
      %5889 = vdwg.mxu0
      %5890 = vmatpush.bf16.msra.mxu0 %v4271
      %5891 = vmatpush.bf16.msra.mxu0 %v4255
      %5892 = vmatpush.bf16.msra.mxu0 %v4239
      %5893 = vmatpush.bf16.msra.mxu0 %v4223
      %5894 = vmatpush.bf16.msra.mxu0 %v4207
      %5895 = vmatpush.bf16.msra.mxu0 %v4191
      %5896 = vmatpush.bf16.msra.mxu0 %v4175
      %5897 = vmatpush.bf16.msra.mxu0 %v4159
      %5898 = vmatmul.bf16.gmra.mxu0 %v400
      %v5899 = vpop.f32.mrf.mxu0
      %v5900 = vadd.f32 %v5887, %v5899
      %v5901 = vpop.f32.mrf.mxu0
      %5902 = vdwg.mxu0
      %5903 = vmatpush.bf16.msra.mxu0 %v3632
      %5904 = vmatpush.bf16.msra.mxu0 %v3616
      %5905 = vmatpush.bf16.msra.mxu0 %v3600
      %5906 = vmatpush.bf16.msra.mxu0 %v3584
      %5907 = vmatpush.bf16.msra.mxu0 %v3568
      %5908 = vmatpush.bf16.msra.mxu0 %v3552
      %5909 = vmatpush.bf16.msra.mxu0 %v3536
      %5910 = vmatpush.bf16.msra.mxu0 %v3520
      %5911 = vmatmul.bf16.gmra.mxu0 %v395
      %v5912 = vpop.f32.mrf.mxu0
      %v5913 = vadd.f32 %v1184, %v5912
      %v5914 = vpop.f32.mrf.mxu0
      %5915 = vdwg.mxu0
      %5916 = vmatpush.bf16.msra.mxu0 %v3760
      %5917 = vmatpush.bf16.msra.mxu0 %v3744
      %5918 = vmatpush.bf16.msra.mxu0 %v3728
      %5919 = vmatpush.bf16.msra.mxu0 %v3712
      %5920 = vmatpush.bf16.msra.mxu0 %v3696
      %5921 = vmatpush.bf16.msra.mxu0 %v3680
      %5922 = vmatpush.bf16.msra.mxu0 %v3664
      %5923 = vmatpush.bf16.msra.mxu0 %v3648
      %5924 = vmatmul.bf16.gmra.mxu0 %v396
      %v5925 = vpop.f32.mrf.mxu0
      %v5926 = vadd.f32 %v5913, %v5925
      %v5927 = vpop.f32.mrf.mxu0
      %5928 = vdwg.mxu0
      %5929 = vmatpush.bf16.msra.mxu0 %v3888
      %5930 = vmatpush.bf16.msra.mxu0 %v3872
      %5931 = vmatpush.bf16.msra.mxu0 %v3856
      %5932 = vmatpush.bf16.msra.mxu0 %v3840
      %5933 = vmatpush.bf16.msra.mxu0 %v3824
      %5934 = vmatpush.bf16.msra.mxu0 %v3808
      %5935 = vmatpush.bf16.msra.mxu0 %v3792
      %5936 = vmatpush.bf16.msra.mxu0 %v3776
      %5937 = vmatmul.bf16.gmra.mxu0 %v397
      %v5938 = vpop.f32.mrf.mxu0
      %v5939 = vadd.f32 %v5926, %v5938
      %v5940 = vpop.f32.mrf.mxu0
      %5941 = vdwg.mxu0
      %5942 = vmatpush.bf16.msra.mxu0 %v4016
      %5943 = vmatpush.bf16.msra.mxu0 %v4000
      %5944 = vmatpush.bf16.msra.mxu0 %v3984
      %5945 = vmatpush.bf16.msra.mxu0 %v3968
      %5946 = vmatpush.bf16.msra.mxu0 %v3952
      %5947 = vmatpush.bf16.msra.mxu0 %v3936
      %5948 = vmatpush.bf16.msra.mxu0 %v3920
      %5949 = vmatpush.bf16.msra.mxu0 %v3904
      %5950 = vmatmul.bf16.gmra.mxu0 %v398
      %v5951 = vpop.f32.mrf.mxu0
      %v5952 = vadd.f32 %v5939, %v5951
      %v5953 = vpop.f32.mrf.mxu0
      %5954 = vdwg.mxu0
      %5955 = vmatpush.bf16.msra.mxu0 %v4144
      %5956 = vmatpush.bf16.msra.mxu0 %v4128
      %5957 = vmatpush.bf16.msra.mxu0 %v4112
      %5958 = vmatpush.bf16.msra.mxu0 %v4096
      %5959 = vmatpush.bf16.msra.mxu0 %v4080
      %5960 = vmatpush.bf16.msra.mxu0 %v4064
      %5961 = vmatpush.bf16.msra.mxu0 %v4048
      %5962 = vmatpush.bf16.msra.mxu0 %v4032
      %5963 = vmatmul.bf16.gmra.mxu0 %v399
      %v5964 = vpop.f32.mrf.mxu0
      %v5965 = vadd.f32 %v5952, %v5964
      %v5966 = vpop.f32.mrf.mxu0
      %5967 = vdwg.mxu0
      %5968 = vmatpush.bf16.msra.mxu0 %v4272
      %5969 = vmatpush.bf16.msra.mxu0 %v4256
      %5970 = vmatpush.bf16.msra.mxu0 %v4240
      %5971 = vmatpush.bf16.msra.mxu0 %v4224
      %5972 = vmatpush.bf16.msra.mxu0 %v4208
      %5973 = vmatpush.bf16.msra.mxu0 %v4192
      %5974 = vmatpush.bf16.msra.mxu0 %v4176
      %5975 = vmatpush.bf16.msra.mxu0 %v4160
      %5976 = vmatmul.bf16.gmra.mxu0 %v400
      %v5977 = vpop.f32.mrf.mxu0
      %v5978 = vadd.f32 %v5965, %v5977
      %v5979 = vpop.f32.mrf.mxu0
      %5980 = vdwg.mxu0
      %5981 = vmatpush.bf16.msra.mxu0 %v3633
      %5982 = vmatpush.bf16.msra.mxu0 %v3617
      %5983 = vmatpush.bf16.msra.mxu0 %v3601
      %5984 = vmatpush.bf16.msra.mxu0 %v3585
      %5985 = vmatpush.bf16.msra.mxu0 %v3569
      %5986 = vmatpush.bf16.msra.mxu0 %v3553
      %5987 = vmatpush.bf16.msra.mxu0 %v3537
      %5988 = vmatpush.bf16.msra.mxu0 %v3521
      %5989 = vmatmul.bf16.gmra.mxu0 %v395
      %v5990 = vpop.f32.mrf.mxu0
      %v5991 = vadd.f32 %v1185, %v5990
      %v5992 = vpop.f32.mrf.mxu0
      %5993 = vdwg.mxu0
      %5994 = vmatpush.bf16.msra.mxu0 %v3761
      %5995 = vmatpush.bf16.msra.mxu0 %v3745
      %5996 = vmatpush.bf16.msra.mxu0 %v3729
      %5997 = vmatpush.bf16.msra.mxu0 %v3713
      %5998 = vmatpush.bf16.msra.mxu0 %v3697
      %5999 = vmatpush.bf16.msra.mxu0 %v3681
      %6000 = vmatpush.bf16.msra.mxu0 %v3665
      %6001 = vmatpush.bf16.msra.mxu0 %v3649
      %6002 = vmatmul.bf16.gmra.mxu0 %v396
      %v6003 = vpop.f32.mrf.mxu0
      %v6004 = vadd.f32 %v5991, %v6003
      %v6005 = vpop.f32.mrf.mxu0
      %6006 = vdwg.mxu0
      %6007 = vmatpush.bf16.msra.mxu0 %v3889
      %6008 = vmatpush.bf16.msra.mxu0 %v3873
      %6009 = vmatpush.bf16.msra.mxu0 %v3857
      %6010 = vmatpush.bf16.msra.mxu0 %v3841
      %6011 = vmatpush.bf16.msra.mxu0 %v3825
      %6012 = vmatpush.bf16.msra.mxu0 %v3809
      %6013 = vmatpush.bf16.msra.mxu0 %v3793
      %6014 = vmatpush.bf16.msra.mxu0 %v3777
      %6015 = vmatmul.bf16.gmra.mxu0 %v397
      %v6016 = vpop.f32.mrf.mxu0
      %v6017 = vadd.f32 %v6004, %v6016
      %v6018 = vpop.f32.mrf.mxu0
      %6019 = vdwg.mxu0
      %6020 = vmatpush.bf16.msra.mxu0 %v4017
      %6021 = vmatpush.bf16.msra.mxu0 %v4001
      %6022 = vmatpush.bf16.msra.mxu0 %v3985
      %6023 = vmatpush.bf16.msra.mxu0 %v3969
      %6024 = vmatpush.bf16.msra.mxu0 %v3953
      %6025 = vmatpush.bf16.msra.mxu0 %v3937
      %6026 = vmatpush.bf16.msra.mxu0 %v3921
      %6027 = vmatpush.bf16.msra.mxu0 %v3905
      %6028 = vmatmul.bf16.gmra.mxu0 %v398
      %v6029 = vpop.f32.mrf.mxu0
      %v6030 = vadd.f32 %v6017, %v6029
      %v6031 = vpop.f32.mrf.mxu0
      %6032 = vdwg.mxu0
      %6033 = vmatpush.bf16.msra.mxu0 %v4145
      %6034 = vmatpush.bf16.msra.mxu0 %v4129
      %6035 = vmatpush.bf16.msra.mxu0 %v4113
      %6036 = vmatpush.bf16.msra.mxu0 %v4097
      %6037 = vmatpush.bf16.msra.mxu0 %v4081
      %6038 = vmatpush.bf16.msra.mxu0 %v4065
      %6039 = vmatpush.bf16.msra.mxu0 %v4049
      %6040 = vmatpush.bf16.msra.mxu0 %v4033
      %6041 = vmatmul.bf16.gmra.mxu0 %v399
      %v6042 = vpop.f32.mrf.mxu0
      %v6043 = vadd.f32 %v6030, %v6042
      %v6044 = vpop.f32.mrf.mxu0
      %6045 = vdwg.mxu0
      %6046 = vmatpush.bf16.msra.mxu0 %v4273
      %6047 = vmatpush.bf16.msra.mxu0 %v4257
      %6048 = vmatpush.bf16.msra.mxu0 %v4241
      %6049 = vmatpush.bf16.msra.mxu0 %v4225
      %6050 = vmatpush.bf16.msra.mxu0 %v4209
      %6051 = vmatpush.bf16.msra.mxu0 %v4193
      %6052 = vmatpush.bf16.msra.mxu0 %v4177
      %6053 = vmatpush.bf16.msra.mxu0 %v4161
      %6054 = vmatmul.bf16.gmra.mxu0 %v400
      %v6055 = vpop.f32.mrf.mxu0
      %v6056 = vadd.f32 %v6043, %v6055
      %v6057 = vpop.f32.mrf.mxu0
      %6058 = vdwg.mxu0
      %6059 = vmatpush.bf16.msra.mxu0 %v3634
      %6060 = vmatpush.bf16.msra.mxu0 %v3618
      %6061 = vmatpush.bf16.msra.mxu0 %v3602
      %6062 = vmatpush.bf16.msra.mxu0 %v3586
      %6063 = vmatpush.bf16.msra.mxu0 %v3570
      %6064 = vmatpush.bf16.msra.mxu0 %v3554
      %6065 = vmatpush.bf16.msra.mxu0 %v3538
      %6066 = vmatpush.bf16.msra.mxu0 %v3522
      %6067 = vmatmul.bf16.gmra.mxu0 %v395
      %v6068 = vpop.f32.mrf.mxu0
      %v6069 = vadd.f32 %v1186, %v6068
      %v6070 = vpop.f32.mrf.mxu0
      %6071 = vdwg.mxu0
      %6072 = vmatpush.bf16.msra.mxu0 %v3762
      %6073 = vmatpush.bf16.msra.mxu0 %v3746
      %6074 = vmatpush.bf16.msra.mxu0 %v3730
      %6075 = vmatpush.bf16.msra.mxu0 %v3714
      %6076 = vmatpush.bf16.msra.mxu0 %v3698
      %6077 = vmatpush.bf16.msra.mxu0 %v3682
      %6078 = vmatpush.bf16.msra.mxu0 %v3666
      %6079 = vmatpush.bf16.msra.mxu0 %v3650
      %6080 = vmatmul.bf16.gmra.mxu0 %v396
      %v6081 = vpop.f32.mrf.mxu0
      %v6082 = vadd.f32 %v6069, %v6081
      %v6083 = vpop.f32.mrf.mxu0
      %6084 = vdwg.mxu0
      %6085 = vmatpush.bf16.msra.mxu0 %v3890
      %6086 = vmatpush.bf16.msra.mxu0 %v3874
      %6087 = vmatpush.bf16.msra.mxu0 %v3858
      %6088 = vmatpush.bf16.msra.mxu0 %v3842
      %6089 = vmatpush.bf16.msra.mxu0 %v3826
      %6090 = vmatpush.bf16.msra.mxu0 %v3810
      %6091 = vmatpush.bf16.msra.mxu0 %v3794
      %6092 = vmatpush.bf16.msra.mxu0 %v3778
      %6093 = vmatmul.bf16.gmra.mxu0 %v397
      %v6094 = vpop.f32.mrf.mxu0
      %v6095 = vadd.f32 %v6082, %v6094
      %v6096 = vpop.f32.mrf.mxu0
      %6097 = vdwg.mxu0
      %6098 = vmatpush.bf16.msra.mxu0 %v4018
      %6099 = vmatpush.bf16.msra.mxu0 %v4002
      %6100 = vmatpush.bf16.msra.mxu0 %v3986
      %6101 = vmatpush.bf16.msra.mxu0 %v3970
      %6102 = vmatpush.bf16.msra.mxu0 %v3954
      %6103 = vmatpush.bf16.msra.mxu0 %v3938
      %6104 = vmatpush.bf16.msra.mxu0 %v3922
      %6105 = vmatpush.bf16.msra.mxu0 %v3906
      %6106 = vmatmul.bf16.gmra.mxu0 %v398
      %v6107 = vpop.f32.mrf.mxu0
      %v6108 = vadd.f32 %v6095, %v6107
      %v6109 = vpop.f32.mrf.mxu0
      %6110 = vdwg.mxu0
      %6111 = vmatpush.bf16.msra.mxu0 %v4146
      %6112 = vmatpush.bf16.msra.mxu0 %v4130
      %6113 = vmatpush.bf16.msra.mxu0 %v4114
      %6114 = vmatpush.bf16.msra.mxu0 %v4098
      %6115 = vmatpush.bf16.msra.mxu0 %v4082
      %6116 = vmatpush.bf16.msra.mxu0 %v4066
      %6117 = vmatpush.bf16.msra.mxu0 %v4050
      %6118 = vmatpush.bf16.msra.mxu0 %v4034
      %6119 = vmatmul.bf16.gmra.mxu0 %v399
      %v6120 = vpop.f32.mrf.mxu0
      %v6121 = vadd.f32 %v6108, %v6120
      %v6122 = vpop.f32.mrf.mxu0
      %6123 = vdwg.mxu0
      %6124 = vmatpush.bf16.msra.mxu0 %v4274
      %6125 = vmatpush.bf16.msra.mxu0 %v4258
      %6126 = vmatpush.bf16.msra.mxu0 %v4242
      %6127 = vmatpush.bf16.msra.mxu0 %v4226
      %6128 = vmatpush.bf16.msra.mxu0 %v4210
      %6129 = vmatpush.bf16.msra.mxu0 %v4194
      %6130 = vmatpush.bf16.msra.mxu0 %v4178
      %6131 = vmatpush.bf16.msra.mxu0 %v4162
      %6132 = vmatmul.bf16.gmra.mxu0 %v400
      %v6133 = vpop.f32.mrf.mxu0
      %v6134 = vadd.f32 %v6121, %v6133
      %v6135 = vpop.f32.mrf.mxu0
      %6136 = vdwg.mxu0
      %6137 = vmatpush.bf16.msra.mxu0 %v3635
      %6138 = vmatpush.bf16.msra.mxu0 %v3619
      %6139 = vmatpush.bf16.msra.mxu0 %v3603
      %6140 = vmatpush.bf16.msra.mxu0 %v3587
      %6141 = vmatpush.bf16.msra.mxu0 %v3571
      %6142 = vmatpush.bf16.msra.mxu0 %v3555
      %6143 = vmatpush.bf16.msra.mxu0 %v3539
      %6144 = vmatpush.bf16.msra.mxu0 %v3523
      %6145 = vmatmul.bf16.gmra.mxu0 %v395
      %v6146 = vpop.f32.mrf.mxu0
      %v6147 = vadd.f32 %v1187, %v6146
      %v6148 = vpop.f32.mrf.mxu0
      %6149 = vdwg.mxu0
      %6150 = vmatpush.bf16.msra.mxu0 %v3763
      %6151 = vmatpush.bf16.msra.mxu0 %v3747
      %6152 = vmatpush.bf16.msra.mxu0 %v3731
      %6153 = vmatpush.bf16.msra.mxu0 %v3715
      %6154 = vmatpush.bf16.msra.mxu0 %v3699
      %6155 = vmatpush.bf16.msra.mxu0 %v3683
      %6156 = vmatpush.bf16.msra.mxu0 %v3667
      %6157 = vmatpush.bf16.msra.mxu0 %v3651
      %6158 = vmatmul.bf16.gmra.mxu0 %v396
      %v6159 = vpop.f32.mrf.mxu0
      %v6160 = vadd.f32 %v6147, %v6159
      %v6161 = vpop.f32.mrf.mxu0
      %6162 = vdwg.mxu0
      %6163 = vmatpush.bf16.msra.mxu0 %v3891
      %6164 = vmatpush.bf16.msra.mxu0 %v3875
      %6165 = vmatpush.bf16.msra.mxu0 %v3859
      %6166 = vmatpush.bf16.msra.mxu0 %v3843
      %6167 = vmatpush.bf16.msra.mxu0 %v3827
      %6168 = vmatpush.bf16.msra.mxu0 %v3811
      %6169 = vmatpush.bf16.msra.mxu0 %v3795
      %6170 = vmatpush.bf16.msra.mxu0 %v3779
      %6171 = vmatmul.bf16.gmra.mxu0 %v397
      %v6172 = vpop.f32.mrf.mxu0
      %v6173 = vadd.f32 %v6160, %v6172
      %v6174 = vpop.f32.mrf.mxu0
      %6175 = vdwg.mxu0
      %6176 = vmatpush.bf16.msra.mxu0 %v4019
      %6177 = vmatpush.bf16.msra.mxu0 %v4003
      %6178 = vmatpush.bf16.msra.mxu0 %v3987
      %6179 = vmatpush.bf16.msra.mxu0 %v3971
      %6180 = vmatpush.bf16.msra.mxu0 %v3955
      %6181 = vmatpush.bf16.msra.mxu0 %v3939
      %6182 = vmatpush.bf16.msra.mxu0 %v3923
      %6183 = vmatpush.bf16.msra.mxu0 %v3907
      %6184 = vmatmul.bf16.gmra.mxu0 %v398
      %v6185 = vpop.f32.mrf.mxu0
      %v6186 = vadd.f32 %v6173, %v6185
      %v6187 = vpop.f32.mrf.mxu0
      %6188 = vdwg.mxu0
      %6189 = vmatpush.bf16.msra.mxu0 %v4147
      %6190 = vmatpush.bf16.msra.mxu0 %v4131
      %6191 = vmatpush.bf16.msra.mxu0 %v4115
      %6192 = vmatpush.bf16.msra.mxu0 %v4099
      %6193 = vmatpush.bf16.msra.mxu0 %v4083
      %6194 = vmatpush.bf16.msra.mxu0 %v4067
      %6195 = vmatpush.bf16.msra.mxu0 %v4051
      %6196 = vmatpush.bf16.msra.mxu0 %v4035
      %6197 = vmatmul.bf16.gmra.mxu0 %v399
      %v6198 = vpop.f32.mrf.mxu0
      %v6199 = vadd.f32 %v6186, %v6198
      %v6200 = vpop.f32.mrf.mxu0
      %6201 = vdwg.mxu0
      %6202 = vmatpush.bf16.msra.mxu0 %v4275
      %6203 = vmatpush.bf16.msra.mxu0 %v4259
      %6204 = vmatpush.bf16.msra.mxu0 %v4243
      %6205 = vmatpush.bf16.msra.mxu0 %v4227
      %6206 = vmatpush.bf16.msra.mxu0 %v4211
      %6207 = vmatpush.bf16.msra.mxu0 %v4195
      %6208 = vmatpush.bf16.msra.mxu0 %v4179
      %6209 = vmatpush.bf16.msra.mxu0 %v4163
      %6210 = vmatmul.bf16.gmra.mxu0 %v400
      %v6211 = vpop.f32.mrf.mxu0
      %v6212 = vadd.f32 %v6199, %v6211
      %v6213 = vpop.f32.mrf.mxu0
      %6214 = vdwg.mxu0
      %6215 = vmatpush.bf16.msra.mxu0 %v3636
      %6216 = vmatpush.bf16.msra.mxu0 %v3620
      %6217 = vmatpush.bf16.msra.mxu0 %v3604
      %6218 = vmatpush.bf16.msra.mxu0 %v3588
      %6219 = vmatpush.bf16.msra.mxu0 %v3572
      %6220 = vmatpush.bf16.msra.mxu0 %v3556
      %6221 = vmatpush.bf16.msra.mxu0 %v3540
      %6222 = vmatpush.bf16.msra.mxu0 %v3524
      %6223 = vmatmul.bf16.gmra.mxu0 %v395
      %v6224 = vpop.f32.mrf.mxu0
      %v6225 = vadd.f32 %v1188, %v6224
      %v6226 = vpop.f32.mrf.mxu0
      %6227 = vdwg.mxu0
      %6228 = vmatpush.bf16.msra.mxu0 %v3764
      %6229 = vmatpush.bf16.msra.mxu0 %v3748
      %6230 = vmatpush.bf16.msra.mxu0 %v3732
      %6231 = vmatpush.bf16.msra.mxu0 %v3716
      %6232 = vmatpush.bf16.msra.mxu0 %v3700
      %6233 = vmatpush.bf16.msra.mxu0 %v3684
      %6234 = vmatpush.bf16.msra.mxu0 %v3668
      %6235 = vmatpush.bf16.msra.mxu0 %v3652
      %6236 = vmatmul.bf16.gmra.mxu0 %v396
      %v6237 = vpop.f32.mrf.mxu0
      %v6238 = vadd.f32 %v6225, %v6237
      %v6239 = vpop.f32.mrf.mxu0
      %6240 = vdwg.mxu0
      %6241 = vmatpush.bf16.msra.mxu0 %v3892
      %6242 = vmatpush.bf16.msra.mxu0 %v3876
      %6243 = vmatpush.bf16.msra.mxu0 %v3860
      %6244 = vmatpush.bf16.msra.mxu0 %v3844
      %6245 = vmatpush.bf16.msra.mxu0 %v3828
      %6246 = vmatpush.bf16.msra.mxu0 %v3812
      %6247 = vmatpush.bf16.msra.mxu0 %v3796
      %6248 = vmatpush.bf16.msra.mxu0 %v3780
      %6249 = vmatmul.bf16.gmra.mxu0 %v397
      %v6250 = vpop.f32.mrf.mxu0
      %v6251 = vadd.f32 %v6238, %v6250
      %v6252 = vpop.f32.mrf.mxu0
      %6253 = vdwg.mxu0
      %6254 = vmatpush.bf16.msra.mxu0 %v4020
      %6255 = vmatpush.bf16.msra.mxu0 %v4004
      %6256 = vmatpush.bf16.msra.mxu0 %v3988
      %6257 = vmatpush.bf16.msra.mxu0 %v3972
      %6258 = vmatpush.bf16.msra.mxu0 %v3956
      %6259 = vmatpush.bf16.msra.mxu0 %v3940
      %6260 = vmatpush.bf16.msra.mxu0 %v3924
      %6261 = vmatpush.bf16.msra.mxu0 %v3908
      %6262 = vmatmul.bf16.gmra.mxu0 %v398
      %v6263 = vpop.f32.mrf.mxu0
      %v6264 = vadd.f32 %v6251, %v6263
      %v6265 = vpop.f32.mrf.mxu0
      %6266 = vdwg.mxu0
      %6267 = vmatpush.bf16.msra.mxu0 %v4148
      %6268 = vmatpush.bf16.msra.mxu0 %v4132
      %6269 = vmatpush.bf16.msra.mxu0 %v4116
      %6270 = vmatpush.bf16.msra.mxu0 %v4100
      %6271 = vmatpush.bf16.msra.mxu0 %v4084
      %6272 = vmatpush.bf16.msra.mxu0 %v4068
      %6273 = vmatpush.bf16.msra.mxu0 %v4052
      %6274 = vmatpush.bf16.msra.mxu0 %v4036
      %6275 = vmatmul.bf16.gmra.mxu0 %v399
      %v6276 = vpop.f32.mrf.mxu0
      %v6277 = vadd.f32 %v6264, %v6276
      %v6278 = vpop.f32.mrf.mxu0
      %6279 = vdwg.mxu0
      %6280 = vmatpush.bf16.msra.mxu0 %v4276
      %6281 = vmatpush.bf16.msra.mxu0 %v4260
      %6282 = vmatpush.bf16.msra.mxu0 %v4244
      %6283 = vmatpush.bf16.msra.mxu0 %v4228
      %6284 = vmatpush.bf16.msra.mxu0 %v4212
      %6285 = vmatpush.bf16.msra.mxu0 %v4196
      %6286 = vmatpush.bf16.msra.mxu0 %v4180
      %6287 = vmatpush.bf16.msra.mxu0 %v4164
      %6288 = vmatmul.bf16.gmra.mxu0 %v400
      %v6289 = vpop.f32.mrf.mxu0
      %v6290 = vadd.f32 %v6277, %v6289
      %v6291 = vpop.f32.mrf.mxu0
      %6292 = vdwg.mxu0
      %v6293 = vmax.f32 %v5120, 0.0
      %v6294 = vmax.f32 %v5198, 0.0
      %v6295 = vmax.f32 %v5276, 0.0
      %v6296 = vmax.f32 %v5354, 0.0
      %v6297 = vmax.f32 %v5432, 0.0
      %v6298 = vmax.f32 %v5510, 0.0
      %v6299 = vmax.f32 %v5588, 0.0
      %v6300 = vmax.f32 %v5666, 0.0
      %v6301 = vmax.f32 %v5744, 0.0
      %v6302 = vmax.f32 %v5822, 0.0
      %v6303 = vmax.f32 %v5900, 0.0
      %v6304 = vmax.f32 %v5978, 0.0
      %v6305 = vmax.f32 %v6056, 0.0
      %v6306 = vmax.f32 %v6134, 0.0
      %v6307 = vmax.f32 %v6212, 0.0
      %v6308 = vmax.f32 %v6290, 0.0
      %v6309 = vpack.c.bf16 %v6293, %v6293
      %v6310 = vpack.c.bf16 %v6294, %v6294
      %v6311 = vpack.c.bf16 %v6295, %v6295
      %v6312 = vpack.c.bf16 %v6296, %v6296
      %v6313 = vpack.c.bf16 %v6297, %v6297
      %v6314 = vpack.c.bf16 %v6298, %v6298
      %v6315 = vpack.c.bf16 %v6299, %v6299
      %v6316 = vpack.c.bf16 %v6300, %v6300
      %v6317 = vpack.c.bf16 %v6301, %v6301
      %v6318 = vpack.c.bf16 %v6302, %v6302
      %v6319 = vpack.c.bf16 %v6303, %v6303
      %v6320 = vpack.c.bf16 %v6304, %v6304
      %v6321 = vpack.c.bf16 %v6305, %v6305
      %v6322 = vpack.c.bf16 %v6306, %v6306
      %v6323 = vpack.c.bf16 %v6307, %v6307
      %v6324 = vpack.c.bf16 %v6308, %v6308
      %v6325 = vld [vmem:[#allocation12] sm:$0xff]
      %v6326 = vld [vmem:[#allocation12 + $0x8] sm:$0xff]
      %v6327 = vld [vmem:[#allocation12 + $0x10] sm:$0xff]
      %v6328 = vld [vmem:[#allocation12 + $0x18] sm:$0xff]
      %v6329 = vld [vmem:[#allocation12 + $0x20] sm:$0xff]
      %v6330 = vld [vmem:[#allocation12 + $0x28] sm:$0xff]
      %v6331 = vld [vmem:[#allocation12 + $0x30] sm:$0xff]
      %v6332 = vld [vmem:[#allocation12 + $0x38] sm:$0xff]
      %v6333 = vld [vmem:[#allocation12 + $0x40] sm:$0xff]
      %v6334 = vld [vmem:[#allocation12 + $0x48] sm:$0xff]
      %v6335 = vld [vmem:[#allocation12 + $0x50] sm:$0xff]
      %v6336 = vld [vmem:[#allocation12 + $0x58] sm:$0xff]
      %v6337 = vld [vmem:[#allocation12 + $0x60] sm:$0xff]
      %v6338 = vld [vmem:[#allocation12 + $0x68] sm:$0xff]
      %v6339 = vld [vmem:[#allocation12 + $0x70] sm:$0xff]
      %v6340 = vld [vmem:[#allocation12 + $0x78] sm:$0xff]
      %v6341 = vld [vmem:[#allocation12 + $0x80] sm:$0xff]
      %v6342 = vld [vmem:[#allocation12 + $0x88] sm:$0xff]
      %v6343 = vld [vmem:[#allocation12 + $0x90] sm:$0xff]
      %v6344 = vld [vmem:[#allocation12 + $0x98] sm:$0xff]
      %v6345 = vld [vmem:[#allocation12 + $0xa0] sm:$0xff]
      %v6346 = vld [vmem:[#allocation12 + $0xa8] sm:$0xff]
      %v6347 = vld [vmem:[#allocation12 + $0xb0] sm:$0xff]
      %v6348 = vld [vmem:[#allocation12 + $0xb8] sm:$0xff]
      %v6349 = vld [vmem:[#allocation12 + $0xc0] sm:$0xff]
      %v6350 = vld [vmem:[#allocation12 + $0xc8] sm:$0xff]
      %v6351 = vld [vmem:[#allocation12 + $0xd0] sm:$0xff]
      %v6352 = vld [vmem:[#allocation12 + $0xd8] sm:$0xff]
      %v6353 = vld [vmem:[#allocation12 + $0xe0] sm:$0xff]
      %v6354 = vld [vmem:[#allocation12 + $0xe8] sm:$0xff]
      %v6355 = vld [vmem:[#allocation12 + $0xf0] sm:$0xff]
      %v6356 = vld [vmem:[#allocation12 + $0xf8] sm:$0xff]
      %v6357 = vld [vmem:[#allocation12 + $0x100] sm:$0xff]
      %v6358 = vld [vmem:[#allocation12 + $0x108] sm:$0xff]
      %v6359 = vld [vmem:[#allocation12 + $0x110] sm:$0xff]
      %v6360 = vld [vmem:[#allocation12 + $0x118] sm:$0xff]
      %v6361 = vld [vmem:[#allocation12 + $0x120] sm:$0xff]
      %v6362 = vld [vmem:[#allocation12 + $0x128] sm:$0xff]
      %v6363 = vld [vmem:[#allocation12 + $0x130] sm:$0xff]
      %v6364 = vld [vmem:[#allocation12 + $0x138] sm:$0xff]
      %v6365 = vld [vmem:[#allocation12 + $0x140] sm:$0xff]
      %v6366 = vld [vmem:[#allocation12 + $0x148] sm:$0xff]
      %v6367 = vld [vmem:[#allocation12 + $0x150] sm:$0xff]
      %v6368 = vld [vmem:[#allocation12 + $0x158] sm:$0xff]
      %v6369 = vld [vmem:[#allocation12 + $0x160] sm:$0xff]
      %v6370 = vld [vmem:[#allocation12 + $0x168] sm:$0xff]
      %v6371 = vld [vmem:[#allocation12 + $0x170] sm:$0xff]
      %v6372 = vld [vmem:[#allocation12 + $0x178] sm:$0xff]
      %v6373 = vld [vmem:[#allocation12 + $0x180] sm:$0xff]
      %v6374 = vld [vmem:[#allocation12 + $0x188] sm:$0xff]
      %v6375 = vld [vmem:[#allocation12 + $0x190] sm:$0xff]
      %v6376 = vld [vmem:[#allocation12 + $0x198] sm:$0xff]
      %v6377 = vld [vmem:[#allocation12 + $0x1a0] sm:$0xff]
      %v6378 = vld [vmem:[#allocation12 + $0x1a8] sm:$0xff]
      %v6379 = vld [vmem:[#allocation12 + $0x1b0] sm:$0xff]
      %v6380 = vld [vmem:[#allocation12 + $0x1b8] sm:$0xff]
      %v6381 = vld [vmem:[#allocation12 + $0x1c0] sm:$0xff]
      %v6382 = vld [vmem:[#allocation12 + $0x1c8] sm:$0xff]
      %v6383 = vld [vmem:[#allocation12 + $0x1d0] sm:$0xff]
      %v6384 = vld [vmem:[#allocation12 + $0x1d8] sm:$0xff]
      %v6385 = vld [vmem:[#allocation12 + $0x1e0] sm:$0xff]
      %v6386 = vld [vmem:[#allocation12 + $0x1e8] sm:$0xff]
      %v6387 = vld [vmem:[#allocation12 + $0x1f0] sm:$0xff]
      %v6388 = vld [vmem:[#allocation12 + $0x1f8] sm:$0xff]
      %v6389 = vld [vmem:[#allocation12 + $0x200] sm:$0xff]
      %v6390 = vld [vmem:[#allocation12 + $0x208] sm:$0xff]
      %v6391 = vld [vmem:[#allocation12 + $0x210] sm:$0xff]
      %v6392 = vld [vmem:[#allocation12 + $0x218] sm:$0xff]
      %v6393 = vld [vmem:[#allocation12 + $0x220] sm:$0xff]
      %v6394 = vld [vmem:[#allocation12 + $0x228] sm:$0xff]
      %v6395 = vld [vmem:[#allocation12 + $0x230] sm:$0xff]
      %v6396 = vld [vmem:[#allocation12 + $0x238] sm:$0xff]
      %v6397 = vld [vmem:[#allocation12 + $0x240] sm:$0xff]
      %v6398 = vld [vmem:[#allocation12 + $0x248] sm:$0xff]
      %v6399 = vld [vmem:[#allocation12 + $0x250] sm:$0xff]
      %v6400 = vld [vmem:[#allocation12 + $0x258] sm:$0xff]
      %v6401 = vld [vmem:[#allocation12 + $0x260] sm:$0xff]
      %v6402 = vld [vmem:[#allocation12 + $0x268] sm:$0xff]
      %v6403 = vld [vmem:[#allocation12 + $0x270] sm:$0xff]
      %v6404 = vld [vmem:[#allocation12 + $0x278] sm:$0xff]
      %v6405 = vld [vmem:[#allocation12 + $0x280] sm:$0xff]
      %v6406 = vld [vmem:[#allocation12 + $0x288] sm:$0xff]
      %v6407 = vld [vmem:[#allocation12 + $0x290] sm:$0xff]
      %v6408 = vld [vmem:[#allocation12 + $0x298] sm:$0xff]
      %v6409 = vld [vmem:[#allocation12 + $0x2a0] sm:$0xff]
      %v6410 = vld [vmem:[#allocation12 + $0x2a8] sm:$0xff]
      %v6411 = vld [vmem:[#allocation12 + $0x2b0] sm:$0xff]
      %v6412 = vld [vmem:[#allocation12 + $0x2b8] sm:$0xff]
      %v6413 = vld [vmem:[#allocation12 + $0x2c0] sm:$0xff]
      %v6414 = vld [vmem:[#allocation12 + $0x2c8] sm:$0xff]
      %v6415 = vld [vmem:[#allocation12 + $0x2d0] sm:$0xff]
      %v6416 = vld [vmem:[#allocation12 + $0x2d8] sm:$0xff]
      %v6417 = vld [vmem:[#allocation12 + $0x2e0] sm:$0xff]
      %v6418 = vld [vmem:[#allocation12 + $0x2e8] sm:$0xff]
      %v6419 = vld [vmem:[#allocation12 + $0x2f0] sm:$0xff]
      %v6420 = vld [vmem:[#allocation12 + $0x2f8] sm:$0xff]
      %v6421 = vld [vmem:[#allocation12 + $0x300] sm:$0xff]
      %v6422 = vld [vmem:[#allocation12 + $0x308] sm:$0xff]
      %v6423 = vld [vmem:[#allocation12 + $0x310] sm:$0xff]
      %v6424 = vld [vmem:[#allocation12 + $0x318] sm:$0xff]
      %v6425 = vld [vmem:[#allocation12 + $0x320] sm:$0xff]
      %v6426 = vld [vmem:[#allocation12 + $0x328] sm:$0xff]
      %v6427 = vld [vmem:[#allocation12 + $0x330] sm:$0xff]
      %v6428 = vld [vmem:[#allocation12 + $0x338] sm:$0xff]
      %v6429 = vld [vmem:[#allocation12 + $0x340] sm:$0xff]
      %v6430 = vld [vmem:[#allocation12 + $0x348] sm:$0xff]
      %v6431 = vld [vmem:[#allocation12 + $0x350] sm:$0xff]
      %v6432 = vld [vmem:[#allocation12 + $0x358] sm:$0xff]
      %v6433 = vld [vmem:[#allocation12 + $0x360] sm:$0xff]
      %v6434 = vld [vmem:[#allocation12 + $0x368] sm:$0xff]
      %v6435 = vld [vmem:[#allocation12 + $0x370] sm:$0xff]
      %v6436 = vld [vmem:[#allocation12 + $0x378] sm:$0xff]
      %v6437 = vld [vmem:[#allocation12 + $0x380] sm:$0xff]
      %v6438 = vld [vmem:[#allocation12 + $0x388] sm:$0xff]
      %v6439 = vld [vmem:[#allocation12 + $0x390] sm:$0xff]
      %v6440 = vld [vmem:[#allocation12 + $0x398] sm:$0xff]
      %v6441 = vld [vmem:[#allocation12 + $0x3a0] sm:$0xff]
      %v6442 = vld [vmem:[#allocation12 + $0x3a8] sm:$0xff]
      %v6443 = vld [vmem:[#allocation12 + $0x3b0] sm:$0xff]
      %v6444 = vld [vmem:[#allocation12 + $0x3b8] sm:$0xff]
      %v6445 = vld [vmem:[#allocation12 + $0x3c0] sm:$0xff]
      %v6446 = vld [vmem:[#allocation12 + $0x3c8] sm:$0xff]
      %v6447 = vld [vmem:[#allocation12 + $0x3d0] sm:$0xff]
      %v6448 = vld [vmem:[#allocation12 + $0x3d8] sm:$0xff]
      %v6449 = vld [vmem:[#allocation12 + $0x3e0] sm:$0xff]
      %v6450 = vld [vmem:[#allocation12 + $0x3e8] sm:$0xff]
      %v6451 = vld [vmem:[#allocation12 + $0x3f0] sm:$0xff]
      %v6452 = vld [vmem:[#allocation12 + $0x3f8] sm:$0xff]
      %v6453 = vld [vmem:[#allocation12 + $0x400] sm:$0xff]
      %v6454 = vld [vmem:[#allocation12 + $0x408] sm:$0xff]
      %v6455 = vld [vmem:[#allocation12 + $0x410] sm:$0xff]
      %v6456 = vld [vmem:[#allocation12 + $0x418] sm:$0xff]
      %v6457 = vld [vmem:[#allocation12 + $0x420] sm:$0xff]
      %v6458 = vld [vmem:[#allocation12 + $0x428] sm:$0xff]
      %v6459 = vld [vmem:[#allocation12 + $0x430] sm:$0xff]
      %v6460 = vld [vmem:[#allocation12 + $0x438] sm:$0xff]
      %v6461 = vld [vmem:[#allocation12 + $0x440] sm:$0xff]
      %v6462 = vld [vmem:[#allocation12 + $0x448] sm:$0xff]
      %v6463 = vld [vmem:[#allocation12 + $0x450] sm:$0xff]
      %v6464 = vld [vmem:[#allocation12 + $0x458] sm:$0xff]
      %v6465 = vld [vmem:[#allocation12 + $0x460] sm:$0xff]
      %v6466 = vld [vmem:[#allocation12 + $0x468] sm:$0xff]
      %v6467 = vld [vmem:[#allocation12 + $0x470] sm:$0xff]
      %v6468 = vld [vmem:[#allocation12 + $0x478] sm:$0xff]
      %v6469 = vld [vmem:[#allocation12 + $0x480] sm:$0xff]
      %v6470 = vld [vmem:[#allocation12 + $0x488] sm:$0xff]
      %v6471 = vld [vmem:[#allocation12 + $0x490] sm:$0xff]
      %v6472 = vld [vmem:[#allocation12 + $0x498] sm:$0xff]
      %v6473 = vld [vmem:[#allocation12 + $0x4a0] sm:$0xff]
      %v6474 = vld [vmem:[#allocation12 + $0x4a8] sm:$0xff]
      %v6475 = vld [vmem:[#allocation12 + $0x4b0] sm:$0xff]
      %v6476 = vld [vmem:[#allocation12 + $0x4b8] sm:$0xff]
      %v6477 = vld [vmem:[#allocation12 + $0x4c0] sm:$0xff]
      %v6478 = vld [vmem:[#allocation12 + $0x4c8] sm:$0xff]
      %v6479 = vld [vmem:[#allocation12 + $0x4d0] sm:$0xff]
      %v6480 = vld [vmem:[#allocation12 + $0x4d8] sm:$0xff]
      %v6481 = vld [vmem:[#allocation12 + $0x4e0] sm:$0xff]
      %v6482 = vld [vmem:[#allocation12 + $0x4e8] sm:$0xff]
      %v6483 = vld [vmem:[#allocation12 + $0x4f0] sm:$0xff]
      %v6484 = vld [vmem:[#allocation12 + $0x4f8] sm:$0xff]
      %v6485 = vld [vmem:[#allocation12 + $0x500] sm:$0xff]
      %v6486 = vld [vmem:[#allocation12 + $0x508] sm:$0xff]
      %v6487 = vld [vmem:[#allocation12 + $0x510] sm:$0xff]
      %v6488 = vld [vmem:[#allocation12 + $0x518] sm:$0xff]
      %v6489 = vld [vmem:[#allocation12 + $0x520] sm:$0xff]
      %v6490 = vld [vmem:[#allocation12 + $0x528] sm:$0xff]
      %v6491 = vld [vmem:[#allocation12 + $0x530] sm:$0xff]
      %v6492 = vld [vmem:[#allocation12 + $0x538] sm:$0xff]
      %v6493 = vld [vmem:[#allocation12 + $0x540] sm:$0xff]
      %v6494 = vld [vmem:[#allocation12 + $0x548] sm:$0xff]
      %v6495 = vld [vmem:[#allocation12 + $0x550] sm:$0xff]
      %v6496 = vld [vmem:[#allocation12 + $0x558] sm:$0xff]
      %v6497 = vld [vmem:[#allocation12 + $0x560] sm:$0xff]
      %v6498 = vld [vmem:[#allocation12 + $0x568] sm:$0xff]
      %v6499 = vld [vmem:[#allocation12 + $0x570] sm:$0xff]
      %v6500 = vld [vmem:[#allocation12 + $0x578] sm:$0xff]
      %v6501 = vld [vmem:[#allocation12 + $0x580] sm:$0xff]
      %v6502 = vld [vmem:[#allocation12 + $0x588] sm:$0xff]
      %v6503 = vld [vmem:[#allocation12 + $0x590] sm:$0xff]
      %v6504 = vld [vmem:[#allocation12 + $0x598] sm:$0xff]
      %v6505 = vld [vmem:[#allocation12 + $0x5a0] sm:$0xff]
      %v6506 = vld [vmem:[#allocation12 + $0x5a8] sm:$0xff]
      %v6507 = vld [vmem:[#allocation12 + $0x5b0] sm:$0xff]
      %v6508 = vld [vmem:[#allocation12 + $0x5b8] sm:$0xff]
      %v6509 = vld [vmem:[#allocation12 + $0x5c0] sm:$0xff]
      %v6510 = vld [vmem:[#allocation12 + $0x5c8] sm:$0xff]
      %v6511 = vld [vmem:[#allocation12 + $0x5d0] sm:$0xff]
      %v6512 = vld [vmem:[#allocation12 + $0x5d8] sm:$0xff]
      %v6513 = vld [vmem:[#allocation12 + $0x5e0] sm:$0xff]
      %v6514 = vld [vmem:[#allocation12 + $0x5e8] sm:$0xff]
      %v6515 = vld [vmem:[#allocation12 + $0x5f0] sm:$0xff]
      %v6516 = vld [vmem:[#allocation12 + $0x5f8] sm:$0xff]
      %v6517 = vld [vmem:[#allocation12 + $0x600] sm:$0xff]
      %v6518 = vld [vmem:[#allocation12 + $0x608] sm:$0xff]
      %v6519 = vld [vmem:[#allocation12 + $0x610] sm:$0xff]
      %v6520 = vld [vmem:[#allocation12 + $0x618] sm:$0xff]
      %v6521 = vld [vmem:[#allocation12 + $0x620] sm:$0xff]
      %v6522 = vld [vmem:[#allocation12 + $0x628] sm:$0xff]
      %v6523 = vld [vmem:[#allocation12 + $0x630] sm:$0xff]
      %v6524 = vld [vmem:[#allocation12 + $0x638] sm:$0xff]
      %v6525 = vld [vmem:[#allocation12 + $0x640] sm:$0xff]
      %v6526 = vld [vmem:[#allocation12 + $0x648] sm:$0xff]
      %v6527 = vld [vmem:[#allocation12 + $0x650] sm:$0xff]
      %v6528 = vld [vmem:[#allocation12 + $0x658] sm:$0xff]
      %v6529 = vld [vmem:[#allocation12 + $0x660] sm:$0xff]
      %v6530 = vld [vmem:[#allocation12 + $0x668] sm:$0xff]
      %v6531 = vld [vmem:[#allocation12 + $0x670] sm:$0xff]
      %v6532 = vld [vmem:[#allocation12 + $0x678] sm:$0xff]
      %v6533 = vld [vmem:[#allocation12 + $0x680] sm:$0xff]
      %v6534 = vld [vmem:[#allocation12 + $0x688] sm:$0xff]
      %v6535 = vld [vmem:[#allocation12 + $0x690] sm:$0xff]
      %v6536 = vld [vmem:[#allocation12 + $0x698] sm:$0xff]
      %v6537 = vld [vmem:[#allocation12 + $0x6a0] sm:$0xff]
      %v6538 = vld [vmem:[#allocation12 + $0x6a8] sm:$0xff]
      %v6539 = vld [vmem:[#allocation12 + $0x6b0] sm:$0xff]
      %v6540 = vld [vmem:[#allocation12 + $0x6b8] sm:$0xff]
      %v6541 = vld [vmem:[#allocation12 + $0x6c0] sm:$0xff]
      %v6542 = vld [vmem:[#allocation12 + $0x6c8] sm:$0xff]
      %v6543 = vld [vmem:[#allocation12 + $0x6d0] sm:$0xff]
      %v6544 = vld [vmem:[#allocation12 + $0x6d8] sm:$0xff]
      %v6545 = vld [vmem:[#allocation12 + $0x6e0] sm:$0xff]
      %v6546 = vld [vmem:[#allocation12 + $0x6e8] sm:$0xff]
      %v6547 = vld [vmem:[#allocation12 + $0x6f0] sm:$0xff]
      %v6548 = vld [vmem:[#allocation12 + $0x6f8] sm:$0xff]
      %v6549 = vld [vmem:[#allocation12 + $0x700] sm:$0xff]
      %v6550 = vld [vmem:[#allocation12 + $0x708] sm:$0xff]
      %v6551 = vld [vmem:[#allocation12 + $0x710] sm:$0xff]
      %v6552 = vld [vmem:[#allocation12 + $0x718] sm:$0xff]
      %v6553 = vld [vmem:[#allocation12 + $0x720] sm:$0xff]
      %v6554 = vld [vmem:[#allocation12 + $0x728] sm:$0xff]
      %v6555 = vld [vmem:[#allocation12 + $0x730] sm:$0xff]
      %v6556 = vld [vmem:[#allocation12 + $0x738] sm:$0xff]
      %v6557 = vld [vmem:[#allocation12 + $0x740] sm:$0xff]
      %v6558 = vld [vmem:[#allocation12 + $0x748] sm:$0xff]
      %v6559 = vld [vmem:[#allocation12 + $0x750] sm:$0xff]
      %v6560 = vld [vmem:[#allocation12 + $0x758] sm:$0xff]
      %v6561 = vld [vmem:[#allocation12 + $0x760] sm:$0xff]
      %v6562 = vld [vmem:[#allocation12 + $0x768] sm:$0xff]
      %v6563 = vld [vmem:[#allocation12 + $0x770] sm:$0xff]
      %v6564 = vld [vmem:[#allocation12 + $0x778] sm:$0xff]
      %v6565 = vld [vmem:[#allocation12 + $0x780] sm:$0xff]
      %v6566 = vld [vmem:[#allocation12 + $0x788] sm:$0xff]
      %v6567 = vld [vmem:[#allocation12 + $0x790] sm:$0xff]
      %v6568 = vld [vmem:[#allocation12 + $0x798] sm:$0xff]
      %v6569 = vld [vmem:[#allocation12 + $0x7a0] sm:$0xff]
      %v6570 = vld [vmem:[#allocation12 + $0x7a8] sm:$0xff]
      %v6571 = vld [vmem:[#allocation12 + $0x7b0] sm:$0xff]
      %v6572 = vld [vmem:[#allocation12 + $0x7b8] sm:$0xff]
      %v6573 = vld [vmem:[#allocation12 + $0x7c0] sm:$0xff]
      %v6574 = vld [vmem:[#allocation12 + $0x7c8] sm:$0xff]
      %v6575 = vld [vmem:[#allocation12 + $0x7d0] sm:$0xff]
      %v6576 = vld [vmem:[#allocation12 + $0x7d8] sm:$0xff]
      %v6577 = vld [vmem:[#allocation12 + $0x7e0] sm:$0xff]
      %v6578 = vld [vmem:[#allocation12 + $0x7e8] sm:$0xff]
      %v6579 = vld [vmem:[#allocation12 + $0x7f0] sm:$0xff]
      %v6580 = vld [vmem:[#allocation12 + $0x7f8] sm:$0xff]
      %v6581 = vld [vmem:[#allocation12 + $0x800] sm:$0xff]
      %v6582 = vld [vmem:[#allocation12 + $0x808] sm:$0xff]
      %v6583 = vld [vmem:[#allocation12 + $0x810] sm:$0xff]
      %v6584 = vld [vmem:[#allocation12 + $0x818] sm:$0xff]
      %v6585 = vld [vmem:[#allocation12 + $0x820] sm:$0xff]
      %v6586 = vld [vmem:[#allocation12 + $0x828] sm:$0xff]
      %v6587 = vld [vmem:[#allocation12 + $0x830] sm:$0xff]
      %v6588 = vld [vmem:[#allocation12 + $0x838] sm:$0xff]
      %v6589 = vld [vmem:[#allocation12 + $0x840] sm:$0xff]
      %v6590 = vld [vmem:[#allocation12 + $0x848] sm:$0xff]
      %v6591 = vld [vmem:[#allocation12 + $0x850] sm:$0xff]
      %v6592 = vld [vmem:[#allocation12 + $0x858] sm:$0xff]
      %v6593 = vld [vmem:[#allocation12 + $0x860] sm:$0xff]
      %v6594 = vld [vmem:[#allocation12 + $0x868] sm:$0xff]
      %v6595 = vld [vmem:[#allocation12 + $0x870] sm:$0xff]
      %v6596 = vld [vmem:[#allocation12 + $0x878] sm:$0xff]
      %v6597 = vld [vmem:[#allocation12 + $0x880] sm:$0xff]
      %v6598 = vld [vmem:[#allocation12 + $0x888] sm:$0xff]
      %v6599 = vld [vmem:[#allocation12 + $0x890] sm:$0xff]
      %v6600 = vld [vmem:[#allocation12 + $0x898] sm:$0xff]
      %v6601 = vld [vmem:[#allocation12 + $0x8a0] sm:$0xff]
      %v6602 = vld [vmem:[#allocation12 + $0x8a8] sm:$0xff]
      %v6603 = vld [vmem:[#allocation12 + $0x8b0] sm:$0xff]
      %v6604 = vld [vmem:[#allocation12 + $0x8b8] sm:$0xff]
      %v6605 = vld [vmem:[#allocation12 + $0x8c0] sm:$0xff]
      %v6606 = vld [vmem:[#allocation12 + $0x8c8] sm:$0xff]
      %v6607 = vld [vmem:[#allocation12 + $0x8d0] sm:$0xff]
      %v6608 = vld [vmem:[#allocation12 + $0x8d8] sm:$0xff]
      %v6609 = vld [vmem:[#allocation12 + $0x8e0] sm:$0xff]
      %v6610 = vld [vmem:[#allocation12 + $0x8e8] sm:$0xff]
      %v6611 = vld [vmem:[#allocation12 + $0x8f0] sm:$0xff]
      %v6612 = vld [vmem:[#allocation12 + $0x8f8] sm:$0xff]
      %v6613 = vld [vmem:[#allocation12 + $0x900] sm:$0xff]
      %v6614 = vld [vmem:[#allocation12 + $0x908] sm:$0xff]
      %v6615 = vld [vmem:[#allocation12 + $0x910] sm:$0xff]
      %v6616 = vld [vmem:[#allocation12 + $0x918] sm:$0xff]
      %v6617 = vld [vmem:[#allocation12 + $0x920] sm:$0xff]
      %v6618 = vld [vmem:[#allocation12 + $0x928] sm:$0xff]
      %v6619 = vld [vmem:[#allocation12 + $0x930] sm:$0xff]
      %v6620 = vld [vmem:[#allocation12 + $0x938] sm:$0xff]
      %v6621 = vld [vmem:[#allocation12 + $0x940] sm:$0xff]
      %v6622 = vld [vmem:[#allocation12 + $0x948] sm:$0xff]
      %v6623 = vld [vmem:[#allocation12 + $0x950] sm:$0xff]
      %v6624 = vld [vmem:[#allocation12 + $0x958] sm:$0xff]
      %v6625 = vld [vmem:[#allocation12 + $0x960] sm:$0xff]
      %v6626 = vld [vmem:[#allocation12 + $0x968] sm:$0xff]
      %v6627 = vld [vmem:[#allocation12 + $0x970] sm:$0xff]
      %v6628 = vld [vmem:[#allocation12 + $0x978] sm:$0xff]
      %v6629 = vld [vmem:[#allocation12 + $0x980] sm:$0xff]
      %v6630 = vld [vmem:[#allocation12 + $0x988] sm:$0xff]
      %v6631 = vld [vmem:[#allocation12 + $0x990] sm:$0xff]
      %v6632 = vld [vmem:[#allocation12 + $0x998] sm:$0xff]
      %v6633 = vld [vmem:[#allocation12 + $0x9a0] sm:$0xff]
      %v6634 = vld [vmem:[#allocation12 + $0x9a8] sm:$0xff]
      %v6635 = vld [vmem:[#allocation12 + $0x9b0] sm:$0xff]
      %v6636 = vld [vmem:[#allocation12 + $0x9b8] sm:$0xff]
      %v6637 = vld [vmem:[#allocation12 + $0x9c0] sm:$0xff]
      %v6638 = vld [vmem:[#allocation12 + $0x9c8] sm:$0xff]
      %v6639 = vld [vmem:[#allocation12 + $0x9d0] sm:$0xff]
      %v6640 = vld [vmem:[#allocation12 + $0x9d8] sm:$0xff]
      %v6641 = vld [vmem:[#allocation12 + $0x9e0] sm:$0xff]
      %v6642 = vld [vmem:[#allocation12 + $0x9e8] sm:$0xff]
      %v6643 = vld [vmem:[#allocation12 + $0x9f0] sm:$0xff]
      %v6644 = vld [vmem:[#allocation12 + $0x9f8] sm:$0xff]
      %v6645 = vld [vmem:[#allocation12 + $0xa00] sm:$0xff]
      %v6646 = vld [vmem:[#allocation12 + $0xa08] sm:$0xff]
      %v6647 = vld [vmem:[#allocation12 + $0xa10] sm:$0xff]
      %v6648 = vld [vmem:[#allocation12 + $0xa18] sm:$0xff]
      %v6649 = vld [vmem:[#allocation12 + $0xa20] sm:$0xff]
      %v6650 = vld [vmem:[#allocation12 + $0xa28] sm:$0xff]
      %v6651 = vld [vmem:[#allocation12 + $0xa30] sm:$0xff]
      %v6652 = vld [vmem:[#allocation12 + $0xa38] sm:$0xff]
      %v6653 = vld [vmem:[#allocation12 + $0xa40] sm:$0xff]
      %v6654 = vld [vmem:[#allocation12 + $0xa48] sm:$0xff]
      %v6655 = vld [vmem:[#allocation12 + $0xa50] sm:$0xff]
      %v6656 = vld [vmem:[#allocation12 + $0xa58] sm:$0xff]
      %v6657 = vld [vmem:[#allocation12 + $0xa60] sm:$0xff]
      %v6658 = vld [vmem:[#allocation12 + $0xa68] sm:$0xff]
      %v6659 = vld [vmem:[#allocation12 + $0xa70] sm:$0xff]
      %v6660 = vld [vmem:[#allocation12 + $0xa78] sm:$0xff]
      %v6661 = vld [vmem:[#allocation12 + $0xa80] sm:$0xff]
      %v6662 = vld [vmem:[#allocation12 + $0xa88] sm:$0xff]
      %v6663 = vld [vmem:[#allocation12 + $0xa90] sm:$0xff]
      %v6664 = vld [vmem:[#allocation12 + $0xa98] sm:$0xff]
      %v6665 = vld [vmem:[#allocation12 + $0xaa0] sm:$0xff]
      %v6666 = vld [vmem:[#allocation12 + $0xaa8] sm:$0xff]
      %v6667 = vld [vmem:[#allocation12 + $0xab0] sm:$0xff]
      %v6668 = vld [vmem:[#allocation12 + $0xab8] sm:$0xff]
      %v6669 = vld [vmem:[#allocation12 + $0xac0] sm:$0xff]
      %v6670 = vld [vmem:[#allocation12 + $0xac8] sm:$0xff]
      %v6671 = vld [vmem:[#allocation12 + $0xad0] sm:$0xff]
      %v6672 = vld [vmem:[#allocation12 + $0xad8] sm:$0xff]
      %v6673 = vld [vmem:[#allocation12 + $0xae0] sm:$0xff]
      %v6674 = vld [vmem:[#allocation12 + $0xae8] sm:$0xff]
      %v6675 = vld [vmem:[#allocation12 + $0xaf0] sm:$0xff]
      %v6676 = vld [vmem:[#allocation12 + $0xaf8] sm:$0xff]
      %v6677 = vld [vmem:[#allocation12 + $0xb00] sm:$0xff]
      %v6678 = vld [vmem:[#allocation12 + $0xb08] sm:$0xff]
      %v6679 = vld [vmem:[#allocation12 + $0xb10] sm:$0xff]
      %v6680 = vld [vmem:[#allocation12 + $0xb18] sm:$0xff]
      %v6681 = vld [vmem:[#allocation12 + $0xb20] sm:$0xff]
      %v6682 = vld [vmem:[#allocation12 + $0xb28] sm:$0xff]
      %v6683 = vld [vmem:[#allocation12 + $0xb30] sm:$0xff]
      %v6684 = vld [vmem:[#allocation12 + $0xb38] sm:$0xff]
      %v6685 = vld [vmem:[#allocation12 + $0xb40] sm:$0xff]
      %v6686 = vld [vmem:[#allocation12 + $0xb48] sm:$0xff]
      %v6687 = vld [vmem:[#allocation12 + $0xb50] sm:$0xff]
      %v6688 = vld [vmem:[#allocation12 + $0xb58] sm:$0xff]
      %v6689 = vld [vmem:[#allocation12 + $0xb60] sm:$0xff]
      %v6690 = vld [vmem:[#allocation12 + $0xb68] sm:$0xff]
      %v6691 = vld [vmem:[#allocation12 + $0xb70] sm:$0xff]
      %v6692 = vld [vmem:[#allocation12 + $0xb78] sm:$0xff]
      %v6693 = vld [vmem:[#allocation12 + $0xb80] sm:$0xff]
      %v6694 = vld [vmem:[#allocation12 + $0xb88] sm:$0xff]
      %v6695 = vld [vmem:[#allocation12 + $0xb90] sm:$0xff]
      %v6696 = vld [vmem:[#allocation12 + $0xb98] sm:$0xff]
      %v6697 = vld [vmem:[#allocation12 + $0xba0] sm:$0xff]
      %v6698 = vld [vmem:[#allocation12 + $0xba8] sm:$0xff]
      %v6699 = vld [vmem:[#allocation12 + $0xbb0] sm:$0xff]
      %v6700 = vld [vmem:[#allocation12 + $0xbb8] sm:$0xff]
      %v6701 = vld [vmem:[#allocation12 + $0xbc0] sm:$0xff]
      %v6702 = vld [vmem:[#allocation12 + $0xbc8] sm:$0xff]
      %v6703 = vld [vmem:[#allocation12 + $0xbd0] sm:$0xff]
      %v6704 = vld [vmem:[#allocation12 + $0xbd8] sm:$0xff]
      %v6705 = vld [vmem:[#allocation12 + $0xbe0] sm:$0xff]
      %v6706 = vld [vmem:[#allocation12 + $0xbe8] sm:$0xff]
      %v6707 = vld [vmem:[#allocation12 + $0xbf0] sm:$0xff]
      %v6708 = vld [vmem:[#allocation12 + $0xbf8] sm:$0xff]
      %v6709 = vld [vmem:[#allocation12 + $0xc00] sm:$0xff]
      %v6710 = vld [vmem:[#allocation12 + $0xc08] sm:$0xff]
      %v6711 = vld [vmem:[#allocation12 + $0xc10] sm:$0xff]
      %v6712 = vld [vmem:[#allocation12 + $0xc18] sm:$0xff]
      %v6713 = vld [vmem:[#allocation12 + $0xc20] sm:$0xff]
      %v6714 = vld [vmem:[#allocation12 + $0xc28] sm:$0xff]
      %v6715 = vld [vmem:[#allocation12 + $0xc30] sm:$0xff]
      %v6716 = vld [vmem:[#allocation12 + $0xc38] sm:$0xff]
      %v6717 = vld [vmem:[#allocation12 + $0xc40] sm:$0xff]
      %v6718 = vld [vmem:[#allocation12 + $0xc48] sm:$0xff]
      %v6719 = vld [vmem:[#allocation12 + $0xc50] sm:$0xff]
      %v6720 = vld [vmem:[#allocation12 + $0xc58] sm:$0xff]
      %v6721 = vld [vmem:[#allocation12 + $0xc60] sm:$0xff]
      %v6722 = vld [vmem:[#allocation12 + $0xc68] sm:$0xff]
      %v6723 = vld [vmem:[#allocation12 + $0xc70] sm:$0xff]
      %v6724 = vld [vmem:[#allocation12 + $0xc78] sm:$0xff]
      %v6725 = vld [vmem:[#allocation12 + $0xc80] sm:$0xff]
      %v6726 = vld [vmem:[#allocation12 + $0xc88] sm:$0xff]
      %v6727 = vld [vmem:[#allocation12 + $0xc90] sm:$0xff]
      %v6728 = vld [vmem:[#allocation12 + $0xc98] sm:$0xff]
      %v6729 = vld [vmem:[#allocation12 + $0xca0] sm:$0xff]
      %v6730 = vld [vmem:[#allocation12 + $0xca8] sm:$0xff]
      %v6731 = vld [vmem:[#allocation12 + $0xcb0] sm:$0xff]
      %v6732 = vld [vmem:[#allocation12 + $0xcb8] sm:$0xff]
      %v6733 = vld [vmem:[#allocation12 + $0xcc0] sm:$0xff]
      %v6734 = vld [vmem:[#allocation12 + $0xcc8] sm:$0xff]
      %v6735 = vld [vmem:[#allocation12 + $0xcd0] sm:$0xff]
      %v6736 = vld [vmem:[#allocation12 + $0xcd8] sm:$0xff]
      %v6737 = vld [vmem:[#allocation12 + $0xce0] sm:$0xff]
      %v6738 = vld [vmem:[#allocation12 + $0xce8] sm:$0xff]
      %v6739 = vld [vmem:[#allocation12 + $0xcf0] sm:$0xff]
      %v6740 = vld [vmem:[#allocation12 + $0xcf8] sm:$0xff]
      %v6741 = vld [vmem:[#allocation12 + $0xd00] sm:$0xff]
      %v6742 = vld [vmem:[#allocation12 + $0xd08] sm:$0xff]
      %v6743 = vld [vmem:[#allocation12 + $0xd10] sm:$0xff]
      %v6744 = vld [vmem:[#allocation12 + $0xd18] sm:$0xff]
      %v6745 = vld [vmem:[#allocation12 + $0xd20] sm:$0xff]
      %v6746 = vld [vmem:[#allocation12 + $0xd28] sm:$0xff]
      %v6747 = vld [vmem:[#allocation12 + $0xd30] sm:$0xff]
      %v6748 = vld [vmem:[#allocation12 + $0xd38] sm:$0xff]
      %v6749 = vld [vmem:[#allocation12 + $0xd40] sm:$0xff]
      %v6750 = vld [vmem:[#allocation12 + $0xd48] sm:$0xff]
      %v6751 = vld [vmem:[#allocation12 + $0xd50] sm:$0xff]
      %v6752 = vld [vmem:[#allocation12 + $0xd58] sm:$0xff]
      %v6753 = vld [vmem:[#allocation12 + $0xd60] sm:$0xff]
      %v6754 = vld [vmem:[#allocation12 + $0xd68] sm:$0xff]
      %v6755 = vld [vmem:[#allocation12 + $0xd70] sm:$0xff]
      %v6756 = vld [vmem:[#allocation12 + $0xd78] sm:$0xff]
      %v6757 = vld [vmem:[#allocation12 + $0xd80] sm:$0xff]
      %v6758 = vld [vmem:[#allocation12 + $0xd88] sm:$0xff]
      %v6759 = vld [vmem:[#allocation12 + $0xd90] sm:$0xff]
      %v6760 = vld [vmem:[#allocation12 + $0xd98] sm:$0xff]
      %v6761 = vld [vmem:[#allocation12 + $0xda0] sm:$0xff]
      %v6762 = vld [vmem:[#allocation12 + $0xda8] sm:$0xff]
      %v6763 = vld [vmem:[#allocation12 + $0xdb0] sm:$0xff]
      %v6764 = vld [vmem:[#allocation12 + $0xdb8] sm:$0xff]
      %v6765 = vld [vmem:[#allocation12 + $0xdc0] sm:$0xff]
      %v6766 = vld [vmem:[#allocation12 + $0xdc8] sm:$0xff]
      %v6767 = vld [vmem:[#allocation12 + $0xdd0] sm:$0xff]
      %v6768 = vld [vmem:[#allocation12 + $0xdd8] sm:$0xff]
      %v6769 = vld [vmem:[#allocation12 + $0xde0] sm:$0xff]
      %v6770 = vld [vmem:[#allocation12 + $0xde8] sm:$0xff]
      %v6771 = vld [vmem:[#allocation12 + $0xdf0] sm:$0xff]
      %v6772 = vld [vmem:[#allocation12 + $0xdf8] sm:$0xff]
      %v6773 = vld [vmem:[#allocation12 + $0xe00] sm:$0xff]
      %v6774 = vld [vmem:[#allocation12 + $0xe08] sm:$0xff]
      %v6775 = vld [vmem:[#allocation12 + $0xe10] sm:$0xff]
      %v6776 = vld [vmem:[#allocation12 + $0xe18] sm:$0xff]
      %v6777 = vld [vmem:[#allocation12 + $0xe20] sm:$0xff]
      %v6778 = vld [vmem:[#allocation12 + $0xe28] sm:$0xff]
      %v6779 = vld [vmem:[#allocation12 + $0xe30] sm:$0xff]
      %v6780 = vld [vmem:[#allocation12 + $0xe38] sm:$0xff]
      %v6781 = vld [vmem:[#allocation12 + $0xe40] sm:$0xff]
      %v6782 = vld [vmem:[#allocation12 + $0xe48] sm:$0xff]
      %v6783 = vld [vmem:[#allocation12 + $0xe50] sm:$0xff]
      %v6784 = vld [vmem:[#allocation12 + $0xe58] sm:$0xff]
      %v6785 = vld [vmem:[#allocation12 + $0xe60] sm:$0xff]
      %v6786 = vld [vmem:[#allocation12 + $0xe68] sm:$0xff]
      %v6787 = vld [vmem:[#allocation12 + $0xe70] sm:$0xff]
      %v6788 = vld [vmem:[#allocation12 + $0xe78] sm:$0xff]
      %v6789 = vld [vmem:[#allocation12 + $0xe80] sm:$0xff]
      %v6790 = vld [vmem:[#allocation12 + $0xe88] sm:$0xff]
      %v6791 = vld [vmem:[#allocation12 + $0xe90] sm:$0xff]
      %v6792 = vld [vmem:[#allocation12 + $0xe98] sm:$0xff]
      %v6793 = vld [vmem:[#allocation12 + $0xea0] sm:$0xff]
      %v6794 = vld [vmem:[#allocation12 + $0xea8] sm:$0xff]
      %v6795 = vld [vmem:[#allocation12 + $0xeb0] sm:$0xff]
      %v6796 = vld [vmem:[#allocation12 + $0xeb8] sm:$0xff]
      %v6797 = vld [vmem:[#allocation12 + $0xec0] sm:$0xff]
      %v6798 = vld [vmem:[#allocation12 + $0xec8] sm:$0xff]
      %v6799 = vld [vmem:[#allocation12 + $0xed0] sm:$0xff]
      %v6800 = vld [vmem:[#allocation12 + $0xed8] sm:$0xff]
      %v6801 = vld [vmem:[#allocation12 + $0xee0] sm:$0xff]
      %v6802 = vld [vmem:[#allocation12 + $0xee8] sm:$0xff]
      %v6803 = vld [vmem:[#allocation12 + $0xef0] sm:$0xff]
      %v6804 = vld [vmem:[#allocation12 + $0xef8] sm:$0xff]
      %v6805 = vld [vmem:[#allocation12 + $0xf00] sm:$0xff]
      %v6806 = vld [vmem:[#allocation12 + $0xf08] sm:$0xff]
      %v6807 = vld [vmem:[#allocation12 + $0xf10] sm:$0xff]
      %v6808 = vld [vmem:[#allocation12 + $0xf18] sm:$0xff]
      %v6809 = vld [vmem:[#allocation12 + $0xf20] sm:$0xff]
      %v6810 = vld [vmem:[#allocation12 + $0xf28] sm:$0xff]
      %v6811 = vld [vmem:[#allocation12 + $0xf30] sm:$0xff]
      %v6812 = vld [vmem:[#allocation12 + $0xf38] sm:$0xff]
      %v6813 = vld [vmem:[#allocation12 + $0xf40] sm:$0xff]
      %v6814 = vld [vmem:[#allocation12 + $0xf48] sm:$0xff]
      %v6815 = vld [vmem:[#allocation12 + $0xf50] sm:$0xff]
      %v6816 = vld [vmem:[#allocation12 + $0xf58] sm:$0xff]
      %v6817 = vld [vmem:[#allocation12 + $0xf60] sm:$0xff]
      %v6818 = vld [vmem:[#allocation12 + $0xf68] sm:$0xff]
      %v6819 = vld [vmem:[#allocation12 + $0xf70] sm:$0xff]
      %v6820 = vld [vmem:[#allocation12 + $0xf78] sm:$0xff]
      %v6821 = vld [vmem:[#allocation12 + $0xf80] sm:$0xff]
      %v6822 = vld [vmem:[#allocation12 + $0xf88] sm:$0xff]
      %v6823 = vld [vmem:[#allocation12 + $0xf90] sm:$0xff]
      %v6824 = vld [vmem:[#allocation12 + $0xf98] sm:$0xff]
      %v6825 = vld [vmem:[#allocation12 + $0xfa0] sm:$0xff]
      %v6826 = vld [vmem:[#allocation12 + $0xfa8] sm:$0xff]
      %v6827 = vld [vmem:[#allocation12 + $0xfb0] sm:$0xff]
      %v6828 = vld [vmem:[#allocation12 + $0xfb8] sm:$0xff]
      %v6829 = vld [vmem:[#allocation12 + $0xfc0] sm:$0xff]
      %v6830 = vld [vmem:[#allocation12 + $0xfc8] sm:$0xff]
      %v6831 = vld [vmem:[#allocation12 + $0xfd0] sm:$0xff]
      %v6832 = vld [vmem:[#allocation12 + $0xfd8] sm:$0xff]
      %v6833 = vld [vmem:[#allocation12 + $0xfe0] sm:$0xff]
      %v6834 = vld [vmem:[#allocation12 + $0xfe8] sm:$0xff]
      %v6835 = vld [vmem:[#allocation12 + $0xff0] sm:$0xff]
      %v6836 = vld [vmem:[#allocation12 + $0xff8] sm:$0xff]
      %v6837 = vld [vmem:[#allocation13] sm:$0xf]
      %v6839 = vperm.slane %v6837, 0
      %v6840 = vperm.slane %v6837, 1
      %v6841 = vperm.slane %v6837, 2
      %v6842 = vperm.slane %v6837, 3
      %v7359 = vunpack.c.l.b16 %v6325
      %v7360 = vunpack.c.h.b16 %v6325
      %v7361 = vunpack.c.l.b16 %v6326
      %v7362 = vunpack.c.h.b16 %v6326
      %v7363 = vunpack.c.l.b16 %v6327
      %v7364 = vunpack.c.h.b16 %v6327
      %v7365 = vunpack.c.l.b16 %v6328
      %v7366 = vunpack.c.h.b16 %v6328
      %v7367 = vunpack.c.l.b16 %v6329
      %v7368 = vunpack.c.h.b16 %v6329
      %v7369 = vunpack.c.l.b16 %v6330
      %v7370 = vunpack.c.h.b16 %v6330
      %v7371 = vunpack.c.l.b16 %v6331
      %v7372 = vunpack.c.h.b16 %v6331
      %v7373 = vunpack.c.l.b16 %v6332
      %v7374 = vunpack.c.h.b16 %v6332
      %v7375 = vunpack.c.l.b16 %v6333
      %v7376 = vunpack.c.h.b16 %v6333
      %v7377 = vunpack.c.l.b16 %v6334
      %v7378 = vunpack.c.h.b16 %v6334
      %v7379 = vunpack.c.l.b16 %v6335
      %v7380 = vunpack.c.h.b16 %v6335
      %v7381 = vunpack.c.l.b16 %v6336
      %v7382 = vunpack.c.h.b16 %v6336
      %v7383 = vunpack.c.l.b16 %v6337
      %v7384 = vunpack.c.h.b16 %v6337
      %v7385 = vunpack.c.l.b16 %v6338
      %v7386 = vunpack.c.h.b16 %v6338
      %v7387 = vunpack.c.l.b16 %v6339
      %v7388 = vunpack.c.h.b16 %v6339
      %v7389 = vunpack.c.l.b16 %v6340
      %v7390 = vunpack.c.h.b16 %v6340
      %v7391 = vunpack.c.l.b16 %v6341
      %v7392 = vunpack.c.h.b16 %v6341
      %v7393 = vunpack.c.l.b16 %v6342
      %v7394 = vunpack.c.h.b16 %v6342
      %v7395 = vunpack.c.l.b16 %v6343
      %v7396 = vunpack.c.h.b16 %v6343
      %v7397 = vunpack.c.l.b16 %v6344
      %v7398 = vunpack.c.h.b16 %v6344
      %v7399 = vunpack.c.l.b16 %v6345
      %v7400 = vunpack.c.h.b16 %v6345
      %v7401 = vunpack.c.l.b16 %v6346
      %v7402 = vunpack.c.h.b16 %v6346
      %v7403 = vunpack.c.l.b16 %v6347
      %v7404 = vunpack.c.h.b16 %v6347
      %v7405 = vunpack.c.l.b16 %v6348
      %v7406 = vunpack.c.h.b16 %v6348
      %v7407 = vunpack.c.l.b16 %v6349
      %v7408 = vunpack.c.h.b16 %v6349
      %v7409 = vunpack.c.l.b16 %v6350
      %v7410 = vunpack.c.h.b16 %v6350
      %v7411 = vunpack.c.l.b16 %v6351
      %v7412 = vunpack.c.h.b16 %v6351
      %v7413 = vunpack.c.l.b16 %v6352
      %v7414 = vunpack.c.h.b16 %v6352
      %v7415 = vunpack.c.l.b16 %v6353
      %v7416 = vunpack.c.h.b16 %v6353
      %v7417 = vunpack.c.l.b16 %v6354
      %v7418 = vunpack.c.h.b16 %v6354
      %v7419 = vunpack.c.l.b16 %v6355
      %v7420 = vunpack.c.h.b16 %v6355
      %v7421 = vunpack.c.l.b16 %v6356
      %v7422 = vunpack.c.h.b16 %v6356
      %v7423 = vunpack.c.l.b16 %v6357
      %v7424 = vunpack.c.h.b16 %v6357
      %v7425 = vunpack.c.l.b16 %v6358
      %v7426 = vunpack.c.h.b16 %v6358
      %v7427 = vunpack.c.l.b16 %v6359
      %v7428 = vunpack.c.h.b16 %v6359
      %v7429 = vunpack.c.l.b16 %v6360
      %v7430 = vunpack.c.h.b16 %v6360
      %v7431 = vunpack.c.l.b16 %v6361
      %v7432 = vunpack.c.h.b16 %v6361
      %v7433 = vunpack.c.l.b16 %v6362
      %v7434 = vunpack.c.h.b16 %v6362
      %v7435 = vunpack.c.l.b16 %v6363
      %v7436 = vunpack.c.h.b16 %v6363
      %v7437 = vunpack.c.l.b16 %v6364
      %v7438 = vunpack.c.h.b16 %v6364
      %v7439 = vunpack.c.l.b16 %v6365
      %v7440 = vunpack.c.h.b16 %v6365
      %v7441 = vunpack.c.l.b16 %v6366
      %v7442 = vunpack.c.h.b16 %v6366
      %v7443 = vunpack.c.l.b16 %v6367
      %v7444 = vunpack.c.h.b16 %v6367
      %v7445 = vunpack.c.l.b16 %v6368
      %v7446 = vunpack.c.h.b16 %v6368
      %v7447 = vunpack.c.l.b16 %v6369
      %v7448 = vunpack.c.h.b16 %v6369
      %v7449 = vunpack.c.l.b16 %v6370
      %v7450 = vunpack.c.h.b16 %v6370
      %v7451 = vunpack.c.l.b16 %v6371
      %v7452 = vunpack.c.h.b16 %v6371
      %v7453 = vunpack.c.l.b16 %v6372
      %v7454 = vunpack.c.h.b16 %v6372
      %v7455 = vunpack.c.l.b16 %v6373
      %v7456 = vunpack.c.h.b16 %v6373
      %v7457 = vunpack.c.l.b16 %v6374
      %v7458 = vunpack.c.h.b16 %v6374
      %v7459 = vunpack.c.l.b16 %v6375
      %v7460 = vunpack.c.h.b16 %v6375
      %v7461 = vunpack.c.l.b16 %v6376
      %v7462 = vunpack.c.h.b16 %v6376
      %v7463 = vunpack.c.l.b16 %v6377
      %v7464 = vunpack.c.h.b16 %v6377
      %v7465 = vunpack.c.l.b16 %v6378
      %v7466 = vunpack.c.h.b16 %v6378
      %v7467 = vunpack.c.l.b16 %v6379
      %v7468 = vunpack.c.h.b16 %v6379
      %v7469 = vunpack.c.l.b16 %v6380
      %v7470 = vunpack.c.h.b16 %v6380
      %v7471 = vunpack.c.l.b16 %v6381
      %v7472 = vunpack.c.h.b16 %v6381
      %v7473 = vunpack.c.l.b16 %v6382
      %v7474 = vunpack.c.h.b16 %v6382
      %v7475 = vunpack.c.l.b16 %v6383
      %v7476 = vunpack.c.h.b16 %v6383
      %v7477 = vunpack.c.l.b16 %v6384
      %v7478 = vunpack.c.h.b16 %v6384
      %v7479 = vunpack.c.l.b16 %v6385
      %v7480 = vunpack.c.h.b16 %v6385
      %v7481 = vunpack.c.l.b16 %v6386
      %v7482 = vunpack.c.h.b16 %v6386
      %v7483 = vunpack.c.l.b16 %v6387
      %v7484 = vunpack.c.h.b16 %v6387
      %v7485 = vunpack.c.l.b16 %v6388
      %v7486 = vunpack.c.h.b16 %v6388
      %v7487 = vunpack.c.l.b16 %v6389
      %v7488 = vunpack.c.h.b16 %v6389
      %v7489 = vunpack.c.l.b16 %v6390
      %v7490 = vunpack.c.h.b16 %v6390
      %v7491 = vunpack.c.l.b16 %v6391
      %v7492 = vunpack.c.h.b16 %v6391
      %v7493 = vunpack.c.l.b16 %v6392
      %v7494 = vunpack.c.h.b16 %v6392
      %v7495 = vunpack.c.l.b16 %v6393
      %v7496 = vunpack.c.h.b16 %v6393
      %v7497 = vunpack.c.l.b16 %v6394
      %v7498 = vunpack.c.h.b16 %v6394
      %v7499 = vunpack.c.l.b16 %v6395
      %v7500 = vunpack.c.h.b16 %v6395
      %v7501 = vunpack.c.l.b16 %v6396
      %v7502 = vunpack.c.h.b16 %v6396
      %v7503 = vunpack.c.l.b16 %v6397
      %v7504 = vunpack.c.h.b16 %v6397
      %v7505 = vunpack.c.l.b16 %v6398
      %v7506 = vunpack.c.h.b16 %v6398
      %v7507 = vunpack.c.l.b16 %v6399
      %v7508 = vunpack.c.h.b16 %v6399
      %v7509 = vunpack.c.l.b16 %v6400
      %v7510 = vunpack.c.h.b16 %v6400
      %v7511 = vunpack.c.l.b16 %v6401
      %v7512 = vunpack.c.h.b16 %v6401
      %v7513 = vunpack.c.l.b16 %v6402
      %v7514 = vunpack.c.h.b16 %v6402
      %v7515 = vunpack.c.l.b16 %v6403
      %v7516 = vunpack.c.h.b16 %v6403
      %v7517 = vunpack.c.l.b16 %v6404
      %v7518 = vunpack.c.h.b16 %v6404
      %v7519 = vunpack.c.l.b16 %v6405
      %v7520 = vunpack.c.h.b16 %v6405
      %v7521 = vunpack.c.l.b16 %v6406
      %v7522 = vunpack.c.h.b16 %v6406
      %v7523 = vunpack.c.l.b16 %v6407
      %v7524 = vunpack.c.h.b16 %v6407
      %v7525 = vunpack.c.l.b16 %v6408
      %v7526 = vunpack.c.h.b16 %v6408
      %v7527 = vunpack.c.l.b16 %v6409
      %v7528 = vunpack.c.h.b16 %v6409
      %v7529 = vunpack.c.l.b16 %v6410
      %v7530 = vunpack.c.h.b16 %v6410
      %v7531 = vunpack.c.l.b16 %v6411
      %v7532 = vunpack.c.h.b16 %v6411
      %v7533 = vunpack.c.l.b16 %v6412
      %v7534 = vunpack.c.h.b16 %v6412
      %v7535 = vunpack.c.l.b16 %v6413
      %v7536 = vunpack.c.h.b16 %v6413
      %v7537 = vunpack.c.l.b16 %v6414
      %v7538 = vunpack.c.h.b16 %v6414
      %v7539 = vunpack.c.l.b16 %v6415
      %v7540 = vunpack.c.h.b16 %v6415
      %v7541 = vunpack.c.l.b16 %v6416
      %v7542 = vunpack.c.h.b16 %v6416
      %v7543 = vunpack.c.l.b16 %v6417
      %v7544 = vunpack.c.h.b16 %v6417
      %v7545 = vunpack.c.l.b16 %v6418
      %v7546 = vunpack.c.h.b16 %v6418
      %v7547 = vunpack.c.l.b16 %v6419
      %v7548 = vunpack.c.h.b16 %v6419
      %v7549 = vunpack.c.l.b16 %v6420
      %v7550 = vunpack.c.h.b16 %v6420
      %v7551 = vunpack.c.l.b16 %v6421
      %v7552 = vunpack.c.h.b16 %v6421
      %v7553 = vunpack.c.l.b16 %v6422
      %v7554 = vunpack.c.h.b16 %v6422
      %v7555 = vunpack.c.l.b16 %v6423
      %v7556 = vunpack.c.h.b16 %v6423
      %v7557 = vunpack.c.l.b16 %v6424
      %v7558 = vunpack.c.h.b16 %v6424
      %v7559 = vunpack.c.l.b16 %v6425
      %v7560 = vunpack.c.h.b16 %v6425
      %v7561 = vunpack.c.l.b16 %v6426
      %v7562 = vunpack.c.h.b16 %v6426
      %v7563 = vunpack.c.l.b16 %v6427
      %v7564 = vunpack.c.h.b16 %v6427
      %v7565 = vunpack.c.l.b16 %v6428
      %v7566 = vunpack.c.h.b16 %v6428
      %v7567 = vunpack.c.l.b16 %v6429
      %v7568 = vunpack.c.h.b16 %v6429
      %v7569 = vunpack.c.l.b16 %v6430
      %v7570 = vunpack.c.h.b16 %v6430
      %v7571 = vunpack.c.l.b16 %v6431
      %v7572 = vunpack.c.h.b16 %v6431
      %v7573 = vunpack.c.l.b16 %v6432
      %v7574 = vunpack.c.h.b16 %v6432
      %v7575 = vunpack.c.l.b16 %v6433
      %v7576 = vunpack.c.h.b16 %v6433
      %v7577 = vunpack.c.l.b16 %v6434
      %v7578 = vunpack.c.h.b16 %v6434
      %v7579 = vunpack.c.l.b16 %v6435
      %v7580 = vunpack.c.h.b16 %v6435
      %v7581 = vunpack.c.l.b16 %v6436
      %v7582 = vunpack.c.h.b16 %v6436
      %v7583 = vunpack.c.l.b16 %v6437
      %v7584 = vunpack.c.h.b16 %v6437
      %v7585 = vunpack.c.l.b16 %v6438
      %v7586 = vunpack.c.h.b16 %v6438
      %v7587 = vunpack.c.l.b16 %v6439
      %v7588 = vunpack.c.h.b16 %v6439
      %v7589 = vunpack.c.l.b16 %v6440
      %v7590 = vunpack.c.h.b16 %v6440
      %v7591 = vunpack.c.l.b16 %v6441
      %v7592 = vunpack.c.h.b16 %v6441
      %v7593 = vunpack.c.l.b16 %v6442
      %v7594 = vunpack.c.h.b16 %v6442
      %v7595 = vunpack.c.l.b16 %v6443
      %v7596 = vunpack.c.h.b16 %v6443
      %v7597 = vunpack.c.l.b16 %v6444
      %v7598 = vunpack.c.h.b16 %v6444
      %v7599 = vunpack.c.l.b16 %v6445
      %v7600 = vunpack.c.h.b16 %v6445
      %v7601 = vunpack.c.l.b16 %v6446
      %v7602 = vunpack.c.h.b16 %v6446
      %v7603 = vunpack.c.l.b16 %v6447
      %v7604 = vunpack.c.h.b16 %v6447
      %v7605 = vunpack.c.l.b16 %v6448
      %v7606 = vunpack.c.h.b16 %v6448
      %v7607 = vunpack.c.l.b16 %v6449
      %v7608 = vunpack.c.h.b16 %v6449
      %v7609 = vunpack.c.l.b16 %v6450
      %v7610 = vunpack.c.h.b16 %v6450
      %v7611 = vunpack.c.l.b16 %v6451
      %v7612 = vunpack.c.h.b16 %v6451
      %v7613 = vunpack.c.l.b16 %v6452
      %v7614 = vunpack.c.h.b16 %v6452
      %v7615 = vunpack.c.l.b16 %v6453
      %v7616 = vunpack.c.h.b16 %v6453
      %v7617 = vunpack.c.l.b16 %v6454
      %v7618 = vunpack.c.h.b16 %v6454
      %v7619 = vunpack.c.l.b16 %v6455
      %v7620 = vunpack.c.h.b16 %v6455
      %v7621 = vunpack.c.l.b16 %v6456
      %v7622 = vunpack.c.h.b16 %v6456
      %v7623 = vunpack.c.l.b16 %v6457
      %v7624 = vunpack.c.h.b16 %v6457
      %v7625 = vunpack.c.l.b16 %v6458
      %v7626 = vunpack.c.h.b16 %v6458
      %v7627 = vunpack.c.l.b16 %v6459
      %v7628 = vunpack.c.h.b16 %v6459
      %v7629 = vunpack.c.l.b16 %v6460
      %v7630 = vunpack.c.h.b16 %v6460
      %v7631 = vunpack.c.l.b16 %v6461
      %v7632 = vunpack.c.h.b16 %v6461
      %v7633 = vunpack.c.l.b16 %v6462
      %v7634 = vunpack.c.h.b16 %v6462
      %v7635 = vunpack.c.l.b16 %v6463
      %v7636 = vunpack.c.h.b16 %v6463
      %v7637 = vunpack.c.l.b16 %v6464
      %v7638 = vunpack.c.h.b16 %v6464
      %v7639 = vunpack.c.l.b16 %v6465
      %v7640 = vunpack.c.h.b16 %v6465
      %v7641 = vunpack.c.l.b16 %v6466
      %v7642 = vunpack.c.h.b16 %v6466
      %v7643 = vunpack.c.l.b16 %v6467
      %v7644 = vunpack.c.h.b16 %v6467
      %v7645 = vunpack.c.l.b16 %v6468
      %v7646 = vunpack.c.h.b16 %v6468
      %v7647 = vunpack.c.l.b16 %v6469
      %v7648 = vunpack.c.h.b16 %v6469
      %v7649 = vunpack.c.l.b16 %v6470
      %v7650 = vunpack.c.h.b16 %v6470
      %v7651 = vunpack.c.l.b16 %v6471
      %v7652 = vunpack.c.h.b16 %v6471
      %v7653 = vunpack.c.l.b16 %v6472
      %v7654 = vunpack.c.h.b16 %v6472
      %v7655 = vunpack.c.l.b16 %v6473
      %v7656 = vunpack.c.h.b16 %v6473
      %v7657 = vunpack.c.l.b16 %v6474
      %v7658 = vunpack.c.h.b16 %v6474
      %v7659 = vunpack.c.l.b16 %v6475
      %v7660 = vunpack.c.h.b16 %v6475
      %v7661 = vunpack.c.l.b16 %v6476
      %v7662 = vunpack.c.h.b16 %v6476
      %v7663 = vunpack.c.l.b16 %v6477
      %v7664 = vunpack.c.h.b16 %v6477
      %v7665 = vunpack.c.l.b16 %v6478
      %v7666 = vunpack.c.h.b16 %v6478
      %v7667 = vunpack.c.l.b16 %v6479
      %v7668 = vunpack.c.h.b16 %v6479
      %v7669 = vunpack.c.l.b16 %v6480
      %v7670 = vunpack.c.h.b16 %v6480
      %v7671 = vunpack.c.l.b16 %v6481
      %v7672 = vunpack.c.h.b16 %v6481
      %v7673 = vunpack.c.l.b16 %v6482
      %v7674 = vunpack.c.h.b16 %v6482
      %v7675 = vunpack.c.l.b16 %v6483
      %v7676 = vunpack.c.h.b16 %v6483
      %v7677 = vunpack.c.l.b16 %v6484
      %v7678 = vunpack.c.h.b16 %v6484
      %v7679 = vunpack.c.l.b16 %v6485
      %v7680 = vunpack.c.h.b16 %v6485
      %v7681 = vunpack.c.l.b16 %v6486
      %v7682 = vunpack.c.h.b16 %v6486
      %v7683 = vunpack.c.l.b16 %v6487
      %v7684 = vunpack.c.h.b16 %v6487
      %v7685 = vunpack.c.l.b16 %v6488
      %v7686 = vunpack.c.h.b16 %v6488
      %v7687 = vunpack.c.l.b16 %v6489
      %v7688 = vunpack.c.h.b16 %v6489
      %v7689 = vunpack.c.l.b16 %v6490
      %v7690 = vunpack.c.h.b16 %v6490
      %v7691 = vunpack.c.l.b16 %v6491
      %v7692 = vunpack.c.h.b16 %v6491
      %v7693 = vunpack.c.l.b16 %v6492
      %v7694 = vunpack.c.h.b16 %v6492
      %v7695 = vunpack.c.l.b16 %v6493
      %v7696 = vunpack.c.h.b16 %v6493
      %v7697 = vunpack.c.l.b16 %v6494
      %v7698 = vunpack.c.h.b16 %v6494
      %v7699 = vunpack.c.l.b16 %v6495
      %v7700 = vunpack.c.h.b16 %v6495
      %v7701 = vunpack.c.l.b16 %v6496
      %v7702 = vunpack.c.h.b16 %v6496
      %v7703 = vunpack.c.l.b16 %v6497
      %v7704 = vunpack.c.h.b16 %v6497
      %v7705 = vunpack.c.l.b16 %v6498
      %v7706 = vunpack.c.h.b16 %v6498
      %v7707 = vunpack.c.l.b16 %v6499
      %v7708 = vunpack.c.h.b16 %v6499
      %v7709 = vunpack.c.l.b16 %v6500
      %v7710 = vunpack.c.h.b16 %v6500
      %v7711 = vunpack.c.l.b16 %v6501
      %v7712 = vunpack.c.h.b16 %v6501
      %v7713 = vunpack.c.l.b16 %v6502
      %v7714 = vunpack.c.h.b16 %v6502
      %v7715 = vunpack.c.l.b16 %v6503
      %v7716 = vunpack.c.h.b16 %v6503
      %v7717 = vunpack.c.l.b16 %v6504
      %v7718 = vunpack.c.h.b16 %v6504
      %v7719 = vunpack.c.l.b16 %v6505
      %v7720 = vunpack.c.h.b16 %v6505
      %v7721 = vunpack.c.l.b16 %v6506
      %v7722 = vunpack.c.h.b16 %v6506
      %v7723 = vunpack.c.l.b16 %v6507
      %v7724 = vunpack.c.h.b16 %v6507
      %v7725 = vunpack.c.l.b16 %v6508
      %v7726 = vunpack.c.h.b16 %v6508
      %v7727 = vunpack.c.l.b16 %v6509
      %v7728 = vunpack.c.h.b16 %v6509
      %v7729 = vunpack.c.l.b16 %v6510
      %v7730 = vunpack.c.h.b16 %v6510
      %v7731 = vunpack.c.l.b16 %v6511
      %v7732 = vunpack.c.h.b16 %v6511
      %v7733 = vunpack.c.l.b16 %v6512
      %v7734 = vunpack.c.h.b16 %v6512
      %v7735 = vunpack.c.l.b16 %v6513
      %v7736 = vunpack.c.h.b16 %v6513
      %v7737 = vunpack.c.l.b16 %v6514
      %v7738 = vunpack.c.h.b16 %v6514
      %v7739 = vunpack.c.l.b16 %v6515
      %v7740 = vunpack.c.h.b16 %v6515
      %v7741 = vunpack.c.l.b16 %v6516
      %v7742 = vunpack.c.h.b16 %v6516
      %v7743 = vunpack.c.l.b16 %v6517
      %v7744 = vunpack.c.h.b16 %v6517
      %v7745 = vunpack.c.l.b16 %v6518
      %v7746 = vunpack.c.h.b16 %v6518
      %v7747 = vunpack.c.l.b16 %v6519
      %v7748 = vunpack.c.h.b16 %v6519
      %v7749 = vunpack.c.l.b16 %v6520
      %v7750 = vunpack.c.h.b16 %v6520
      %v7751 = vunpack.c.l.b16 %v6521
      %v7752 = vunpack.c.h.b16 %v6521
      %v7753 = vunpack.c.l.b16 %v6522
      %v7754 = vunpack.c.h.b16 %v6522
      %v7755 = vunpack.c.l.b16 %v6523
      %v7756 = vunpack.c.h.b16 %v6523
      %v7757 = vunpack.c.l.b16 %v6524
      %v7758 = vunpack.c.h.b16 %v6524
      %v7759 = vunpack.c.l.b16 %v6525
      %v7760 = vunpack.c.h.b16 %v6525
      %v7761 = vunpack.c.l.b16 %v6526
      %v7762 = vunpack.c.h.b16 %v6526
      %v7763 = vunpack.c.l.b16 %v6527
      %v7764 = vunpack.c.h.b16 %v6527
      %v7765 = vunpack.c.l.b16 %v6528
      %v7766 = vunpack.c.h.b16 %v6528
      %v7767 = vunpack.c.l.b16 %v6529
      %v7768 = vunpack.c.h.b16 %v6529
      %v7769 = vunpack.c.l.b16 %v6530
      %v7770 = vunpack.c.h.b16 %v6530
      %v7771 = vunpack.c.l.b16 %v6531
      %v7772 = vunpack.c.h.b16 %v6531
      %v7773 = vunpack.c.l.b16 %v6532
      %v7774 = vunpack.c.h.b16 %v6532
      %v7775 = vunpack.c.l.b16 %v6533
      %v7776 = vunpack.c.h.b16 %v6533
      %v7777 = vunpack.c.l.b16 %v6534
      %v7778 = vunpack.c.h.b16 %v6534
      %v7779 = vunpack.c.l.b16 %v6535
      %v7780 = vunpack.c.h.b16 %v6535
      %v7781 = vunpack.c.l.b16 %v6536
      %v7782 = vunpack.c.h.b16 %v6536
      %v7783 = vunpack.c.l.b16 %v6537
      %v7784 = vunpack.c.h.b16 %v6537
      %v7785 = vunpack.c.l.b16 %v6538
      %v7786 = vunpack.c.h.b16 %v6538
      %v7787 = vunpack.c.l.b16 %v6539
      %v7788 = vunpack.c.h.b16 %v6539
      %v7789 = vunpack.c.l.b16 %v6540
      %v7790 = vunpack.c.h.b16 %v6540
      %v7791 = vunpack.c.l.b16 %v6541
      %v7792 = vunpack.c.h.b16 %v6541
      %v7793 = vunpack.c.l.b16 %v6542
      %v7794 = vunpack.c.h.b16 %v6542
      %v7795 = vunpack.c.l.b16 %v6543
      %v7796 = vunpack.c.h.b16 %v6543
      %v7797 = vunpack.c.l.b16 %v6544
      %v7798 = vunpack.c.h.b16 %v6544
      %v7799 = vunpack.c.l.b16 %v6545
      %v7800 = vunpack.c.h.b16 %v6545
      %v7801 = vunpack.c.l.b16 %v6546
      %v7802 = vunpack.c.h.b16 %v6546
      %v7803 = vunpack.c.l.b16 %v6547
      %v7804 = vunpack.c.h.b16 %v6547
      %v7805 = vunpack.c.l.b16 %v6548
      %v7806 = vunpack.c.h.b16 %v6548
      %v7807 = vunpack.c.l.b16 %v6549
      %v7808 = vunpack.c.h.b16 %v6549
      %v7809 = vunpack.c.l.b16 %v6550
      %v7810 = vunpack.c.h.b16 %v6550
      %v7811 = vunpack.c.l.b16 %v6551
      %v7812 = vunpack.c.h.b16 %v6551
      %v7813 = vunpack.c.l.b16 %v6552
      %v7814 = vunpack.c.h.b16 %v6552
      %v7815 = vunpack.c.l.b16 %v6553
      %v7816 = vunpack.c.h.b16 %v6553
      %v7817 = vunpack.c.l.b16 %v6554
      %v7818 = vunpack.c.h.b16 %v6554
      %v7819 = vunpack.c.l.b16 %v6555
      %v7820 = vunpack.c.h.b16 %v6555
      %v7821 = vunpack.c.l.b16 %v6556
      %v7822 = vunpack.c.h.b16 %v6556
      %v7823 = vunpack.c.l.b16 %v6557
      %v7824 = vunpack.c.h.b16 %v6557
      %v7825 = vunpack.c.l.b16 %v6558
      %v7826 = vunpack.c.h.b16 %v6558
      %v7827 = vunpack.c.l.b16 %v6559
      %v7828 = vunpack.c.h.b16 %v6559
      %v7829 = vunpack.c.l.b16 %v6560
      %v7830 = vunpack.c.h.b16 %v6560
      %v7831 = vunpack.c.l.b16 %v6561
      %v7832 = vunpack.c.h.b16 %v6561
      %v7833 = vunpack.c.l.b16 %v6562
      %v7834 = vunpack.c.h.b16 %v6562
      %v7835 = vunpack.c.l.b16 %v6563
      %v7836 = vunpack.c.h.b16 %v6563
      %v7837 = vunpack.c.l.b16 %v6564
      %v7838 = vunpack.c.h.b16 %v6564
      %v7839 = vunpack.c.l.b16 %v6565
      %v7840 = vunpack.c.h.b16 %v6565
      %v7841 = vunpack.c.l.b16 %v6566
      %v7842 = vunpack.c.h.b16 %v6566
      %v7843 = vunpack.c.l.b16 %v6567
      %v7844 = vunpack.c.h.b16 %v6567
      %v7845 = vunpack.c.l.b16 %v6568
      %v7846 = vunpack.c.h.b16 %v6568
      %v7847 = vunpack.c.l.b16 %v6569
      %v7848 = vunpack.c.h.b16 %v6569
      %v7849 = vunpack.c.l.b16 %v6570
      %v7850 = vunpack.c.h.b16 %v6570
      %v7851 = vunpack.c.l.b16 %v6571
      %v7852 = vunpack.c.h.b16 %v6571
      %v7853 = vunpack.c.l.b16 %v6572
      %v7854 = vunpack.c.h.b16 %v6572
      %v7855 = vunpack.c.l.b16 %v6573
      %v7856 = vunpack.c.h.b16 %v6573
      %v7857 = vunpack.c.l.b16 %v6574
      %v7858 = vunpack.c.h.b16 %v6574
      %v7859 = vunpack.c.l.b16 %v6575
      %v7860 = vunpack.c.h.b16 %v6575
      %v7861 = vunpack.c.l.b16 %v6576
      %v7862 = vunpack.c.h.b16 %v6576
      %v7863 = vunpack.c.l.b16 %v6577
      %v7864 = vunpack.c.h.b16 %v6577
      %v7865 = vunpack.c.l.b16 %v6578
      %v7866 = vunpack.c.h.b16 %v6578
      %v7867 = vunpack.c.l.b16 %v6579
      %v7868 = vunpack.c.h.b16 %v6579
      %v7869 = vunpack.c.l.b16 %v6580
      %v7870 = vunpack.c.h.b16 %v6580
      %v7871 = vunpack.c.l.b16 %v6581
      %v7872 = vunpack.c.h.b16 %v6581
      %v7873 = vunpack.c.l.b16 %v6582
      %v7874 = vunpack.c.h.b16 %v6582
      %v7875 = vunpack.c.l.b16 %v6583
      %v7876 = vunpack.c.h.b16 %v6583
      %v7877 = vunpack.c.l.b16 %v6584
      %v7878 = vunpack.c.h.b16 %v6584
      %v7879 = vunpack.c.l.b16 %v6585
      %v7880 = vunpack.c.h.b16 %v6585
      %v7881 = vunpack.c.l.b16 %v6586
      %v7882 = vunpack.c.h.b16 %v6586
      %v7883 = vunpack.c.l.b16 %v6587
      %v7884 = vunpack.c.h.b16 %v6587
      %v7885 = vunpack.c.l.b16 %v6588
      %v7886 = vunpack.c.h.b16 %v6588
      %v7887 = vunpack.c.l.b16 %v6589
      %v7888 = vunpack.c.h.b16 %v6589
      %v7889 = vunpack.c.l.b16 %v6590
      %v7890 = vunpack.c.h.b16 %v6590
      %v7891 = vunpack.c.l.b16 %v6591
      %v7892 = vunpack.c.h.b16 %v6591
      %v7893 = vunpack.c.l.b16 %v6592
      %v7894 = vunpack.c.h.b16 %v6592
      %v7895 = vunpack.c.l.b16 %v6593
      %v7896 = vunpack.c.h.b16 %v6593
      %v7897 = vunpack.c.l.b16 %v6594
      %v7898 = vunpack.c.h.b16 %v6594
      %v7899 = vunpack.c.l.b16 %v6595
      %v7900 = vunpack.c.h.b16 %v6595
      %v7901 = vunpack.c.l.b16 %v6596
      %v7902 = vunpack.c.h.b16 %v6596
      %v7903 = vunpack.c.l.b16 %v6597
      %v7904 = vunpack.c.h.b16 %v6597
      %v7905 = vunpack.c.l.b16 %v6598
      %v7906 = vunpack.c.h.b16 %v6598
      %v7907 = vunpack.c.l.b16 %v6599
      %v7908 = vunpack.c.h.b16 %v6599
      %v7909 = vunpack.c.l.b16 %v6600
      %v7910 = vunpack.c.h.b16 %v6600
      %v7911 = vunpack.c.l.b16 %v6601
      %v7912 = vunpack.c.h.b16 %v6601
      %v7913 = vunpack.c.l.b16 %v6602
      %v7914 = vunpack.c.h.b16 %v6602
      %v7915 = vunpack.c.l.b16 %v6603
      %v7916 = vunpack.c.h.b16 %v6603
      %v7917 = vunpack.c.l.b16 %v6604
      %v7918 = vunpack.c.h.b16 %v6604
      %v7919 = vunpack.c.l.b16 %v6605
      %v7920 = vunpack.c.h.b16 %v6605
      %v7921 = vunpack.c.l.b16 %v6606
      %v7922 = vunpack.c.h.b16 %v6606
      %v7923 = vunpack.c.l.b16 %v6607
      %v7924 = vunpack.c.h.b16 %v6607
      %v7925 = vunpack.c.l.b16 %v6608
      %v7926 = vunpack.c.h.b16 %v6608
      %v7927 = vunpack.c.l.b16 %v6609
      %v7928 = vunpack.c.h.b16 %v6609
      %v7929 = vunpack.c.l.b16 %v6610
      %v7930 = vunpack.c.h.b16 %v6610
      %v7931 = vunpack.c.l.b16 %v6611
      %v7932 = vunpack.c.h.b16 %v6611
      %v7933 = vunpack.c.l.b16 %v6612
      %v7934 = vunpack.c.h.b16 %v6612
      %v7935 = vunpack.c.l.b16 %v6613
      %v7936 = vunpack.c.h.b16 %v6613
      %v7937 = vunpack.c.l.b16 %v6614
      %v7938 = vunpack.c.h.b16 %v6614
      %v7939 = vunpack.c.l.b16 %v6615
      %v7940 = vunpack.c.h.b16 %v6615
      %v7941 = vunpack.c.l.b16 %v6616
      %v7942 = vunpack.c.h.b16 %v6616
      %v7943 = vunpack.c.l.b16 %v6617
      %v7944 = vunpack.c.h.b16 %v6617
      %v7945 = vunpack.c.l.b16 %v6618
      %v7946 = vunpack.c.h.b16 %v6618
      %v7947 = vunpack.c.l.b16 %v6619
      %v7948 = vunpack.c.h.b16 %v6619
      %v7949 = vunpack.c.l.b16 %v6620
      %v7950 = vunpack.c.h.b16 %v6620
      %v7951 = vunpack.c.l.b16 %v6621
      %v7952 = vunpack.c.h.b16 %v6621
      %v7953 = vunpack.c.l.b16 %v6622
      %v7954 = vunpack.c.h.b16 %v6622
      %v7955 = vunpack.c.l.b16 %v6623
      %v7956 = vunpack.c.h.b16 %v6623
      %v7957 = vunpack.c.l.b16 %v6624
      %v7958 = vunpack.c.h.b16 %v6624
      %v7959 = vunpack.c.l.b16 %v6625
      %v7960 = vunpack.c.h.b16 %v6625
      %v7961 = vunpack.c.l.b16 %v6626
      %v7962 = vunpack.c.h.b16 %v6626
      %v7963 = vunpack.c.l.b16 %v6627
      %v7964 = vunpack.c.h.b16 %v6627
      %v7965 = vunpack.c.l.b16 %v6628
      %v7966 = vunpack.c.h.b16 %v6628
      %v7967 = vunpack.c.l.b16 %v6629
      %v7968 = vunpack.c.h.b16 %v6629
      %v7969 = vunpack.c.l.b16 %v6630
      %v7970 = vunpack.c.h.b16 %v6630
      %v7971 = vunpack.c.l.b16 %v6631
      %v7972 = vunpack.c.h.b16 %v6631
      %v7973 = vunpack.c.l.b16 %v6632
      %v7974 = vunpack.c.h.b16 %v6632
      %v7975 = vunpack.c.l.b16 %v6633
      %v7976 = vunpack.c.h.b16 %v6633
      %v7977 = vunpack.c.l.b16 %v6634
      %v7978 = vunpack.c.h.b16 %v6634
      %v7979 = vunpack.c.l.b16 %v6635
      %v7980 = vunpack.c.h.b16 %v6635
      %v7981 = vunpack.c.l.b16 %v6636
      %v7982 = vunpack.c.h.b16 %v6636
      %v7983 = vunpack.c.l.b16 %v6637
      %v7984 = vunpack.c.h.b16 %v6637
      %v7985 = vunpack.c.l.b16 %v6638
      %v7986 = vunpack.c.h.b16 %v6638
      %v7987 = vunpack.c.l.b16 %v6639
      %v7988 = vunpack.c.h.b16 %v6639
      %v7989 = vunpack.c.l.b16 %v6640
      %v7990 = vunpack.c.h.b16 %v6640
      %v7991 = vunpack.c.l.b16 %v6641
      %v7992 = vunpack.c.h.b16 %v6641
      %v7993 = vunpack.c.l.b16 %v6642
      %v7994 = vunpack.c.h.b16 %v6642
      %v7995 = vunpack.c.l.b16 %v6643
      %v7996 = vunpack.c.h.b16 %v6643
      %v7997 = vunpack.c.l.b16 %v6644
      %v7998 = vunpack.c.h.b16 %v6644
      %v7999 = vunpack.c.l.b16 %v6645
      %v8000 = vunpack.c.h.b16 %v6645
      %v8001 = vunpack.c.l.b16 %v6646
      %v8002 = vunpack.c.h.b16 %v6646
      %v8003 = vunpack.c.l.b16 %v6647
      %v8004 = vunpack.c.h.b16 %v6647
      %v8005 = vunpack.c.l.b16 %v6648
      %v8006 = vunpack.c.h.b16 %v6648
      %v8007 = vunpack.c.l.b16 %v6649
      %v8008 = vunpack.c.h.b16 %v6649
      %v8009 = vunpack.c.l.b16 %v6650
      %v8010 = vunpack.c.h.b16 %v6650
      %v8011 = vunpack.c.l.b16 %v6651
      %v8012 = vunpack.c.h.b16 %v6651
      %v8013 = vunpack.c.l.b16 %v6652
      %v8014 = vunpack.c.h.b16 %v6652
      %v8015 = vunpack.c.l.b16 %v6653
      %v8016 = vunpack.c.h.b16 %v6653
      %v8017 = vunpack.c.l.b16 %v6654
      %v8018 = vunpack.c.h.b16 %v6654
      %v8019 = vunpack.c.l.b16 %v6655
      %v8020 = vunpack.c.h.b16 %v6655
      %v8021 = vunpack.c.l.b16 %v6656
      %v8022 = vunpack.c.h.b16 %v6656
      %v8023 = vunpack.c.l.b16 %v6657
      %v8024 = vunpack.c.h.b16 %v6657
      %v8025 = vunpack.c.l.b16 %v6658
      %v8026 = vunpack.c.h.b16 %v6658
      %v8027 = vunpack.c.l.b16 %v6659
      %v8028 = vunpack.c.h.b16 %v6659
      %v8029 = vunpack.c.l.b16 %v6660
      %v8030 = vunpack.c.h.b16 %v6660
      %v8031 = vunpack.c.l.b16 %v6661
      %v8032 = vunpack.c.h.b16 %v6661
      %v8033 = vunpack.c.l.b16 %v6662
      %v8034 = vunpack.c.h.b16 %v6662
      %v8035 = vunpack.c.l.b16 %v6663
      %v8036 = vunpack.c.h.b16 %v6663
      %v8037 = vunpack.c.l.b16 %v6664
      %v8038 = vunpack.c.h.b16 %v6664
      %v8039 = vunpack.c.l.b16 %v6665
      %v8040 = vunpack.c.h.b16 %v6665
      %v8041 = vunpack.c.l.b16 %v6666
      %v8042 = vunpack.c.h.b16 %v6666
      %v8043 = vunpack.c.l.b16 %v6667
      %v8044 = vunpack.c.h.b16 %v6667
      %v8045 = vunpack.c.l.b16 %v6668
      %v8046 = vunpack.c.h.b16 %v6668
      %v8047 = vunpack.c.l.b16 %v6669
      %v8048 = vunpack.c.h.b16 %v6669
      %v8049 = vunpack.c.l.b16 %v6670
      %v8050 = vunpack.c.h.b16 %v6670
      %v8051 = vunpack.c.l.b16 %v6671
      %v8052 = vunpack.c.h.b16 %v6671
      %v8053 = vunpack.c.l.b16 %v6672
      %v8054 = vunpack.c.h.b16 %v6672
      %v8055 = vunpack.c.l.b16 %v6673
      %v8056 = vunpack.c.h.b16 %v6673
      %v8057 = vunpack.c.l.b16 %v6674
      %v8058 = vunpack.c.h.b16 %v6674
      %v8059 = vunpack.c.l.b16 %v6675
      %v8060 = vunpack.c.h.b16 %v6675
      %v8061 = vunpack.c.l.b16 %v6676
      %v8062 = vunpack.c.h.b16 %v6676
      %v8063 = vunpack.c.l.b16 %v6677
      %v8064 = vunpack.c.h.b16 %v6677
      %v8065 = vunpack.c.l.b16 %v6678
      %v8066 = vunpack.c.h.b16 %v6678
      %v8067 = vunpack.c.l.b16 %v6679
      %v8068 = vunpack.c.h.b16 %v6679
      %v8069 = vunpack.c.l.b16 %v6680
      %v8070 = vunpack.c.h.b16 %v6680
      %v8071 = vunpack.c.l.b16 %v6681
      %v8072 = vunpack.c.h.b16 %v6681
      %v8073 = vunpack.c.l.b16 %v6682
      %v8074 = vunpack.c.h.b16 %v6682
      %v8075 = vunpack.c.l.b16 %v6683
      %v8076 = vunpack.c.h.b16 %v6683
      %v8077 = vunpack.c.l.b16 %v6684
      %v8078 = vunpack.c.h.b16 %v6684
      %v8079 = vunpack.c.l.b16 %v6685
      %v8080 = vunpack.c.h.b16 %v6685
      %v8081 = vunpack.c.l.b16 %v6686
      %v8082 = vunpack.c.h.b16 %v6686
      %v8083 = vunpack.c.l.b16 %v6687
      %v8084 = vunpack.c.h.b16 %v6687
      %v8085 = vunpack.c.l.b16 %v6688
      %v8086 = vunpack.c.h.b16 %v6688
      %v8087 = vunpack.c.l.b16 %v6689
      %v8088 = vunpack.c.h.b16 %v6689
      %v8089 = vunpack.c.l.b16 %v6690
      %v8090 = vunpack.c.h.b16 %v6690
      %v8091 = vunpack.c.l.b16 %v6691
      %v8092 = vunpack.c.h.b16 %v6691
      %v8093 = vunpack.c.l.b16 %v6692
      %v8094 = vunpack.c.h.b16 %v6692
      %v8095 = vunpack.c.l.b16 %v6693
      %v8096 = vunpack.c.h.b16 %v6693
      %v8097 = vunpack.c.l.b16 %v6694
      %v8098 = vunpack.c.h.b16 %v6694
      %v8099 = vunpack.c.l.b16 %v6695
      %v8100 = vunpack.c.h.b16 %v6695
      %v8101 = vunpack.c.l.b16 %v6696
      %v8102 = vunpack.c.h.b16 %v6696
      %v8103 = vunpack.c.l.b16 %v6697
      %v8104 = vunpack.c.h.b16 %v6697
      %v8105 = vunpack.c.l.b16 %v6698
      %v8106 = vunpack.c.h.b16 %v6698
      %v8107 = vunpack.c.l.b16 %v6699
      %v8108 = vunpack.c.h.b16 %v6699
      %v8109 = vunpack.c.l.b16 %v6700
      %v8110 = vunpack.c.h.b16 %v6700
      %v8111 = vunpack.c.l.b16 %v6701
      %v8112 = vunpack.c.h.b16 %v6701
      %v8113 = vunpack.c.l.b16 %v6702
      %v8114 = vunpack.c.h.b16 %v6702
      %v8115 = vunpack.c.l.b16 %v6703
      %v8116 = vunpack.c.h.b16 %v6703
      %v8117 = vunpack.c.l.b16 %v6704
      %v8118 = vunpack.c.h.b16 %v6704
      %v8119 = vunpack.c.l.b16 %v6705
      %v8120 = vunpack.c.h.b16 %v6705
      %v8121 = vunpack.c.l.b16 %v6706
      %v8122 = vunpack.c.h.b16 %v6706
      %v8123 = vunpack.c.l.b16 %v6707
      %v8124 = vunpack.c.h.b16 %v6707
      %v8125 = vunpack.c.l.b16 %v6708
      %v8126 = vunpack.c.h.b16 %v6708
      %v8127 = vunpack.c.l.b16 %v6709
      %v8128 = vunpack.c.h.b16 %v6709
      %v8129 = vunpack.c.l.b16 %v6710
      %v8130 = vunpack.c.h.b16 %v6710
      %v8131 = vunpack.c.l.b16 %v6711
      %v8132 = vunpack.c.h.b16 %v6711
      %v8133 = vunpack.c.l.b16 %v6712
      %v8134 = vunpack.c.h.b16 %v6712
      %v8135 = vunpack.c.l.b16 %v6713
      %v8136 = vunpack.c.h.b16 %v6713
      %v8137 = vunpack.c.l.b16 %v6714
      %v8138 = vunpack.c.h.b16 %v6714
      %v8139 = vunpack.c.l.b16 %v6715
      %v8140 = vunpack.c.h.b16 %v6715
      %v8141 = vunpack.c.l.b16 %v6716
      %v8142 = vunpack.c.h.b16 %v6716
      %v8143 = vunpack.c.l.b16 %v6717
      %v8144 = vunpack.c.h.b16 %v6717
      %v8145 = vunpack.c.l.b16 %v6718
      %v8146 = vunpack.c.h.b16 %v6718
      %v8147 = vunpack.c.l.b16 %v6719
      %v8148 = vunpack.c.h.b16 %v6719
      %v8149 = vunpack.c.l.b16 %v6720
      %v8150 = vunpack.c.h.b16 %v6720
      %v8151 = vunpack.c.l.b16 %v6721
      %v8152 = vunpack.c.h.b16 %v6721
      %v8153 = vunpack.c.l.b16 %v6722
      %v8154 = vunpack.c.h.b16 %v6722
      %v8155 = vunpack.c.l.b16 %v6723
      %v8156 = vunpack.c.h.b16 %v6723
      %v8157 = vunpack.c.l.b16 %v6724
      %v8158 = vunpack.c.h.b16 %v6724
      %v8159 = vunpack.c.l.b16 %v6725
      %v8160 = vunpack.c.h.b16 %v6725
      %v8161 = vunpack.c.l.b16 %v6726
      %v8162 = vunpack.c.h.b16 %v6726
      %v8163 = vunpack.c.l.b16 %v6727
      %v8164 = vunpack.c.h.b16 %v6727
      %v8165 = vunpack.c.l.b16 %v6728
      %v8166 = vunpack.c.h.b16 %v6728
      %v8167 = vunpack.c.l.b16 %v6729
      %v8168 = vunpack.c.h.b16 %v6729
      %v8169 = vunpack.c.l.b16 %v6730
      %v8170 = vunpack.c.h.b16 %v6730
      %v8171 = vunpack.c.l.b16 %v6731
      %v8172 = vunpack.c.h.b16 %v6731
      %v8173 = vunpack.c.l.b16 %v6732
      %v8174 = vunpack.c.h.b16 %v6732
      %v8175 = vunpack.c.l.b16 %v6733
      %v8176 = vunpack.c.h.b16 %v6733
      %v8177 = vunpack.c.l.b16 %v6734
      %v8178 = vunpack.c.h.b16 %v6734
      %v8179 = vunpack.c.l.b16 %v6735
      %v8180 = vunpack.c.h.b16 %v6735
      %v8181 = vunpack.c.l.b16 %v6736
      %v8182 = vunpack.c.h.b16 %v6736
      %v8183 = vunpack.c.l.b16 %v6737
      %v8184 = vunpack.c.h.b16 %v6737
      %v8185 = vunpack.c.l.b16 %v6738
      %v8186 = vunpack.c.h.b16 %v6738
      %v8187 = vunpack.c.l.b16 %v6739
      %v8188 = vunpack.c.h.b16 %v6739
      %v8189 = vunpack.c.l.b16 %v6740
      %v8190 = vunpack.c.h.b16 %v6740
      %v8191 = vunpack.c.l.b16 %v6741
      %v8192 = vunpack.c.h.b16 %v6741
      %v8193 = vunpack.c.l.b16 %v6742
      %v8194 = vunpack.c.h.b16 %v6742
      %v8195 = vunpack.c.l.b16 %v6743
      %v8196 = vunpack.c.h.b16 %v6743
      %v8197 = vunpack.c.l.b16 %v6744
      %v8198 = vunpack.c.h.b16 %v6744
      %v8199 = vunpack.c.l.b16 %v6745
      %v8200 = vunpack.c.h.b16 %v6745
      %v8201 = vunpack.c.l.b16 %v6746
      %v8202 = vunpack.c.h.b16 %v6746
      %v8203 = vunpack.c.l.b16 %v6747
      %v8204 = vunpack.c.h.b16 %v6747
      %v8205 = vunpack.c.l.b16 %v6748
      %v8206 = vunpack.c.h.b16 %v6748
      %v8207 = vunpack.c.l.b16 %v6749
      %v8208 = vunpack.c.h.b16 %v6749
      %v8209 = vunpack.c.l.b16 %v6750
      %v8210 = vunpack.c.h.b16 %v6750
      %v8211 = vunpack.c.l.b16 %v6751
      %v8212 = vunpack.c.h.b16 %v6751
      %v8213 = vunpack.c.l.b16 %v6752
      %v8214 = vunpack.c.h.b16 %v6752
      %v8215 = vunpack.c.l.b16 %v6753
      %v8216 = vunpack.c.h.b16 %v6753
      %v8217 = vunpack.c.l.b16 %v6754
      %v8218 = vunpack.c.h.b16 %v6754
      %v8219 = vunpack.c.l.b16 %v6755
      %v8220 = vunpack.c.h.b16 %v6755
      %v8221 = vunpack.c.l.b16 %v6756
      %v8222 = vunpack.c.h.b16 %v6756
      %v8223 = vunpack.c.l.b16 %v6757
      %v8224 = vunpack.c.h.b16 %v6757
      %v8225 = vunpack.c.l.b16 %v6758
      %v8226 = vunpack.c.h.b16 %v6758
      %v8227 = vunpack.c.l.b16 %v6759
      %v8228 = vunpack.c.h.b16 %v6759
      %v8229 = vunpack.c.l.b16 %v6760
      %v8230 = vunpack.c.h.b16 %v6760
      %v8231 = vunpack.c.l.b16 %v6761
      %v8232 = vunpack.c.h.b16 %v6761
      %v8233 = vunpack.c.l.b16 %v6762
      %v8234 = vunpack.c.h.b16 %v6762
      %v8235 = vunpack.c.l.b16 %v6763
      %v8236 = vunpack.c.h.b16 %v6763
      %v8237 = vunpack.c.l.b16 %v6764
      %v8238 = vunpack.c.h.b16 %v6764
      %v8239 = vunpack.c.l.b16 %v6765
      %v8240 = vunpack.c.h.b16 %v6765
      %v8241 = vunpack.c.l.b16 %v6766
      %v8242 = vunpack.c.h.b16 %v6766
      %v8243 = vunpack.c.l.b16 %v6767
      %v8244 = vunpack.c.h.b16 %v6767
      %v8245 = vunpack.c.l.b16 %v6768
      %v8246 = vunpack.c.h.b16 %v6768
      %v8247 = vunpack.c.l.b16 %v6769
      %v8248 = vunpack.c.h.b16 %v6769
      %v8249 = vunpack.c.l.b16 %v6770
      %v8250 = vunpack.c.h.b16 %v6770
      %v8251 = vunpack.c.l.b16 %v6771
      %v8252 = vunpack.c.h.b16 %v6771
      %v8253 = vunpack.c.l.b16 %v6772
      %v8254 = vunpack.c.h.b16 %v6772
      %v8255 = vunpack.c.l.b16 %v6773
      %v8256 = vunpack.c.h.b16 %v6773
      %v8257 = vunpack.c.l.b16 %v6774
      %v8258 = vunpack.c.h.b16 %v6774
      %v8259 = vunpack.c.l.b16 %v6775
      %v8260 = vunpack.c.h.b16 %v6775
      %v8261 = vunpack.c.l.b16 %v6776
      %v8262 = vunpack.c.h.b16 %v6776
      %v8263 = vunpack.c.l.b16 %v6777
      %v8264 = vunpack.c.h.b16 %v6777
      %v8265 = vunpack.c.l.b16 %v6778
      %v8266 = vunpack.c.h.b16 %v6778
      %v8267 = vunpack.c.l.b16 %v6779
      %v8268 = vunpack.c.h.b16 %v6779
      %v8269 = vunpack.c.l.b16 %v6780
      %v8270 = vunpack.c.h.b16 %v6780
      %v8271 = vunpack.c.l.b16 %v6781
      %v8272 = vunpack.c.h.b16 %v6781
      %v8273 = vunpack.c.l.b16 %v6782
      %v8274 = vunpack.c.h.b16 %v6782
      %v8275 = vunpack.c.l.b16 %v6783
      %v8276 = vunpack.c.h.b16 %v6783
      %v8277 = vunpack.c.l.b16 %v6784
      %v8278 = vunpack.c.h.b16 %v6784
      %v8279 = vunpack.c.l.b16 %v6785
      %v8280 = vunpack.c.h.b16 %v6785
      %v8281 = vunpack.c.l.b16 %v6786
      %v8282 = vunpack.c.h.b16 %v6786
      %v8283 = vunpack.c.l.b16 %v6787
      %v8284 = vunpack.c.h.b16 %v6787
      %v8285 = vunpack.c.l.b16 %v6788
      %v8286 = vunpack.c.h.b16 %v6788
      %v8287 = vunpack.c.l.b16 %v6789
      %v8288 = vunpack.c.h.b16 %v6789
      %v8289 = vunpack.c.l.b16 %v6790
      %v8290 = vunpack.c.h.b16 %v6790
      %v8291 = vunpack.c.l.b16 %v6791
      %v8292 = vunpack.c.h.b16 %v6791
      %v8293 = vunpack.c.l.b16 %v6792
      %v8294 = vunpack.c.h.b16 %v6792
      %v8295 = vunpack.c.l.b16 %v6793
      %v8296 = vunpack.c.h.b16 %v6793
      %v8297 = vunpack.c.l.b16 %v6794
      %v8298 = vunpack.c.h.b16 %v6794
      %v8299 = vunpack.c.l.b16 %v6795
      %v8300 = vunpack.c.h.b16 %v6795
      %v8301 = vunpack.c.l.b16 %v6796
      %v8302 = vunpack.c.h.b16 %v6796
      %v8303 = vunpack.c.l.b16 %v6797
      %v8304 = vunpack.c.h.b16 %v6797
      %v8305 = vunpack.c.l.b16 %v6798
      %v8306 = vunpack.c.h.b16 %v6798
      %v8307 = vunpack.c.l.b16 %v6799
      %v8308 = vunpack.c.h.b16 %v6799
      %v8309 = vunpack.c.l.b16 %v6800
      %v8310 = vunpack.c.h.b16 %v6800
      %v8311 = vunpack.c.l.b16 %v6801
      %v8312 = vunpack.c.h.b16 %v6801
      %v8313 = vunpack.c.l.b16 %v6802
      %v8314 = vunpack.c.h.b16 %v6802
      %v8315 = vunpack.c.l.b16 %v6803
      %v8316 = vunpack.c.h.b16 %v6803
      %v8317 = vunpack.c.l.b16 %v6804
      %v8318 = vunpack.c.h.b16 %v6804
      %v8319 = vunpack.c.l.b16 %v6805
      %v8320 = vunpack.c.h.b16 %v6805
      %v8321 = vunpack.c.l.b16 %v6806
      %v8322 = vunpack.c.h.b16 %v6806
      %v8323 = vunpack.c.l.b16 %v6807
      %v8324 = vunpack.c.h.b16 %v6807
      %v8325 = vunpack.c.l.b16 %v6808
      %v8326 = vunpack.c.h.b16 %v6808
      %v8327 = vunpack.c.l.b16 %v6809
      %v8328 = vunpack.c.h.b16 %v6809
      %v8329 = vunpack.c.l.b16 %v6810
      %v8330 = vunpack.c.h.b16 %v6810
      %v8331 = vunpack.c.l.b16 %v6811
      %v8332 = vunpack.c.h.b16 %v6811
      %v8333 = vunpack.c.l.b16 %v6812
      %v8334 = vunpack.c.h.b16 %v6812
      %v8335 = vunpack.c.l.b16 %v6813
      %v8336 = vunpack.c.h.b16 %v6813
      %v8337 = vunpack.c.l.b16 %v6814
      %v8338 = vunpack.c.h.b16 %v6814
      %v8339 = vunpack.c.l.b16 %v6815
      %v8340 = vunpack.c.h.b16 %v6815
      %v8341 = vunpack.c.l.b16 %v6816
      %v8342 = vunpack.c.h.b16 %v6816
      %v8343 = vunpack.c.l.b16 %v6817
      %v8344 = vunpack.c.h.b16 %v6817
      %v8345 = vunpack.c.l.b16 %v6818
      %v8346 = vunpack.c.h.b16 %v6818
      %v8347 = vunpack.c.l.b16 %v6819
      %v8348 = vunpack.c.h.b16 %v6819
      %v8349 = vunpack.c.l.b16 %v6820
      %v8350 = vunpack.c.h.b16 %v6820
      %v8351 = vunpack.c.l.b16 %v6821
      %v8352 = vunpack.c.h.b16 %v6821
      %v8353 = vunpack.c.l.b16 %v6822
      %v8354 = vunpack.c.h.b16 %v6822
      %v8355 = vunpack.c.l.b16 %v6823
      %v8356 = vunpack.c.h.b16 %v6823
      %v8357 = vunpack.c.l.b16 %v6824
      %v8358 = vunpack.c.h.b16 %v6824
      %v8359 = vunpack.c.l.b16 %v6825
      %v8360 = vunpack.c.h.b16 %v6825
      %v8361 = vunpack.c.l.b16 %v6826
      %v8362 = vunpack.c.h.b16 %v6826
      %v8363 = vunpack.c.l.b16 %v6827
      %v8364 = vunpack.c.h.b16 %v6827
      %v8365 = vunpack.c.l.b16 %v6828
      %v8366 = vunpack.c.h.b16 %v6828
      %v8367 = vunpack.c.l.b16 %v6829
      %v8368 = vunpack.c.h.b16 %v6829
      %v8369 = vunpack.c.l.b16 %v6830
      %v8370 = vunpack.c.h.b16 %v6830
      %v8371 = vunpack.c.l.b16 %v6831
      %v8372 = vunpack.c.h.b16 %v6831
      %v8373 = vunpack.c.l.b16 %v6832
      %v8374 = vunpack.c.h.b16 %v6832
      %v8375 = vunpack.c.l.b16 %v6833
      %v8376 = vunpack.c.h.b16 %v6833
      %v8377 = vunpack.c.l.b16 %v6834
      %v8378 = vunpack.c.h.b16 %v6834
      %v8379 = vunpack.c.l.b16 %v6835
      %v8380 = vunpack.c.h.b16 %v6835
      %v8381 = vunpack.c.l.b16 %v6836
      %v8382 = vunpack.c.h.b16 %v6836
      %v8383 = vpack.c.b16 %v7363, %v7359
      %v8384 = vpack.c.b16 %v7364, %v7360
      %v8385 = vpack.c.b16 %v7365, %v7361
      %v8386 = vpack.c.b16 %v7366, %v7362
      %v8387 = vpack.c.b16 %v7371, %v7367
      %v8388 = vpack.c.b16 %v7372, %v7368
      %v8389 = vpack.c.b16 %v7373, %v7369
      %v8390 = vpack.c.b16 %v7374, %v7370
      %v8391 = vpack.c.b16 %v7379, %v7375
      %v8392 = vpack.c.b16 %v7380, %v7376
      %v8393 = vpack.c.b16 %v7381, %v7377
      %v8394 = vpack.c.b16 %v7382, %v7378
      %v8395 = vpack.c.b16 %v7387, %v7383
      %v8396 = vpack.c.b16 %v7388, %v7384
      %v8397 = vpack.c.b16 %v7389, %v7385
      %v8398 = vpack.c.b16 %v7390, %v7386
      %v8399 = vpack.c.b16 %v7395, %v7391
      %v8400 = vpack.c.b16 %v7396, %v7392
      %v8401 = vpack.c.b16 %v7397, %v7393
      %v8402 = vpack.c.b16 %v7398, %v7394
      %v8403 = vpack.c.b16 %v7403, %v7399
      %v8404 = vpack.c.b16 %v7404, %v7400
      %v8405 = vpack.c.b16 %v7405, %v7401
      %v8406 = vpack.c.b16 %v7406, %v7402
      %v8407 = vpack.c.b16 %v7411, %v7407
      %v8408 = vpack.c.b16 %v7412, %v7408
      %v8409 = vpack.c.b16 %v7413, %v7409
      %v8410 = vpack.c.b16 %v7414, %v7410
      %v8411 = vpack.c.b16 %v7419, %v7415
      %v8412 = vpack.c.b16 %v7420, %v7416
      %v8413 = vpack.c.b16 %v7421, %v7417
      %v8414 = vpack.c.b16 %v7422, %v7418
      %v8415 = vpack.c.b16 %v7427, %v7423
      %v8416 = vpack.c.b16 %v7428, %v7424
      %v8417 = vpack.c.b16 %v7429, %v7425
      %v8418 = vpack.c.b16 %v7430, %v7426
      %v8419 = vpack.c.b16 %v7435, %v7431
      %v8420 = vpack.c.b16 %v7436, %v7432
      %v8421 = vpack.c.b16 %v7437, %v7433
      %v8422 = vpack.c.b16 %v7438, %v7434
      %v8423 = vpack.c.b16 %v7443, %v7439
      %v8424 = vpack.c.b16 %v7444, %v7440
      %v8425 = vpack.c.b16 %v7445, %v7441
      %v8426 = vpack.c.b16 %v7446, %v7442
      %v8427 = vpack.c.b16 %v7451, %v7447
      %v8428 = vpack.c.b16 %v7452, %v7448
      %v8429 = vpack.c.b16 %v7453, %v7449
      %v8430 = vpack.c.b16 %v7454, %v7450
      %v8431 = vpack.c.b16 %v7459, %v7455
      %v8432 = vpack.c.b16 %v7460, %v7456
      %v8433 = vpack.c.b16 %v7461, %v7457
      %v8434 = vpack.c.b16 %v7462, %v7458
      %v8435 = vpack.c.b16 %v7467, %v7463
      %v8436 = vpack.c.b16 %v7468, %v7464
      %v8437 = vpack.c.b16 %v7469, %v7465
      %v8438 = vpack.c.b16 %v7470, %v7466
      %v8439 = vpack.c.b16 %v7475, %v7471
      %v8440 = vpack.c.b16 %v7476, %v7472
      %v8441 = vpack.c.b16 %v7477, %v7473
      %v8442 = vpack.c.b16 %v7478, %v7474
      %v8443 = vpack.c.b16 %v7483, %v7479
      %v8444 = vpack.c.b16 %v7484, %v7480
      %v8445 = vpack.c.b16 %v7485, %v7481
      %v8446 = vpack.c.b16 %v7486, %v7482
      %v8447 = vpack.c.b16 %v7491, %v7487
      %v8448 = vpack.c.b16 %v7492, %v7488
      %v8449 = vpack.c.b16 %v7493, %v7489
      %v8450 = vpack.c.b16 %v7494, %v7490
      %v8451 = vpack.c.b16 %v7499, %v7495
      %v8452 = vpack.c.b16 %v7500, %v7496
      %v8453 = vpack.c.b16 %v7501, %v7497
      %v8454 = vpack.c.b16 %v7502, %v7498
      %v8455 = vpack.c.b16 %v7507, %v7503
      %v8456 = vpack.c.b16 %v7508, %v7504
      %v8457 = vpack.c.b16 %v7509, %v7505
      %v8458 = vpack.c.b16 %v7510, %v7506
      %v8459 = vpack.c.b16 %v7515, %v7511
      %v8460 = vpack.c.b16 %v7516, %v7512
      %v8461 = vpack.c.b16 %v7517, %v7513
      %v8462 = vpack.c.b16 %v7518, %v7514
      %v8463 = vpack.c.b16 %v7523, %v7519
      %v8464 = vpack.c.b16 %v7524, %v7520
      %v8465 = vpack.c.b16 %v7525, %v7521
      %v8466 = vpack.c.b16 %v7526, %v7522
      %v8467 = vpack.c.b16 %v7531, %v7527
      %v8468 = vpack.c.b16 %v7532, %v7528
      %v8469 = vpack.c.b16 %v7533, %v7529
      %v8470 = vpack.c.b16 %v7534, %v7530
      %v8471 = vpack.c.b16 %v7539, %v7535
      %v8472 = vpack.c.b16 %v7540, %v7536
      %v8473 = vpack.c.b16 %v7541, %v7537
      %v8474 = vpack.c.b16 %v7542, %v7538
      %v8475 = vpack.c.b16 %v7547, %v7543
      %v8476 = vpack.c.b16 %v7548, %v7544
      %v8477 = vpack.c.b16 %v7549, %v7545
      %v8478 = vpack.c.b16 %v7550, %v7546
      %v8479 = vpack.c.b16 %v7555, %v7551
      %v8480 = vpack.c.b16 %v7556, %v7552
      %v8481 = vpack.c.b16 %v7557, %v7553
      %v8482 = vpack.c.b16 %v7558, %v7554
      %v8483 = vpack.c.b16 %v7563, %v7559
      %v8484 = vpack.c.b16 %v7564, %v7560
      %v8485 = vpack.c.b16 %v7565, %v7561
      %v8486 = vpack.c.b16 %v7566, %v7562
      %v8487 = vpack.c.b16 %v7571, %v7567
      %v8488 = vpack.c.b16 %v7572, %v7568
      %v8489 = vpack.c.b16 %v7573, %v7569
      %v8490 = vpack.c.b16 %v7574, %v7570
      %v8491 = vpack.c.b16 %v7579, %v7575
      %v8492 = vpack.c.b16 %v7580, %v7576
      %v8493 = vpack.c.b16 %v7581, %v7577
      %v8494 = vpack.c.b16 %v7582, %v7578
      %v8495 = vpack.c.b16 %v7587, %v7583
      %v8496 = vpack.c.b16 %v7588, %v7584
      %v8497 = vpack.c.b16 %v7589, %v7585
      %v8498 = vpack.c.b16 %v7590, %v7586
      %v8499 = vpack.c.b16 %v7595, %v7591
      %v8500 = vpack.c.b16 %v7596, %v7592
      %v8501 = vpack.c.b16 %v7597, %v7593
      %v8502 = vpack.c.b16 %v7598, %v7594
      %v8503 = vpack.c.b16 %v7603, %v7599
      %v8504 = vpack.c.b16 %v7604, %v7600
      %v8505 = vpack.c.b16 %v7605, %v7601
      %v8506 = vpack.c.b16 %v7606, %v7602
      %v8507 = vpack.c.b16 %v7611, %v7607
      %v8508 = vpack.c.b16 %v7612, %v7608
      %v8509 = vpack.c.b16 %v7613, %v7609
      %v8510 = vpack.c.b16 %v7614, %v7610
      %v8511 = vpack.c.b16 %v7619, %v7615
      %v8512 = vpack.c.b16 %v7620, %v7616
      %v8513 = vpack.c.b16 %v7621, %v7617
      %v8514 = vpack.c.b16 %v7622, %v7618
      %v8515 = vpack.c.b16 %v7627, %v7623
      %v8516 = vpack.c.b16 %v7628, %v7624
      %v8517 = vpack.c.b16 %v7629, %v7625
      %v8518 = vpack.c.b16 %v7630, %v7626
      %v8519 = vpack.c.b16 %v7635, %v7631
      %v8520 = vpack.c.b16 %v7636, %v7632
      %v8521 = vpack.c.b16 %v7637, %v7633
      %v8522 = vpack.c.b16 %v7638, %v7634
      %v8523 = vpack.c.b16 %v7643, %v7639
      %v8524 = vpack.c.b16 %v7644, %v7640
      %v8525 = vpack.c.b16 %v7645, %v7641
      %v8526 = vpack.c.b16 %v7646, %v7642
      %v8527 = vpack.c.b16 %v7651, %v7647
      %v8528 = vpack.c.b16 %v7652, %v7648
      %v8529 = vpack.c.b16 %v7653, %v7649
      %v8530 = vpack.c.b16 %v7654, %v7650
      %v8531 = vpack.c.b16 %v7659, %v7655
      %v8532 = vpack.c.b16 %v7660, %v7656
      %v8533 = vpack.c.b16 %v7661, %v7657
      %v8534 = vpack.c.b16 %v7662, %v7658
      %v8535 = vpack.c.b16 %v7667, %v7663
      %v8536 = vpack.c.b16 %v7668, %v7664
      %v8537 = vpack.c.b16 %v7669, %v7665
      %v8538 = vpack.c.b16 %v7670, %v7666
      %v8539 = vpack.c.b16 %v7675, %v7671
      %v8540 = vpack.c.b16 %v7676, %v7672
      %v8541 = vpack.c.b16 %v7677, %v7673
      %v8542 = vpack.c.b16 %v7678, %v7674
      %v8543 = vpack.c.b16 %v7683, %v7679
      %v8544 = vpack.c.b16 %v7684, %v7680
      %v8545 = vpack.c.b16 %v7685, %v7681
      %v8546 = vpack.c.b16 %v7686, %v7682
      %v8547 = vpack.c.b16 %v7691, %v7687
      %v8548 = vpack.c.b16 %v7692, %v7688
      %v8549 = vpack.c.b16 %v7693, %v7689
      %v8550 = vpack.c.b16 %v7694, %v7690
      %v8551 = vpack.c.b16 %v7699, %v7695
      %v8552 = vpack.c.b16 %v7700, %v7696
      %v8553 = vpack.c.b16 %v7701, %v7697
      %v8554 = vpack.c.b16 %v7702, %v7698
      %v8555 = vpack.c.b16 %v7707, %v7703
      %v8556 = vpack.c.b16 %v7708, %v7704
      %v8557 = vpack.c.b16 %v7709, %v7705
      %v8558 = vpack.c.b16 %v7710, %v7706
      %v8559 = vpack.c.b16 %v7715, %v7711
      %v8560 = vpack.c.b16 %v7716, %v7712
      %v8561 = vpack.c.b16 %v7717, %v7713
      %v8562 = vpack.c.b16 %v7718, %v7714
      %v8563 = vpack.c.b16 %v7723, %v7719
      %v8564 = vpack.c.b16 %v7724, %v7720
      %v8565 = vpack.c.b16 %v7725, %v7721
      %v8566 = vpack.c.b16 %v7726, %v7722
      %v8567 = vpack.c.b16 %v7731, %v7727
      %v8568 = vpack.c.b16 %v7732, %v7728
      %v8569 = vpack.c.b16 %v7733, %v7729
      %v8570 = vpack.c.b16 %v7734, %v7730
      %v8571 = vpack.c.b16 %v7739, %v7735
      %v8572 = vpack.c.b16 %v7740, %v7736
      %v8573 = vpack.c.b16 %v7741, %v7737
      %v8574 = vpack.c.b16 %v7742, %v7738
      %v8575 = vpack.c.b16 %v7747, %v7743
      %v8576 = vpack.c.b16 %v7748, %v7744
      %v8577 = vpack.c.b16 %v7749, %v7745
      %v8578 = vpack.c.b16 %v7750, %v7746
      %v8579 = vpack.c.b16 %v7755, %v7751
      %v8580 = vpack.c.b16 %v7756, %v7752
      %v8581 = vpack.c.b16 %v7757, %v7753
      %v8582 = vpack.c.b16 %v7758, %v7754
      %v8583 = vpack.c.b16 %v7763, %v7759
      %v8584 = vpack.c.b16 %v7764, %v7760
      %v8585 = vpack.c.b16 %v7765, %v7761
      %v8586 = vpack.c.b16 %v7766, %v7762
      %v8587 = vpack.c.b16 %v7771, %v7767
      %v8588 = vpack.c.b16 %v7772, %v7768
      %v8589 = vpack.c.b16 %v7773, %v7769
      %v8590 = vpack.c.b16 %v7774, %v7770
      %v8591 = vpack.c.b16 %v7779, %v7775
      %v8592 = vpack.c.b16 %v7780, %v7776
      %v8593 = vpack.c.b16 %v7781, %v7777
      %v8594 = vpack.c.b16 %v7782, %v7778
      %v8595 = vpack.c.b16 %v7787, %v7783
      %v8596 = vpack.c.b16 %v7788, %v7784
      %v8597 = vpack.c.b16 %v7789, %v7785
      %v8598 = vpack.c.b16 %v7790, %v7786
      %v8599 = vpack.c.b16 %v7795, %v7791
      %v8600 = vpack.c.b16 %v7796, %v7792
      %v8601 = vpack.c.b16 %v7797, %v7793
      %v8602 = vpack.c.b16 %v7798, %v7794
      %v8603 = vpack.c.b16 %v7803, %v7799
      %v8604 = vpack.c.b16 %v7804, %v7800
      %v8605 = vpack.c.b16 %v7805, %v7801
      %v8606 = vpack.c.b16 %v7806, %v7802
      %v8607 = vpack.c.b16 %v7811, %v7807
      %v8608 = vpack.c.b16 %v7812, %v7808
      %v8609 = vpack.c.b16 %v7813, %v7809
      %v8610 = vpack.c.b16 %v7814, %v7810
      %v8611 = vpack.c.b16 %v7819, %v7815
      %v8612 = vpack.c.b16 %v7820, %v7816
      %v8613 = vpack.c.b16 %v7821, %v7817
      %v8614 = vpack.c.b16 %v7822, %v7818
      %v8615 = vpack.c.b16 %v7827, %v7823
      %v8616 = vpack.c.b16 %v7828, %v7824
      %v8617 = vpack.c.b16 %v7829, %v7825
      %v8618 = vpack.c.b16 %v7830, %v7826
      %v8619 = vpack.c.b16 %v7835, %v7831
      %v8620 = vpack.c.b16 %v7836, %v7832
      %v8621 = vpack.c.b16 %v7837, %v7833
      %v8622 = vpack.c.b16 %v7838, %v7834
      %v8623 = vpack.c.b16 %v7843, %v7839
      %v8624 = vpack.c.b16 %v7844, %v7840
      %v8625 = vpack.c.b16 %v7845, %v7841
      %v8626 = vpack.c.b16 %v7846, %v7842
      %v8627 = vpack.c.b16 %v7851, %v7847
      %v8628 = vpack.c.b16 %v7852, %v7848
      %v8629 = vpack.c.b16 %v7853, %v7849
      %v8630 = vpack.c.b16 %v7854, %v7850
      %v8631 = vpack.c.b16 %v7859, %v7855
      %v8632 = vpack.c.b16 %v7860, %v7856
      %v8633 = vpack.c.b16 %v7861, %v7857
      %v8634 = vpack.c.b16 %v7862, %v7858
      %v8635 = vpack.c.b16 %v7867, %v7863
      %v8636 = vpack.c.b16 %v7868, %v7864
      %v8637 = vpack.c.b16 %v7869, %v7865
      %v8638 = vpack.c.b16 %v7870, %v7866
      %v8639 = vpack.c.b16 %v7875, %v7871
      %v8640 = vpack.c.b16 %v7876, %v7872
      %v8641 = vpack.c.b16 %v7877, %v7873
      %v8642 = vpack.c.b16 %v7878, %v7874
      %v8643 = vpack.c.b16 %v7883, %v7879
      %v8644 = vpack.c.b16 %v7884, %v7880
      %v8645 = vpack.c.b16 %v7885, %v7881
      %v8646 = vpack.c.b16 %v7886, %v7882
      %v8647 = vpack.c.b16 %v7891, %v7887
      %v8648 = vpack.c.b16 %v7892, %v7888
      %v8649 = vpack.c.b16 %v7893, %v7889
      %v8650 = vpack.c.b16 %v7894, %v7890
      %v8651 = vpack.c.b16 %v7899, %v7895
      %v8652 = vpack.c.b16 %v7900, %v7896
      %v8653 = vpack.c.b16 %v7901, %v7897
      %v8654 = vpack.c.b16 %v7902, %v7898
      %v8655 = vpack.c.b16 %v7907, %v7903
      %v8656 = vpack.c.b16 %v7908, %v7904
      %v8657 = vpack.c.b16 %v7909, %v7905
      %v8658 = vpack.c.b16 %v7910, %v7906
      %v8659 = vpack.c.b16 %v7915, %v7911
      %v8660 = vpack.c.b16 %v7916, %v7912
      %v8661 = vpack.c.b16 %v7917, %v7913
      %v8662 = vpack.c.b16 %v7918, %v7914
      %v8663 = vpack.c.b16 %v7923, %v7919
      %v8664 = vpack.c.b16 %v7924, %v7920
      %v8665 = vpack.c.b16 %v7925, %v7921
      %v8666 = vpack.c.b16 %v7926, %v7922
      %v8667 = vpack.c.b16 %v7931, %v7927
      %v8668 = vpack.c.b16 %v7932, %v7928
      %v8669 = vpack.c.b16 %v7933, %v7929
      %v8670 = vpack.c.b16 %v7934, %v7930
      %v8671 = vpack.c.b16 %v7939, %v7935
      %v8672 = vpack.c.b16 %v7940, %v7936
      %v8673 = vpack.c.b16 %v7941, %v7937
      %v8674 = vpack.c.b16 %v7942, %v7938
      %v8675 = vpack.c.b16 %v7947, %v7943
      %v8676 = vpack.c.b16 %v7948, %v7944
      %v8677 = vpack.c.b16 %v7949, %v7945
      %v8678 = vpack.c.b16 %v7950, %v7946
      %v8679 = vpack.c.b16 %v7955, %v7951
      %v8680 = vpack.c.b16 %v7956, %v7952
      %v8681 = vpack.c.b16 %v7957, %v7953
      %v8682 = vpack.c.b16 %v7958, %v7954
      %v8683 = vpack.c.b16 %v7963, %v7959
      %v8684 = vpack.c.b16 %v7964, %v7960
      %v8685 = vpack.c.b16 %v7965, %v7961
      %v8686 = vpack.c.b16 %v7966, %v7962
      %v8687 = vpack.c.b16 %v7971, %v7967
      %v8688 = vpack.c.b16 %v7972, %v7968
      %v8689 = vpack.c.b16 %v7973, %v7969
      %v8690 = vpack.c.b16 %v7974, %v7970
      %v8691 = vpack.c.b16 %v7979, %v7975
      %v8692 = vpack.c.b16 %v7980, %v7976
      %v8693 = vpack.c.b16 %v7981, %v7977
      %v8694 = vpack.c.b16 %v7982, %v7978
      %v8695 = vpack.c.b16 %v7987, %v7983
      %v8696 = vpack.c.b16 %v7988, %v7984
      %v8697 = vpack.c.b16 %v7989, %v7985
      %v8698 = vpack.c.b16 %v7990, %v7986
      %v8699 = vpack.c.b16 %v7995, %v7991
      %v8700 = vpack.c.b16 %v7996, %v7992
      %v8701 = vpack.c.b16 %v7997, %v7993
      %v8702 = vpack.c.b16 %v7998, %v7994
      %v8703 = vpack.c.b16 %v8003, %v7999
      %v8704 = vpack.c.b16 %v8004, %v8000
      %v8705 = vpack.c.b16 %v8005, %v8001
      %v8706 = vpack.c.b16 %v8006, %v8002
      %v8707 = vpack.c.b16 %v8011, %v8007
      %v8708 = vpack.c.b16 %v8012, %v8008
      %v8709 = vpack.c.b16 %v8013, %v8009
      %v8710 = vpack.c.b16 %v8014, %v8010
      %v8711 = vpack.c.b16 %v8019, %v8015
      %v8712 = vpack.c.b16 %v8020, %v8016
      %v8713 = vpack.c.b16 %v8021, %v8017
      %v8714 = vpack.c.b16 %v8022, %v8018
      %v8715 = vpack.c.b16 %v8027, %v8023
      %v8716 = vpack.c.b16 %v8028, %v8024
      %v8717 = vpack.c.b16 %v8029, %v8025
      %v8718 = vpack.c.b16 %v8030, %v8026
      %v8719 = vpack.c.b16 %v8035, %v8031
      %v8720 = vpack.c.b16 %v8036, %v8032
      %v8721 = vpack.c.b16 %v8037, %v8033
      %v8722 = vpack.c.b16 %v8038, %v8034
      %v8723 = vpack.c.b16 %v8043, %v8039
      %v8724 = vpack.c.b16 %v8044, %v8040
      %v8725 = vpack.c.b16 %v8045, %v8041
      %v8726 = vpack.c.b16 %v8046, %v8042
      %v8727 = vpack.c.b16 %v8051, %v8047
      %v8728 = vpack.c.b16 %v8052, %v8048
      %v8729 = vpack.c.b16 %v8053, %v8049
      %v8730 = vpack.c.b16 %v8054, %v8050
      %v8731 = vpack.c.b16 %v8059, %v8055
      %v8732 = vpack.c.b16 %v8060, %v8056
      %v8733 = vpack.c.b16 %v8061, %v8057
      %v8734 = vpack.c.b16 %v8062, %v8058
      %v8735 = vpack.c.b16 %v8067, %v8063
      %v8736 = vpack.c.b16 %v8068, %v8064
      %v8737 = vpack.c.b16 %v8069, %v8065
      %v8738 = vpack.c.b16 %v8070, %v8066
      %v8739 = vpack.c.b16 %v8075, %v8071
      %v8740 = vpack.c.b16 %v8076, %v8072
      %v8741 = vpack.c.b16 %v8077, %v8073
      %v8742 = vpack.c.b16 %v8078, %v8074
      %v8743 = vpack.c.b16 %v8083, %v8079
      %v8744 = vpack.c.b16 %v8084, %v8080
      %v8745 = vpack.c.b16 %v8085, %v8081
      %v8746 = vpack.c.b16 %v8086, %v8082
      %v8747 = vpack.c.b16 %v8091, %v8087
      %v8748 = vpack.c.b16 %v8092, %v8088
      %v8749 = vpack.c.b16 %v8093, %v8089
      %v8750 = vpack.c.b16 %v8094, %v8090
      %v8751 = vpack.c.b16 %v8099, %v8095
      %v8752 = vpack.c.b16 %v8100, %v8096
      %v8753 = vpack.c.b16 %v8101, %v8097
      %v8754 = vpack.c.b16 %v8102, %v8098
      %v8755 = vpack.c.b16 %v8107, %v8103
      %v8756 = vpack.c.b16 %v8108, %v8104
      %v8757 = vpack.c.b16 %v8109, %v8105
      %v8758 = vpack.c.b16 %v8110, %v8106
      %v8759 = vpack.c.b16 %v8115, %v8111
      %v8760 = vpack.c.b16 %v8116, %v8112
      %v8761 = vpack.c.b16 %v8117, %v8113
      %v8762 = vpack.c.b16 %v8118, %v8114
      %v8763 = vpack.c.b16 %v8123, %v8119
      %v8764 = vpack.c.b16 %v8124, %v8120
      %v8765 = vpack.c.b16 %v8125, %v8121
      %v8766 = vpack.c.b16 %v8126, %v8122
      %v8767 = vpack.c.b16 %v8131, %v8127
      %v8768 = vpack.c.b16 %v8132, %v8128
      %v8769 = vpack.c.b16 %v8133, %v8129
      %v8770 = vpack.c.b16 %v8134, %v8130
      %v8771 = vpack.c.b16 %v8139, %v8135
      %v8772 = vpack.c.b16 %v8140, %v8136
      %v8773 = vpack.c.b16 %v8141, %v8137
      %v8774 = vpack.c.b16 %v8142, %v8138
      %v8775 = vpack.c.b16 %v8147, %v8143
      %v8776 = vpack.c.b16 %v8148, %v8144
      %v8777 = vpack.c.b16 %v8149, %v8145
      %v8778 = vpack.c.b16 %v8150, %v8146
      %v8779 = vpack.c.b16 %v8155, %v8151
      %v8780 = vpack.c.b16 %v8156, %v8152
      %v8781 = vpack.c.b16 %v8157, %v8153
      %v8782 = vpack.c.b16 %v8158, %v8154
      %v8783 = vpack.c.b16 %v8163, %v8159
      %v8784 = vpack.c.b16 %v8164, %v8160
      %v8785 = vpack.c.b16 %v8165, %v8161
      %v8786 = vpack.c.b16 %v8166, %v8162
      %v8787 = vpack.c.b16 %v8171, %v8167
      %v8788 = vpack.c.b16 %v8172, %v8168
      %v8789 = vpack.c.b16 %v8173, %v8169
      %v8790 = vpack.c.b16 %v8174, %v8170
      %v8791 = vpack.c.b16 %v8179, %v8175
      %v8792 = vpack.c.b16 %v8180, %v8176
      %v8793 = vpack.c.b16 %v8181, %v8177
      %v8794 = vpack.c.b16 %v8182, %v8178
      %v8795 = vpack.c.b16 %v8187, %v8183
      %v8796 = vpack.c.b16 %v8188, %v8184
      %v8797 = vpack.c.b16 %v8189, %v8185
      %v8798 = vpack.c.b16 %v8190, %v8186
      %v8799 = vpack.c.b16 %v8195, %v8191
      %v8800 = vpack.c.b16 %v8196, %v8192
      %v8801 = vpack.c.b16 %v8197, %v8193
      %v8802 = vpack.c.b16 %v8198, %v8194
      %v8803 = vpack.c.b16 %v8203, %v8199
      %v8804 = vpack.c.b16 %v8204, %v8200
      %v8805 = vpack.c.b16 %v8205, %v8201
      %v8806 = vpack.c.b16 %v8206, %v8202
      %v8807 = vpack.c.b16 %v8211, %v8207
      %v8808 = vpack.c.b16 %v8212, %v8208
      %v8809 = vpack.c.b16 %v8213, %v8209
      %v8810 = vpack.c.b16 %v8214, %v8210
      %v8811 = vpack.c.b16 %v8219, %v8215
      %v8812 = vpack.c.b16 %v8220, %v8216
      %v8813 = vpack.c.b16 %v8221, %v8217
      %v8814 = vpack.c.b16 %v8222, %v8218
      %v8815 = vpack.c.b16 %v8227, %v8223
      %v8816 = vpack.c.b16 %v8228, %v8224
      %v8817 = vpack.c.b16 %v8229, %v8225
      %v8818 = vpack.c.b16 %v8230, %v8226
      %v8819 = vpack.c.b16 %v8235, %v8231
      %v8820 = vpack.c.b16 %v8236, %v8232
      %v8821 = vpack.c.b16 %v8237, %v8233
      %v8822 = vpack.c.b16 %v8238, %v8234
      %v8823 = vpack.c.b16 %v8243, %v8239
      %v8824 = vpack.c.b16 %v8244, %v8240
      %v8825 = vpack.c.b16 %v8245, %v8241
      %v8826 = vpack.c.b16 %v8246, %v8242
      %v8827 = vpack.c.b16 %v8251, %v8247
      %v8828 = vpack.c.b16 %v8252, %v8248
      %v8829 = vpack.c.b16 %v8253, %v8249
      %v8830 = vpack.c.b16 %v8254, %v8250
      %v8831 = vpack.c.b16 %v8259, %v8255
      %v8832 = vpack.c.b16 %v8260, %v8256
      %v8833 = vpack.c.b16 %v8261, %v8257
      %v8834 = vpack.c.b16 %v8262, %v8258
      %v8835 = vpack.c.b16 %v8267, %v8263
      %v8836 = vpack.c.b16 %v8268, %v8264
      %v8837 = vpack.c.b16 %v8269, %v8265
      %v8838 = vpack.c.b16 %v8270, %v8266
      %v8839 = vpack.c.b16 %v8275, %v8271
      %v8840 = vpack.c.b16 %v8276, %v8272
      %v8841 = vpack.c.b16 %v8277, %v8273
      %v8842 = vpack.c.b16 %v8278, %v8274
      %v8843 = vpack.c.b16 %v8283, %v8279
      %v8844 = vpack.c.b16 %v8284, %v8280
      %v8845 = vpack.c.b16 %v8285, %v8281
      %v8846 = vpack.c.b16 %v8286, %v8282
      %v8847 = vpack.c.b16 %v8291, %v8287
      %v8848 = vpack.c.b16 %v8292, %v8288
      %v8849 = vpack.c.b16 %v8293, %v8289
      %v8850 = vpack.c.b16 %v8294, %v8290
      %v8851 = vpack.c.b16 %v8299, %v8295
      %v8852 = vpack.c.b16 %v8300, %v8296
      %v8853 = vpack.c.b16 %v8301, %v8297
      %v8854 = vpack.c.b16 %v8302, %v8298
      %v8855 = vpack.c.b16 %v8307, %v8303
      %v8856 = vpack.c.b16 %v8308, %v8304
      %v8857 = vpack.c.b16 %v8309, %v8305
      %v8858 = vpack.c.b16 %v8310, %v8306
      %v8859 = vpack.c.b16 %v8315, %v8311
      %v8860 = vpack.c.b16 %v8316, %v8312
      %v8861 = vpack.c.b16 %v8317, %v8313
      %v8862 = vpack.c.b16 %v8318, %v8314
      %v8863 = vpack.c.b16 %v8323, %v8319
      %v8864 = vpack.c.b16 %v8324, %v8320
      %v8865 = vpack.c.b16 %v8325, %v8321
      %v8866 = vpack.c.b16 %v8326, %v8322
      %v8867 = vpack.c.b16 %v8331, %v8327
      %v8868 = vpack.c.b16 %v8332, %v8328
      %v8869 = vpack.c.b16 %v8333, %v8329
      %v8870 = vpack.c.b16 %v8334, %v8330
      %v8871 = vpack.c.b16 %v8339, %v8335
      %v8872 = vpack.c.b16 %v8340, %v8336
      %v8873 = vpack.c.b16 %v8341, %v8337
      %v8874 = vpack.c.b16 %v8342, %v8338
      %v8875 = vpack.c.b16 %v8347, %v8343
      %v8876 = vpack.c.b16 %v8348, %v8344
      %v8877 = vpack.c.b16 %v8349, %v8345
      %v8878 = vpack.c.b16 %v8350, %v8346
      %v8879 = vpack.c.b16 %v8355, %v8351
      %v8880 = vpack.c.b16 %v8356, %v8352
      %v8881 = vpack.c.b16 %v8357, %v8353
      %v8882 = vpack.c.b16 %v8358, %v8354
      %v8883 = vpack.c.b16 %v8363, %v8359
      %v8884 = vpack.c.b16 %v8364, %v8360
      %v8885 = vpack.c.b16 %v8365, %v8361
      %v8886 = vpack.c.b16 %v8366, %v8362
      %v8887 = vpack.c.b16 %v8371, %v8367
      %v8888 = vpack.c.b16 %v8372, %v8368
      %v8889 = vpack.c.b16 %v8373, %v8369
      %v8890 = vpack.c.b16 %v8374, %v8370
      %v8891 = vpack.c.b16 %v8379, %v8375
      %v8892 = vpack.c.b16 %v8380, %v8376
      %v8893 = vpack.c.b16 %v8381, %v8377
      %v8894 = vpack.c.b16 %v8382, %v8378
      %9407 = vmatpush.bf16.msra.mxu0 %v8411
      %9408 = vmatpush.bf16.msra.mxu0 %v8407
      %9409 = vmatpush.bf16.msra.mxu0 %v8403
      %9410 = vmatpush.bf16.msra.mxu0 %v8399
      %9411 = vmatpush.bf16.msra.mxu0 %v8395
      %9412 = vmatpush.bf16.msra.mxu0 %v8391
      %9413 = vmatpush.bf16.msra.mxu0 %v8387
      %9414 = vmatpush.bf16.msra.mxu0 %v8383
      %9415 = vmatmul.bf16.gmra.mxu0 %v6309
      %v9416 = vpop.f32.mrf.mxu0
      %v9417 = vadd.f32 %v6839, %v9416
      %v9418 = vpop.f32.mrf.mxu0
      %9419 = vdwg.mxu0
      %9420 = vmatpush.bf16.msra.mxu0 %v8443
      %9421 = vmatpush.bf16.msra.mxu0 %v8439
      %9422 = vmatpush.bf16.msra.mxu0 %v8435
      %9423 = vmatpush.bf16.msra.mxu0 %v8431
      %9424 = vmatpush.bf16.msra.mxu0 %v8427
      %9425 = vmatpush.bf16.msra.mxu0 %v8423
      %9426 = vmatpush.bf16.msra.mxu0 %v8419
      %9427 = vmatpush.bf16.msra.mxu0 %v8415
      %9428 = vmatmul.bf16.gmra.mxu0 %v6310
      %v9429 = vpop.f32.mrf.mxu0
      %v9430 = vadd.f32 %v9417, %v9429
      %v9431 = vpop.f32.mrf.mxu0
      %9432 = vdwg.mxu0
      %9433 = vmatpush.bf16.msra.mxu0 %v8475
      %9434 = vmatpush.bf16.msra.mxu0 %v8471
      %9435 = vmatpush.bf16.msra.mxu0 %v8467
      %9436 = vmatpush.bf16.msra.mxu0 %v8463
      %9437 = vmatpush.bf16.msra.mxu0 %v8459
      %9438 = vmatpush.bf16.msra.mxu0 %v8455
      %9439 = vmatpush.bf16.msra.mxu0 %v8451
      %9440 = vmatpush.bf16.msra.mxu0 %v8447
      %9441 = vmatmul.bf16.gmra.mxu0 %v6311
      %v9442 = vpop.f32.mrf.mxu0
      %v9443 = vadd.f32 %v9430, %v9442
      %v9444 = vpop.f32.mrf.mxu0
      %9445 = vdwg.mxu0
      %9446 = vmatpush.bf16.msra.mxu0 %v8507
      %9447 = vmatpush.bf16.msra.mxu0 %v8503
      %9448 = vmatpush.bf16.msra.mxu0 %v8499
      %9449 = vmatpush.bf16.msra.mxu0 %v8495
      %9450 = vmatpush.bf16.msra.mxu0 %v8491
      %9451 = vmatpush.bf16.msra.mxu0 %v8487
      %9452 = vmatpush.bf16.msra.mxu0 %v8483
      %9453 = vmatpush.bf16.msra.mxu0 %v8479
      %9454 = vmatmul.bf16.gmra.mxu0 %v6312
      %v9455 = vpop.f32.mrf.mxu0
      %v9456 = vadd.f32 %v9443, %v9455
      %v9457 = vpop.f32.mrf.mxu0
      %9458 = vdwg.mxu0
      %9459 = vmatpush.bf16.msra.mxu0 %v8539
      %9460 = vmatpush.bf16.msra.mxu0 %v8535
      %9461 = vmatpush.bf16.msra.mxu0 %v8531
      %9462 = vmatpush.bf16.msra.mxu0 %v8527
      %9463 = vmatpush.bf16.msra.mxu0 %v8523
      %9464 = vmatpush.bf16.msra.mxu0 %v8519
      %9465 = vmatpush.bf16.msra.mxu0 %v8515
      %9466 = vmatpush.bf16.msra.mxu0 %v8511
      %9467 = vmatmul.bf16.gmra.mxu0 %v6313
      %v9468 = vpop.f32.mrf.mxu0
      %v9469 = vadd.f32 %v9456, %v9468
      %v9470 = vpop.f32.mrf.mxu0
      %9471 = vdwg.mxu0
      %9472 = vmatpush.bf16.msra.mxu0 %v8571
      %9473 = vmatpush.bf16.msra.mxu0 %v8567
      %9474 = vmatpush.bf16.msra.mxu0 %v8563
      %9475 = vmatpush.bf16.msra.mxu0 %v8559
      %9476 = vmatpush.bf16.msra.mxu0 %v8555
      %9477 = vmatpush.bf16.msra.mxu0 %v8551
      %9478 = vmatpush.bf16.msra.mxu0 %v8547
      %9479 = vmatpush.bf16.msra.mxu0 %v8543
      %9480 = vmatmul.bf16.gmra.mxu0 %v6314
      %v9481 = vpop.f32.mrf.mxu0
      %v9482 = vadd.f32 %v9469, %v9481
      %v9483 = vpop.f32.mrf.mxu0
      %9484 = vdwg.mxu0
      %9485 = vmatpush.bf16.msra.mxu0 %v8603
      %9486 = vmatpush.bf16.msra.mxu0 %v8599
      %9487 = vmatpush.bf16.msra.mxu0 %v8595
      %9488 = vmatpush.bf16.msra.mxu0 %v8591
      %9489 = vmatpush.bf16.msra.mxu0 %v8587
      %9490 = vmatpush.bf16.msra.mxu0 %v8583
      %9491 = vmatpush.bf16.msra.mxu0 %v8579
      %9492 = vmatpush.bf16.msra.mxu0 %v8575
      %9493 = vmatmul.bf16.gmra.mxu0 %v6315
      %v9494 = vpop.f32.mrf.mxu0
      %v9495 = vadd.f32 %v9482, %v9494
      %v9496 = vpop.f32.mrf.mxu0
      %9497 = vdwg.mxu0
      %9498 = vmatpush.bf16.msra.mxu0 %v8635
      %9499 = vmatpush.bf16.msra.mxu0 %v8631
      %9500 = vmatpush.bf16.msra.mxu0 %v8627
      %9501 = vmatpush.bf16.msra.mxu0 %v8623
      %9502 = vmatpush.bf16.msra.mxu0 %v8619
      %9503 = vmatpush.bf16.msra.mxu0 %v8615
      %9504 = vmatpush.bf16.msra.mxu0 %v8611
      %9505 = vmatpush.bf16.msra.mxu0 %v8607
      %9506 = vmatmul.bf16.gmra.mxu0 %v6316
      %v9507 = vpop.f32.mrf.mxu0
      %v9508 = vadd.f32 %v9495, %v9507
      %v9509 = vpop.f32.mrf.mxu0
      %9510 = vdwg.mxu0
      %9511 = vmatpush.bf16.msra.mxu0 %v8667
      %9512 = vmatpush.bf16.msra.mxu0 %v8663
      %9513 = vmatpush.bf16.msra.mxu0 %v8659
      %9514 = vmatpush.bf16.msra.mxu0 %v8655
      %9515 = vmatpush.bf16.msra.mxu0 %v8651
      %9516 = vmatpush.bf16.msra.mxu0 %v8647
      %9517 = vmatpush.bf16.msra.mxu0 %v8643
      %9518 = vmatpush.bf16.msra.mxu0 %v8639
      %9519 = vmatmul.bf16.gmra.mxu0 %v6317
      %v9520 = vpop.f32.mrf.mxu0
      %v9521 = vadd.f32 %v9508, %v9520
      %v9522 = vpop.f32.mrf.mxu0
      %9523 = vdwg.mxu0
      %9524 = vmatpush.bf16.msra.mxu0 %v8699
      %9525 = vmatpush.bf16.msra.mxu0 %v8695
      %9526 = vmatpush.bf16.msra.mxu0 %v8691
      %9527 = vmatpush.bf16.msra.mxu0 %v8687
      %9528 = vmatpush.bf16.msra.mxu0 %v8683
      %9529 = vmatpush.bf16.msra.mxu0 %v8679
      %9530 = vmatpush.bf16.msra.mxu0 %v8675
      %9531 = vmatpush.bf16.msra.mxu0 %v8671
      %9532 = vmatmul.bf16.gmra.mxu0 %v6318
      %v9533 = vpop.f32.mrf.mxu0
      %v9534 = vadd.f32 %v9521, %v9533
      %v9535 = vpop.f32.mrf.mxu0
      %9536 = vdwg.mxu0
      %9537 = vmatpush.bf16.msra.mxu0 %v8731
      %9538 = vmatpush.bf16.msra.mxu0 %v8727
      %9539 = vmatpush.bf16.msra.mxu0 %v8723
      %9540 = vmatpush.bf16.msra.mxu0 %v8719
      %9541 = vmatpush.bf16.msra.mxu0 %v8715
      %9542 = vmatpush.bf16.msra.mxu0 %v8711
      %9543 = vmatpush.bf16.msra.mxu0 %v8707
      %9544 = vmatpush.bf16.msra.mxu0 %v8703
      %9545 = vmatmul.bf16.gmra.mxu0 %v6319
      %v9546 = vpop.f32.mrf.mxu0
      %v9547 = vadd.f32 %v9534, %v9546
      %v9548 = vpop.f32.mrf.mxu0
      %9549 = vdwg.mxu0
      %9550 = vmatpush.bf16.msra.mxu0 %v8763
      %9551 = vmatpush.bf16.msra.mxu0 %v8759
      %9552 = vmatpush.bf16.msra.mxu0 %v8755
      %9553 = vmatpush.bf16.msra.mxu0 %v8751
      %9554 = vmatpush.bf16.msra.mxu0 %v8747
      %9555 = vmatpush.bf16.msra.mxu0 %v8743
      %9556 = vmatpush.bf16.msra.mxu0 %v8739
      %9557 = vmatpush.bf16.msra.mxu0 %v8735
      %9558 = vmatmul.bf16.gmra.mxu0 %v6320
      %v9559 = vpop.f32.mrf.mxu0
      %v9560 = vadd.f32 %v9547, %v9559
      %v9561 = vpop.f32.mrf.mxu0
      %9562 = vdwg.mxu0
      %9563 = vmatpush.bf16.msra.mxu0 %v8795
      %9564 = vmatpush.bf16.msra.mxu0 %v8791
      %9565 = vmatpush.bf16.msra.mxu0 %v8787
      %9566 = vmatpush.bf16.msra.mxu0 %v8783
      %9567 = vmatpush.bf16.msra.mxu0 %v8779
      %9568 = vmatpush.bf16.msra.mxu0 %v8775
      %9569 = vmatpush.bf16.msra.mxu0 %v8771
      %9570 = vmatpush.bf16.msra.mxu0 %v8767
      %9571 = vmatmul.bf16.gmra.mxu0 %v6321
      %v9572 = vpop.f32.mrf.mxu0
      %v9573 = vadd.f32 %v9560, %v9572
      %v9574 = vpop.f32.mrf.mxu0
      %9575 = vdwg.mxu0
      %9576 = vmatpush.bf16.msra.mxu0 %v8827
      %9577 = vmatpush.bf16.msra.mxu0 %v8823
      %9578 = vmatpush.bf16.msra.mxu0 %v8819
      %9579 = vmatpush.bf16.msra.mxu0 %v8815
      %9580 = vmatpush.bf16.msra.mxu0 %v8811
      %9581 = vmatpush.bf16.msra.mxu0 %v8807
      %9582 = vmatpush.bf16.msra.mxu0 %v8803
      %9583 = vmatpush.bf16.msra.mxu0 %v8799
      %9584 = vmatmul.bf16.gmra.mxu0 %v6322
      %v9585 = vpop.f32.mrf.mxu0
      %v9586 = vadd.f32 %v9573, %v9585
      %v9587 = vpop.f32.mrf.mxu0
      %9588 = vdwg.mxu0
      %9589 = vmatpush.bf16.msra.mxu0 %v8859
      %9590 = vmatpush.bf16.msra.mxu0 %v8855
      %9591 = vmatpush.bf16.msra.mxu0 %v8851
      %9592 = vmatpush.bf16.msra.mxu0 %v8847
      %9593 = vmatpush.bf16.msra.mxu0 %v8843
      %9594 = vmatpush.bf16.msra.mxu0 %v8839
      %9595 = vmatpush.bf16.msra.mxu0 %v8835
      %9596 = vmatpush.bf16.msra.mxu0 %v8831
      %9597 = vmatmul.bf16.gmra.mxu0 %v6323
      %v9598 = vpop.f32.mrf.mxu0
      %v9599 = vadd.f32 %v9586, %v9598
      %v9600 = vpop.f32.mrf.mxu0
      %9601 = vdwg.mxu0
      %9602 = vmatpush.bf16.msra.mxu0 %v8891
      %9603 = vmatpush.bf16.msra.mxu0 %v8887
      %9604 = vmatpush.bf16.msra.mxu0 %v8883
      %9605 = vmatpush.bf16.msra.mxu0 %v8879
      %9606 = vmatpush.bf16.msra.mxu0 %v8875
      %9607 = vmatpush.bf16.msra.mxu0 %v8871
      %9608 = vmatpush.bf16.msra.mxu0 %v8867
      %9609 = vmatpush.bf16.msra.mxu0 %v8863
      %9610 = vmatmul.bf16.gmra.mxu0 %v6324
      %v9611 = vpop.f32.mrf.mxu0
      %v9612 = vadd.f32 %v9599, %v9611
      %v9613 = vpop.f32.mrf.mxu0
      %9614 = vdwg.mxu0
      %9615 = vmatpush.bf16.msra.mxu0 %v8412
      %9616 = vmatpush.bf16.msra.mxu0 %v8408
      %9617 = vmatpush.bf16.msra.mxu0 %v8404
      %9618 = vmatpush.bf16.msra.mxu0 %v8400
      %9619 = vmatpush.bf16.msra.mxu0 %v8396
      %9620 = vmatpush.bf16.msra.mxu0 %v8392
      %9621 = vmatpush.bf16.msra.mxu0 %v8388
      %9622 = vmatpush.bf16.msra.mxu0 %v8384
      %9623 = vmatmul.bf16.gmra.mxu0 %v6309
      %v9624 = vpop.f32.mrf.mxu0
      %v9625 = vadd.f32 %v6840, %v9624
      %v9626 = vpop.f32.mrf.mxu0
      %9627 = vdwg.mxu0
      %9628 = vmatpush.bf16.msra.mxu0 %v8444
      %9629 = vmatpush.bf16.msra.mxu0 %v8440
      %9630 = vmatpush.bf16.msra.mxu0 %v8436
      %9631 = vmatpush.bf16.msra.mxu0 %v8432
      %9632 = vmatpush.bf16.msra.mxu0 %v8428
      %9633 = vmatpush.bf16.msra.mxu0 %v8424
      %9634 = vmatpush.bf16.msra.mxu0 %v8420
      %9635 = vmatpush.bf16.msra.mxu0 %v8416
      %9636 = vmatmul.bf16.gmra.mxu0 %v6310
      %v9637 = vpop.f32.mrf.mxu0
      %v9638 = vadd.f32 %v9625, %v9637
      %v9639 = vpop.f32.mrf.mxu0
      %9640 = vdwg.mxu0
      %9641 = vmatpush.bf16.msra.mxu0 %v8476
      %9642 = vmatpush.bf16.msra.mxu0 %v8472
      %9643 = vmatpush.bf16.msra.mxu0 %v8468
      %9644 = vmatpush.bf16.msra.mxu0 %v8464
      %9645 = vmatpush.bf16.msra.mxu0 %v8460
      %9646 = vmatpush.bf16.msra.mxu0 %v8456
      %9647 = vmatpush.bf16.msra.mxu0 %v8452
      %9648 = vmatpush.bf16.msra.mxu0 %v8448
      %9649 = vmatmul.bf16.gmra.mxu0 %v6311
      %v9650 = vpop.f32.mrf.mxu0
      %v9651 = vadd.f32 %v9638, %v9650
      %v9652 = vpop.f32.mrf.mxu0
      %9653 = vdwg.mxu0
      %9654 = vmatpush.bf16.msra.mxu0 %v8508
      %9655 = vmatpush.bf16.msra.mxu0 %v8504
      %9656 = vmatpush.bf16.msra.mxu0 %v8500
      %9657 = vmatpush.bf16.msra.mxu0 %v8496
      %9658 = vmatpush.bf16.msra.mxu0 %v8492
      %9659 = vmatpush.bf16.msra.mxu0 %v8488
      %9660 = vmatpush.bf16.msra.mxu0 %v8484
      %9661 = vmatpush.bf16.msra.mxu0 %v8480
      %9662 = vmatmul.bf16.gmra.mxu0 %v6312
      %v9663 = vpop.f32.mrf.mxu0
      %v9664 = vadd.f32 %v9651, %v9663
      %v9665 = vpop.f32.mrf.mxu0
      %9666 = vdwg.mxu0
      %9667 = vmatpush.bf16.msra.mxu0 %v8540
      %9668 = vmatpush.bf16.msra.mxu0 %v8536
      %9669 = vmatpush.bf16.msra.mxu0 %v8532
      %9670 = vmatpush.bf16.msra.mxu0 %v8528
      %9671 = vmatpush.bf16.msra.mxu0 %v8524
      %9672 = vmatpush.bf16.msra.mxu0 %v8520
      %9673 = vmatpush.bf16.msra.mxu0 %v8516
      %9674 = vmatpush.bf16.msra.mxu0 %v8512
      %9675 = vmatmul.bf16.gmra.mxu0 %v6313
      %v9676 = vpop.f32.mrf.mxu0
      %v9677 = vadd.f32 %v9664, %v9676
      %v9678 = vpop.f32.mrf.mxu0
      %9679 = vdwg.mxu0
      %9680 = vmatpush.bf16.msra.mxu0 %v8572
      %9681 = vmatpush.bf16.msra.mxu0 %v8568
      %9682 = vmatpush.bf16.msra.mxu0 %v8564
      %9683 = vmatpush.bf16.msra.mxu0 %v8560
      %9684 = vmatpush.bf16.msra.mxu0 %v8556
      %9685 = vmatpush.bf16.msra.mxu0 %v8552
      %9686 = vmatpush.bf16.msra.mxu0 %v8548
      %9687 = vmatpush.bf16.msra.mxu0 %v8544
      %9688 = vmatmul.bf16.gmra.mxu0 %v6314
      %v9689 = vpop.f32.mrf.mxu0
      %v9690 = vadd.f32 %v9677, %v9689
      %v9691 = vpop.f32.mrf.mxu0
      %9692 = vdwg.mxu0
      %9693 = vmatpush.bf16.msra.mxu0 %v8604
      %9694 = vmatpush.bf16.msra.mxu0 %v8600
      %9695 = vmatpush.bf16.msra.mxu0 %v8596
      %9696 = vmatpush.bf16.msra.mxu0 %v8592
      %9697 = vmatpush.bf16.msra.mxu0 %v8588
      %9698 = vmatpush.bf16.msra.mxu0 %v8584
      %9699 = vmatpush.bf16.msra.mxu0 %v8580
      %9700 = vmatpush.bf16.msra.mxu0 %v8576
      %9701 = vmatmul.bf16.gmra.mxu0 %v6315
      %v9702 = vpop.f32.mrf.mxu0
      %v9703 = vadd.f32 %v9690, %v9702
      %v9704 = vpop.f32.mrf.mxu0
      %9705 = vdwg.mxu0
      %9706 = vmatpush.bf16.msra.mxu0 %v8636
      %9707 = vmatpush.bf16.msra.mxu0 %v8632
      %9708 = vmatpush.bf16.msra.mxu0 %v8628
      %9709 = vmatpush.bf16.msra.mxu0 %v8624
      %9710 = vmatpush.bf16.msra.mxu0 %v8620
      %9711 = vmatpush.bf16.msra.mxu0 %v8616
      %9712 = vmatpush.bf16.msra.mxu0 %v8612
      %9713 = vmatpush.bf16.msra.mxu0 %v8608
      %9714 = vmatmul.bf16.gmra.mxu0 %v6316
      %v9715 = vpop.f32.mrf.mxu0
      %v9716 = vadd.f32 %v9703, %v9715
      %v9717 = vpop.f32.mrf.mxu0
      %9718 = vdwg.mxu0
      %9719 = vmatpush.bf16.msra.mxu0 %v8668
      %9720 = vmatpush.bf16.msra.mxu0 %v8664
      %9721 = vmatpush.bf16.msra.mxu0 %v8660
      %9722 = vmatpush.bf16.msra.mxu0 %v8656
      %9723 = vmatpush.bf16.msra.mxu0 %v8652
      %9724 = vmatpush.bf16.msra.mxu0 %v8648
      %9725 = vmatpush.bf16.msra.mxu0 %v8644
      %9726 = vmatpush.bf16.msra.mxu0 %v8640
      %9727 = vmatmul.bf16.gmra.mxu0 %v6317
      %v9728 = vpop.f32.mrf.mxu0
      %v9729 = vadd.f32 %v9716, %v9728
      %v9730 = vpop.f32.mrf.mxu0
      %9731 = vdwg.mxu0
      %9732 = vmatpush.bf16.msra.mxu0 %v8700
      %9733 = vmatpush.bf16.msra.mxu0 %v8696
      %9734 = vmatpush.bf16.msra.mxu0 %v8692
      %9735 = vmatpush.bf16.msra.mxu0 %v8688
      %9736 = vmatpush.bf16.msra.mxu0 %v8684
      %9737 = vmatpush.bf16.msra.mxu0 %v8680
      %9738 = vmatpush.bf16.msra.mxu0 %v8676
      %9739 = vmatpush.bf16.msra.mxu0 %v8672
      %9740 = vmatmul.bf16.gmra.mxu0 %v6318
      %v9741 = vpop.f32.mrf.mxu0
      %v9742 = vadd.f32 %v9729, %v9741
      %v9743 = vpop.f32.mrf.mxu0
      %9744 = vdwg.mxu0
      %9745 = vmatpush.bf16.msra.mxu0 %v8732
      %9746 = vmatpush.bf16.msra.mxu0 %v8728
      %9747 = vmatpush.bf16.msra.mxu0 %v8724
      %9748 = vmatpush.bf16.msra.mxu0 %v8720
      %9749 = vmatpush.bf16.msra.mxu0 %v8716
      %9750 = vmatpush.bf16.msra.mxu0 %v8712
      %9751 = vmatpush.bf16.msra.mxu0 %v8708
      %9752 = vmatpush.bf16.msra.mxu0 %v8704
      %9753 = vmatmul.bf16.gmra.mxu0 %v6319
      %v9754 = vpop.f32.mrf.mxu0
      %v9755 = vadd.f32 %v9742, %v9754
      %v9756 = vpop.f32.mrf.mxu0
      %9757 = vdwg.mxu0
      %9758 = vmatpush.bf16.msra.mxu0 %v8764
      %9759 = vmatpush.bf16.msra.mxu0 %v8760
      %9760 = vmatpush.bf16.msra.mxu0 %v8756
      %9761 = vmatpush.bf16.msra.mxu0 %v8752
      %9762 = vmatpush.bf16.msra.mxu0 %v8748
      %9763 = vmatpush.bf16.msra.mxu0 %v8744
      %9764 = vmatpush.bf16.msra.mxu0 %v8740
      %9765 = vmatpush.bf16.msra.mxu0 %v8736
      %9766 = vmatmul.bf16.gmra.mxu0 %v6320
      %v9767 = vpop.f32.mrf.mxu0
      %v9768 = vadd.f32 %v9755, %v9767
      %v9769 = vpop.f32.mrf.mxu0
      %9770 = vdwg.mxu0
      %9771 = vmatpush.bf16.msra.mxu0 %v8796
      %9772 = vmatpush.bf16.msra.mxu0 %v8792
      %9773 = vmatpush.bf16.msra.mxu0 %v8788
      %9774 = vmatpush.bf16.msra.mxu0 %v8784
      %9775 = vmatpush.bf16.msra.mxu0 %v8780
      %9776 = vmatpush.bf16.msra.mxu0 %v8776
      %9777 = vmatpush.bf16.msra.mxu0 %v8772
      %9778 = vmatpush.bf16.msra.mxu0 %v8768
      %9779 = vmatmul.bf16.gmra.mxu0 %v6321
      %v9780 = vpop.f32.mrf.mxu0
      %v9781 = vadd.f32 %v9768, %v9780
      %v9782 = vpop.f32.mrf.mxu0
      %9783 = vdwg.mxu0
      %9784 = vmatpush.bf16.msra.mxu0 %v8828
      %9785 = vmatpush.bf16.msra.mxu0 %v8824
      %9786 = vmatpush.bf16.msra.mxu0 %v8820
      %9787 = vmatpush.bf16.msra.mxu0 %v8816
      %9788 = vmatpush.bf16.msra.mxu0 %v8812
      %9789 = vmatpush.bf16.msra.mxu0 %v8808
      %9790 = vmatpush.bf16.msra.mxu0 %v8804
      %9791 = vmatpush.bf16.msra.mxu0 %v8800
      %9792 = vmatmul.bf16.gmra.mxu0 %v6322
      %v9793 = vpop.f32.mrf.mxu0
      %v9794 = vadd.f32 %v9781, %v9793
      %v9795 = vpop.f32.mrf.mxu0
      %9796 = vdwg.mxu0
      %9797 = vmatpush.bf16.msra.mxu0 %v8860
      %9798 = vmatpush.bf16.msra.mxu0 %v8856
      %9799 = vmatpush.bf16.msra.mxu0 %v8852
      %9800 = vmatpush.bf16.msra.mxu0 %v8848
      %9801 = vmatpush.bf16.msra.mxu0 %v8844
      %9802 = vmatpush.bf16.msra.mxu0 %v8840
      %9803 = vmatpush.bf16.msra.mxu0 %v8836
      %9804 = vmatpush.bf16.msra.mxu0 %v8832
      %9805 = vmatmul.bf16.gmra.mxu0 %v6323
      %v9806 = vpop.f32.mrf.mxu0
      %v9807 = vadd.f32 %v9794, %v9806
      %v9808 = vpop.f32.mrf.mxu0
      %9809 = vdwg.mxu0
      %9810 = vmatpush.bf16.msra.mxu0 %v8892
      %9811 = vmatpush.bf16.msra.mxu0 %v8888
      %9812 = vmatpush.bf16.msra.mxu0 %v8884
      %9813 = vmatpush.bf16.msra.mxu0 %v8880
      %9814 = vmatpush.bf16.msra.mxu0 %v8876
      %9815 = vmatpush.bf16.msra.mxu0 %v8872
      %9816 = vmatpush.bf16.msra.mxu0 %v8868
      %9817 = vmatpush.bf16.msra.mxu0 %v8864
      %9818 = vmatmul.bf16.gmra.mxu0 %v6324
      %v9819 = vpop.f32.mrf.mxu0
      %v9820 = vadd.f32 %v9807, %v9819
      %v9821 = vpop.f32.mrf.mxu0
      %9822 = vdwg.mxu0
      %9823 = vmatpush.bf16.msra.mxu0 %v8413
      %9824 = vmatpush.bf16.msra.mxu0 %v8409
      %9825 = vmatpush.bf16.msra.mxu0 %v8405
      %9826 = vmatpush.bf16.msra.mxu0 %v8401
      %9827 = vmatpush.bf16.msra.mxu0 %v8397
      %9828 = vmatpush.bf16.msra.mxu0 %v8393
      %9829 = vmatpush.bf16.msra.mxu0 %v8389
      %9830 = vmatpush.bf16.msra.mxu0 %v8385
      %9831 = vmatmul.bf16.gmra.mxu0 %v6309
      %v9832 = vpop.f32.mrf.mxu0
      %v9833 = vadd.f32 %v6841, %v9832
      %v9834 = vpop.f32.mrf.mxu0
      %9835 = vdwg.mxu0
      %9836 = vmatpush.bf16.msra.mxu0 %v8445
      %9837 = vmatpush.bf16.msra.mxu0 %v8441
      %9838 = vmatpush.bf16.msra.mxu0 %v8437
      %9839 = vmatpush.bf16.msra.mxu0 %v8433
      %9840 = vmatpush.bf16.msra.mxu0 %v8429
      %9841 = vmatpush.bf16.msra.mxu0 %v8425
      %9842 = vmatpush.bf16.msra.mxu0 %v8421
      %9843 = vmatpush.bf16.msra.mxu0 %v8417
      %9844 = vmatmul.bf16.gmra.mxu0 %v6310
      %v9845 = vpop.f32.mrf.mxu0
      %v9846 = vadd.f32 %v9833, %v9845
      %v9847 = vpop.f32.mrf.mxu0
      %9848 = vdwg.mxu0
      %9849 = vmatpush.bf16.msra.mxu0 %v8477
      %9850 = vmatpush.bf16.msra.mxu0 %v8473
      %9851 = vmatpush.bf16.msra.mxu0 %v8469
      %9852 = vmatpush.bf16.msra.mxu0 %v8465
      %9853 = vmatpush.bf16.msra.mxu0 %v8461
      %9854 = vmatpush.bf16.msra.mxu0 %v8457
      %9855 = vmatpush.bf16.msra.mxu0 %v8453
      %9856 = vmatpush.bf16.msra.mxu0 %v8449
      %9857 = vmatmul.bf16.gmra.mxu0 %v6311
      %v9858 = vpop.f32.mrf.mxu0
      %v9859 = vadd.f32 %v9846, %v9858
      %v9860 = vpop.f32.mrf.mxu0
      %9861 = vdwg.mxu0
      %9862 = vmatpush.bf16.msra.mxu0 %v8509
      %9863 = vmatpush.bf16.msra.mxu0 %v8505
      %9864 = vmatpush.bf16.msra.mxu0 %v8501
      %9865 = vmatpush.bf16.msra.mxu0 %v8497
      %9866 = vmatpush.bf16.msra.mxu0 %v8493
      %9867 = vmatpush.bf16.msra.mxu0 %v8489
      %9868 = vmatpush.bf16.msra.mxu0 %v8485
      %9869 = vmatpush.bf16.msra.mxu0 %v8481
      %9870 = vmatmul.bf16.gmra.mxu0 %v6312
      %v9871 = vpop.f32.mrf.mxu0
      %v9872 = vadd.f32 %v9859, %v9871
      %v9873 = vpop.f32.mrf.mxu0
      %9874 = vdwg.mxu0
      %9875 = vmatpush.bf16.msra.mxu0 %v8541
      %9876 = vmatpush.bf16.msra.mxu0 %v8537
      %9877 = vmatpush.bf16.msra.mxu0 %v8533
      %9878 = vmatpush.bf16.msra.mxu0 %v8529
      %9879 = vmatpush.bf16.msra.mxu0 %v8525
      %9880 = vmatpush.bf16.msra.mxu0 %v8521
      %9881 = vmatpush.bf16.msra.mxu0 %v8517
      %9882 = vmatpush.bf16.msra.mxu0 %v8513
      %9883 = vmatmul.bf16.gmra.mxu0 %v6313
      %v9884 = vpop.f32.mrf.mxu0
      %v9885 = vadd.f32 %v9872, %v9884
      %v9886 = vpop.f32.mrf.mxu0
      %9887 = vdwg.mxu0
      %9888 = vmatpush.bf16.msra.mxu0 %v8573
      %9889 = vmatpush.bf16.msra.mxu0 %v8569
      %9890 = vmatpush.bf16.msra.mxu0 %v8565
      %9891 = vmatpush.bf16.msra.mxu0 %v8561
      %9892 = vmatpush.bf16.msra.mxu0 %v8557
      %9893 = vmatpush.bf16.msra.mxu0 %v8553
      %9894 = vmatpush.bf16.msra.mxu0 %v8549
      %9895 = vmatpush.bf16.msra.mxu0 %v8545
      %9896 = vmatmul.bf16.gmra.mxu0 %v6314
      %v9897 = vpop.f32.mrf.mxu0
      %v9898 = vadd.f32 %v9885, %v9897
      %v9899 = vpop.f32.mrf.mxu0
      %9900 = vdwg.mxu0
      %9901 = vmatpush.bf16.msra.mxu0 %v8605
      %9902 = vmatpush.bf16.msra.mxu0 %v8601
      %9903 = vmatpush.bf16.msra.mxu0 %v8597
      %9904 = vmatpush.bf16.msra.mxu0 %v8593
      %9905 = vmatpush.bf16.msra.mxu0 %v8589
      %9906 = vmatpush.bf16.msra.mxu0 %v8585
      %9907 = vmatpush.bf16.msra.mxu0 %v8581
      %9908 = vmatpush.bf16.msra.mxu0 %v8577
      %9909 = vmatmul.bf16.gmra.mxu0 %v6315
      %v9910 = vpop.f32.mrf.mxu0
      %v9911 = vadd.f32 %v9898, %v9910
      %v9912 = vpop.f32.mrf.mxu0
      %9913 = vdwg.mxu0
      %9914 = vmatpush.bf16.msra.mxu0 %v8637
      %9915 = vmatpush.bf16.msra.mxu0 %v8633
      %9916 = vmatpush.bf16.msra.mxu0 %v8629
      %9917 = vmatpush.bf16.msra.mxu0 %v8625
      %9918 = vmatpush.bf16.msra.mxu0 %v8621
      %9919 = vmatpush.bf16.msra.mxu0 %v8617
      %9920 = vmatpush.bf16.msra.mxu0 %v8613
      %9921 = vmatpush.bf16.msra.mxu0 %v8609
      %9922 = vmatmul.bf16.gmra.mxu0 %v6316
      %v9923 = vpop.f32.mrf.mxu0
      %v9924 = vadd.f32 %v9911, %v9923
      %v9925 = vpop.f32.mrf.mxu0
      %9926 = vdwg.mxu0
      %9927 = vmatpush.bf16.msra.mxu0 %v8669
      %9928 = vmatpush.bf16.msra.mxu0 %v8665
      %9929 = vmatpush.bf16.msra.mxu0 %v8661
      %9930 = vmatpush.bf16.msra.mxu0 %v8657
      %9931 = vmatpush.bf16.msra.mxu0 %v8653
      %9932 = vmatpush.bf16.msra.mxu0 %v8649
      %9933 = vmatpush.bf16.msra.mxu0 %v8645
      %9934 = vmatpush.bf16.msra.mxu0 %v8641
      %9935 = vmatmul.bf16.gmra.mxu0 %v6317
      %v9936 = vpop.f32.mrf.mxu0
      %v9937 = vadd.f32 %v9924, %v9936
      %v9938 = vpop.f32.mrf.mxu0
      %9939 = vdwg.mxu0
      %9940 = vmatpush.bf16.msra.mxu0 %v8701
      %9941 = vmatpush.bf16.msra.mxu0 %v8697
      %9942 = vmatpush.bf16.msra.mxu0 %v8693
      %9943 = vmatpush.bf16.msra.mxu0 %v8689
      %9944 = vmatpush.bf16.msra.mxu0 %v8685
      %9945 = vmatpush.bf16.msra.mxu0 %v8681
      %9946 = vmatpush.bf16.msra.mxu0 %v8677
      %9947 = vmatpush.bf16.msra.mxu0 %v8673
      %9948 = vmatmul.bf16.gmra.mxu0 %v6318
      %v9949 = vpop.f32.mrf.mxu0
      %v9950 = vadd.f32 %v9937, %v9949
      %v9951 = vpop.f32.mrf.mxu0
      %9952 = vdwg.mxu0
      %9953 = vmatpush.bf16.msra.mxu0 %v8733
      %9954 = vmatpush.bf16.msra.mxu0 %v8729
      %9955 = vmatpush.bf16.msra.mxu0 %v8725
      %9956 = vmatpush.bf16.msra.mxu0 %v8721
      %9957 = vmatpush.bf16.msra.mxu0 %v8717
      %9958 = vmatpush.bf16.msra.mxu0 %v8713
      %9959 = vmatpush.bf16.msra.mxu0 %v8709
      %9960 = vmatpush.bf16.msra.mxu0 %v8705
      %9961 = vmatmul.bf16.gmra.mxu0 %v6319
      %v9962 = vpop.f32.mrf.mxu0
      %v9963 = vadd.f32 %v9950, %v9962
      %v9964 = vpop.f32.mrf.mxu0
      %9965 = vdwg.mxu0
      %9966 = vmatpush.bf16.msra.mxu0 %v8765
      %9967 = vmatpush.bf16.msra.mxu0 %v8761
      %9968 = vmatpush.bf16.msra.mxu0 %v8757
      %9969 = vmatpush.bf16.msra.mxu0 %v8753
      %9970 = vmatpush.bf16.msra.mxu0 %v8749
      %9971 = vmatpush.bf16.msra.mxu0 %v8745
      %9972 = vmatpush.bf16.msra.mxu0 %v8741
      %9973 = vmatpush.bf16.msra.mxu0 %v8737
      %9974 = vmatmul.bf16.gmra.mxu0 %v6320
      %v9975 = vpop.f32.mrf.mxu0
      %v9976 = vadd.f32 %v9963, %v9975
      %v9977 = vpop.f32.mrf.mxu0
      %9978 = vdwg.mxu0
      %9979 = vmatpush.bf16.msra.mxu0 %v8797
      %9980 = vmatpush.bf16.msra.mxu0 %v8793
      %9981 = vmatpush.bf16.msra.mxu0 %v8789
      %9982 = vmatpush.bf16.msra.mxu0 %v8785
      %9983 = vmatpush.bf16.msra.mxu0 %v8781
      %9984 = vmatpush.bf16.msra.mxu0 %v8777
      %9985 = vmatpush.bf16.msra.mxu0 %v8773
      %9986 = vmatpush.bf16.msra.mxu0 %v8769
      %9987 = vmatmul.bf16.gmra.mxu0 %v6321
      %v9988 = vpop.f32.mrf.mxu0
      %v9989 = vadd.f32 %v9976, %v9988
      %v9990 = vpop.f32.mrf.mxu0
      %9991 = vdwg.mxu0
      %9992 = vmatpush.bf16.msra.mxu0 %v8829
      %9993 = vmatpush.bf16.msra.mxu0 %v8825
      %9994 = vmatpush.bf16.msra.mxu0 %v8821
      %9995 = vmatpush.bf16.msra.mxu0 %v8817
      %9996 = vmatpush.bf16.msra.mxu0 %v8813
      %9997 = vmatpush.bf16.msra.mxu0 %v8809
      %9998 = vmatpush.bf16.msra.mxu0 %v8805
      %9999 = vmatpush.bf16.msra.mxu0 %v8801
      %10000 = vmatmul.bf16.gmra.mxu0 %v6322
      %v10001 = vpop.f32.mrf.mxu0
      %v10002 = vadd.f32 %v9989, %v10001
      %v10003 = vpop.f32.mrf.mxu0
      %10004 = vdwg.mxu0
      %10005 = vmatpush.bf16.msra.mxu0 %v8861
      %10006 = vmatpush.bf16.msra.mxu0 %v8857
      %10007 = vmatpush.bf16.msra.mxu0 %v8853
      %10008 = vmatpush.bf16.msra.mxu0 %v8849
      %10009 = vmatpush.bf16.msra.mxu0 %v8845
      %10010 = vmatpush.bf16.msra.mxu0 %v8841
      %10011 = vmatpush.bf16.msra.mxu0 %v8837
      %10012 = vmatpush.bf16.msra.mxu0 %v8833
      %10013 = vmatmul.bf16.gmra.mxu0 %v6323
      %v10014 = vpop.f32.mrf.mxu0
      %v10015 = vadd.f32 %v10002, %v10014
      %v10016 = vpop.f32.mrf.mxu0
      %10017 = vdwg.mxu0
      %10018 = vmatpush.bf16.msra.mxu0 %v8893
      %10019 = vmatpush.bf16.msra.mxu0 %v8889
      %10020 = vmatpush.bf16.msra.mxu0 %v8885
      %10021 = vmatpush.bf16.msra.mxu0 %v8881
      %10022 = vmatpush.bf16.msra.mxu0 %v8877
      %10023 = vmatpush.bf16.msra.mxu0 %v8873
      %10024 = vmatpush.bf16.msra.mxu0 %v8869
      %10025 = vmatpush.bf16.msra.mxu0 %v8865
      %10026 = vmatmul.bf16.gmra.mxu0 %v6324
      %v10027 = vpop.f32.mrf.mxu0
      %v10028 = vadd.f32 %v10015, %v10027
      %v10029 = vpop.f32.mrf.mxu0
      %10030 = vdwg.mxu0
      %10031 = vmatpush.bf16.msra.mxu0 %v8414
      %10032 = vmatpush.bf16.msra.mxu0 %v8410
      %10033 = vmatpush.bf16.msra.mxu0 %v8406
      %10034 = vmatpush.bf16.msra.mxu0 %v8402
      %10035 = vmatpush.bf16.msra.mxu0 %v8398
      %10036 = vmatpush.bf16.msra.mxu0 %v8394
      %10037 = vmatpush.bf16.msra.mxu0 %v8390
      %10038 = vmatpush.bf16.msra.mxu0 %v8386
      %10039 = vmatmul.bf16.gmra.mxu0 %v6309
      %v10040 = vpop.f32.mrf.mxu0
      %v10041 = vadd.f32 %v6842, %v10040
      %v10042 = vpop.f32.mrf.mxu0
      %10043 = vdwg.mxu0
      %10044 = vmatpush.bf16.msra.mxu0 %v8446
      %10045 = vmatpush.bf16.msra.mxu0 %v8442
      %10046 = vmatpush.bf16.msra.mxu0 %v8438
      %10047 = vmatpush.bf16.msra.mxu0 %v8434
      %10048 = vmatpush.bf16.msra.mxu0 %v8430
      %10049 = vmatpush.bf16.msra.mxu0 %v8426
      %10050 = vmatpush.bf16.msra.mxu0 %v8422
      %10051 = vmatpush.bf16.msra.mxu0 %v8418
      %10052 = vmatmul.bf16.gmra.mxu0 %v6310
      %v10053 = vpop.f32.mrf.mxu0
      %v10054 = vadd.f32 %v10041, %v10053
      %v10055 = vpop.f32.mrf.mxu0
      %10056 = vdwg.mxu0
      %10057 = vmatpush.bf16.msra.mxu0 %v8478
      %10058 = vmatpush.bf16.msra.mxu0 %v8474
      %10059 = vmatpush.bf16.msra.mxu0 %v8470
      %10060 = vmatpush.bf16.msra.mxu0 %v8466
      %10061 = vmatpush.bf16.msra.mxu0 %v8462
      %10062 = vmatpush.bf16.msra.mxu0 %v8458
      %10063 = vmatpush.bf16.msra.mxu0 %v8454
      %10064 = vmatpush.bf16.msra.mxu0 %v8450
      %10065 = vmatmul.bf16.gmra.mxu0 %v6311
      %v10066 = vpop.f32.mrf.mxu0
      %v10067 = vadd.f32 %v10054, %v10066
      %v10068 = vpop.f32.mrf.mxu0
      %10069 = vdwg.mxu0
      %10070 = vmatpush.bf16.msra.mxu0 %v8510
      %10071 = vmatpush.bf16.msra.mxu0 %v8506
      %10072 = vmatpush.bf16.msra.mxu0 %v8502
      %10073 = vmatpush.bf16.msra.mxu0 %v8498
      %10074 = vmatpush.bf16.msra.mxu0 %v8494
      %10075 = vmatpush.bf16.msra.mxu0 %v8490
      %10076 = vmatpush.bf16.msra.mxu0 %v8486
      %10077 = vmatpush.bf16.msra.mxu0 %v8482
      %10078 = vmatmul.bf16.gmra.mxu0 %v6312
      %v10079 = vpop.f32.mrf.mxu0
      %v10080 = vadd.f32 %v10067, %v10079
      %v10081 = vpop.f32.mrf.mxu0
      %10082 = vdwg.mxu0
      %10083 = vmatpush.bf16.msra.mxu0 %v8542
      %10084 = vmatpush.bf16.msra.mxu0 %v8538
      %10085 = vmatpush.bf16.msra.mxu0 %v8534
      %10086 = vmatpush.bf16.msra.mxu0 %v8530
      %10087 = vmatpush.bf16.msra.mxu0 %v8526
      %10088 = vmatpush.bf16.msra.mxu0 %v8522
      %10089 = vmatpush.bf16.msra.mxu0 %v8518
      %10090 = vmatpush.bf16.msra.mxu0 %v8514
      %10091 = vmatmul.bf16.gmra.mxu0 %v6313
      %v10092 = vpop.f32.mrf.mxu0
      %v10093 = vadd.f32 %v10080, %v10092
      %v10094 = vpop.f32.mrf.mxu0
      %10095 = vdwg.mxu0
      %10096 = vmatpush.bf16.msra.mxu0 %v8574
      %10097 = vmatpush.bf16.msra.mxu0 %v8570
      %10098 = vmatpush.bf16.msra.mxu0 %v8566
      %10099 = vmatpush.bf16.msra.mxu0 %v8562
      %10100 = vmatpush.bf16.msra.mxu0 %v8558
      %10101 = vmatpush.bf16.msra.mxu0 %v8554
      %10102 = vmatpush.bf16.msra.mxu0 %v8550
      %10103 = vmatpush.bf16.msra.mxu0 %v8546
      %10104 = vmatmul.bf16.gmra.mxu0 %v6314
      %v10105 = vpop.f32.mrf.mxu0
      %v10106 = vadd.f32 %v10093, %v10105
      %v10107 = vpop.f32.mrf.mxu0
      %10108 = vdwg.mxu0
      %10109 = vmatpush.bf16.msra.mxu0 %v8606
      %10110 = vmatpush.bf16.msra.mxu0 %v8602
      %10111 = vmatpush.bf16.msra.mxu0 %v8598
      %10112 = vmatpush.bf16.msra.mxu0 %v8594
      %10113 = vmatpush.bf16.msra.mxu0 %v8590
      %10114 = vmatpush.bf16.msra.mxu0 %v8586
      %10115 = vmatpush.bf16.msra.mxu0 %v8582
      %10116 = vmatpush.bf16.msra.mxu0 %v8578
      %10117 = vmatmul.bf16.gmra.mxu0 %v6315
      %v10118 = vpop.f32.mrf.mxu0
      %v10119 = vadd.f32 %v10106, %v10118
      %v10120 = vpop.f32.mrf.mxu0
      %10121 = vdwg.mxu0
      %10122 = vmatpush.bf16.msra.mxu0 %v8638
      %10123 = vmatpush.bf16.msra.mxu0 %v8634
      %10124 = vmatpush.bf16.msra.mxu0 %v8630
      %10125 = vmatpush.bf16.msra.mxu0 %v8626
      %10126 = vmatpush.bf16.msra.mxu0 %v8622
      %10127 = vmatpush.bf16.msra.mxu0 %v8618
      %10128 = vmatpush.bf16.msra.mxu0 %v8614
      %10129 = vmatpush.bf16.msra.mxu0 %v8610
      %10130 = vmatmul.bf16.gmra.mxu0 %v6316
      %v10131 = vpop.f32.mrf.mxu0
      %v10132 = vadd.f32 %v10119, %v10131
      %v10133 = vpop.f32.mrf.mxu0
      %10134 = vdwg.mxu0
      %10135 = vmatpush.bf16.msra.mxu0 %v8670
      %10136 = vmatpush.bf16.msra.mxu0 %v8666
      %10137 = vmatpush.bf16.msra.mxu0 %v8662
      %10138 = vmatpush.bf16.msra.mxu0 %v8658
      %10139 = vmatpush.bf16.msra.mxu0 %v8654
      %10140 = vmatpush.bf16.msra.mxu0 %v8650
      %10141 = vmatpush.bf16.msra.mxu0 %v8646
      %10142 = vmatpush.bf16.msra.mxu0 %v8642
      %10143 = vmatmul.bf16.gmra.mxu0 %v6317
      %v10144 = vpop.f32.mrf.mxu0
      %v10145 = vadd.f32 %v10132, %v10144
      %v10146 = vpop.f32.mrf.mxu0
      %10147 = vdwg.mxu0
      %10148 = vmatpush.bf16.msra.mxu0 %v8702
      %10149 = vmatpush.bf16.msra.mxu0 %v8698
      %10150 = vmatpush.bf16.msra.mxu0 %v8694
      %10151 = vmatpush.bf16.msra.mxu0 %v8690
      %10152 = vmatpush.bf16.msra.mxu0 %v8686
      %10153 = vmatpush.bf16.msra.mxu0 %v8682
      %10154 = vmatpush.bf16.msra.mxu0 %v8678
      %10155 = vmatpush.bf16.msra.mxu0 %v8674
      %10156 = vmatmul.bf16.gmra.mxu0 %v6318
      %v10157 = vpop.f32.mrf.mxu0
      %v10158 = vadd.f32 %v10145, %v10157
      %v10159 = vpop.f32.mrf.mxu0
      %10160 = vdwg.mxu0
      %10161 = vmatpush.bf16.msra.mxu0 %v8734
      %10162 = vmatpush.bf16.msra.mxu0 %v8730
      %10163 = vmatpush.bf16.msra.mxu0 %v8726
      %10164 = vmatpush.bf16.msra.mxu0 %v8722
      %10165 = vmatpush.bf16.msra.mxu0 %v8718
      %10166 = vmatpush.bf16.msra.mxu0 %v8714
      %10167 = vmatpush.bf16.msra.mxu0 %v8710
      %10168 = vmatpush.bf16.msra.mxu0 %v8706
      %10169 = vmatmul.bf16.gmra.mxu0 %v6319
      %v10170 = vpop.f32.mrf.mxu0
      %v10171 = vadd.f32 %v10158, %v10170
      %v10172 = vpop.f32.mrf.mxu0
      %10173 = vdwg.mxu0
      %10174 = vmatpush.bf16.msra.mxu0 %v8766
      %10175 = vmatpush.bf16.msra.mxu0 %v8762
      %10176 = vmatpush.bf16.msra.mxu0 %v8758
      %10177 = vmatpush.bf16.msra.mxu0 %v8754
      %10178 = vmatpush.bf16.msra.mxu0 %v8750
      %10179 = vmatpush.bf16.msra.mxu0 %v8746
      %10180 = vmatpush.bf16.msra.mxu0 %v8742
      %10181 = vmatpush.bf16.msra.mxu0 %v8738
      %10182 = vmatmul.bf16.gmra.mxu0 %v6320
      %v10183 = vpop.f32.mrf.mxu0
      %v10184 = vadd.f32 %v10171, %v10183
      %v10185 = vpop.f32.mrf.mxu0
      %10186 = vdwg.mxu0
      %10187 = vmatpush.bf16.msra.mxu0 %v8798
      %10188 = vmatpush.bf16.msra.mxu0 %v8794
      %10189 = vmatpush.bf16.msra.mxu0 %v8790
      %10190 = vmatpush.bf16.msra.mxu0 %v8786
      %10191 = vmatpush.bf16.msra.mxu0 %v8782
      %10192 = vmatpush.bf16.msra.mxu0 %v8778
      %10193 = vmatpush.bf16.msra.mxu0 %v8774
      %10194 = vmatpush.bf16.msra.mxu0 %v8770
      %10195 = vmatmul.bf16.gmra.mxu0 %v6321
      %v10196 = vpop.f32.mrf.mxu0
      %v10197 = vadd.f32 %v10184, %v10196
      %v10198 = vpop.f32.mrf.mxu0
      %10199 = vdwg.mxu0
      %10200 = vmatpush.bf16.msra.mxu0 %v8830
      %10201 = vmatpush.bf16.msra.mxu0 %v8826
      %10202 = vmatpush.bf16.msra.mxu0 %v8822
      %10203 = vmatpush.bf16.msra.mxu0 %v8818
      %10204 = vmatpush.bf16.msra.mxu0 %v8814
      %10205 = vmatpush.bf16.msra.mxu0 %v8810
      %10206 = vmatpush.bf16.msra.mxu0 %v8806
      %10207 = vmatpush.bf16.msra.mxu0 %v8802
      %10208 = vmatmul.bf16.gmra.mxu0 %v6322
      %v10209 = vpop.f32.mrf.mxu0
      %v10210 = vadd.f32 %v10197, %v10209
      %v10211 = vpop.f32.mrf.mxu0
      %10212 = vdwg.mxu0
      %10213 = vmatpush.bf16.msra.mxu0 %v8862
      %10214 = vmatpush.bf16.msra.mxu0 %v8858
      %10215 = vmatpush.bf16.msra.mxu0 %v8854
      %10216 = vmatpush.bf16.msra.mxu0 %v8850
      %10217 = vmatpush.bf16.msra.mxu0 %v8846
      %10218 = vmatpush.bf16.msra.mxu0 %v8842
      %10219 = vmatpush.bf16.msra.mxu0 %v8838
      %10220 = vmatpush.bf16.msra.mxu0 %v8834
      %10221 = vmatmul.bf16.gmra.mxu0 %v6323
      %v10222 = vpop.f32.mrf.mxu0
      %v10223 = vadd.f32 %v10210, %v10222
      %v10224 = vpop.f32.mrf.mxu0
      %10225 = vdwg.mxu0
      %10226 = vmatpush.bf16.msra.mxu0 %v8894
      %10227 = vmatpush.bf16.msra.mxu0 %v8890
      %10228 = vmatpush.bf16.msra.mxu0 %v8886
      %10229 = vmatpush.bf16.msra.mxu0 %v8882
      %10230 = vmatpush.bf16.msra.mxu0 %v8878
      %10231 = vmatpush.bf16.msra.mxu0 %v8874
      %10232 = vmatpush.bf16.msra.mxu0 %v8870
      %10233 = vmatpush.bf16.msra.mxu0 %v8866
      %10234 = vmatmul.bf16.gmra.mxu0 %v6324
      %v10235 = vpop.f32.mrf.mxu0
      %v10236 = vadd.f32 %v10223, %v10235
      %v10237 = vpop.f32.mrf.mxu0
      %10238 = vdwg.mxu0
      %v10239 = vmax.f32 %v9612, 0.0
      %v10240 = vmax.f32 %v9820, 0.0
      %v10241 = vmax.f32 %v10028, 0.0
      %v10242 = vmax.f32 %v10236, 0.0
      %v10243 = vpack.c.bf16 %v10239, %v10239
      %v10244 = vpack.c.bf16 %v10240, %v10240
      %v10245 = vpack.c.bf16 %v10241, %v10241
      %v10246 = vpack.c.bf16 %v10242, %v10242
      %v10247 = vld [vmem:[%s6] sm:$0xf]
      %v10248 = vld [vmem:[%s6 + $0x4] sm:$0xf]
      %v10249 = vld [vmem:[%s6 + $0x8] sm:$0xf]
      %v10250 = vld [vmem:[%s6 + $0xc] sm:$0xf]
      %v10251 = vld [vmem:[%s6 + $0x10] sm:$0xf]
      %v10252 = vld [vmem:[%s6 + $0x14] sm:$0xf]
      %v10253 = vld [vmem:[%s6 + $0x18] sm:$0xf]
      %v10254 = vld [vmem:[%s6 + $0x1c] sm:$0xf]
      %v10255 = vld [vmem:[%s6 + $0x20] sm:$0xf]
      %v10256 = vld [vmem:[%s6 + $0x24] sm:$0xf]
      %v10257 = vld [vmem:[%s6 + $0x28] sm:$0xf]
      %v10258 = vld [vmem:[%s6 + $0x2c] sm:$0xf]
      %v10259 = vld [vmem:[%s6 + $0x30] sm:$0xf]
      %v10260 = vld [vmem:[%s6 + $0x34] sm:$0xf]
      %v10261 = vld [vmem:[%s6 + $0x38] sm:$0xf]
      %v10262 = vld [vmem:[%s6 + $0x3c] sm:$0xf]
      %v10263 = vld [vmem:[%s6 + $0x40] sm:$0xf]
      %v10264 = vld [vmem:[%s6 + $0x44] sm:$0xf]
      %v10265 = vld [vmem:[%s6 + $0x48] sm:$0xf]
      %v10266 = vld [vmem:[%s6 + $0x4c] sm:$0xf]
      %v10267 = vld [vmem:[%s6 + $0x50] sm:$0xf]
      %v10268 = vld [vmem:[%s6 + $0x54] sm:$0xf]
      %v10269 = vld [vmem:[%s6 + $0x58] sm:$0xf]
      %v10270 = vld [vmem:[%s6 + $0x5c] sm:$0xf]
      %v10271 = vld [vmem:[%s6 + $0x60] sm:$0xf]
      %v10272 = vld [vmem:[%s6 + $0x64] sm:$0xf]
      %v10273 = vld [vmem:[%s6 + $0x68] sm:$0xf]
      %v10274 = vld [vmem:[%s6 + $0x6c] sm:$0xf]
      %v10275 = vld [vmem:[%s6 + $0x70] sm:$0xf]
      %v10276 = vld [vmem:[%s6 + $0x74] sm:$0xf]
      %v10277 = vld [vmem:[%s6 + $0x78] sm:$0xf]
      %v10278 = vld [vmem:[%s6 + $0x7c] sm:$0xf]
      %v10279 = vld [vmem:[%s6 + $0x80] sm:$0xf]
      %v10280 = vld [vmem:[%s6 + $0x84] sm:$0xf]
      %v10281 = vld [vmem:[%s6 + $0x88] sm:$0xf]
      %v10282 = vld [vmem:[%s6 + $0x8c] sm:$0xf]
      %v10283 = vld [vmem:[%s6 + $0x90] sm:$0xf]
      %v10284 = vld [vmem:[%s6 + $0x94] sm:$0xf]
      %v10285 = vld [vmem:[%s6 + $0x98] sm:$0xf]
      %v10286 = vld [vmem:[%s6 + $0x9c] sm:$0xf]
      %v10287 = vld [vmem:[%s6 + $0xa0] sm:$0xf]
      %v10288 = vld [vmem:[%s6 + $0xa4] sm:$0xf]
      %v10289 = vld [vmem:[%s6 + $0xa8] sm:$0xf]
      %v10290 = vld [vmem:[%s6 + $0xac] sm:$0xf]
      %v10291 = vld [vmem:[%s6 + $0xb0] sm:$0xf]
      %v10292 = vld [vmem:[%s6 + $0xb4] sm:$0xf]
      %v10293 = vld [vmem:[%s6 + $0xb8] sm:$0xf]
      %v10294 = vld [vmem:[%s6 + $0xbc] sm:$0xf]
      %v10295 = vld [vmem:[%s6 + $0xc0] sm:$0xf]
      %v10296 = vld [vmem:[%s6 + $0xc4] sm:$0xf]
      %v10297 = vld [vmem:[%s6 + $0xc8] sm:$0xf]
      %v10298 = vld [vmem:[%s6 + $0xcc] sm:$0xf]
      %v10299 = vld [vmem:[%s6 + $0xd0] sm:$0xf]
      %v10300 = vld [vmem:[%s6 + $0xd4] sm:$0xf]
      %v10301 = vld [vmem:[%s6 + $0xd8] sm:$0xf]
      %v10302 = vld [vmem:[%s6 + $0xdc] sm:$0xf]
      %v10303 = vld [vmem:[%s6 + $0xe0] sm:$0xf]
      %v10304 = vld [vmem:[%s6 + $0xe4] sm:$0xf]
      %v10305 = vld [vmem:[%s6 + $0xe8] sm:$0xf]
      %v10306 = vld [vmem:[%s6 + $0xec] sm:$0xf]
      %v10307 = vld [vmem:[%s6 + $0xf0] sm:$0xf]
      %v10308 = vld [vmem:[%s6 + $0xf4] sm:$0xf]
      %v10309 = vld [vmem:[%s6 + $0xf8] sm:$0xf]
      %v10310 = vld [vmem:[%s6 + $0xfc] sm:$0xf]
      %v10311 = vld [vmem:[#allocation15] sm:$0x1]
      %v10313 = vperm.slane %v10311, 0
      %v10379 = vunpack.c.l.b16 %v10247
      %v10380 = vunpack.c.l.b16 %v10248
      %v10381 = vunpack.c.l.b16 %v10249
      %v10382 = vunpack.c.l.b16 %v10250
      %v10383 = vunpack.c.l.b16 %v10251
      %v10384 = vunpack.c.l.b16 %v10252
      %v10385 = vunpack.c.l.b16 %v10253
      %v10386 = vunpack.c.l.b16 %v10254
      %v10387 = vunpack.c.l.b16 %v10255
      %v10388 = vunpack.c.l.b16 %v10256
      %v10389 = vunpack.c.l.b16 %v10257
      %v10390 = vunpack.c.l.b16 %v10258
      %v10391 = vunpack.c.l.b16 %v10259
      %v10392 = vunpack.c.l.b16 %v10260
      %v10393 = vunpack.c.l.b16 %v10261
      %v10394 = vunpack.c.l.b16 %v10262
      %v10395 = vunpack.c.l.b16 %v10263
      %v10396 = vunpack.c.l.b16 %v10264
      %v10397 = vunpack.c.l.b16 %v10265
      %v10398 = vunpack.c.l.b16 %v10266
      %v10399 = vunpack.c.l.b16 %v10267
      %v10400 = vunpack.c.l.b16 %v10268
      %v10401 = vunpack.c.l.b16 %v10269
      %v10402 = vunpack.c.l.b16 %v10270
      %v10403 = vunpack.c.l.b16 %v10271
      %v10404 = vunpack.c.l.b16 %v10272
      %v10405 = vunpack.c.l.b16 %v10273
      %v10406 = vunpack.c.l.b16 %v10274
      %v10407 = vunpack.c.l.b16 %v10275
      %v10408 = vunpack.c.l.b16 %v10276
      %v10409 = vunpack.c.l.b16 %v10277
      %v10410 = vunpack.c.l.b16 %v10278
      %v10411 = vunpack.c.l.b16 %v10279
      %v10412 = vunpack.c.l.b16 %v10280
      %v10413 = vunpack.c.l.b16 %v10281
      %v10414 = vunpack.c.l.b16 %v10282
      %v10415 = vunpack.c.l.b16 %v10283
      %v10416 = vunpack.c.l.b16 %v10284
      %v10417 = vunpack.c.l.b16 %v10285
      %v10418 = vunpack.c.l.b16 %v10286
      %v10419 = vunpack.c.l.b16 %v10287
      %v10420 = vunpack.c.l.b16 %v10288
      %v10421 = vunpack.c.l.b16 %v10289
      %v10422 = vunpack.c.l.b16 %v10290
      %v10423 = vunpack.c.l.b16 %v10291
      %v10424 = vunpack.c.l.b16 %v10292
      %v10425 = vunpack.c.l.b16 %v10293
      %v10426 = vunpack.c.l.b16 %v10294
      %v10427 = vunpack.c.l.b16 %v10295
      %v10428 = vunpack.c.l.b16 %v10296
      %v10429 = vunpack.c.l.b16 %v10297
      %v10430 = vunpack.c.l.b16 %v10298
      %v10431 = vunpack.c.l.b16 %v10299
      %v10432 = vunpack.c.l.b16 %v10300
      %v10433 = vunpack.c.l.b16 %v10301
      %v10434 = vunpack.c.l.b16 %v10302
      %v10435 = vunpack.c.l.b16 %v10303
      %v10436 = vunpack.c.l.b16 %v10304
      %v10437 = vunpack.c.l.b16 %v10305
      %v10438 = vunpack.c.l.b16 %v10306
      %v10439 = vunpack.c.l.b16 %v10307
      %v10440 = vunpack.c.l.b16 %v10308
      %v10441 = vunpack.c.l.b16 %v10309
      %v10442 = vunpack.c.l.b16 %v10310
      %v10443 = vpack.c.b16 %v10380, %v10379
      %v10444 = vpack.c.b16 %v10382, %v10381
      %v10445 = vpack.c.b16 %v10384, %v10383
      %v10446 = vpack.c.b16 %v10386, %v10385
      %v10447 = vpack.c.b16 %v10388, %v10387
      %v10448 = vpack.c.b16 %v10390, %v10389
      %v10449 = vpack.c.b16 %v10392, %v10391
      %v10450 = vpack.c.b16 %v10394, %v10393
      %v10451 = vpack.c.b16 %v10396, %v10395
      %v10452 = vpack.c.b16 %v10398, %v10397
      %v10453 = vpack.c.b16 %v10400, %v10399
      %v10454 = vpack.c.b16 %v10402, %v10401
      %v10455 = vpack.c.b16 %v10404, %v10403
      %v10456 = vpack.c.b16 %v10406, %v10405
      %v10457 = vpack.c.b16 %v10408, %v10407
      %v10458 = vpack.c.b16 %v10410, %v10409
      %v10459 = vpack.c.b16 %v10412, %v10411
      %v10460 = vpack.c.b16 %v10414, %v10413
      %v10461 = vpack.c.b16 %v10416, %v10415
      %v10462 = vpack.c.b16 %v10418, %v10417
      %v10463 = vpack.c.b16 %v10420, %v10419
      %v10464 = vpack.c.b16 %v10422, %v10421
      %v10465 = vpack.c.b16 %v10424, %v10423
      %v10466 = vpack.c.b16 %v10426, %v10425
      %v10467 = vpack.c.b16 %v10428, %v10427
      %v10468 = vpack.c.b16 %v10430, %v10429
      %v10469 = vpack.c.b16 %v10432, %v10431
      %v10470 = vpack.c.b16 %v10434, %v10433
      %v10471 = vpack.c.b16 %v10436, %v10435
      %v10472 = vpack.c.b16 %v10438, %v10437
      %v10473 = vpack.c.b16 %v10440, %v10439
      %v10474 = vpack.c.b16 %v10442, %v10441
      %10507 = vmatpush.bf16.msra.mxu0 %v10450
      %10508 = vmatpush.bf16.msra.mxu0 %v10449
      %10509 = vmatpush.bf16.msra.mxu0 %v10448
      %10510 = vmatpush.bf16.msra.mxu0 %v10447
      %10511 = vmatpush.bf16.msra.mxu0 %v10446
      %10512 = vmatpush.bf16.msra.mxu0 %v10445
      %10513 = vmatpush.bf16.msra.mxu0 %v10444
      %10514 = vmatpush.bf16.msra.mxu0 %v10443
      %10515 = vmatmul.bf16.gmra.mxu0 %v10243
      %v10516 = vpop.f32.mrf.mxu0
      %v10517 = vadd.f32 %v10313, %v10516
      %v10518 = vpop.f32.mrf.mxu0
      %10519 = vdwg.mxu0
      %10520 = vmatpush.bf16.msra.mxu0 %v10458
      %10521 = vmatpush.bf16.msra.mxu0 %v10457
      %10522 = vmatpush.bf16.msra.mxu0 %v10456
      %10523 = vmatpush.bf16.msra.mxu0 %v10455
      %10524 = vmatpush.bf16.msra.mxu0 %v10454
      %10525 = vmatpush.bf16.msra.mxu0 %v10453
      %10526 = vmatpush.bf16.msra.mxu0 %v10452
      %10527 = vmatpush.bf16.msra.mxu0 %v10451
      %10528 = vmatmul.bf16.gmra.mxu0 %v10244
      %v10529 = vpop.f32.mrf.mxu0
      %v10530 = vadd.f32 %v10517, %v10529
      %v10531 = vpop.f32.mrf.mxu0
      %10532 = vdwg.mxu0
      %10533 = vmatpush.bf16.msra.mxu0 %v10466
      %10534 = vmatpush.bf16.msra.mxu0 %v10465
      %10535 = vmatpush.bf16.msra.mxu0 %v10464
      %10536 = vmatpush.bf16.msra.mxu0 %v10463
      %10537 = vmatpush.bf16.msra.mxu0 %v10462
      %10538 = vmatpush.bf16.msra.mxu0 %v10461
      %10539 = vmatpush.bf16.msra.mxu0 %v10460
      %10540 = vmatpush.bf16.msra.mxu0 %v10459
      %10541 = vmatmul.bf16.gmra.mxu0 %v10245
      %v10542 = vpop.f32.mrf.mxu0
      %v10543 = vadd.f32 %v10530, %v10542
      %v10544 = vpop.f32.mrf.mxu0
      %10545 = vdwg.mxu0
      %10546 = vmatpush.bf16.msra.mxu0 %v10474
      %10547 = vmatpush.bf16.msra.mxu0 %v10473
      %10548 = vmatpush.bf16.msra.mxu0 %v10472
      %10549 = vmatpush.bf16.msra.mxu0 %v10471
      %10550 = vmatpush.bf16.msra.mxu0 %v10470
      %10551 = vmatpush.bf16.msra.mxu0 %v10469
      %10552 = vmatpush.bf16.msra.mxu0 %v10468
      %10553 = vmatpush.bf16.msra.mxu0 %v10467
      %10554 = vmatmul.bf16.gmra.mxu0 %v10246
      %v10555 = vpop.f32.mrf.mxu0
      %v10556 = vadd.f32 %v10543, %v10555
      %v10557 = vpop.f32.mrf.mxu0
      %10558 = vdwg.mxu0
      %v10559 = vmax.f32 %v10556, 0.0
      %v10560 = vpack.c.bf16 %v10559, %v10559
      %v10561 = vld [vmem:[%s8] sm:$0xf]
      %v10562 = vld [vmem:[%s8 + $0x4] sm:$0xf]
      %v10563 = vld [vmem:[%s8 + $0x8] sm:$0xf]
      %v10564 = vld [vmem:[%s8 + $0xc] sm:$0xf]
      %v10565 = vld [vmem:[%s8 + $0x10] sm:$0xf]
      %v10566 = vld [vmem:[%s8 + $0x14] sm:$0xf]
      %v10567 = vld [vmem:[%s8 + $0x18] sm:$0xf]
      %v10568 = vld [vmem:[%s8 + $0x1c] sm:$0xf]
      %v10569 = vld [vmem:[#allocation16] sm:$0x1]
      %v10571 = vperm.slane %v10569, 0
      %v10581 = vunpack.c.l.b16 %v10561
      %v10582 = vunpack.c.l.b16 %v10562
      %v10583 = vunpack.c.l.b16 %v10563
      %v10584 = vunpack.c.l.b16 %v10564
      %v10585 = vunpack.c.l.b16 %v10565
      %v10586 = vunpack.c.l.b16 %v10566
      %v10587 = vunpack.c.l.b16 %v10567
      %v10588 = vunpack.c.l.b16 %v10568
      %v10589 = vpack.c.b16 %v10582, %v10581
      %v10590 = vpack.c.b16 %v10584, %v10583
      %v10591 = vpack.c.b16 %v10586, %v10585
      %v10592 = vpack.c.b16 %v10588, %v10587
      %vm10597 = vcmask 523264
      %v10599 = vsel %vm10597, %v10560, 0
      %10601 = vmatpush.bf16.msra.mxu0 0
      %10602 = vmatpush.bf16.msra.mxu0 0
      %10603 = vmatpush.bf16.msra.mxu0 0
      %10604 = vmatpush.bf16.msra.mxu0 0
      %10605 = vmatpush.bf16.msra.mxu0 %v10592
      %10606 = vmatpush.bf16.msra.mxu0 %v10591
      %10607 = vmatpush.bf16.msra.mxu0 %v10590
      %10608 = vmatpush.bf16.msra.mxu0 %v10589
      %10609 = vmatmul.bf16.gmra.mxu0 %v10599
      %v10610 = vpop.f32.mrf.mxu0
      %v10611 = vadd.f32 %v10571, %v10610
      %v10612 = vpop.f32.mrf.mxu0
      %10613 = vdwg.mxu0
      %v10614 = vsel %vm337, %v10611, -inf
      %10615 = vmax.xlane.f32.xlu0 %v10614
      %v10616 = vpop.xlane.xlu0 %10615
      %v10617 = vsub.f32 %v10611, %v10616
      %v10618 = vmul.f32 %v10617, 1.442695
      %v10619 = vpow.pop %v10618
      %v10620 = vsel %vm337, %v10619, 0.0
      %10621 = vadd.xlane.f32.xlu0 %v10620
      %v10622 = vpop.xlane.xlu0 %10621
      %v10623 = vlog2.pop %v10622
      %v10624 = vmul.f32 %v10623, 0.6931472
      %v10625 = vadd.f32 %v10616, %v10624
      %v10626 = vsub.f32 %v10611, %v10625
      %10627 = vst.msk [vmem:[#allocation18] sm:$0x3] %vm337, %v10626
    $region81: #{tpu_custom_call.1} parent=1 // pred_fallthru
      _
    // Predicated region
    $region82: #{tpu_custom_call.1} parent=1 // pred_check
      _
    $region83: #{tpu_custom_call.1} parent=1 // pred_check_branch
      %10629 = sbr.rel (0) target = $region85
    $region84: #{tpu_custom_call.1} parent=1 // pred_region
      %10631 = vsyncadd [#allocation6], 0
      %s10633 = sshll.u32 [#allocation18], 4
      %s10634 = int_to_ptr.vmem [resolvable:$true] %s10633
      %s10635 = sshll.u32 %s10, 4
      %s10636 = int_to_ptr.hbm [resolvable:$true] %s10635
      %10638 = dma.vmem_to_hbm [thread:$0]  %s10634, 32, %s10636, [#allocation6]
    $region85: #{tpu_custom_call.1} parent=1 // pred_fallthru
      _
    // Predicated region
    $region86: #{tpu_custom_call.1} parent=1 // pred_check
      _
    $region87: #{tpu_custom_call.1} parent=1 // pred_check_branch
      %10640 = sbr.rel (0) target = $region89
    $region88: #{tpu_custom_call.1} parent=1 // pred_region
      %10642 = dma.done [#allocation6], 32
    $region89: #{tpu_custom_call.1} parent=1 // pred_fallthru
      _
    %10643 = vsyncpa [#allocation5], 1
    %10644 = vsyncpa [#allocation8], 1
    %10645 = vsyncpa [#allocation11], 1
    %10646 = vsyncpa [#allocation14], 1
    %10647 = vsyncpa [#allocation17], 1
    %10648 = vsyncpa [#allocation6], 1

</llo_original>
